<compile_context>
chip_gen: v7x
topology: tpu7x:2x2x1
jax: 0.10.0
libtpu: 0.0.40
codegen_flags: <defaults>
</compile_context>

<pallas_src>
import functools

import jax
import jax.numpy as jnp
from jax import lax
from jax.experimental import pallas as pl
from jax.experimental.pallas import tpu as pltpu

EPS = 1e-5


# ---------------------------------------------------------------------------
# The fused Inception kernel: one image per grid step.
# ---------------------------------------------------------------------------
def _inception_kernel(x_ref, wq_ref, ep_ref, w1_ref, w2_ref, o_ref, pad_ref,
                      *, h, w, cb):
    # x_ref  : (1, H*W, 96)        bf16  NHWC image, spatially flattened
    # wq_ref : (96, 96)            bf16  all four 96->24 1x1 convs (BN folded)
    # ep_ref : (4, 96)             f32   [quad shift | quad relu floor | lvl1 shift | lvl2 shift]
    # w1_ref : (9, 96, 96)         bf16  level-1 taps: pool(I/9) | b2 pass | 3x3 | 3x3_2
    # w2_ref : (9, 96, 96)         bf16  level-2 taps: 3x3_3 acting on the `t` lanes
    # o_ref  : (1, H*(W+2), 96)    f32   output on the padded-column row grid
    # pad_ref: ((H+3)*(W+2), 96)   bf16  zero-padded, row-flattened halo scratch
    wp = w + 2
    q = h * wp
    ct = 4 * cb

    sq = ep_ref[0:1, :]          # quad shift
    fq = ep_ref[1:2, :]          # quad relu floor (-inf for the pre-pool y1 lanes)
    s1 = ep_ref[2:3, :]          # level-1 shift
    s2 = ep_ref[3:4, :]          # level-2 shift (branch3x3_3 lanes)

    # ---- stage 0: fused quad 1x1 (all four 96->24 reduces, one MXU matmul) ----
    quad = jnp.dot(x_ref[0], wq_ref[...], preferred_element_type=jnp.float32)
    quad = jnp.maximum(quad + sq, fq).astype(jnp.bfloat16)          # (h*w, ct)

    # ---- in-kernel zero padding: scatter into the flattened halo scratch ----
    pad_ref[...] = jnp.zeros(pad_ref.shape, pad_ref.dtype)
    for i in range(h):                                     # static, in-VMEM copies
        pad_ref[pl.ds((i + 1) * wp + 1, w), :] = quad[i * w:(i + 1) * w, :]

    # ---- level 1: 9-tap conv; pool / pass-through / 3x3 / 3x3_2 all folded ----
    # Tap reads are constant sublane-offset loads on the flattened row grid;
    # wrap reads land in zero-pad columns, garbage rows are discarded later.
    acc = jnp.zeros((q, ct), jnp.float32)
    for t in range(9):
        dh, dw = divmod(t, 3)
        tap = pad_ref[pl.ds(dh * wp + dw, q), :]           # (q, ct) bf16
        acc = acc + jnp.dot(tap, w1_ref[t], preferred_element_type=jnp.float32)
    lvl1 = jnp.maximum(acc + s1, 0.0)                      # lanes: [b1 | b2 | b3 | t]

    # ---- repack level-1 valid pixels into the (still zero-bordered) scratch ----
    lvl1_bf = lvl1.astype(jnp.bfloat16)
    for i in range(h):
        pad_ref[pl.ds((i + 1) * wp + 1, w), :] = lvl1_bf[i * wp:i * wp + w, :]

    # ---- level 2: branch3x3_3 over the `t` lanes (weights zero elsewhere) ----
    acc2 = jnp.zeros((q, ct), jnp.float32)
    for t in range(9):
        dh, dw = divmod(t, 3)
        tap = pad_ref[pl.ds(dh * wp + dw, q), :]
        acc2 = acc2 + jnp.dot(tap, w2_ref[t], preferred_element_type=jnp.float32)
    b4 = jnp.maximum(acc2 + s2, 0.0)

    # ---- assemble [b1 | b2 | b3 | b4]: single dense whole-block store ----
    lane = lax.broadcasted_iota(jnp.int32, (q, ct), 1)
    o_ref[0] = jnp.where(lane >= 3 * cb, b4, lvl1)


# ---------------------------------------------------------------------------
# Parameter folding helpers (eval-mode BN folded into conv weights)
# ---------------------------------------------------------------------------
def _fold_bn(wgt, gamma, beta, mean, var, eps=EPS):
    scale = gamma / jnp.sqrt(var + eps)
    return wgt * scale[:, None, None, None], beta - mean * scale


def _w1x1_mat(wf):                 # (Cout, Cin, 1, 1) -> (Cin, Cout)
    return jnp.transpose(wf[:, :, 0, 0], (1, 0))


def _w3x3_taps(wf):                # (Cout, Cin, 3, 3) -> (9, Cin, Cout), tap = 3*kh + kw
    cout, cin = wf.shape[0], wf.shape[1]
    return jnp.transpose(wf, (2, 3, 1, 0)).reshape(9, cin, cout)


# ---------------------------------------------------------------------------
# Full Inception forward (NCHW in / NCHW out, like the PyTorch module)
# ---------------------------------------------------------------------------
@jax.jit
def inception_forward(x_nchw, params):
    n, cin, h, w = x_nchw.shape
    cb = params["branch1x1"][0].shape[0]                   # 24 channels / branch
    ct = 4 * cb                                            # 96 output channels
    folded = {k: _fold_bn(*v) for k, v in params.items()}

    # ---- quad 1x1 weights / epilogue (lanes: y1 | b2 | r1 | r2) ----
    wq = jnp.concatenate(
        [_w1x1_mat(folded["branch1x1"][0]),
         _w1x1_mat(folded["branch1x1_2"][0]),
         _w1x1_mat(folded["branch3x3_reduce"][0]),
         _w1x1_mat(folded["branch3x3_reduce_2"][0])], axis=1).astype(jnp.bfloat16)
    sq = jnp.concatenate([jnp.zeros((cb,), jnp.float32),   # branch1x1 shift applied post-pool
                          folded["branch1x1_2"][1],
                          folded["branch3x3_reduce"][1],
                          folded["branch3x3_reduce_2"][1]])
    fq = jnp.concatenate([jnp.full((cb,), -1e30, jnp.float32),  # no relu on y1 (pre-pool)
                          jnp.zeros((3 * cb,), jnp.float32)])
    s1 = jnp.concatenate([folded["branch1x1"][1],
                          jnp.zeros((cb,), jnp.float32),
                          folded["branch3x3"][1],
                          folded["branch3x3_2"][1]])
    s2 = jnp.concatenate([jnp.zeros((3 * cb,), jnp.float32),
                          folded["branch3x3_3"][1]])
    ep = jnp.stack([sq, fq, s1, s2]).astype(jnp.float32)   # (4, ct)

    # ---- level-1 per-tap block-diagonal weights (pool commuted past its 1x1) ----
    eye = jnp.eye(cb, dtype=jnp.float32)
    w1 = jnp.zeros((9, ct, ct), jnp.float32)
    w1 = w1.at[:, 0:cb, 0:cb].set(eye / 9.0)                       # avg-pool (count_include_pad)
    w1 = w1.at[4, cb:2 * cb, cb:2 * cb].set(eye)                   # branch1x1_2 pass-through
    w1 = w1.at[:, 2 * cb:3 * cb, 2 * cb:3 * cb].set(_w3x3_taps(folded["branch3x3"][0]))
    w1 = w1.at[:, 3 * cb:4 * cb, 3 * cb:4 * cb].set(_w3x3_taps(folded["branch3x3_2"][0]))
    w1 = w1.astype(jnp.bfloat16)

    # ---- level-2 per-tap weights: branch3x3_3 on the `t` lanes only ----
    w2 = jnp.zeros((9, ct, ct), jnp.float32)
    w2 = w2.at[:, 3 * cb:4 * cb, 3 * cb:4 * cb].set(_w3x3_taps(folded["branch3x3_3"][0]))
    w2 = w2.astype(jnp.bfloat16)

    # ---- one HBM pass: NCHW -> flattened NHWC bf16 (cast fuses into the transpose) ----
    x_flat = jnp.transpose(x_nchw, (0, 2, 3, 1)).astype(jnp.bfloat16).reshape(n, h * w, cin)

    wp = w + 2
    q = h * wp
    out = pl.pallas_call(
        functools.partial(_inception_kernel, h=h, w=w, cb=cb),
        out_shape=jax.ShapeDtypeStruct((n, q, ct), jnp.float32),
        grid_spec=pltpu.PrefetchScalarGridSpec(
            num_scalar_prefetch=0,
            grid=(n,),
            in_specs=[
                pl.BlockSpec((1, h * w, cin), lambda i: (i, 0, 0)),
                pl.BlockSpec((cin, ct), lambda i: (0, 0)),
                pl.BlockSpec((4, ct), lambda i: (0, 0)),
                pl.BlockSpec((9, ct, ct), lambda i: (0, 0, 0)),
                pl.BlockSpec((9, ct, ct), lambda i: (0, 0, 0)),
            ],
            out_specs=pl.BlockSpec((1, q, ct), lambda i: (i, 0, 0)),
            scratch_shapes=[pltpu.VMEM(((h + 3) * wp, ct), jnp.bfloat16)],
        ),
        compiler_params=pltpu.CompilerParams(
            dimension_semantics=("parallel",),        # batch splits across v7x's 2 TCs
            vmem_limit_bytes=32 * 1024 * 1024),       # explicit (v5e default is 16 MiB)
    )(x_flat, wq, ep, w1, w2)

    # Drop the 2 garbage columns of the padded-column row grid and go NCHW;
    # the slice fuses into the transpose pass that the output contract needs anyway.
    out = out.reshape(n, h, wp, ct)[:, :, :w, :]
    return jnp.transpose(out, (0, 3, 1, 2))


# ---------------------------------------------------------------------------
# Pure-JAX f32 reference (exact module semantics, eval-mode BN)
# ---------------------------------------------------------------------------
def inception_reference(x, params, eps=EPS):
    def conv_bn_relu(inp, p, padding):
        wgt, g, b, m, v = p
        y = jax.lax.conv_general_dilated(
            inp, wgt, window_strides=(1, 1),
            padding=((padding, padding), (padding, padding)),
            dimension_numbers=("NCHW", "OIHW", "NCHW"),
            precision=jax.lax.Precision.HIGHEST)
        s = g / jnp.sqrt(v + eps)
        y = y * s[None, :, None, None] + (b - m * s)[None, :, None, None]
        return jnp.maximum(y, 0.0)

    # avg_pool2d(k=3, s=1, p=1, ceil_mode=True, count_include_pad=True)
    pooled = jax.lax.reduce_window(
        x, 0.0, jax.lax.add, (1, 1, 3, 3), (1, 1, 1, 1),
        ((0, 0), (0, 0), (1, 1), (1, 1))) / 9.0

    b1 = conv_bn_relu(pooled, params["branch1x1"], 0)
    b2 = conv_bn_relu(x, params["branch1x1_2"], 0)
    r1 = conv_bn_relu(x, params["branch3x3_reduce"], 0)
    b3 = conv_bn_relu(r1, params["branch3x3"], 1)
    r2 = conv_bn_relu(x, params["branch3x3_reduce_2"], 0)
    t = conv_bn_relu(r2, params["branch3x3_2"], 1)
    b4 = conv_bn_relu(t, params["branch3x3_3"], 1)
    return jnp.concatenate([b1, b2, b3, b4], axis=1)


if __name__ == "__main__":
    key = jax.random.PRNGKey(0)
    keys = jax.random.split(key, 8)

    # Small shapes consistent with the module: Inception requires 96 input channels.
    N, C, H, W = 2, 96, 16, 16
    x = jax.random.normal(keys[0], (N, C, H, W), dtype=jnp.float32)

    def make_params(k, cin, cout, ksize):
        wgt = 0.05 * jax.random.normal(k, (cout, cin, ksize, ksize), jnp.float32)
        idx = jnp.arange(cout, dtype=jnp.float32)
        gamma = 1.0 + 0.05 * jnp.cos(idx)
        beta = 0.01 * jnp.sin(idx)
        mean = 0.02 * jnp.sin(idx + 1.0)
        var = 1.0 + 0.05 * jnp.cos(idx + 2.0)
        return (wgt, gamma, beta, mean, var)

    params = {
        "branch1x1": make_params(keys[1], 96, 24, 1),
        "branch1x1_2": make_params(keys[2], 96, 24, 1),
        "branch3x3_reduce": make_params(keys[3], 96, 24, 1),
        "branch3x3": make_params(keys[4], 24, 24, 3),
        "branch3x3_reduce_2": make_params(keys[5], 96, 24, 1),
        "branch3x3_2": make_params(keys[6], 24, 24, 3),
        "branch3x3_3": make_params(keys[7], 24, 24, 3),
    }

    out = inception_forward(x, params)
    out = jax.block_until_ready(out)

    ref = inception_reference(x, params)
    assert out.shape == (N, 96, H, W), out.shape
    max_err = float(jnp.max(jnp.abs(out - ref)))
    # Tolerance sized for bf16 MXU operands / bf16 inter-stage activations;
    # accumulation and all epilogues are f32.
    assert jnp.allclose(out, ref, atol=4e-2, rtol=4e-2), f"max abs diff {max_err}"
    print("KERNEL_OK")
</pallas_src>

<mosaic_0001>
module attributes {stable_mosaic.version = 11 : i64} {
  func.func @_inception_kernel(%arg0: i32, %arg1: memref<1x256x96xbf16, #tpu.memory_space<vmem>>, %arg2: memref<96x96xbf16, #tpu.memory_space<vmem>>, %arg3: memref<4x96xf32, #tpu.memory_space<vmem>>, %arg4: memref<9x96x96xbf16, #tpu.memory_space<vmem>>, %arg5: memref<9x96x96xbf16, #tpu.memory_space<vmem>>, %arg6: memref<1x288x96xf32, #tpu.memory_space<vmem>>, %arg7: memref<342x96xbf16, #tpu.memory_space<vmem>>) attributes {dimension_semantics = [#tpu.dimension_semantics<parallel>], iteration_bounds = array<i64: 2>, scalar_prefetch = 0 : i64, scratch_operands = 1 : i64, tpu.core_type = #tpu.core_type<tc>, window_params = [{transform_indices = @transform_0, window_bounds = array<i64: 1, 256, 96>}, {pipeline_mode = #tpu.pipeline_mode<synchronous>, transform_indices = @transform_1, window_bounds = array<i64: 96, 96>}, {pipeline_mode = #tpu.pipeline_mode<synchronous>, transform_indices = @transform_2, window_bounds = array<i64: 4, 96>}, {pipeline_mode = #tpu.pipeline_mode<synchronous>, transform_indices = @transform_3, window_bounds = array<i64: 9, 96, 96>}, {pipeline_mode = #tpu.pipeline_mode<synchronous>, transform_indices = @transform_4, window_bounds = array<i64: 9, 96, 96>}, {transform_indices = @transform_5, window_bounds = array<i64: 1, 288, 96>}]} {
    %c0 = arith.constant 0 : index
    %c0_0 = arith.constant 0 : index
    %0 = vector.load %arg3[%c0, %c0_0] : memref<4x96xf32, #tpu.memory_space<vmem>>, vector<1x96xf32>
    %c1 = arith.constant 1 : index
    %c0_1 = arith.constant 0 : index
    %1 = vector.load %arg3[%c1, %c0_1] : memref<4x96xf32, #tpu.memory_space<vmem>>, vector<1x96xf32>
    %c2 = arith.constant 2 : index
    %c0_2 = arith.constant 0 : index
    %2 = vector.load %arg3[%c2, %c0_2] : memref<4x96xf32, #tpu.memory_space<vmem>>, vector<1x96xf32>
    %c3 = arith.constant 3 : index
    %c0_3 = arith.constant 0 : index
    %3 = vector.load %arg3[%c3, %c0_3] : memref<4x96xf32, #tpu.memory_space<vmem>>, vector<1x96xf32>
    %c0_4 = arith.constant 0 : index
    %c0_5 = arith.constant 0 : index
    %c0_6 = arith.constant 0 : index
    %4 = vector.load %arg1[%c0_4, %c0_5, %c0_6] : memref<1x256x96xbf16, #tpu.memory_space<vmem>>, vector<1x256x96xbf16>
    %5 = vector.shape_cast %4 : vector<1x256x96xbf16> to vector<256x96xbf16>
    %c0_7 = arith.constant 0 : index
    %c0_8 = arith.constant 0 : index
    %6 = vector.load %arg2[%c0_7, %c0_8] : memref<96x96xbf16, #tpu.memory_space<vmem>>, vector<96x96xbf16>
    %cst = arith.constant dense<0.000000e+00> : vector<256x96xf32>
    %7 = tpu.matmul %5, %6, %cst {dimension_numbers = #tpu.dot_dimension_numbers<[1], [0], [0], [1], [0, 0, 1, 1], [], []>} : vector<256x96xbf16>, vector<96x96xbf16>, vector<256x96xf32> -> vector<256x96xf32>
    %8 = vector.broadcast %0 : vector<1x96xf32> to vector<256x96xf32>
    %9 = arith.addf %7, %8 : vector<256x96xf32>
    %10 = vector.broadcast %1 : vector<1x96xf32> to vector<256x96xf32>
    %11 = arith.maximumf %9, %10 : vector<256x96xf32>
    %12 = arith.truncf %11 : vector<256x96xf32> to vector<256x96xbf16>
    %cst_9 = arith.constant 0.000000e+00 : bf16
    %13 = vector.broadcast %cst_9 : bf16 to vector<342x96xbf16>
    %c0_10 = arith.constant 0 : index
    %c0_11 = arith.constant 0 : index
    %14 = vector.load %arg7[%c0_10, %c0_11] : memref<342x96xbf16, #tpu.memory_space<vmem>>, vector<342x96xbf16>
    tpu.vector_store %arg7[%c0_10, %c0_11], %13 {strides = array<i32>} : memref<342x96xbf16, #tpu.memory_space<vmem>>, vector<342x96xbf16>,
    %15 = vector.extract_strided_slice %12 {offsets = [0, 0], sizes = [16, 96], strides = [1, 1]} : vector<256x96xbf16> to vector<16x96xbf16>
    %c19 = arith.constant 19 : index
    %c0_12 = arith.constant 0 : index
    %16 = vector.load %arg7[%c19, %c0_12] : memref<342x96xbf16, #tpu.memory_space<vmem>>, vector<16x96xbf16>
    tpu.vector_store %arg7[%c19, %c0_12], %15 {strides = array<i32>} : memref<342x96xbf16, #tpu.memory_space<vmem>>, vector<16x96xbf16>,
    %17 = vector.extract_strided_slice %12 {offsets = [16, 0], sizes = [16, 96], strides = [1, 1]} : vector<256x96xbf16> to vector<16x96xbf16>
    %c37 = arith.constant 37 : index
    %c0_13 = arith.constant 0 : index
    %18 = vector.load %arg7[%c37, %c0_13] : memref<342x96xbf16, #tpu.memory_space<vmem>>, vector<16x96xbf16>
    tpu.vector_store %arg7[%c37, %c0_13], %17 {strides = array<i32>} : memref<342x96xbf16, #tpu.memory_space<vmem>>, vector<16x96xbf16>,
    %19 = vector.extract_strided_slice %12 {offsets = [32, 0], sizes = [16, 96], strides = [1, 1]} : vector<256x96xbf16> to vector<16x96xbf16>
    %c55 = arith.constant 55 : index
    %c0_14 = arith.constant 0 : index
    %20 = vector.load %arg7[%c55, %c0_14] : memref<342x96xbf16, #tpu.memory_space<vmem>>, vector<16x96xbf16>
    tpu.vector_store %arg7[%c55, %c0_14], %19 {strides = array<i32>} : memref<342x96xbf16, #tpu.memory_space<vmem>>, vector<16x96xbf16>,
    %21 = vector.extract_strided_slice %12 {offsets = [48, 0], sizes = [16, 96], strides = [1, 1]} : vector<256x96xbf16> to vector<16x96xbf16>
    %c73 = arith.constant 73 : index
    %c0_15 = arith.constant 0 : index
    %22 = vector.load %arg7[%c73, %c0_15] : memref<342x96xbf16, #tpu.memory_space<vmem>>, vector<16x96xbf16>
    tpu.vector_store %arg7[%c73, %c0_15], %21 {strides = array<i32>} : memref<342x96xbf16, #tpu.memory_space<vmem>>, vector<16x96xbf16>,
    %23 = vector.extract_strided_slice %12 {offsets = [64, 0], sizes = [16, 96], strides = [1, 1]} : vector<256x96xbf16> to vector<16x96xbf16>
    %c91 = arith.constant 91 : index
    %c0_16 = arith.constant 0 : index
    %24 = vector.load %arg7[%c91, %c0_16] : memref<342x96xbf16, #tpu.memory_space<vmem>>, vector<16x96xbf16>
    tpu.vector_store %arg7[%c91, %c0_16], %23 {strides = array<i32>} : memref<342x96xbf16, #tpu.memory_space<vmem>>, vector<16x96xbf16>,
    %25 = vector.extract_strided_slice %12 {offsets = [80, 0], sizes = [16, 96], strides = [1, 1]} : vector<256x96xbf16> to vector<16x96xbf16>
    %c109 = arith.constant 109 : index
    %c0_17 = arith.constant 0 : index
    %26 = vector.load %arg7[%c109, %c0_17] : memref<342x96xbf16, #tpu.memory_space<vmem>>, vector<16x96xbf16>
    tpu.vector_store %arg7[%c109, %c0_17], %25 {strides = array<i32>} : memref<342x96xbf16, #tpu.memory_space<vmem>>, vector<16x96xbf16>,
    %27 = vector.extract_strided_slice %12 {offsets = [96, 0], sizes = [16, 96], strides = [1, 1]} : vector<256x96xbf16> to vector<16x96xbf16>
    %c127 = arith.constant 127 : index
    %c0_18 = arith.constant 0 : index
    %28 = vector.load %arg7[%c127, %c0_18] : memref<342x96xbf16, #tpu.memory_space<vmem>>, vector<16x96xbf16>
    tpu.vector_store %arg7[%c127, %c0_18], %27 {strides = array<i32>} : memref<342x96xbf16, #tpu.memory_space<vmem>>, vector<16x96xbf16>,
    %29 = vector.extract_strided_slice %12 {offsets = [112, 0], sizes = [16, 96], strides = [1, 1]} : vector<256x96xbf16> to vector<16x96xbf16>
    %c145 = arith.constant 145 : index
    %c0_19 = arith.constant 0 : index
    %30 = vector.load %arg7[%c145, %c0_19] : memref<342x96xbf16, #tpu.memory_space<vmem>>, vector<16x96xbf16>
    tpu.vector_store %arg7[%c145, %c0_19], %29 {strides = array<i32>} : memref<342x96xbf16, #tpu.memory_space<vmem>>, vector<16x96xbf16>,
    %31 = vector.extract_strided_slice %12 {offsets = [128, 0], sizes = [16, 96], strides = [1, 1]} : vector<256x96xbf16> to vector<16x96xbf16>
    %c163 = arith.constant 163 : index
    %c0_20 = arith.constant 0 : index
    %32 = vector.load %arg7[%c163, %c0_20] : memref<342x96xbf16, #tpu.memory_space<vmem>>, vector<16x96xbf16>
    tpu.vector_store %arg7[%c163, %c0_20], %31 {strides = array<i32>} : memref<342x96xbf16, #tpu.memory_space<vmem>>, vector<16x96xbf16>,
    %33 = vector.extract_strided_slice %12 {offsets = [144, 0], sizes = [16, 96], strides = [1, 1]} : vector<256x96xbf16> to vector<16x96xbf16>
    %c181 = arith.constant 181 : index
    %c0_21 = arith.constant 0 : index
    %34 = vector.load %arg7[%c181, %c0_21] : memref<342x96xbf16, #tpu.memory_space<vmem>>, vector<16x96xbf16>
    tpu.vector_store %arg7[%c181, %c0_21], %33 {strides = array<i32>} : memref<342x96xbf16, #tpu.memory_space<vmem>>, vector<16x96xbf16>,
    %35 = vector.extract_strided_slice %12 {offsets = [160, 0], sizes = [16, 96], strides = [1, 1]} : vector<256x96xbf16> to vector<16x96xbf16>
    %c199 = arith.constant 199 : index
    %c0_22 = arith.constant 0 : index
    %36 = vector.load %arg7[%c199, %c0_22] : memref<342x96xbf16, #tpu.memory_space<vmem>>, vector<16x96xbf16>
    tpu.vector_store %arg7[%c199, %c0_22], %35 {strides = array<i32>} : memref<342x96xbf16, #tpu.memory_space<vmem>>, vector<16x96xbf16>,
    %37 = vector.extract_strided_slice %12 {offsets = [176, 0], sizes = [16, 96], strides = [1, 1]} : vector<256x96xbf16> to vector<16x96xbf16>
    %c217 = arith.constant 217 : index
    %c0_23 = arith.constant 0 : index
    %38 = vector.load %arg7[%c217, %c0_23] : memref<342x96xbf16, #tpu.memory_space<vmem>>, vector<16x96xbf16>
    tpu.vector_store %arg7[%c217, %c0_23], %37 {strides = array<i32>} : memref<342x96xbf16, #tpu.memory_space<vmem>>, vector<16x96xbf16>,
    %39 = vector.extract_strided_slice %12 {offsets = [192, 0], sizes = [16, 96], strides = [1, 1]} : vector<256x96xbf16> to vector<16x96xbf16>
    %c235 = arith.constant 235 : index
    %c0_24 = arith.constant 0 : index
    %40 = vector.load %arg7[%c235, %c0_24] : memref<342x96xbf16, #tpu.memory_space<vmem>>, vector<16x96xbf16>
    tpu.vector_store %arg7[%c235, %c0_24], %39 {strides = array<i32>} : memref<342x96xbf16, #tpu.memory_space<vmem>>, vector<16x96xbf16>,
    %41 = vector.extract_strided_slice %12 {offsets = [208, 0], sizes = [16, 96], strides = [1, 1]} : vector<256x96xbf16> to vector<16x96xbf16>
    %c253 = arith.constant 253 : index
    %c0_25 = arith.constant 0 : index
    %42 = vector.load %arg7[%c253, %c0_25] : memref<342x96xbf16, #tpu.memory_space<vmem>>, vector<16x96xbf16>
    tpu.vector_store %arg7[%c253, %c0_25], %41 {strides = array<i32>} : memref<342x96xbf16, #tpu.memory_space<vmem>>, vector<16x96xbf16>,
    %43 = vector.extract_strided_slice %12 {offsets = [224, 0], sizes = [16, 96], strides = [1, 1]} : vector<256x96xbf16> to vector<16x96xbf16>
    %c271 = arith.constant 271 : index
    %c0_26 = arith.constant 0 : index
    %44 = vector.load %arg7[%c271, %c0_26] : memref<342x96xbf16, #tpu.memory_space<vmem>>, vector<16x96xbf16>
    tpu.vector_store %arg7[%c271, %c0_26], %43 {strides = array<i32>} : memref<342x96xbf16, #tpu.memory_space<vmem>>, vector<16x96xbf16>,
    %45 = vector.extract_strided_slice %12 {offsets = [240, 0], sizes = [16, 96], strides = [1, 1]} : vector<256x96xbf16> to vector<16x96xbf16>
    %c289 = arith.constant 289 : index
    %c0_27 = arith.constant 0 : index
    %46 = vector.load %arg7[%c289, %c0_27] : memref<342x96xbf16, #tpu.memory_space<vmem>>, vector<16x96xbf16>
    tpu.vector_store %arg7[%c289, %c0_27], %45 {strides = array<i32>} : memref<342x96xbf16, #tpu.memory_space<vmem>>, vector<16x96xbf16>,
    %cst_28 = arith.constant 0.000000e+00 : f32
    %47 = vector.broadcast %cst_28 : f32 to vector<288x96xf32>
    %c0_29 = arith.constant 0 : index
    %c0_30 = arith.constant 0 : index
    %48 = vector.load %arg7[%c0_29, %c0_30] : memref<342x96xbf16, #tpu.memory_space<vmem>>, vector<288x96xbf16>
    %c0_31 = arith.constant 0 : index
    %c0_32 = arith.constant 0 : index
    %c0_33 = arith.constant 0 : index
    %49 = vector.load %arg4[%c0_31, %c0_32, %c0_33] : memref<9x96x96xbf16, #tpu.memory_space<vmem>>, vector<1x96x96xbf16>
    %50 = vector.shape_cast %49 : vector<1x96x96xbf16> to vector<96x96xbf16>
    %cst_34 = arith.constant dense<0.000000e+00> : vector<288x96xf32>
    %51 = tpu.matmul %48, %50, %cst_34 {dimension_numbers = #tpu.dot_dimension_numbers<[1], [0], [0], [1], [0, 0, 1, 1], [], []>} : vector<288x96xbf16>, vector<96x96xbf16>, vector<288x96xf32> -> vector<288x96xf32>
    %52 = arith.addf %47, %51 : vector<288x96xf32>
    %c1_35 = arith.constant 1 : index
    %c0_36 = arith.constant 0 : index
    %53 = vector.load %arg7[%c1_35, %c0_36] : memref<342x96xbf16, #tpu.memory_space<vmem>>, vector<288x96xbf16>
    %c1_37 = arith.constant 1 : index
    %c0_38 = arith.constant 0 : index
    %c0_39 = arith.constant 0 : index
    %54 = vector.load %arg4[%c1_37, %c0_38, %c0_39] : memref<9x96x96xbf16, #tpu.memory_space<vmem>>, vector<1x96x96xbf16>
    %55 = vector.shape_cast %54 : vector<1x96x96xbf16> to vector<96x96xbf16>
    %cst_40 = arith.constant dense<0.000000e+00> : vector<288x96xf32>
    %56 = tpu.matmul %53, %55, %cst_40 {dimension_numbers = #tpu.dot_dimension_numbers<[1], [0], [0], [1], [0, 0, 1, 1], [], []>} : vector<288x96xbf16>, vector<96x96xbf16>, vector<288x96xf32> -> vector<288x96xf32>
    %57 = arith.addf %52, %56 : vector<288x96xf32>
    %c2_41 = arith.constant 2 : index
    %c0_42 = arith.constant 0 : index
    %58 = vector.load %arg7[%c2_41, %c0_42] : memref<342x96xbf16, #tpu.memory_space<vmem>>, vector<288x96xbf16>
    %c2_43 = arith.constant 2 : index
    %c0_44 = arith.constant 0 : index
    %c0_45 = arith.constant 0 : index
    %59 = vector.load %arg4[%c2_43, %c0_44, %c0_45] : memref<9x96x96xbf16, #tpu.memory_space<vmem>>, vector<1x96x96xbf16>
    %60 = vector.shape_cast %59 : vector<1x96x96xbf16> to vector<96x96xbf16>
    %cst_46 = arith.constant dense<0.000000e+00> : vector<288x96xf32>
    %61 = tpu.matmul %58, %60, %cst_46 {dimension_numbers = #tpu.dot_dimension_numbers<[1], [0], [0], [1], [0, 0, 1, 1], [], []>} : vector<288x96xbf16>, vector<96x96xbf16>, vector<288x96xf32> -> vector<288x96xf32>
    %62 = arith.addf %57, %61 : vector<288x96xf32>
    %c18 = arith.constant 18 : index
    %c0_47 = arith.constant 0 : index
    %63 = vector.load %arg7[%c18, %c0_47] : memref<342x96xbf16, #tpu.memory_space<vmem>>, vector<288x96xbf16>
    %c3_48 = arith.constant 3 : index
    %c0_49 = arith.constant 0 : index
    %c0_50 = arith.constant 0 : index
    %64 = vector.load %arg4[%c3_48, %c0_49, %c0_50] : memref<9x96x96xbf16, #tpu.memory_space<vmem>>, vector<1x96x96xbf16>
    %65 = vector.shape_cast %64 : vector<1x96x96xbf16> to vector<96x96xbf16>
    %cst_51 = arith.constant dense<0.000000e+00> : vector<288x96xf32>
    %66 = tpu.matmul %63, %65, %cst_51 {dimension_numbers = #tpu.dot_dimension_numbers<[1], [0], [0], [1], [0, 0, 1, 1], [], []>} : vector<288x96xbf16>, vector<96x96xbf16>, vector<288x96xf32> -> vector<288x96xf32>
    %67 = arith.addf %62, %66 : vector<288x96xf32>
    %c19_52 = arith.constant 19 : index
    %c0_53 = arith.constant 0 : index
    %68 = vector.load %arg7[%c19_52, %c0_53] : memref<342x96xbf16, #tpu.memory_space<vmem>>, vector<288x96xbf16>
    %c4 = arith.constant 4 : index
    %c0_54 = arith.constant 0 : index
    %c0_55 = arith.constant 0 : index
    %69 = vector.load %arg4[%c4, %c0_54, %c0_55] : memref<9x96x96xbf16, #tpu.memory_space<vmem>>, vector<1x96x96xbf16>
    %70 = vector.shape_cast %69 : vector<1x96x96xbf16> to vector<96x96xbf16>
    %cst_56 = arith.constant dense<0.000000e+00> : vector<288x96xf32>
    %71 = tpu.matmul %68, %70, %cst_56 {dimension_numbers = #tpu.dot_dimension_numbers<[1], [0], [0], [1], [0, 0, 1, 1], [], []>} : vector<288x96xbf16>, vector<96x96xbf16>, vector<288x96xf32> -> vector<288x96xf32>
    %72 = arith.addf %67, %71 : vector<288x96xf32>
    %c20 = arith.constant 20 : index
    %c0_57 = arith.constant 0 : index
    %73 = vector.load %arg7[%c20, %c0_57] : memref<342x96xbf16, #tpu.memory_space<vmem>>, vector<288x96xbf16>
    %c5 = arith.constant 5 : index
    %c0_58 = arith.constant 0 : index
    %c0_59 = arith.constant 0 : index
    %74 = vector.load %arg4[%c5, %c0_58, %c0_59] : memref<9x96x96xbf16, #tpu.memory_space<vmem>>, vector<1x96x96xbf16>
    %75 = vector.shape_cast %74 : vector<1x96x96xbf16> to vector<96x96xbf16>
    %cst_60 = arith.constant dense<0.000000e+00> : vector<288x96xf32>
    %76 = tpu.matmul %73, %75, %cst_60 {dimension_numbers = #tpu.dot_dimension_numbers<[1], [0], [0], [1], [0, 0, 1, 1], [], []>} : vector<288x96xbf16>, vector<96x96xbf16>, vector<288x96xf32> -> vector<288x96xf32>
    %77 = arith.addf %72, %76 : vector<288x96xf32>
    %c36 = arith.constant 36 : index
    %c0_61 = arith.constant 0 : index
    %78 = vector.load %arg7[%c36, %c0_61] : memref<342x96xbf16, #tpu.memory_space<vmem>>, vector<288x96xbf16>
    %c6 = arith.constant 6 : index
    %c0_62 = arith.constant 0 : index
    %c0_63 = arith.constant 0 : index
    %79 = vector.load %arg4[%c6, %c0_62, %c0_63] : memref<9x96x96xbf16, #tpu.memory_space<vmem>>, vector<1x96x96xbf16>
    %80 = vector.shape_cast %79 : vector<1x96x96xbf16> to vector<96x96xbf16>
    %cst_64 = arith.constant dense<0.000000e+00> : vector<288x96xf32>
    %81 = tpu.matmul %78, %80, %cst_64 {dimension_numbers = #tpu.dot_dimension_numbers<[1], [0], [0], [1], [0, 0, 1, 1], [], []>} : vector<288x96xbf16>, vector<96x96xbf16>, vector<288x96xf32> -> vector<288x96xf32>
    %82 = arith.addf %77, %81 : vector<288x96xf32>
    %c37_65 = arith.constant 37 : index
    %c0_66 = arith.constant 0 : index
    %83 = vector.load %arg7[%c37_65, %c0_66] : memref<342x96xbf16, #tpu.memory_space<vmem>>, vector<288x96xbf16>
    %c7 = arith.constant 7 : index
    %c0_67 = arith.constant 0 : index
    %c0_68 = arith.constant 0 : index
    %84 = vector.load %arg4[%c7, %c0_67, %c0_68] : memref<9x96x96xbf16, #tpu.memory_space<vmem>>, vector<1x96x96xbf16>
    %85 = vector.shape_cast %84 : vector<1x96x96xbf16> to vector<96x96xbf16>
    %cst_69 = arith.constant dense<0.000000e+00> : vector<288x96xf32>
    %86 = tpu.matmul %83, %85, %cst_69 {dimension_numbers = #tpu.dot_dimension_numbers<[1], [0], [0], [1], [0, 0, 1, 1], [], []>} : vector<288x96xbf16>, vector<96x96xbf16>, vector<288x96xf32> -> vector<288x96xf32>
    %87 = arith.addf %82, %86 : vector<288x96xf32>
    %c38 = arith.constant 38 : index
    %c0_70 = arith.constant 0 : index
    %88 = vector.load %arg7[%c38, %c0_70] : memref<342x96xbf16, #tpu.memory_space<vmem>>, vector<288x96xbf16>
    %c8 = arith.constant 8 : index
    %c0_71 = arith.constant 0 : index
    %c0_72 = arith.constant 0 : index
    %89 = vector.load %arg4[%c8, %c0_71, %c0_72] : memref<9x96x96xbf16, #tpu.memory_space<vmem>>, vector<1x96x96xbf16>
    %90 = vector.shape_cast %89 : vector<1x96x96xbf16> to vector<96x96xbf16>
    %cst_73 = arith.constant dense<0.000000e+00> : vector<288x96xf32>
    %91 = tpu.matmul %88, %90, %cst_73 {dimension_numbers = #tpu.dot_dimension_numbers<[1], [0], [0], [1], [0, 0, 1, 1], [], []>} : vector<288x96xbf16>, vector<96x96xbf16>, vector<288x96xf32> -> vector<288x96xf32>
    %92 = arith.addf %87, %91 : vector<288x96xf32>
    %93 = vector.broadcast %2 : vector<1x96xf32> to vector<288x96xf32>
    %94 = arith.addf %92, %93 : vector<288x96xf32>
    %cst_74 = arith.constant 0.000000e+00 : f32
    %95 = vector.broadcast %cst_74 : f32 to vector<288x96xf32>
    %96 = arith.maximumf %94, %95 : vector<288x96xf32>
    %97 = arith.truncf %96 : vector<288x96xf32> to vector<288x96xbf16>
    %98 = vector.extract_strided_slice %97 {offsets = [0, 0], sizes = [16, 96], strides = [1, 1]} : vector<288x96xbf16> to vector<16x96xbf16>
    %c19_75 = arith.constant 19 : index
    %c0_76 = arith.constant 0 : index
    %99 = vector.load %arg7[%c19_75, %c0_76] : memref<342x96xbf16, #tpu.memory_space<vmem>>, vector<16x96xbf16>
    tpu.vector_store %arg7[%c19_75, %c0_76], %98 {strides = array<i32>} : memref<342x96xbf16, #tpu.memory_space<vmem>>, vector<16x96xbf16>,
    %100 = vector.extract_strided_slice %97 {offsets = [18, 0], sizes = [16, 96], strides = [1, 1]} : vector<288x96xbf16> to vector<16x96xbf16>
    %c37_77 = arith.constant 37 : index
    %c0_78 = arith.constant 0 : index
    %101 = vector.load %arg7[%c37_77, %c0_78] : memref<342x96xbf16, #tpu.memory_space<vmem>>, vector<16x96xbf16>
    tpu.vector_store %arg7[%c37_77, %c0_78], %100 {strides = array<i32>} : memref<342x96xbf16, #tpu.memory_space<vmem>>, vector<16x96xbf16>,
    %102 = vector.extract_strided_slice %97 {offsets = [36, 0], sizes = [16, 96], strides = [1, 1]} : vector<288x96xbf16> to vector<16x96xbf16>
    %c55_79 = arith.constant 55 : index
    %c0_80 = arith.constant 0 : index
    %103 = vector.load %arg7[%c55_79, %c0_80] : memref<342x96xbf16, #tpu.memory_space<vmem>>, vector<16x96xbf16>
    tpu.vector_store %arg7[%c55_79, %c0_80], %102 {strides = array<i32>} : memref<342x96xbf16, #tpu.memory_space<vmem>>, vector<16x96xbf16>,
    %104 = vector.extract_strided_slice %97 {offsets = [54, 0], sizes = [16, 96], strides = [1, 1]} : vector<288x96xbf16> to vector<16x96xbf16>
    %c73_81 = arith.constant 73 : index
    %c0_82 = arith.constant 0 : index
    %105 = vector.load %arg7[%c73_81, %c0_82] : memref<342x96xbf16, #tpu.memory_space<vmem>>, vector<16x96xbf16>
    tpu.vector_store %arg7[%c73_81, %c0_82], %104 {strides = array<i32>} : memref<342x96xbf16, #tpu.memory_space<vmem>>, vector<16x96xbf16>,
    %106 = vector.extract_strided_slice %97 {offsets = [72, 0], sizes = [16, 96], strides = [1, 1]} : vector<288x96xbf16> to vector<16x96xbf16>
    %c91_83 = arith.constant 91 : index
    %c0_84 = arith.constant 0 : index
    %107 = vector.load %arg7[%c91_83, %c0_84] : memref<342x96xbf16, #tpu.memory_space<vmem>>, vector<16x96xbf16>
    tpu.vector_store %arg7[%c91_83, %c0_84], %106 {strides = array<i32>} : memref<342x96xbf16, #tpu.memory_space<vmem>>, vector<16x96xbf16>,
    %108 = vector.extract_strided_slice %97 {offsets = [90, 0], sizes = [16, 96], strides = [1, 1]} : vector<288x96xbf16> to vector<16x96xbf16>
    %c109_85 = arith.constant 109 : index
    %c0_86 = arith.constant 0 : index
    %109 = vector.load %arg7[%c109_85, %c0_86] : memref<342x96xbf16, #tpu.memory_space<vmem>>, vector<16x96xbf16>
    tpu.vector_store %arg7[%c109_85, %c0_86], %108 {strides = array<i32>} : memref<342x96xbf16, #tpu.memory_space<vmem>>, vector<16x96xbf16>,
    %110 = vector.extract_strided_slice %97 {offsets = [108, 0], sizes = [16, 96], strides = [1, 1]} : vector<288x96xbf16> to vector<16x96xbf16>
    %c127_87 = arith.constant 127 : index
    %c0_88 = arith.constant 0 : index
    %111 = vector.load %arg7[%c127_87, %c0_88] : memref<342x96xbf16, #tpu.memory_space<vmem>>, vector<16x96xbf16>
    tpu.vector_store %arg7[%c127_87, %c0_88], %110 {strides = array<i32>} : memref<342x96xbf16, #tpu.memory_space<vmem>>, vector<16x96xbf16>,
    %112 = vector.extract_strided_slice %97 {offsets = [126, 0], sizes = [16, 96], strides = [1, 1]} : vector<288x96xbf16> to vector<16x96xbf16>
    %c145_89 = arith.constant 145 : index
    %c0_90 = arith.constant 0 : index
    %113 = vector.load %arg7[%c145_89, %c0_90] : memref<342x96xbf16, #tpu.memory_space<vmem>>, vector<16x96xbf16>
    tpu.vector_store %arg7[%c145_89, %c0_90], %112 {strides = array<i32>} : memref<342x96xbf16, #tpu.memory_space<vmem>>, vector<16x96xbf16>,
    %114 = vector.extract_strided_slice %97 {offsets = [144, 0], sizes = [16, 96], strides = [1, 1]} : vector<288x96xbf16> to vector<16x96xbf16>
    %c163_91 = arith.constant 163 : index
    %c0_92 = arith.constant 0 : index
    %115 = vector.load %arg7[%c163_91, %c0_92] : memref<342x96xbf16, #tpu.memory_space<vmem>>, vector<16x96xbf16>
    tpu.vector_store %arg7[%c163_91, %c0_92], %114 {strides = array<i32>} : memref<342x96xbf16, #tpu.memory_space<vmem>>, vector<16x96xbf16>,
    %116 = vector.extract_strided_slice %97 {offsets = [162, 0], sizes = [16, 96], strides = [1, 1]} : vector<288x96xbf16> to vector<16x96xbf16>
    %c181_93 = arith.constant 181 : index
    %c0_94 = arith.constant 0 : index
    %117 = vector.load %arg7[%c181_93, %c0_94] : memref<342x96xbf16, #tpu.memory_space<vmem>>, vector<16x96xbf16>
    tpu.vector_store %arg7[%c181_93, %c0_94], %116 {strides = array<i32>} : memref<342x96xbf16, #tpu.memory_space<vmem>>, vector<16x96xbf16>,
    %118 = vector.extract_strided_slice %97 {offsets = [180, 0], sizes = [16, 96], strides = [1, 1]} : vector<288x96xbf16> to vector<16x96xbf16>
    %c199_95 = arith.constant 199 : index
    %c0_96 = arith.constant 0 : index
    %119 = vector.load %arg7[%c199_95, %c0_96] : memref<342x96xbf16, #tpu.memory_space<vmem>>, vector<16x96xbf16>
    tpu.vector_store %arg7[%c199_95, %c0_96], %118 {strides = array<i32>} : memref<342x96xbf16, #tpu.memory_space<vmem>>, vector<16x96xbf16>,
    %120 = vector.extract_strided_slice %97 {offsets = [198, 0], sizes = [16, 96], strides = [1, 1]} : vector<288x96xbf16> to vector<16x96xbf16>
    %c217_97 = arith.constant 217 : index
    %c0_98 = arith.constant 0 : index
    %121 = vector.load %arg7[%c217_97, %c0_98] : memref<342x96xbf16, #tpu.memory_space<vmem>>, vector<16x96xbf16>
    tpu.vector_store %arg7[%c217_97, %c0_98], %120 {strides = array<i32>} : memref<342x96xbf16, #tpu.memory_space<vmem>>, vector<16x96xbf16>,
    %122 = vector.extract_strided_slice %97 {offsets = [216, 0], sizes = [16, 96], strides = [1, 1]} : vector<288x96xbf16> to vector<16x96xbf16>
    %c235_99 = arith.constant 235 : index
    %c0_100 = arith.constant 0 : index
    %123 = vector.load %arg7[%c235_99, %c0_100] : memref<342x96xbf16, #tpu.memory_space<vmem>>, vector<16x96xbf16>
    tpu.vector_store %arg7[%c235_99, %c0_100], %122 {strides = array<i32>} : memref<342x96xbf16, #tpu.memory_space<vmem>>, vector<16x96xbf16>,
    %124 = vector.extract_strided_slice %97 {offsets = [234, 0], sizes = [16, 96], strides = [1, 1]} : vector<288x96xbf16> to vector<16x96xbf16>
    %c253_101 = arith.constant 253 : index
    %c0_102 = arith.constant 0 : index
    %125 = vector.load %arg7[%c253_101, %c0_102] : memref<342x96xbf16, #tpu.memory_space<vmem>>, vector<16x96xbf16>
    tpu.vector_store %arg7[%c253_101, %c0_102], %124 {strides = array<i32>} : memref<342x96xbf16, #tpu.memory_space<vmem>>, vector<16x96xbf16>,
    %126 = vector.extract_strided_slice %97 {offsets = [252, 0], sizes = [16, 96], strides = [1, 1]} : vector<288x96xbf16> to vector<16x96xbf16>
    %c271_103 = arith.constant 271 : index
    %c0_104 = arith.constant 0 : index
    %127 = vector.load %arg7[%c271_103, %c0_104] : memref<342x96xbf16, #tpu.memory_space<vmem>>, vector<16x96xbf16>
    tpu.vector_store %arg7[%c271_103, %c0_104], %126 {strides = array<i32>} : memref<342x96xbf16, #tpu.memory_space<vmem>>, vector<16x96xbf16>,
    %128 = vector.extract_strided_slice %97 {offsets = [270, 0], sizes = [16, 96], strides = [1, 1]} : vector<288x96xbf16> to vector<16x96xbf16>
    %c289_105 = arith.constant 289 : index
    %c0_106 = arith.constant 0 : index
    %129 = vector.load %arg7[%c289_105, %c0_106] : memref<342x96xbf16, #tpu.memory_space<vmem>>, vector<16x96xbf16>
    tpu.vector_store %arg7[%c289_105, %c0_106], %128 {strides = array<i32>} : memref<342x96xbf16, #tpu.memory_space<vmem>>, vector<16x96xbf16>,
    %cst_107 = arith.constant 0.000000e+00 : f32
    %130 = vector.broadcast %cst_107 : f32 to vector<288x96xf32>
    %c0_108 = arith.constant 0 : index
    %c0_109 = arith.constant 0 : index
    %131 = vector.load %arg7[%c0_108, %c0_109] : memref<342x96xbf16, #tpu.memory_space<vmem>>, vector<288x96xbf16>
    %c0_110 = arith.constant 0 : index
    %c0_111 = arith.constant 0 : index
    %c0_112 = arith.constant 0 : index
    %132 = vector.load %arg5[%c0_110, %c0_111, %c0_112] : memref<9x96x96xbf16, #tpu.memory_space<vmem>>, vector<1x96x96xbf16>
    %133 = vector.shape_cast %132 : vector<1x96x96xbf16> to vector<96x96xbf16>
    %cst_113 = arith.constant dense<0.000000e+00> : vector<288x96xf32>
    %134 = tpu.matmul %131, %133, %cst_113 {dimension_numbers = #tpu.dot_dimension_numbers<[1], [0], [0], [1], [0, 0, 1, 1], [], []>} : vector<288x96xbf16>, vector<96x96xbf16>, vector<288x96xf32> -> vector<288x96xf32>
    %135 = arith.addf %130, %134 : vector<288x96xf32>
    %c1_114 = arith.constant 1 : index
    %c0_115 = arith.constant 0 : index
    %136 = vector.load %arg7[%c1_114, %c0_115] : memref<342x96xbf16, #tpu.memory_space<vmem>>, vector<288x96xbf16>
    %c1_116 = arith.constant 1 : index
    %c0_117 = arith.constant 0 : index
    %c0_118 = arith.constant 0 : index
    %137 = vector.load %arg5[%c1_116, %c0_117, %c0_118] : memref<9x96x96xbf16, #tpu.memory_space<vmem>>, vector<1x96x96xbf16>
    %138 = vector.shape_cast %137 : vector<1x96x96xbf16> to vector<96x96xbf16>
    %cst_119 = arith.constant dense<0.000000e+00> : vector<288x96xf32>
    %139 = tpu.matmul %136, %138, %cst_119 {dimension_numbers = #tpu.dot_dimension_numbers<[1], [0], [0], [1], [0, 0, 1, 1], [], []>} : vector<288x96xbf16>, vector<96x96xbf16>, vector<288x96xf32> -> vector<288x96xf32>
    %140 = arith.addf %135, %139 : vector<288x96xf32>
    %c2_120 = arith.constant 2 : index
    %c0_121 = arith.constant 0 : index
    %141 = vector.load %arg7[%c2_120, %c0_121] : memref<342x96xbf16, #tpu.memory_space<vmem>>, vector<288x96xbf16>
    %c2_122 = arith.constant 2 : index
    %c0_123 = arith.constant 0 : index
    %c0_124 = arith.constant 0 : index
    %142 = vector.load %arg5[%c2_122, %c0_123, %c0_124] : memref<9x96x96xbf16, #tpu.memory_space<vmem>>, vector<1x96x96xbf16>
    %143 = vector.shape_cast %142 : vector<1x96x96xbf16> to vector<96x96xbf16>
    %cst_125 = arith.constant dense<0.000000e+00> : vector<288x96xf32>
    %144 = tpu.matmul %141, %143, %cst_125 {dimension_numbers = #tpu.dot_dimension_numbers<[1], [0], [0], [1], [0, 0, 1, 1], [], []>} : vector<288x96xbf16>, vector<96x96xbf16>, vector<288x96xf32> -> vector<288x96xf32>
    %145 = arith.addf %140, %144 : vector<288x96xf32>
    %c18_126 = arith.constant 18 : index
    %c0_127 = arith.constant 0 : index
    %146 = vector.load %arg7[%c18_126, %c0_127] : memref<342x96xbf16, #tpu.memory_space<vmem>>, vector<288x96xbf16>
    %c3_128 = arith.constant 3 : index
    %c0_129 = arith.constant 0 : index
    %c0_130 = arith.constant 0 : index
    %147 = vector.load %arg5[%c3_128, %c0_129, %c0_130] : memref<9x96x96xbf16, #tpu.memory_space<vmem>>, vector<1x96x96xbf16>
    %148 = vector.shape_cast %147 : vector<1x96x96xbf16> to vector<96x96xbf16>
    %cst_131 = arith.constant dense<0.000000e+00> : vector<288x96xf32>
    %149 = tpu.matmul %146, %148, %cst_131 {dimension_numbers = #tpu.dot_dimension_numbers<[1], [0], [0], [1], [0, 0, 1, 1], [], []>} : vector<288x96xbf16>, vector<96x96xbf16>, vector<288x96xf32> -> vector<288x96xf32>
    %150 = arith.addf %145, %149 : vector<288x96xf32>
    %c19_132 = arith.constant 19 : index
    %c0_133 = arith.constant 0 : index
    %151 = vector.load %arg7[%c19_132, %c0_133] : memref<342x96xbf16, #tpu.memory_space<vmem>>, vector<288x96xbf16>
    %c4_134 = arith.constant 4 : index
    %c0_135 = arith.constant 0 : index
    %c0_136 = arith.constant 0 : index
    %152 = vector.load %arg5[%c4_134, %c0_135, %c0_136] : memref<9x96x96xbf16, #tpu.memory_space<vmem>>, vector<1x96x96xbf16>
    %153 = vector.shape_cast %152 : vector<1x96x96xbf16> to vector<96x96xbf16>
    %cst_137 = arith.constant dense<0.000000e+00> : vector<288x96xf32>
    %154 = tpu.matmul %151, %153, %cst_137 {dimension_numbers = #tpu.dot_dimension_numbers<[1], [0], [0], [1], [0, 0, 1, 1], [], []>} : vector<288x96xbf16>, vector<96x96xbf16>, vector<288x96xf32> -> vector<288x96xf32>
    %155 = arith.addf %150, %154 : vector<288x96xf32>
    %c20_138 = arith.constant 20 : index
    %c0_139 = arith.constant 0 : index
    %156 = vector.load %arg7[%c20_138, %c0_139] : memref<342x96xbf16, #tpu.memory_space<vmem>>, vector<288x96xbf16>
    %c5_140 = arith.constant 5 : index
    %c0_141 = arith.constant 0 : index
    %c0_142 = arith.constant 0 : index
    %157 = vector.load %arg5[%c5_140, %c0_141, %c0_142] : memref<9x96x96xbf16, #tpu.memory_space<vmem>>, vector<1x96x96xbf16>
    %158 = vector.shape_cast %157 : vector<1x96x96xbf16> to vector<96x96xbf16>
    %cst_143 = arith.constant dense<0.000000e+00> : vector<288x96xf32>
    %159 = tpu.matmul %156, %158, %cst_143 {dimension_numbers = #tpu.dot_dimension_numbers<[1], [0], [0], [1], [0, 0, 1, 1], [], []>} : vector<288x96xbf16>, vector<96x96xbf16>, vector<288x96xf32> -> vector<288x96xf32>
    %160 = arith.addf %155, %159 : vector<288x96xf32>
    %c36_144 = arith.constant 36 : index
    %c0_145 = arith.constant 0 : index
    %161 = vector.load %arg7[%c36_144, %c0_145] : memref<342x96xbf16, #tpu.memory_space<vmem>>, vector<288x96xbf16>
    %c6_146 = arith.constant 6 : index
    %c0_147 = arith.constant 0 : index
    %c0_148 = arith.constant 0 : index
    %162 = vector.load %arg5[%c6_146, %c0_147, %c0_148] : memref<9x96x96xbf16, #tpu.memory_space<vmem>>, vector<1x96x96xbf16>
    %163 = vector.shape_cast %162 : vector<1x96x96xbf16> to vector<96x96xbf16>
    %cst_149 = arith.constant dense<0.000000e+00> : vector<288x96xf32>
    %164 = tpu.matmul %161, %163, %cst_149 {dimension_numbers = #tpu.dot_dimension_numbers<[1], [0], [0], [1], [0, 0, 1, 1], [], []>} : vector<288x96xbf16>, vector<96x96xbf16>, vector<288x96xf32> -> vector<288x96xf32>
    %165 = arith.addf %160, %164 : vector<288x96xf32>
    %c37_150 = arith.constant 37 : index
    %c0_151 = arith.constant 0 : index
    %166 = vector.load %arg7[%c37_150, %c0_151] : memref<342x96xbf16, #tpu.memory_space<vmem>>, vector<288x96xbf16>
    %c7_152 = arith.constant 7 : index
    %c0_153 = arith.constant 0 : index
    %c0_154 = arith.constant 0 : index
    %167 = vector.load %arg5[%c7_152, %c0_153, %c0_154] : memref<9x96x96xbf16, #tpu.memory_space<vmem>>, vector<1x96x96xbf16>
    %168 = vector.shape_cast %167 : vector<1x96x96xbf16> to vector<96x96xbf16>
    %cst_155 = arith.constant dense<0.000000e+00> : vector<288x96xf32>
    %169 = tpu.matmul %166, %168, %cst_155 {dimension_numbers = #tpu.dot_dimension_numbers<[1], [0], [0], [1], [0, 0, 1, 1], [], []>} : vector<288x96xbf16>, vector<96x96xbf16>, vector<288x96xf32> -> vector<288x96xf32>
    %170 = arith.addf %165, %169 : vector<288x96xf32>
    %c38_156 = arith.constant 38 : index
    %c0_157 = arith.constant 0 : index
    %171 = vector.load %arg7[%c38_156, %c0_157] : memref<342x96xbf16, #tpu.memory_space<vmem>>, vector<288x96xbf16>
    %c8_158 = arith.constant 8 : index
    %c0_159 = arith.constant 0 : index
    %c0_160 = arith.constant 0 : index
    %172 = vector.load %arg5[%c8_158, %c0_159, %c0_160] : memref<9x96x96xbf16, #tpu.memory_space<vmem>>, vector<1x96x96xbf16>
    %173 = vector.shape_cast %172 : vector<1x96x96xbf16> to vector<96x96xbf16>
    %cst_161 = arith.constant dense<0.000000e+00> : vector<288x96xf32>
    %174 = tpu.matmul %171, %173, %cst_161 {dimension_numbers = #tpu.dot_dimension_numbers<[1], [0], [0], [1], [0, 0, 1, 1], [], []>} : vector<288x96xbf16>, vector<96x96xbf16>, vector<288x96xf32> -> vector<288x96xf32>
    %175 = arith.addf %170, %174 : vector<288x96xf32>
    %176 = vector.broadcast %3 : vector<1x96xf32> to vector<288x96xf32>
    %177 = arith.addf %175, %176 : vector<288x96xf32>
    %cst_162 = arith.constant 0.000000e+00 : f32
    %178 = vector.broadcast %cst_162 : f32 to vector<288x96xf32>
    %179 = arith.maximumf %177, %178 : vector<288x96xf32>
    %180 = tpu.iota {dimensions = array<i32: 1>} : vector<288x96xi32>
    %c72_i32 = arith.constant 72 : i32
    %181 = vector.broadcast %c72_i32 : i32 to vector<288x96xi32>
    %182 = arith.cmpi sge, %180, %181 : vector<288x96xi32>
    %183 = arith.select %182, %179, %96 : vector<288x96xi1>, vector<288x96xf32>
    %c0_163 = arith.constant 0 : index
    %c0_164 = arith.constant 0 : index
    %c0_165 = arith.constant 0 : index
    %184 = vector.load %arg6[%c0_163, %c0_164, %c0_165] : memref<1x288x96xf32, #tpu.memory_space<vmem>>, vector<1x288x96xf32>
    %185 = vector.shape_cast %184 : vector<1x288x96xf32> to vector<288x96xf32>
    %186 = vector.shape_cast %183 : vector<288x96xf32> to vector<1x288x96xf32>
    tpu.vector_store %arg6[%c0_163, %c0_164, %c0_165], %186 {strides = array<i32>} : memref<1x288x96xf32, #tpu.memory_space<vmem>>, vector<1x288x96xf32>,
    return
  }
  func.func @transform_0(%arg0: i32) -> (i32, i32, i32) {
    %c0_i32 = arith.constant 0 : i32
    %c0_i32_0 = arith.constant 0 : i32
    %c0_i32_1 = arith.constant 0 : i32
    return %arg0, %c0_i32, %c0_i32_0 : i32, i32, i32
  }
  func.func @transform_1(%arg0: i32) -> (i32, i32) {
    %c0_i32 = arith.constant 0 : i32
    %c0_i32_0 = arith.constant 0 : i32
    %c0_i32_1 = arith.constant 0 : i32
    return %c0_i32, %c0_i32_0 : i32, i32
  }
  func.func @transform_2(%arg0: i32) -> (i32, i32) {
    %c0_i32 = arith.constant 0 : i32
    %c0_i32_0 = arith.constant 0 : i32
    %c0_i32_1 = arith.constant 0 : i32
    return %c0_i32, %c0_i32_0 : i32, i32
  }
  func.func @transform_3(%arg0: i32) -> (i32, i32, i32) {
    %c0_i32 = arith.constant 0 : i32
    %c0_i32_0 = arith.constant 0 : i32
    %c0_i32_1 = arith.constant 0 : i32
    %c0_i32_2 = arith.constant 0 : i32
    return %c0_i32, %c0_i32_0, %c0_i32_1 : i32, i32, i32
  }
  func.func @transform_4(%arg0: i32) -> (i32, i32, i32) {
    %c0_i32 = arith.constant 0 : i32
    %c0_i32_0 = arith.constant 0 : i32
    %c0_i32_1 = arith.constant 0 : i32
    %c0_i32_2 = arith.constant 0 : i32
    return %c0_i32, %c0_i32_0, %c0_i32_1 : i32, i32, i32
  }
  func.func @transform_5(%arg0: i32) -> (i32, i32, i32) {
    %c0_i32 = arith.constant 0 : i32
    %c0_i32_0 = arith.constant 0 : i32
    %c0_i32_1 = arith.constant 0 : i32
    return %arg0, %c0_i32, %c0_i32_0 : i32, i32, i32
  }
}

</mosaic_0001>

<llo_original>
// kernel: inception_forward.1
$region0: #{inception_forward.1}
  #allocation0 [shape = 'u32[]', space=smem, size = 0x4, offset = 0x4, fixed_abs, tag = 'smem constant byte address 0x4 - core index']
  #allocation1 [shape = 'u32[144,128]{1,0:T(1,128)}', space=vmem, size = 0x12000, scoped, tag = 'internal scratch']
  #allocation2 [shape = 'bf16[342,96]{1,0:T(8,128)(2,1)}', space=vmem, size = 0x15800, scoped, tag = 'scratch operand']
  %s0 = inlined_call_operand.vmem [shape: bf16[2,256,96], index: 0, kind: input, shape index: {}]
  %s1 = inlined_call_operand.vmem [shape: bf16[96,96], index: 1, kind: input, shape index: {}]
  %s2 = inlined_call_operand.vmem [shape: f32[4,96], index: 2, kind: input, shape index: {}]
  %s3 = inlined_call_operand.vmem [shape: bf16[9,96,96], index: 3, kind: input, shape index: {}]
  %s4 = inlined_call_operand.vmem [shape: bf16[9,96,96], index: 4, kind: input, shape index: {}]
  %s5 = inlined_call_operand.vmem [shape: f32[2,288,96], index: 5, kind: output, shape index: {}]
  %s6 = sld [smem:[#allocation0]]
  $region53: #{inception_forward.1} parent=0
    _
  %s8 = ssub.s32 1, %s6
  %s9 = scalar_select 0, %s8, %s6
  loop: start=0, step=1, limit=4
  $region2: #{inception_forward.1} parent=0 // loop_pre_header
    _
  $region3: #{inception_forward.1} parent=0 // loop_header
    %s11 = sphi 0, %s15
    %p12 = scmp.ge.s32.totalorder %s11, 4
    %s21 = sphi 0, %s23
    %s24 = sphi 0, %s21
    %s25 = sphi 0, %s24
    %s41 = sphi 0, %s25
    %s45 = sphi 0, %s45
    %s47 = sphi 0, %s45
    %s48 = sphi 0, %s47
    %s62 = sphi 0, %s48
    %s66 = sphi 0, %s66
    %s68 = sphi 0, %s66
    %s69 = sphi 0, %s68
    %s83 = sphi 0, %s69
    %s87 = sphi 0, %s87
    %s89 = sphi 0, %s87
    %s90 = sphi 0, %s89
    %s104 = sphi 0, %s90
    %s108 = sphi 0, %s108
    %s110 = sphi 0, %s108
    %s111 = sphi 0, %s110
    %s125 = sphi 0, %s111
    %s131 = sphi 0, %s133
    %s134 = sphi 0, %s131
    %s135 = sphi 0, %s134
    %s151 = sphi 0, %s135
  $region4: #{inception_forward.1} parent=0 // loop_header_branch
    %14 = sbr.rel (%p12) target = $region8
  $region5: #{inception_forward.1} parent=0 // loop_body
    %s16 = ssub.s32 %s11, 1
    %s17 = ssub.s32 %s11, 2
    %s18 = sadd.s32 %s11, 1
    %s19 = ssub.s32 %s11, %s18
    %p20 = scmp.eq.s32.totalorder %s19, 0
    %s22 = sadd.s32 %s21, 1
    %s23 = scalar_select %p20, %s21, %s22
    %p26 = pneg %p20
    %p27 = scmp.eq.s32.totalorder %s11, 1
    %p28 = por %p26, %p27
    %p29 = scmp.ne.s32.totalorder %s21, %s24
    %p30 = scmp.eq.s32.totalorder %s11, 0
    %p31 = por %p29, %p30
    %p32 = scmp.ne.s32.totalorder %s21, %s24
    %p33 = scmp.eq.s32.totalorder %s16, 1
    %p34 = por %p32, %p33
    %p35 = scmp.ne.s32.totalorder %s24, %s25
    %p36 = scmp.eq.s32.totalorder %s16, 0
    %p37 = por %p35, %p36
    %p38 = scmp.ne.s32.totalorder %s24, %s25
    %p39 = scmp.eq.s32.totalorder %s17, 1
    %p40 = por %p38, %p39
    %p42 = scmp.ne.s32.totalorder %s25, %s41
    %p43 = scmp.eq.s32.totalorder %s17, 0
    %p44 = por %p42, %p43
    %s46 = sadd.s32 %s45, 1
    %p49 = scmp.eq.s32.totalorder %s11, 1
    %p50 = scmp.ne.s32.totalorder %s45, %s47
    %p51 = scmp.eq.s32.totalorder %s11, 0
    %p52 = por %p50, %p51
    %p53 = scmp.ne.s32.totalorder %s45, %s47
    %p54 = scmp.eq.s32.totalorder %s16, 1
    %p55 = por %p53, %p54
    %p56 = scmp.ne.s32.totalorder %s47, %s48
    %p57 = scmp.eq.s32.totalorder %s16, 0
    %p58 = por %p56, %p57
    %p59 = scmp.ne.s32.totalorder %s47, %s48
    %p60 = scmp.eq.s32.totalorder %s17, 1
    %p61 = por %p59, %p60
    %p63 = scmp.ne.s32.totalorder %s48, %s62
    %p64 = scmp.eq.s32.totalorder %s17, 0
    %p65 = por %p63, %p64
    %s67 = sadd.s32 %s66, 1
    %p70 = scmp.eq.s32.totalorder %s11, 1
    %p71 = scmp.ne.s32.totalorder %s66, %s68
    %p72 = scmp.eq.s32.totalorder %s11, 0
    %p73 = por %p71, %p72
    %p74 = scmp.ne.s32.totalorder %s66, %s68
    %p75 = scmp.eq.s32.totalorder %s16, 1
    %p76 = por %p74, %p75
    %p77 = scmp.ne.s32.totalorder %s68, %s69
    %p78 = scmp.eq.s32.totalorder %s16, 0
    %p79 = por %p77, %p78
    %p80 = scmp.ne.s32.totalorder %s68, %s69
    %p81 = scmp.eq.s32.totalorder %s17, 1
    %p82 = por %p80, %p81
    %p84 = scmp.ne.s32.totalorder %s69, %s83
    %p85 = scmp.eq.s32.totalorder %s17, 0
    %p86 = por %p84, %p85
    %s88 = sadd.s32 %s87, 1
    %p91 = scmp.eq.s32.totalorder %s11, 1
    %p92 = scmp.ne.s32.totalorder %s87, %s89
    %p93 = scmp.eq.s32.totalorder %s11, 0
    %p94 = por %p92, %p93
    %p95 = scmp.ne.s32.totalorder %s87, %s89
    %p96 = scmp.eq.s32.totalorder %s16, 1
    %p97 = por %p95, %p96
    %p98 = scmp.ne.s32.totalorder %s89, %s90
    %p99 = scmp.eq.s32.totalorder %s16, 0
    %p100 = por %p98, %p99
    %p101 = scmp.ne.s32.totalorder %s89, %s90
    %p102 = scmp.eq.s32.totalorder %s17, 1
    %p103 = por %p101, %p102
    %p105 = scmp.ne.s32.totalorder %s90, %s104
    %p106 = scmp.eq.s32.totalorder %s17, 0
    %p107 = por %p105, %p106
    %s109 = sadd.s32 %s108, 1
    %p112 = scmp.eq.s32.totalorder %s11, 1
    %p113 = scmp.ne.s32.totalorder %s108, %s110
    %p114 = scmp.eq.s32.totalorder %s11, 0
    %p115 = por %p113, %p114
    %p116 = scmp.ne.s32.totalorder %s108, %s110
    %p117 = scmp.eq.s32.totalorder %s16, 1
    %p118 = por %p116, %p117
    %p119 = scmp.ne.s32.totalorder %s110, %s111
    %p120 = scmp.eq.s32.totalorder %s16, 0
    %p121 = por %p119, %p120
    %p122 = scmp.ne.s32.totalorder %s110, %s111
    %p123 = scmp.eq.s32.totalorder %s17, 1
    %p124 = por %p122, %p123
    %p126 = scmp.ne.s32.totalorder %s111, %s125
    %p127 = scmp.eq.s32.totalorder %s17, 0
    %p128 = por %p126, %p127
    %s129 = ssub.s32 %s11, %s18
    %p130 = scmp.eq.s32.totalorder %s129, 0
    %s132 = sadd.s32 %s131, 1
    %s133 = scalar_select %p130, %s131, %s132
    %p136 = pneg %p130
    %p137 = scmp.eq.s32.totalorder %s11, 1
    %p138 = por %p136, %p137
    %p139 = scmp.ne.s32.totalorder %s131, %s134
    %p140 = scmp.eq.s32.totalorder %s11, 0
    %p141 = por %p139, %p140
    %p142 = scmp.ne.s32.totalorder %s131, %s134
    %p143 = scmp.eq.s32.totalorder %s16, 1
    %p144 = por %p142, %p143
    %p145 = scmp.ne.s32.totalorder %s134, %s135
    %p146 = scmp.eq.s32.totalorder %s16, 0
    %p147 = por %p145, %p146
    %p148 = scmp.ne.s32.totalorder %s134, %s135
    %p149 = scmp.eq.s32.totalorder %s17, 1
    %p150 = por %p148, %p149
    %p152 = scmp.ne.s32.totalorder %s135, %s151
    %p153 = scmp.eq.s32.totalorder %s17, 0
    %p154 = por %p152, %p153
    %p155 = scmp.le.s32.totalorder 1, %s11
    %p156 = scmp.lt.s32.totalorder %s11, 3
    %p157 = pnand %p155, %p156
    %p158 = pneg %p157
    // Predicated region
    $region9: #{inception_forward.1} parent=5 // pred_check
      _
    $region10: #{inception_forward.1} parent=5 // pred_check_branch
      %160 = sbr.rel (%p157) target = $region12
    $region11: #{inception_forward.1} parent=5 // pred_region
      %s161 = ssub.s32 %s11, 1
      // Predicated region
      $region13: #{inception_forward.1} parent=11 // pred_check
        %p162 = pneg %p58
      $region14: #{inception_forward.1} parent=11 // pred_check_branch
        %164 = sbr.rel (%p162) target = $region16
      $region15: #{inception_forward.1} parent=11 // pred_region
        _
      $region16: #{inception_forward.1} parent=11 // pred_fallthru
        _
      // Predicated region
      $region17: #{inception_forward.1} parent=11 // pred_check
        %p165 = pneg %p79
      $region18: #{inception_forward.1} parent=11 // pred_check_branch
        %167 = sbr.rel (%p165) target = $region20
      $region19: #{inception_forward.1} parent=11 // pred_region
        _
      $region20: #{inception_forward.1} parent=11 // pred_fallthru
        _
      // Predicated region
      $region21: #{inception_forward.1} parent=11 // pred_check
        %p168 = pneg %p100
      $region22: #{inception_forward.1} parent=11 // pred_check_branch
        %170 = sbr.rel (%p168) target = $region24
      $region23: #{inception_forward.1} parent=11 // pred_region
        _
      $region24: #{inception_forward.1} parent=11 // pred_fallthru
        _
      // Predicated region
      $region25: #{inception_forward.1} parent=11 // pred_check
        %p171 = pneg %p121
      $region26: #{inception_forward.1} parent=11 // pred_check_branch
        %173 = sbr.rel (%p171) target = $region28
      $region27: #{inception_forward.1} parent=11 // pred_region
        _
      $region28: #{inception_forward.1} parent=11 // pred_fallthru
        _
    $region12: #{inception_forward.1} parent=5 // pred_fallthru
      _
    %p174 = scmp.lt.s32.totalorder %s11, 2
    // Predicated region
    $region29: #{inception_forward.1} parent=5 // pred_check
      %p175 = pneg %p174
    $region30: #{inception_forward.1} parent=5 // pred_check_branch
      %177 = sbr.rel (%p175) target = $region32
    $region31: #{inception_forward.1} parent=5 // pred_region
      // Predicated region
      $region33: #{inception_forward.1} parent=31 // pred_check
        %p178 = pneg %p31
      $region34: #{inception_forward.1} parent=31 // pred_check_branch
        %180 = sbr.rel (%p178) target = $region36
      $region35: #{inception_forward.1} parent=31 // pred_region
        %p181 = scmp.lt.s32.totalorder %s11, 1
        %s182 = scalar_select %p181, %s11, 1
        %s183 = smul.addr %s182, 32
        %s184 = smul.addr %s183, 4
        %s185 = scalar_lea.vmem %s0, %s184
      $region36: #{inception_forward.1} parent=31 // pred_fallthru
        _
    $region32: #{inception_forward.1} parent=5 // pred_fallthru
      _
    %p186 = scmp.le.s32.totalorder 1, %s11
    %p187 = scmp.lt.s32.totalorder %s11, 3
    %p188 = pnand %p186, %p187
    %p189 = pneg %p188
    // Predicated region
    $region37: #{inception_forward.1} parent=5 // pred_check
      _
    $region38: #{inception_forward.1} parent=5 // pred_check_branch
      %191 = sbr.rel (%p188) target = $region40
    $region39: #{inception_forward.1} parent=5 // pred_region
      %s192 = ssub.s32 %s11, 1
      %p193 = scmp.lt.s32.totalorder %s16, 1
      %s194 = scalar_select %p193, %s16, 1
      %s195 = smul.addr %s194, 32
      %s196 = smul.addr %s195, 4
      %s197 = scalar_lea.vmem %s0, %s196
      %p198 = pneg %p37
      %p199 = pneg %p34
      %p200 = pneg %p58
      %p201 = pneg %p55
      %p202 = pneg %p79
      %p203 = pneg %p76
      %p204 = pneg %p100
      %p205 = pneg %p97
      %p206 = pneg %p121
      %p207 = pneg %p118
      %p208 = pneg %p147
      %p209 = pneg %p144
      %p210 = scmp.lt.s32.totalorder %s16, 1
      %s211 = scalar_select %p210, %s16, 1
      %s212 = smul.addr %s211, 36
      %s213 = smul.addr %s212, 8
      %s214 = scalar_lea.vmem %s5, %s213
      %p215 = scmp.lt.s32.totalorder %s16, 1
      %s216 = scalar_select %p215, %s16, 1
      %s217 = smul.addr %s216, 32
      %s218 = smul.addr %s217, 4
      %s219 = scalar_lea.vmem %s0, %s218
      %p220 = scmp.lt.s32.totalorder %s16, 1
      %s221 = scalar_select %p220, %s16, 1
      %s222 = smul.addr %s221, 36
      %s223 = smul.addr %s222, 8
      %s224 = scalar_lea.vmem %s5, %s223
      %v226 = vld [vmem:[%s2] sm:$0x1]
      %v227 = vld [vmem:[%s2 + $0x1] sm:$0x1]
      %v228 = vld [vmem:[%s2 + $0x2] sm:$0x1]
      %v229 = vld [vmem:[%s2 + $0x3] sm:$0x1]
      %v230 = vld [vmem:[%s219] sm:$0xf]
      %v231 = vld [vmem:[%s219 + $0x4] sm:$0xf]
      %v232 = vld [vmem:[%s219 + $0x8] sm:$0xf]
      %v233 = vld [vmem:[%s219 + $0xc] sm:$0xf]
      %v234 = vld [vmem:[%s219 + $0x10] sm:$0xf]
      %v235 = vld [vmem:[%s219 + $0x14] sm:$0xf]
      %v236 = vld [vmem:[%s219 + $0x18] sm:$0xf]
      %v237 = vld [vmem:[%s219 + $0x1c] sm:$0xf]
      %v238 = vld [vmem:[%s219 + $0x20] sm:$0xf]
      %v239 = vld [vmem:[%s219 + $0x24] sm:$0xf]
      %v240 = vld [vmem:[%s219 + $0x28] sm:$0xf]
      %v241 = vld [vmem:[%s219 + $0x2c] sm:$0xf]
      %v242 = vld [vmem:[%s219 + $0x30] sm:$0xf]
      %v243 = vld [vmem:[%s219 + $0x34] sm:$0xf]
      %v244 = vld [vmem:[%s219 + $0x38] sm:$0xf]
      %v245 = vld [vmem:[%s219 + $0x3c] sm:$0xf]
      %v246 = vld [vmem:[%s219 + $0x40] sm:$0xf]
      %v247 = vld [vmem:[%s219 + $0x44] sm:$0xf]
      %v248 = vld [vmem:[%s219 + $0x48] sm:$0xf]
      %v249 = vld [vmem:[%s219 + $0x4c] sm:$0xf]
      %v250 = vld [vmem:[%s219 + $0x50] sm:$0xf]
      %v251 = vld [vmem:[%s219 + $0x54] sm:$0xf]
      %v252 = vld [vmem:[%s219 + $0x58] sm:$0xf]
      %v253 = vld [vmem:[%s219 + $0x5c] sm:$0xf]
      %v254 = vld [vmem:[%s219 + $0x60] sm:$0xf]
      %v255 = vld [vmem:[%s219 + $0x64] sm:$0xf]
      %v256 = vld [vmem:[%s219 + $0x68] sm:$0xf]
      %v257 = vld [vmem:[%s219 + $0x6c] sm:$0xf]
      %v258 = vld [vmem:[%s219 + $0x70] sm:$0xf]
      %v259 = vld [vmem:[%s219 + $0x74] sm:$0xf]
      %v260 = vld [vmem:[%s219 + $0x78] sm:$0xf]
      %v261 = vld [vmem:[%s219 + $0x7c] sm:$0xf]
      %v262 = vld [vmem:[%s1] sm:$0xf]
      %v263 = vld [vmem:[%s1 + $0x4] sm:$0xf]
      %v264 = vld [vmem:[%s1 + $0x8] sm:$0xf]
      %v265 = vld [vmem:[%s1 + $0xc] sm:$0xf]
      %v266 = vld [vmem:[%s1 + $0x10] sm:$0xf]
      %v267 = vld [vmem:[%s1 + $0x14] sm:$0xf]
      %v268 = vld [vmem:[%s1 + $0x18] sm:$0xf]
      %v269 = vld [vmem:[%s1 + $0x1c] sm:$0xf]
      %v270 = vld [vmem:[%s1 + $0x20] sm:$0xf]
      %v271 = vld [vmem:[%s1 + $0x24] sm:$0xf]
      %v272 = vld [vmem:[%s1 + $0x28] sm:$0xf]
      %v273 = vld [vmem:[%s1 + $0x2c] sm:$0xf]
      %v274 = vlaneseq
      %v275 = vshrl.u32 %v274, 7
      %v276 = vsub.s32 0, %v275
      %v277 = vrot.slane %v226, %v276
      %v310 = vunpack.c.l.b16 %v230
      %v311 = vunpack.c.l.b16 %v231
      %v312 = vunpack.c.l.b16 %v232
      %v313 = vunpack.c.l.b16 %v233
      %v314 = vunpack.c.l.b16 %v234
      %v315 = vunpack.c.l.b16 %v235
      %v316 = vunpack.c.l.b16 %v236
      %v317 = vunpack.c.l.b16 %v237
      %v318 = vunpack.c.l.b16 %v238
      %v319 = vunpack.c.l.b16 %v239
      %v320 = vunpack.c.l.b16 %v240
      %v321 = vunpack.c.l.b16 %v241
      %v322 = vunpack.c.l.b16 %v242
      %v323 = vunpack.c.l.b16 %v243
      %v324 = vunpack.c.l.b16 %v244
      %v325 = vunpack.c.l.b16 %v245
      %v326 = vunpack.c.l.b16 %v246
      %v327 = vunpack.c.l.b16 %v247
      %v328 = vunpack.c.l.b16 %v248
      %v329 = vunpack.c.l.b16 %v249
      %v330 = vunpack.c.l.b16 %v250
      %v331 = vunpack.c.l.b16 %v251
      %v332 = vunpack.c.l.b16 %v252
      %v333 = vunpack.c.l.b16 %v253
      %v334 = vunpack.c.l.b16 %v254
      %v335 = vunpack.c.l.b16 %v255
      %v336 = vunpack.c.l.b16 %v256
      %v337 = vunpack.c.l.b16 %v257
      %v338 = vunpack.c.l.b16 %v258
      %v339 = vunpack.c.l.b16 %v259
      %v340 = vunpack.c.l.b16 %v260
      %v341 = vunpack.c.l.b16 %v261
      %v342 = vpack.c.b16 %v311, %v310
      %v343 = vpack.c.b16 %v313, %v312
      %v344 = vpack.c.b16 %v315, %v314
      %v345 = vpack.c.b16 %v317, %v316
      %v346 = vpack.c.b16 %v319, %v318
      %v347 = vpack.c.b16 %v321, %v320
      %v348 = vpack.c.b16 %v323, %v322
      %v349 = vpack.c.b16 %v325, %v324
      %v350 = vpack.c.b16 %v327, %v326
      %v351 = vpack.c.b16 %v329, %v328
      %v352 = vpack.c.b16 %v331, %v330
      %v353 = vpack.c.b16 %v333, %v332
      %v354 = vpack.c.b16 %v335, %v334
      %v355 = vpack.c.b16 %v337, %v336
      %v356 = vpack.c.b16 %v339, %v338
      %v357 = vpack.c.b16 %v341, %v340
      %v370 = vunpack.c.l.b16 %v262
      %v371 = vunpack.c.l.b16 %v263
      %v372 = vunpack.c.l.b16 %v264
      %v373 = vunpack.c.l.b16 %v265
      %v374 = vunpack.c.l.b16 %v266
      %v375 = vunpack.c.l.b16 %v267
      %v376 = vunpack.c.l.b16 %v268
      %v377 = vunpack.c.l.b16 %v269
      %v378 = vunpack.c.l.b16 %v270
      %v379 = vunpack.c.l.b16 %v271
      %v380 = vunpack.c.l.b16 %v272
      %v381 = vunpack.c.l.b16 %v273
      %v382 = vpack.c.b16 %v371, %v370
      %v383 = vpack.c.b16 %v373, %v372
      %v384 = vpack.c.b16 %v375, %v374
      %v385 = vpack.c.b16 %v377, %v376
      %v386 = vpack.c.b16 %v379, %v378
      %v387 = vpack.c.b16 %v381, %v380
      %vm394 = vcmask 785408
      %v396 = vsel %vm394, %v342, 0
      %v399 = vsel %vm394, %v343, 0
      %v402 = vsel %vm394, %v344, 0
      %v405 = vsel %vm394, %v345, 0
      %v408 = vsel %vm394, %v346, 0
      %v411 = vsel %vm394, %v347, 0
      %v414 = vsel %vm394, %v348, 0
      %v417 = vsel %vm394, %v349, 0
      %v420 = vsel %vm394, %v350, 0
      %v423 = vsel %vm394, %v351, 0
      %v426 = vsel %vm394, %v352, 0
      %v429 = vsel %vm394, %v353, 0
      %v432 = vsel %vm394, %v354, 0
      %v435 = vsel %vm394, %v355, 0
      %v438 = vsel %vm394, %v356, 0
      %v441 = vsel %vm394, %v357, 0
      %443 = vmatprep.subr.bf16.mxu0 0
      %444 = vmatpush1.bf16.msra.mxu0 %v382
      %445 = vmatprep.subr.bf16.mxu0 0
      %446 = vmatpush1.bf16.msra.mxu0 %v383
      %447 = vmatprep.subr.bf16.mxu0 0
      %448 = vmatpush1.bf16.msra.mxu0 %v384
      %449 = vmatprep.subr.bf16.mxu0 0
      %450 = vmatpush1.bf16.msra.mxu0 %v385
      %451 = vmatprep.subr.bf16.mxu0 0
      %452 = vmatpush1.bf16.msra.mxu0 %v386
      %453 = vmatprep.subr.bf16.mxu0 0
      %454 = vmatpush1.bf16.msra.mxu0 %v387
      %455 = vmatprep.subr.bf16.mxu0 0
      %456 = vmatpush1.bf16.msra.mxu0 0
      %457 = vmatprep.subr.bf16.mxu0 0
      %458 = vmatpush1.bf16.msra.mxu0 0
      %459 = vmatprep.subr.bf16.mxu0 0
      %460 = vmatpush1.bf16.msra.mxu0 0
      %461 = vmatprep.subr.bf16.mxu0 0
      %462 = vmatpush1.bf16.msra.mxu0 0
      %463 = vmatprep.subr.bf16.mxu0 0
      %464 = vmatpush1.bf16.msra.mxu0 0
      %465 = vmatprep.subr.bf16.mxu0 0
      %466 = vmatpush1.bf16.msra.mxu0 0
      %467 = vmatprep.subr.bf16.mxu0 0
      %468 = vmatpush1.bf16.msra.mxu0 0
      %469 = vmatprep.subr.bf16.mxu0 0
      %470 = vmatpush1.bf16.msra.mxu0 0
      %471 = vmatprep.subr.bf16.mxu0 0
      %472 = vmatpush1.bf16.msra.mxu0 0
      %473 = vmatprep.subr.bf16.mxu0 0
      %474 = vmatpush1.bf16.msra.mxu0 0
      %475 = vmatprep.mubr.bf16.mxu0 0
      %476 = vmatmul.mubr.bf16.gmra.mrb[0].mxu0 %v396
      %v477 = vpop.f32.mrb[0].mxu0
      %v478 = vadd.f32 %v277, %v477
      %v479 = vpop.f32.mrb[0].mxu0
      %v480 = vpop.f32.mrb[0].mxu0
      %v481 = vadd.f32 %v277, %v480
      %v482 = vpop.f32.mrb[0].mxu0
      %483 = vmatprep.mubr.bf16.mxu0 0
      %484 = vmatmul.mubr.bf16.gmra.mrb[0].mxu0 %v399
      %v485 = vpop.f32.mrb[0].mxu0
      %v486 = vadd.f32 %v277, %v485
      %v487 = vpop.f32.mrb[0].mxu0
      %v488 = vpop.f32.mrb[0].mxu0
      %v489 = vadd.f32 %v277, %v488
      %v490 = vpop.f32.mrb[0].mxu0
      %491 = vmatprep.mubr.bf16.mxu0 0
      %492 = vmatmul.mubr.bf16.gmra.mrb[0].mxu0 %v402
      %v493 = vpop.f32.mrb[0].mxu0
      %v494 = vadd.f32 %v277, %v493
      %v495 = vpop.f32.mrb[0].mxu0
      %v496 = vpop.f32.mrb[0].mxu0
      %v497 = vadd.f32 %v277, %v496
      %v498 = vpop.f32.mrb[0].mxu0
      %499 = vmatprep.mubr.bf16.mxu0 0
      %500 = vmatmul.mubr.bf16.gmra.mrb[0].mxu0 %v405
      %v501 = vpop.f32.mrb[0].mxu0
      %v502 = vadd.f32 %v277, %v501
      %v503 = vpop.f32.mrb[0].mxu0
      %v504 = vpop.f32.mrb[0].mxu0
      %v505 = vadd.f32 %v277, %v504
      %v506 = vpop.f32.mrb[0].mxu0
      %507 = vmatprep.mubr.bf16.mxu0 0
      %508 = vmatmul.mubr.bf16.gmra.mrb[0].mxu0 %v408
      %v509 = vpop.f32.mrb[0].mxu0
      %v510 = vadd.f32 %v277, %v509
      %v511 = vpop.f32.mrb[0].mxu0
      %v512 = vpop.f32.mrb[0].mxu0
      %v513 = vadd.f32 %v277, %v512
      %v514 = vpop.f32.mrb[0].mxu0
      %515 = vmatprep.mubr.bf16.mxu0 0
      %516 = vmatmul.mubr.bf16.gmra.mrb[0].mxu0 %v411
      %v517 = vpop.f32.mrb[0].mxu0
      %v518 = vadd.f32 %v277, %v517
      %v519 = vpop.f32.mrb[0].mxu0
      %v520 = vpop.f32.mrb[0].mxu0
      %v521 = vadd.f32 %v277, %v520
      %v522 = vpop.f32.mrb[0].mxu0
      %523 = vmatprep.mubr.bf16.mxu0 0
      %524 = vmatmul.mubr.bf16.gmra.mrb[0].mxu0 %v414
      %v525 = vpop.f32.mrb[0].mxu0
      %v526 = vadd.f32 %v277, %v525
      %v527 = vpop.f32.mrb[0].mxu0
      %v528 = vpop.f32.mrb[0].mxu0
      %v529 = vadd.f32 %v277, %v528
      %v530 = vpop.f32.mrb[0].mxu0
      %531 = vmatprep.mubr.bf16.mxu0 0
      %532 = vmatmul.mubr.bf16.gmra.mrb[0].mxu0 %v417
      %v533 = vpop.f32.mrb[0].mxu0
      %v534 = vadd.f32 %v277, %v533
      %v535 = vpop.f32.mrb[0].mxu0
      %v536 = vpop.f32.mrb[0].mxu0
      %v537 = vadd.f32 %v277, %v536
      %v538 = vpop.f32.mrb[0].mxu0
      %539 = vmatprep.mubr.bf16.mxu0 0
      %540 = vmatmul.mubr.bf16.gmra.mrb[0].mxu0 %v420
      %v541 = vpop.f32.mrb[0].mxu0
      %v542 = vadd.f32 %v277, %v541
      %v543 = vpop.f32.mrb[0].mxu0
      %v544 = vpop.f32.mrb[0].mxu0
      %v545 = vadd.f32 %v277, %v544
      %v546 = vpop.f32.mrb[0].mxu0
      %547 = vmatprep.mubr.bf16.mxu0 0
      %548 = vmatmul.mubr.bf16.gmra.mrb[0].mxu0 %v423
      %v549 = vpop.f32.mrb[0].mxu0
      %v550 = vadd.f32 %v277, %v549
      %v551 = vpop.f32.mrb[0].mxu0
      %v552 = vpop.f32.mrb[0].mxu0
      %v553 = vadd.f32 %v277, %v552
      %v554 = vpop.f32.mrb[0].mxu0
      %555 = vmatprep.mubr.bf16.mxu0 0
      %556 = vmatmul.mubr.bf16.gmra.mrb[0].mxu0 %v426
      %v557 = vpop.f32.mrb[0].mxu0
      %v558 = vadd.f32 %v277, %v557
      %v559 = vpop.f32.mrb[0].mxu0
      %v560 = vpop.f32.mrb[0].mxu0
      %v561 = vadd.f32 %v277, %v560
      %v562 = vpop.f32.mrb[0].mxu0
      %563 = vmatprep.mubr.bf16.mxu0 0
      %564 = vmatmul.mubr.bf16.gmra.mrb[0].mxu0 %v429
      %v565 = vpop.f32.mrb[0].mxu0
      %v566 = vadd.f32 %v277, %v565
      %v567 = vpop.f32.mrb[0].mxu0
      %v568 = vpop.f32.mrb[0].mxu0
      %v569 = vadd.f32 %v277, %v568
      %v570 = vpop.f32.mrb[0].mxu0
      %571 = vmatprep.mubr.bf16.mxu0 0
      %572 = vmatmul.mubr.bf16.gmra.mrb[0].mxu0 %v432
      %v573 = vpop.f32.mrb[0].mxu0
      %v574 = vadd.f32 %v277, %v573
      %v575 = vpop.f32.mrb[0].mxu0
      %v576 = vpop.f32.mrb[0].mxu0
      %v577 = vadd.f32 %v277, %v576
      %v578 = vpop.f32.mrb[0].mxu0
      %579 = vmatprep.mubr.bf16.mxu0 0
      %580 = vmatmul.mubr.bf16.gmra.mrb[0].mxu0 %v435
      %v581 = vpop.f32.mrb[0].mxu0
      %v582 = vadd.f32 %v277, %v581
      %v583 = vpop.f32.mrb[0].mxu0
      %v584 = vpop.f32.mrb[0].mxu0
      %v585 = vadd.f32 %v277, %v584
      %v586 = vpop.f32.mrb[0].mxu0
      %587 = vmatprep.mubr.bf16.mxu0 0
      %588 = vmatmul.mubr.bf16.gmra.mrb[0].mxu0 %v438
      %v589 = vpop.f32.mrb[0].mxu0
      %v590 = vadd.f32 %v277, %v589
      %v591 = vpop.f32.mrb[0].mxu0
      %v592 = vpop.f32.mrb[0].mxu0
      %v593 = vadd.f32 %v277, %v592
      %v594 = vpop.f32.mrb[0].mxu0
      %595 = vmatprep.mubr.bf16.mxu0 0
      %596 = vmatmul.mubr.bf16.gmra.mrb[0].mxu0 %v441
      %v597 = vpop.f32.mrb[0].mxu0
      %v598 = vadd.f32 %v277, %v597
      %v599 = vpop.f32.mrb[0].mxu0
      %v600 = vpop.f32.mrb[0].mxu0
      %v601 = vadd.f32 %v277, %v600
      %v602 = vpop.f32.mrb[0].mxu0
      %603 = vdwg.mxu0
      %v604 = vlaneseq
      %v605 = vshrl.u32 %v604, 7
      %v606 = vsub.s32 0, %v605
      %v607 = vrot.slane %v227, %v606
      %v608 = vmax.f32 %v478, %v607
      %v609 = vmax.f32 %v481, %v607
      %v610 = vmax.f32 %v486, %v607
      %v611 = vmax.f32 %v489, %v607
      %v612 = vmax.f32 %v494, %v607
      %v613 = vmax.f32 %v497, %v607
      %v614 = vmax.f32 %v502, %v607
      %v615 = vmax.f32 %v505, %v607
      %v616 = vmax.f32 %v510, %v607
      %v617 = vmax.f32 %v513, %v607
      %v618 = vmax.f32 %v518, %v607
      %v619 = vmax.f32 %v521, %v607
      %v620 = vmax.f32 %v526, %v607
      %v621 = vmax.f32 %v529, %v607
      %v622 = vmax.f32 %v534, %v607
      %v623 = vmax.f32 %v537, %v607
      %v624 = vmax.f32 %v542, %v607
      %v625 = vmax.f32 %v545, %v607
      %v626 = vmax.f32 %v550, %v607
      %v627 = vmax.f32 %v553, %v607
      %v628 = vmax.f32 %v558, %v607
      %v629 = vmax.f32 %v561, %v607
      %v630 = vmax.f32 %v566, %v607
      %v631 = vmax.f32 %v569, %v607
      %v632 = vmax.f32 %v574, %v607
      %v633 = vmax.f32 %v577, %v607
      %v634 = vmax.f32 %v582, %v607
      %v635 = vmax.f32 %v585, %v607
      %v636 = vmax.f32 %v590, %v607
      %v637 = vmax.f32 %v593, %v607
      %v638 = vmax.f32 %v598, %v607
      %v639 = vmax.f32 %v601, %v607
      %v640 = vpack.c.bf16 %v609, %v608
      %v641 = vpack.c.bf16 %v611, %v610
      %v642 = vpack.c.bf16 %v613, %v612
      %v643 = vpack.c.bf16 %v615, %v614
      %v644 = vpack.c.bf16 %v617, %v616
      %v645 = vpack.c.bf16 %v619, %v618
      %v646 = vpack.c.bf16 %v621, %v620
      %v647 = vpack.c.bf16 %v623, %v622
      %v648 = vpack.c.bf16 %v625, %v624
      %v649 = vpack.c.bf16 %v627, %v626
      %v650 = vpack.c.bf16 %v629, %v628
      %v651 = vpack.c.bf16 %v631, %v630
      %v652 = vpack.c.bf16 %v633, %v632
      %v653 = vpack.c.bf16 %v635, %v634
      %v654 = vpack.c.bf16 %v637, %v636
      %v655 = vpack.c.bf16 %v639, %v638
      %vm656 = vcmask 781312
      %657 = vst.msk [vmem:[#allocation2] sm:$0xf] %vm656, 0
      %658 = vst.msk [vmem:[#allocation2 + $0x4] sm:$0xf] %vm656, 0
      %659 = vst.msk [vmem:[#allocation2 + $0x8] sm:$0xf] %vm656, 0
      %660 = vst.msk [vmem:[#allocation2 + $0xc] sm:$0xf] %vm656, 0
      %661 = vst.msk [vmem:[#allocation2 + $0x10] sm:$0xf] %vm656, 0
      %662 = vst.msk [vmem:[#allocation2 + $0x14] sm:$0xf] %vm656, 0
      %663 = vst.msk [vmem:[#allocation2 + $0x18] sm:$0xf] %vm656, 0
      %664 = vst.msk [vmem:[#allocation2 + $0x1c] sm:$0xf] %vm656, 0
      %665 = vst.msk [vmem:[#allocation2 + $0x20] sm:$0xf] %vm656, 0
      %666 = vst.msk [vmem:[#allocation2 + $0x24] sm:$0xf] %vm656, 0
      %667 = vst.msk [vmem:[#allocation2 + $0x28] sm:$0xf] %vm656, 0
      %668 = vst.msk [vmem:[#allocation2 + $0x2c] sm:$0xf] %vm656, 0
      %669 = vst.msk [vmem:[#allocation2 + $0x30] sm:$0xf] %vm656, 0
      %670 = vst.msk [vmem:[#allocation2 + $0x34] sm:$0xf] %vm656, 0
      %671 = vst.msk [vmem:[#allocation2 + $0x38] sm:$0xf] %vm656, 0
      %672 = vst.msk [vmem:[#allocation2 + $0x3c] sm:$0xf] %vm656, 0
      %673 = vst.msk [vmem:[#allocation2 + $0x40] sm:$0xf] %vm656, 0
      %674 = vst.msk [vmem:[#allocation2 + $0x44] sm:$0xf] %vm656, 0
      %675 = vst.msk [vmem:[#allocation2 + $0x48] sm:$0xf] %vm656, 0
      %676 = vst.msk [vmem:[#allocation2 + $0x4c] sm:$0xf] %vm656, 0
      %677 = vst.msk [vmem:[#allocation2 + $0x50] sm:$0xf] %vm656, 0
      %678 = vst.msk [vmem:[#allocation2 + $0x54] sm:$0xf] %vm656, 0
      %679 = vst.msk [vmem:[#allocation2 + $0x58] sm:$0xf] %vm656, 0
      %680 = vst.msk [vmem:[#allocation2 + $0x5c] sm:$0xf] %vm656, 0
      %681 = vst.msk [vmem:[#allocation2 + $0x60] sm:$0xf] %vm656, 0
      %682 = vst.msk [vmem:[#allocation2 + $0x64] sm:$0xf] %vm656, 0
      %683 = vst.msk [vmem:[#allocation2 + $0x68] sm:$0xf] %vm656, 0
      %684 = vst.msk [vmem:[#allocation2 + $0x6c] sm:$0xf] %vm656, 0
      %685 = vst.msk [vmem:[#allocation2 + $0x70] sm:$0xf] %vm656, 0
      %686 = vst.msk [vmem:[#allocation2 + $0x74] sm:$0xf] %vm656, 0
      %687 = vst.msk [vmem:[#allocation2 + $0x78] sm:$0xf] %vm656, 0
      %688 = vst.msk [vmem:[#allocation2 + $0x7c] sm:$0xf] %vm656, 0
      %689 = vst.msk [vmem:[#allocation2 + $0x80] sm:$0xf] %vm656, 0
      %690 = vst.msk [vmem:[#allocation2 + $0x84] sm:$0xf] %vm656, 0
      %691 = vst.msk [vmem:[#allocation2 + $0x88] sm:$0xf] %vm656, 0
      %692 = vst.msk [vmem:[#allocation2 + $0x8c] sm:$0xf] %vm656, 0
      %693 = vst.msk [vmem:[#allocation2 + $0x90] sm:$0xf] %vm656, 0
      %694 = vst.msk [vmem:[#allocation2 + $0x94] sm:$0xf] %vm656, 0
      %695 = vst.msk [vmem:[#allocation2 + $0x98] sm:$0xf] %vm656, 0
      %696 = vst.msk [vmem:[#allocation2 + $0x9c] sm:$0xf] %vm656, 0
      %697 = vst.msk [vmem:[#allocation2 + $0xa0] sm:$0xf] %vm656, 0
      %698 = vst.msk [vmem:[#allocation2 + $0xa4] sm:$0xf] %vm656, 0
      %vm699 = vcmask 780288
      %700 = vst.msk [vmem:[#allocation2 + $0xa8] sm:$0x7] %vm699, 0
      %v702 = vunpack.c.l.b16 %v640
      %v703 = vunpack.c.h.b16 %v640
      %v704 = vpack.c.b16 %v702, %v702
      %v705 = vpack.c.b16 %v703, %v703
      %vm706 = vsmask.f32 1280
      %vm707 = vsmask.f32 5392
      %vm708 = vmor %vm706, %vm707
      %v710 = vshrl.u32 %v704, 16
      %v712 = vrot.slane %v710, 6
      %v713 = vshll.u32 %v704, 16
      %v715 = vrot.slane %v713, 7
      %v716 = vor.u32 %v712, %v715
      %v717 = vrot.slane %v716, 4
      %v719 = vshrl.u32 %v705, 16
      %v721 = vrot.slane %v719, 6
      %v722 = vshll.u32 %v705, 16
      %v724 = vrot.slane %v722, 7
      %v725 = vor.u32 %v721, %v724
      %v726 = vsel %vm708, %v717, %v725
      %v727 = vrot.slane %v725, 4
      %vm731 = vcmask 781313
      %vm732 = vsmask.f32 7942
      %vm733 = vmand %vm731, %vm732
      %v734 = vld [vmem:[#allocation2 + $0x8] sm:$0xe]
      %v735 = vsel %vm733, %v716, %v734
      %736 = vst [vmem:[#allocation2 + $0x8] sm:$0xe] %v735
      %737 = vst.msk [vmem:[#allocation2 + $0xc] sm:$0xf] %vm656, %v726
      %vm738 = vcmask 779264
      %vm739 = vmand %vm738, %vm706
      %v740 = vld [vmem:[#allocation2 + $0x10] sm:$0x3]
      %v741 = vsel %vm739, %v727, %v740
      %742 = vst [vmem:[#allocation2 + $0x10] sm:$0x3] %v741
      %v744 = vunpack.c.l.b16 %v641
      %v745 = vunpack.c.h.b16 %v641
      %v746 = vpack.c.b16 %v744, %v744
      %v747 = vpack.c.b16 %v745, %v745
      %vm748 = vsmask.f32 2304
      %vm749 = vsmask.f32 6416
      %vm750 = vmor %vm748, %vm749
      %v752 = vshrl.u32 %v746, 16
      %v754 = vrot.slane %v752, 5
      %v755 = vshll.u32 %v746, 16
      %v757 = vrot.slane %v755, 6
      %v758 = vor.u32 %v754, %v757
      %v759 = vrot.slane %v758, 4
      %v761 = vshrl.u32 %v747, 16
      %v763 = vrot.slane %v761, 5
      %v764 = vshll.u32 %v747, 16
      %v766 = vrot.slane %v764, 6
      %v767 = vor.u32 %v763, %v766
      %v768 = vsel %vm750, %v759, %v767
      %v769 = vrot.slane %v767, 4
      %vm773 = vcmask 781314
      %vm774 = vsmask.f32 7946
      %vm775 = vmand %vm773, %vm774
      %v776 = vld [vmem:[#allocation2 + $0x10] sm:$0xc]
      %v777 = vsel %vm775, %v758, %v776
      %778 = vst [vmem:[#allocation2 + $0x10] sm:$0xc] %v777
      %779 = vst.msk [vmem:[#allocation2 + $0x14] sm:$0xf] %vm656, %v768
      %vm780 = vcmask 780288
      %vm781 = vmand %vm780, %vm748
      %v782 = vld [vmem:[#allocation2 + $0x18] sm:$0x7]
      %v783 = vsel %vm781, %v769, %v782
      %784 = vst [vmem:[#allocation2 + $0x18] sm:$0x7] %v783
      %v786 = vunpack.c.l.b16 %v642
      %v787 = vunpack.c.h.b16 %v642
      %v788 = vpack.c.b16 %v786, %v786
      %v789 = vpack.c.b16 %v787, %v787
      %vm790 = vsmask.f32 3328
      %vm791 = vsmask.f32 7440
      %vm792 = vmor %vm790, %vm791
      %v794 = vshll.u32 %v788, 16
      %v796 = vrot.slane %v794, 5
      %v797 = vshrl.u32 %v788, 16
      %v799 = vrot.slane %v797, 4
      %v800 = vor.u32 %v799, %v796
      %v801 = vrot.slane %v800, 4
      %v803 = vshll.u32 %v789, 16
      %v805 = vrot.slane %v803, 5
      %v806 = vsel %vm792, %v801, %v805
      %v807 = vshrl.u32 %v789, 16
      %v809 = vrot.slane %v807, 4
      %v810 = vor.u32 %v809, %v805
      %v811 = vrot.slane %v810, 4
      %vm815 = vcmask 781315
      %vm816 = vsmask.f32 7950
      %vm817 = vmand %vm815, %vm816
      %v818 = vld [vmem:[#allocation2 + $0x18] sm:$0x8]
      %v819 = vsel %vm817, %v796, %v818
      %820 = vst [vmem:[#allocation2 + $0x18] sm:$0x8] %v819
      %821 = vst.msk [vmem:[#allocation2 + $0x1c] sm:$0xf] %vm656, %v806
      %vm822 = vcmask 781312
      %vm823 = vmand %vm822, %vm790
      %v824 = vld [vmem:[#allocation2 + $0x20] sm:$0xf]
      %v825 = vsel %vm823, %v811, %v824
      %826 = vst [vmem:[#allocation2 + $0x20] sm:$0xf] %v825
      %v828 = vunpack.c.l.b16 %v643
      %v829 = vunpack.c.h.b16 %v643
      %v830 = vpack.c.b16 %v828, %v828
      %v831 = vpack.c.b16 %v829, %v829
      %vm832 = vsmask.f32 256
      %vm833 = vsmask.f32 4368
      %vm834 = vmor %vm832, %vm833
      %v836 = vshrl.u32 %v830, 16
      %v838 = vrot.slane %v836, 7
      %v839 = vshll.u32 %v830, 16
      %v841 = vor.u32 %v838, %v839
      %v842 = vrot.slane %v838, 4
      %v844 = vshrl.u32 %v831, 16
      %v846 = vrot.slane %v844, 7
      %v847 = vshll.u32 %v831, 16
      %v849 = vor.u32 %v846, %v847
      %v850 = vsel %vm834, %v842, %v849
      %v851 = vrot.slane %v846, 4
      %vm855 = vsmask.f32 7938
      %vm856 = vmand %vm822, %vm855
      %v857 = vld [vmem:[#allocation2 + $0x24] sm:$0xf]
      %v858 = vsel %vm856, %v841, %v857
      %859 = vst [vmem:[#allocation2 + $0x24] sm:$0xf] %v858
      %860 = vst.msk [vmem:[#allocation2 + $0x28] sm:$0xf] %vm656, %v850
      %vm861 = vcmask 778240
      %vm862 = vmand %vm861, %vm832
      %v863 = vld [vmem:[#allocation2 + $0x2c] sm:$0x1]
      %v864 = vsel %vm862, %v851, %v863
      %865 = vst [vmem:[#allocation2 + $0x2c] sm:$0x1] %v864
      %v867 = vunpack.c.l.b16 %v644
      %v868 = vunpack.c.h.b16 %v644
      %v869 = vpack.c.b16 %v867, %v867
      %v870 = vpack.c.b16 %v868, %v868
      %v872 = vshrl.u32 %v869, 16
      %v874 = vrot.slane %v872, 6
      %v875 = vshll.u32 %v869, 16
      %v877 = vrot.slane %v875, 7
      %v878 = vor.u32 %v874, %v877
      %v879 = vrot.slane %v878, 4
      %v881 = vshrl.u32 %v870, 16
      %v883 = vrot.slane %v881, 6
      %v884 = vshll.u32 %v870, 16
      %v886 = vrot.slane %v884, 7
      %v887 = vor.u32 %v883, %v886
      %v888 = vsel %vm708, %v879, %v887
      %v889 = vrot.slane %v887, 4
      %v893 = vld [vmem:[#allocation2 + $0x2c] sm:$0xe]
      %v894 = vsel %vm733, %v878, %v893
      %895 = vst [vmem:[#allocation2 + $0x2c] sm:$0xe] %v894
      %896 = vst.msk [vmem:[#allocation2 + $0x30] sm:$0xf] %vm656, %v888
      %v897 = vld [vmem:[#allocation2 + $0x34] sm:$0x3]
      %v898 = vsel %vm739, %v889, %v897
      %899 = vst [vmem:[#allocation2 + $0x34] sm:$0x3] %v898
      %v901 = vunpack.c.l.b16 %v645
      %v902 = vunpack.c.h.b16 %v645
      %v903 = vpack.c.b16 %v901, %v901
      %v904 = vpack.c.b16 %v902, %v902
      %v906 = vshrl.u32 %v903, 16
      %v908 = vrot.slane %v906, 5
      %v909 = vshll.u32 %v903, 16
      %v911 = vrot.slane %v909, 6
      %v912 = vor.u32 %v908, %v911
      %v913 = vrot.slane %v912, 4
      %v915 = vshrl.u32 %v904, 16
      %v917 = vrot.slane %v915, 5
      %v918 = vshll.u32 %v904, 16
      %v920 = vrot.slane %v918, 6
      %v921 = vor.u32 %v917, %v920
      %v922 = vsel %vm750, %v913, %v921
      %v923 = vrot.slane %v921, 4
      %v927 = vld [vmem:[#allocation2 + $0x34] sm:$0xc]
      %v928 = vsel %vm775, %v912, %v927
      %929 = vst [vmem:[#allocation2 + $0x34] sm:$0xc] %v928
      %930 = vst.msk [vmem:[#allocation2 + $0x38] sm:$0xf] %vm656, %v922
      %v931 = vld [vmem:[#allocation2 + $0x3c] sm:$0x7]
      %v932 = vsel %vm781, %v923, %v931
      %933 = vst [vmem:[#allocation2 + $0x3c] sm:$0x7] %v932
      %v935 = vunpack.c.l.b16 %v646
      %v936 = vunpack.c.h.b16 %v646
      %v937 = vpack.c.b16 %v935, %v935
      %v938 = vpack.c.b16 %v936, %v936
      %v940 = vshll.u32 %v937, 16
      %v942 = vrot.slane %v940, 5
      %v943 = vshrl.u32 %v937, 16
      %v945 = vrot.slane %v943, 4
      %v946 = vor.u32 %v945, %v942
      %v947 = vrot.slane %v946, 4
      %v949 = vshll.u32 %v938, 16
      %v951 = vrot.slane %v949, 5
      %v952 = vsel %vm792, %v947, %v951
      %v953 = vshrl.u32 %v938, 16
      %v955 = vrot.slane %v953, 4
      %v956 = vor.u32 %v955, %v951
      %v957 = vrot.slane %v956, 4
      %v961 = vld [vmem:[#allocation2 + $0x3c] sm:$0x8]
      %v962 = vsel %vm817, %v942, %v961
      %963 = vst [vmem:[#allocation2 + $0x3c] sm:$0x8] %v962
      %964 = vst.msk [vmem:[#allocation2 + $0x40] sm:$0xf] %vm656, %v952
      %v965 = vld [vmem:[#allocation2 + $0x44] sm:$0xf]
      %v966 = vsel %vm823, %v957, %v965
      %967 = vst [vmem:[#allocation2 + $0x44] sm:$0xf] %v966
      %v969 = vunpack.c.l.b16 %v647
      %v970 = vunpack.c.h.b16 %v647
      %v971 = vpack.c.b16 %v969, %v969
      %v972 = vpack.c.b16 %v970, %v970
      %v974 = vshrl.u32 %v971, 16
      %v976 = vrot.slane %v974, 7
      %v977 = vshll.u32 %v971, 16
      %v979 = vor.u32 %v976, %v977
      %v980 = vrot.slane %v976, 4
      %v982 = vshrl.u32 %v972, 16
      %v984 = vrot.slane %v982, 7
      %v985 = vshll.u32 %v972, 16
      %v987 = vor.u32 %v984, %v985
      %v988 = vsel %vm834, %v980, %v987
      %v989 = vrot.slane %v984, 4
      %v993 = vld [vmem:[#allocation2 + $0x48] sm:$0xf]
      %v994 = vsel %vm856, %v979, %v993
      %995 = vst [vmem:[#allocation2 + $0x48] sm:$0xf] %v994
      %996 = vst.msk [vmem:[#allocation2 + $0x4c] sm:$0xf] %vm656, %v988
      %v997 = vld [vmem:[#allocation2 + $0x50] sm:$0x1]
      %v998 = vsel %vm862, %v989, %v997
      %999 = vst [vmem:[#allocation2 + $0x50] sm:$0x1] %v998
      %v1001 = vunpack.c.l.b16 %v648
      %v1002 = vunpack.c.h.b16 %v648
      %v1003 = vpack.c.b16 %v1001, %v1001
      %v1004 = vpack.c.b16 %v1002, %v1002
      %v1006 = vshrl.u32 %v1003, 16
      %v1008 = vrot.slane %v1006, 6
      %v1009 = vshll.u32 %v1003, 16
      %v1011 = vrot.slane %v1009, 7
      %v1012 = vor.u32 %v1008, %v1011
      %v1013 = vrot.slane %v1012, 4
      %v1015 = vshrl.u32 %v1004, 16
      %v1017 = vrot.slane %v1015, 6
      %v1018 = vshll.u32 %v1004, 16
      %v1020 = vrot.slane %v1018, 7
      %v1021 = vor.u32 %v1017, %v1020
      %v1022 = vsel %vm708, %v1013, %v1021
      %v1023 = vrot.slane %v1021, 4
      %v1027 = vld [vmem:[#allocation2 + $0x50] sm:$0xe]
      %v1028 = vsel %vm733, %v1012, %v1027
      %1029 = vst [vmem:[#allocation2 + $0x50] sm:$0xe] %v1028
      %1030 = vst.msk [vmem:[#allocation2 + $0x54] sm:$0xf] %vm656, %v1022
      %v1031 = vld [vmem:[#allocation2 + $0x58] sm:$0x3]
      %v1032 = vsel %vm739, %v1023, %v1031
      %1033 = vst [vmem:[#allocation2 + $0x58] sm:$0x3] %v1032
      %v1035 = vunpack.c.l.b16 %v649
      %v1036 = vunpack.c.h.b16 %v649
      %v1037 = vpack.c.b16 %v1035, %v1035
      %v1038 = vpack.c.b16 %v1036, %v1036
      %v1040 = vshrl.u32 %v1037, 16
      %v1042 = vrot.slane %v1040, 5
      %v1043 = vshll.u32 %v1037, 16
      %v1045 = vrot.slane %v1043, 6
      %v1046 = vor.u32 %v1042, %v1045
      %v1047 = vrot.slane %v1046, 4
      %v1049 = vshrl.u32 %v1038, 16
      %v1051 = vrot.slane %v1049, 5
      %v1052 = vshll.u32 %v1038, 16
      %v1054 = vrot.slane %v1052, 6
      %v1055 = vor.u32 %v1051, %v1054
      %v1056 = vsel %vm750, %v1047, %v1055
      %v1057 = vrot.slane %v1055, 4
      %v1061 = vld [vmem:[#allocation2 + $0x58] sm:$0xc]
      %v1062 = vsel %vm775, %v1046, %v1061
      %1063 = vst [vmem:[#allocation2 + $0x58] sm:$0xc] %v1062
      %1064 = vst.msk [vmem:[#allocation2 + $0x5c] sm:$0xf] %vm656, %v1056
      %v1065 = vld [vmem:[#allocation2 + $0x60] sm:$0x7]
      %v1066 = vsel %vm781, %v1057, %v1065
      %1067 = vst [vmem:[#allocation2 + $0x60] sm:$0x7] %v1066
      %v1069 = vunpack.c.l.b16 %v650
      %v1070 = vunpack.c.h.b16 %v650
      %v1071 = vpack.c.b16 %v1069, %v1069
      %v1072 = vpack.c.b16 %v1070, %v1070
      %v1074 = vshll.u32 %v1071, 16
      %v1076 = vrot.slane %v1074, 5
      %v1077 = vshrl.u32 %v1071, 16
      %v1079 = vrot.slane %v1077, 4
      %v1080 = vor.u32 %v1079, %v1076
      %v1081 = vrot.slane %v1080, 4
      %v1083 = vshll.u32 %v1072, 16
      %v1085 = vrot.slane %v1083, 5
      %v1086 = vsel %vm792, %v1081, %v1085
      %v1087 = vshrl.u32 %v1072, 16
      %v1089 = vrot.slane %v1087, 4
      %v1090 = vor.u32 %v1089, %v1085
      %v1091 = vrot.slane %v1090, 4
      %v1095 = vld [vmem:[#allocation2 + $0x60] sm:$0x8]
      %v1096 = vsel %vm817, %v1076, %v1095
      %1097 = vst [vmem:[#allocation2 + $0x60] sm:$0x8] %v1096
      %1098 = vst.msk [vmem:[#allocation2 + $0x64] sm:$0xf] %vm656, %v1086
      %v1099 = vld [vmem:[#allocation2 + $0x68] sm:$0xf]
      %v1100 = vsel %vm823, %v1091, %v1099
      %1101 = vst [vmem:[#allocation2 + $0x68] sm:$0xf] %v1100
      %v1103 = vunpack.c.l.b16 %v651
      %v1104 = vunpack.c.h.b16 %v651
      %v1105 = vpack.c.b16 %v1103, %v1103
      %v1106 = vpack.c.b16 %v1104, %v1104
      %v1108 = vshrl.u32 %v1105, 16
      %v1110 = vrot.slane %v1108, 7
      %v1111 = vshll.u32 %v1105, 16
      %v1113 = vor.u32 %v1110, %v1111
      %v1114 = vrot.slane %v1110, 4
      %v1116 = vshrl.u32 %v1106, 16
      %v1118 = vrot.slane %v1116, 7
      %v1119 = vshll.u32 %v1106, 16
      %v1121 = vor.u32 %v1118, %v1119
      %v1122 = vsel %vm834, %v1114, %v1121
      %v1123 = vrot.slane %v1118, 4
      %v1127 = vld [vmem:[#allocation2 + $0x6c] sm:$0xf]
      %v1128 = vsel %vm856, %v1113, %v1127
      %1129 = vst [vmem:[#allocation2 + $0x6c] sm:$0xf] %v1128
      %1130 = vst.msk [vmem:[#allocation2 + $0x70] sm:$0xf] %vm656, %v1122
      %v1131 = vld [vmem:[#allocation2 + $0x74] sm:$0x1]
      %v1132 = vsel %vm862, %v1123, %v1131
      %1133 = vst [vmem:[#allocation2 + $0x74] sm:$0x1] %v1132
      %v1135 = vunpack.c.l.b16 %v652
      %v1136 = vunpack.c.h.b16 %v652
      %v1137 = vpack.c.b16 %v1135, %v1135
      %v1138 = vpack.c.b16 %v1136, %v1136
      %v1140 = vshrl.u32 %v1137, 16
      %v1142 = vrot.slane %v1140, 6
      %v1143 = vshll.u32 %v1137, 16
      %v1145 = vrot.slane %v1143, 7
      %v1146 = vor.u32 %v1142, %v1145
      %v1147 = vrot.slane %v1146, 4
      %v1149 = vshrl.u32 %v1138, 16
      %v1151 = vrot.slane %v1149, 6
      %v1152 = vshll.u32 %v1138, 16
      %v1154 = vrot.slane %v1152, 7
      %v1155 = vor.u32 %v1151, %v1154
      %v1156 = vsel %vm708, %v1147, %v1155
      %v1157 = vrot.slane %v1155, 4
      %v1161 = vld [vmem:[#allocation2 + $0x74] sm:$0xe]
      %v1162 = vsel %vm733, %v1146, %v1161
      %1163 = vst [vmem:[#allocation2 + $0x74] sm:$0xe] %v1162
      %1164 = vst.msk [vmem:[#allocation2 + $0x78] sm:$0xf] %vm656, %v1156
      %v1165 = vld [vmem:[#allocation2 + $0x7c] sm:$0x3]
      %v1166 = vsel %vm739, %v1157, %v1165
      %1167 = vst [vmem:[#allocation2 + $0x7c] sm:$0x3] %v1166
      %v1169 = vunpack.c.l.b16 %v653
      %v1170 = vunpack.c.h.b16 %v653
      %v1171 = vpack.c.b16 %v1169, %v1169
      %v1172 = vpack.c.b16 %v1170, %v1170
      %v1174 = vshrl.u32 %v1171, 16
      %v1176 = vrot.slane %v1174, 5
      %v1177 = vshll.u32 %v1171, 16
      %v1179 = vrot.slane %v1177, 6
      %v1180 = vor.u32 %v1176, %v1179
      %v1181 = vrot.slane %v1180, 4
      %v1183 = vshrl.u32 %v1172, 16
      %v1185 = vrot.slane %v1183, 5
      %v1186 = vshll.u32 %v1172, 16
      %v1188 = vrot.slane %v1186, 6
      %v1189 = vor.u32 %v1185, %v1188
      %v1190 = vsel %vm750, %v1181, %v1189
      %v1191 = vrot.slane %v1189, 4
      %v1195 = vld [vmem:[#allocation2 + $0x7c] sm:$0xc]
      %v1196 = vsel %vm775, %v1180, %v1195
      %1197 = vst [vmem:[#allocation2 + $0x7c] sm:$0xc] %v1196
      %1198 = vst.msk [vmem:[#allocation2 + $0x80] sm:$0xf] %vm656, %v1190
      %v1199 = vld [vmem:[#allocation2 + $0x84] sm:$0x7]
      %v1200 = vsel %vm781, %v1191, %v1199
      %1201 = vst [vmem:[#allocation2 + $0x84] sm:$0x7] %v1200
      %v1203 = vunpack.c.l.b16 %v654
      %v1204 = vunpack.c.h.b16 %v654
      %v1205 = vpack.c.b16 %v1203, %v1203
      %v1206 = vpack.c.b16 %v1204, %v1204
      %v1208 = vshll.u32 %v1205, 16
      %v1210 = vrot.slane %v1208, 5
      %v1211 = vshrl.u32 %v1205, 16
      %v1213 = vrot.slane %v1211, 4
      %v1214 = vor.u32 %v1213, %v1210
      %v1215 = vrot.slane %v1214, 4
      %v1217 = vshll.u32 %v1206, 16
      %v1219 = vrot.slane %v1217, 5
      %v1220 = vsel %vm792, %v1215, %v1219
      %v1221 = vshrl.u32 %v1206, 16
      %v1223 = vrot.slane %v1221, 4
      %v1224 = vor.u32 %v1223, %v1219
      %v1225 = vrot.slane %v1224, 4
      %v1229 = vld [vmem:[#allocation2 + $0x84] sm:$0x8]
      %v1230 = vsel %vm817, %v1210, %v1229
      %1231 = vst [vmem:[#allocation2 + $0x84] sm:$0x8] %v1230
      %1232 = vst.msk [vmem:[#allocation2 + $0x88] sm:$0xf] %vm656, %v1220
      %v1233 = vld [vmem:[#allocation2 + $0x8c] sm:$0xf]
      %v1234 = vsel %vm823, %v1225, %v1233
      %1235 = vst [vmem:[#allocation2 + $0x8c] sm:$0xf] %v1234
      %v1237 = vunpack.c.l.b16 %v655
      %v1238 = vunpack.c.h.b16 %v655
      %v1239 = vpack.c.b16 %v1237, %v1237
      %v1240 = vpack.c.b16 %v1238, %v1238
      %v1242 = vshrl.u32 %v1239, 16
      %v1244 = vrot.slane %v1242, 7
      %v1245 = vshll.u32 %v1239, 16
      %v1247 = vor.u32 %v1244, %v1245
      %v1248 = vrot.slane %v1244, 4
      %v1250 = vshrl.u32 %v1240, 16
      %v1252 = vrot.slane %v1250, 7
      %v1253 = vshll.u32 %v1240, 16
      %v1255 = vor.u32 %v1252, %v1253
      %v1256 = vsel %vm834, %v1248, %v1255
      %v1257 = vrot.slane %v1252, 4
      %v1261 = vld [vmem:[#allocation2 + $0x90] sm:$0xf]
      %v1262 = vsel %vm856, %v1247, %v1261
      %1263 = vst [vmem:[#allocation2 + $0x90] sm:$0xf] %v1262
      %1264 = vst.msk [vmem:[#allocation2 + $0x94] sm:$0xf] %vm656, %v1256
      %v1265 = vld [vmem:[#allocation2 + $0x98] sm:$0x1]
      %v1266 = vsel %vm862, %v1257, %v1265
      %1267 = vst [vmem:[#allocation2 + $0x98] sm:$0x1] %v1266
      %v1268 = vld [vmem:[#allocation2] sm:$0xf]
      %v1269 = vld [vmem:[#allocation2 + $0x4] sm:$0xf]
      %v1270 = vld [vmem:[#allocation2 + $0x8] sm:$0xf]
      %v1271 = vld [vmem:[#allocation2 + $0xc] sm:$0xf]
      %v1272 = vld [vmem:[#allocation2 + $0x10] sm:$0xf]
      %v1273 = vld [vmem:[#allocation2 + $0x14] sm:$0xf]
      %v1274 = vld [vmem:[#allocation2 + $0x18] sm:$0xf]
      %v1275 = vld [vmem:[#allocation2 + $0x1c] sm:$0xf]
      %v1276 = vld [vmem:[#allocation2 + $0x20] sm:$0xf]
      %v1277 = vld [vmem:[#allocation2 + $0x24] sm:$0xf]
      %v1278 = vld [vmem:[#allocation2 + $0x28] sm:$0xf]
      %v1279 = vld [vmem:[#allocation2 + $0x2c] sm:$0xf]
      %v1280 = vld [vmem:[#allocation2 + $0x30] sm:$0xf]
      %v1281 = vld [vmem:[#allocation2 + $0x34] sm:$0xf]
      %v1282 = vld [vmem:[#allocation2 + $0x38] sm:$0xf]
      %v1283 = vld [vmem:[#allocation2 + $0x3c] sm:$0xf]
      %v1284 = vld [vmem:[#allocation2 + $0x40] sm:$0xf]
      %v1285 = vld [vmem:[#allocation2 + $0x44] sm:$0xf]
      %v1286 = vld [vmem:[#allocation2 + $0x48] sm:$0xf]
      %v1287 = vld [vmem:[#allocation2 + $0x4c] sm:$0xf]
      %v1288 = vld [vmem:[#allocation2 + $0x50] sm:$0xf]
      %v1289 = vld [vmem:[#allocation2 + $0x54] sm:$0xf]
      %v1290 = vld [vmem:[#allocation2 + $0x58] sm:$0xf]
      %v1291 = vld [vmem:[#allocation2 + $0x5c] sm:$0xf]
      %v1292 = vld [vmem:[#allocation2 + $0x60] sm:$0xf]
      %v1293 = vld [vmem:[#allocation2 + $0x64] sm:$0xf]
      %v1294 = vld [vmem:[#allocation2 + $0x68] sm:$0xf]
      %v1295 = vld [vmem:[#allocation2 + $0x6c] sm:$0xf]
      %v1296 = vld [vmem:[#allocation2 + $0x70] sm:$0xf]
      %v1297 = vld [vmem:[#allocation2 + $0x74] sm:$0xf]
      %v1298 = vld [vmem:[#allocation2 + $0x78] sm:$0xf]
      %v1299 = vld [vmem:[#allocation2 + $0x7c] sm:$0xf]
      %v1300 = vld [vmem:[#allocation2 + $0x80] sm:$0xf]
      %v1301 = vld [vmem:[#allocation2 + $0x84] sm:$0xf]
      %v1302 = vld [vmem:[#allocation2 + $0x88] sm:$0xf]
      %v1303 = vld [vmem:[#allocation2 + $0x8c] sm:$0xf]
      %v1304 = vld [vmem:[%s3] sm:$0xf]
      %v1305 = vld [vmem:[%s3 + $0x4] sm:$0xf]
      %v1306 = vld [vmem:[%s3 + $0x8] sm:$0xf]
      %v1307 = vld [vmem:[%s3 + $0xc] sm:$0xf]
      %v1308 = vld [vmem:[%s3 + $0x10] sm:$0xf]
      %v1309 = vld [vmem:[%s3 + $0x14] sm:$0xf]
      %v1310 = vld [vmem:[%s3 + $0x18] sm:$0xf]
      %v1311 = vld [vmem:[%s3 + $0x1c] sm:$0xf]
      %v1312 = vld [vmem:[%s3 + $0x20] sm:$0xf]
      %v1313 = vld [vmem:[%s3 + $0x24] sm:$0xf]
      %v1314 = vld [vmem:[%s3 + $0x28] sm:$0xf]
      %v1315 = vld [vmem:[%s3 + $0x2c] sm:$0xf]
      %v1316 = vld [vmem:[#allocation2 + $0x90] sm:$0x1]
      %s1317 = scalar_lea.vmem %s3, 48
      %v1318 = vld [vmem:[%s1317] sm:$0xf]
      %v1319 = vld [vmem:[%s1317 + $0x4] sm:$0xf]
      %v1320 = vld [vmem:[%s1317 + $0x8] sm:$0xf]
      %v1321 = vld [vmem:[%s1317 + $0xc] sm:$0xf]
      %v1322 = vld [vmem:[%s1317 + $0x10] sm:$0xf]
      %v1323 = vld [vmem:[%s1317 + $0x14] sm:$0xf]
      %v1324 = vld [vmem:[%s1317 + $0x18] sm:$0xf]
      %v1325 = vld [vmem:[%s1317 + $0x1c] sm:$0xf]
      %v1326 = vld [vmem:[%s1317 + $0x20] sm:$0xf]
      %v1327 = vld [vmem:[%s1317 + $0x24] sm:$0xf]
      %v1328 = vld [vmem:[%s1317 + $0x28] sm:$0xf]
      %v1329 = vld [vmem:[%s1317 + $0x2c] sm:$0xf]
      %v1367 = vunpack.c.l.b16 %v1268
      %v1368 = vunpack.c.l.b16 %v1269
      %v1369 = vunpack.c.l.b16 %v1270
      %v1370 = vunpack.c.l.b16 %v1271
      %v1371 = vunpack.c.l.b16 %v1272
      %v1372 = vunpack.c.l.b16 %v1273
      %v1373 = vunpack.c.l.b16 %v1274
      %v1374 = vunpack.c.l.b16 %v1275
      %v1375 = vunpack.c.l.b16 %v1276
      %v1376 = vunpack.c.l.b16 %v1277
      %v1377 = vunpack.c.l.b16 %v1278
      %v1378 = vunpack.c.l.b16 %v1279
      %v1379 = vunpack.c.l.b16 %v1280
      %v1380 = vunpack.c.l.b16 %v1281
      %v1381 = vunpack.c.l.b16 %v1282
      %v1382 = vunpack.c.l.b16 %v1283
      %v1383 = vunpack.c.l.b16 %v1284
      %v1384 = vunpack.c.l.b16 %v1285
      %v1385 = vunpack.c.l.b16 %v1286
      %v1386 = vunpack.c.l.b16 %v1287
      %v1387 = vunpack.c.l.b16 %v1288
      %v1388 = vunpack.c.l.b16 %v1289
      %v1389 = vunpack.c.l.b16 %v1290
      %v1390 = vunpack.c.l.b16 %v1291
      %v1391 = vunpack.c.l.b16 %v1292
      %v1392 = vunpack.c.l.b16 %v1293
      %v1393 = vunpack.c.l.b16 %v1294
      %v1394 = vunpack.c.l.b16 %v1295
      %v1395 = vunpack.c.l.b16 %v1296
      %v1396 = vunpack.c.l.b16 %v1297
      %v1397 = vunpack.c.l.b16 %v1298
      %v1398 = vunpack.c.l.b16 %v1299
      %v1399 = vunpack.c.l.b16 %v1300
      %v1400 = vunpack.c.l.b16 %v1301
      %v1401 = vunpack.c.l.b16 %v1302
      %v1402 = vunpack.c.l.b16 %v1303
      %v1403 = vunpack.c.l.b16 %v1316
      %v1404 = vpack.c.b16 %v1368, %v1367
      %v1405 = vpack.c.b16 %v1370, %v1369
      %v1406 = vpack.c.b16 %v1372, %v1371
      %v1407 = vpack.c.b16 %v1374, %v1373
      %v1408 = vpack.c.b16 %v1376, %v1375
      %v1409 = vpack.c.b16 %v1378, %v1377
      %v1410 = vpack.c.b16 %v1380, %v1379
      %v1411 = vpack.c.b16 %v1382, %v1381
      %v1412 = vpack.c.b16 %v1384, %v1383
      %v1413 = vpack.c.b16 %v1386, %v1385
      %v1414 = vpack.c.b16 %v1388, %v1387
      %v1415 = vpack.c.b16 %v1390, %v1389
      %v1416 = vpack.c.b16 %v1392, %v1391
      %v1417 = vpack.c.b16 %v1394, %v1393
      %v1418 = vpack.c.b16 %v1396, %v1395
      %v1419 = vpack.c.b16 %v1398, %v1397
      %v1420 = vpack.c.b16 %v1400, %v1399
      %v1421 = vpack.c.b16 %v1402, %v1401
      %v1422 = vpack.c.b16 %v1403, %v1403
      %vm1423 = vsmask.f32 7424
      %v1425 = vshrl.u32 %v1404, 16
      %v1427 = vshll.u32 %v1404, 16
      %v1429 = vrot.slane %v1427, 1
      %v1430 = vor.u32 %v1425, %v1429
      %v1432 = vshll.u32 %v1405, 16
      %v1434 = vrot.slane %v1432, 1
      %v1435 = vsel %vm1423, %v1430, %v1434
      %v1436 = vshrl.u32 %v1405, 16
      %v1438 = vor.u32 %v1436, %v1434
      %v1440 = vshll.u32 %v1406, 16
      %v1442 = vrot.slane %v1440, 1
      %v1443 = vsel %vm1423, %v1438, %v1442
      %v1444 = vshrl.u32 %v1406, 16
      %v1446 = vor.u32 %v1444, %v1442
      %v1448 = vshll.u32 %v1407, 16
      %v1450 = vrot.slane %v1448, 1
      %v1451 = vsel %vm1423, %v1446, %v1450
      %v1452 = vshrl.u32 %v1407, 16
      %v1454 = vor.u32 %v1452, %v1450
      %v1456 = vshll.u32 %v1408, 16
      %v1458 = vrot.slane %v1456, 1
      %v1459 = vsel %vm1423, %v1454, %v1458
      %v1460 = vshrl.u32 %v1408, 16
      %v1462 = vor.u32 %v1460, %v1458
      %v1464 = vshll.u32 %v1409, 16
      %v1466 = vrot.slane %v1464, 1
      %v1467 = vsel %vm1423, %v1462, %v1466
      %v1468 = vshrl.u32 %v1409, 16
      %v1470 = vor.u32 %v1468, %v1466
      %v1472 = vshll.u32 %v1410, 16
      %v1474 = vrot.slane %v1472, 1
      %v1475 = vsel %vm1423, %v1470, %v1474
      %v1476 = vshrl.u32 %v1410, 16
      %v1478 = vor.u32 %v1476, %v1474
      %v1480 = vshll.u32 %v1411, 16
      %v1482 = vrot.slane %v1480, 1
      %v1483 = vsel %vm1423, %v1478, %v1482
      %v1484 = vshrl.u32 %v1411, 16
      %v1486 = vor.u32 %v1484, %v1482
      %v1488 = vshll.u32 %v1412, 16
      %v1490 = vrot.slane %v1488, 1
      %v1491 = vsel %vm1423, %v1486, %v1490
      %v1492 = vshrl.u32 %v1412, 16
      %v1494 = vor.u32 %v1492, %v1490
      %v1496 = vshll.u32 %v1413, 16
      %v1498 = vrot.slane %v1496, 1
      %v1499 = vsel %vm1423, %v1494, %v1498
      %v1500 = vshrl.u32 %v1413, 16
      %v1502 = vor.u32 %v1500, %v1498
      %v1504 = vshll.u32 %v1414, 16
      %v1506 = vrot.slane %v1504, 1
      %v1507 = vsel %vm1423, %v1502, %v1506
      %v1508 = vshrl.u32 %v1414, 16
      %v1510 = vor.u32 %v1508, %v1506
      %v1512 = vshll.u32 %v1415, 16
      %v1514 = vrot.slane %v1512, 1
      %v1515 = vsel %vm1423, %v1510, %v1514
      %v1516 = vshrl.u32 %v1415, 16
      %v1518 = vor.u32 %v1516, %v1514
      %v1520 = vshll.u32 %v1416, 16
      %v1522 = vrot.slane %v1520, 1
      %v1523 = vsel %vm1423, %v1518, %v1522
      %v1524 = vshrl.u32 %v1416, 16
      %v1526 = vor.u32 %v1524, %v1522
      %v1528 = vshll.u32 %v1417, 16
      %v1530 = vrot.slane %v1528, 1
      %v1531 = vsel %vm1423, %v1526, %v1530
      %v1532 = vshrl.u32 %v1417, 16
      %v1534 = vor.u32 %v1532, %v1530
      %v1536 = vshll.u32 %v1418, 16
      %v1538 = vrot.slane %v1536, 1
      %v1539 = vsel %vm1423, %v1534, %v1538
      %v1540 = vshrl.u32 %v1418, 16
      %v1542 = vor.u32 %v1540, %v1538
      %v1544 = vshll.u32 %v1419, 16
      %v1546 = vrot.slane %v1544, 1
      %v1547 = vsel %vm1423, %v1542, %v1546
      %v1548 = vshrl.u32 %v1419, 16
      %v1550 = vor.u32 %v1548, %v1546
      %v1552 = vshll.u32 %v1420, 16
      %v1554 = vrot.slane %v1552, 1
      %v1555 = vsel %vm1423, %v1550, %v1554
      %v1556 = vshrl.u32 %v1420, 16
      %v1558 = vor.u32 %v1556, %v1554
      %v1560 = vshll.u32 %v1421, 16
      %v1562 = vrot.slane %v1560, 1
      %v1563 = vsel %vm1423, %v1558, %v1562
      %v1564 = vshrl.u32 %v1421, 16
      %v1566 = vor.u32 %v1564, %v1562
      %v1568 = vshll.u32 %v1422, 16
      %v1570 = vrot.slane %v1568, 1
      %v1571 = vsel %vm1423, %v1566, %v1570
      %v1584 = vunpack.c.l.b16 %v1318
      %v1585 = vunpack.c.l.b16 %v1319
      %v1586 = vunpack.c.l.b16 %v1320
      %v1587 = vunpack.c.l.b16 %v1321
      %v1588 = vunpack.c.l.b16 %v1322
      %v1589 = vunpack.c.l.b16 %v1323
      %v1590 = vunpack.c.l.b16 %v1324
      %v1591 = vunpack.c.l.b16 %v1325
      %v1592 = vunpack.c.l.b16 %v1326
      %v1593 = vunpack.c.l.b16 %v1327
      %v1594 = vunpack.c.l.b16 %v1328
      %v1595 = vunpack.c.l.b16 %v1329
      %v1596 = vpack.c.b16 %v1585, %v1584
      %v1597 = vpack.c.b16 %v1587, %v1586
      %v1598 = vpack.c.b16 %v1589, %v1588
      %v1599 = vpack.c.b16 %v1591, %v1590
      %v1600 = vpack.c.b16 %v1593, %v1592
      %v1601 = vpack.c.b16 %v1595, %v1594
      %v1609 = vsel %vm394, %v1435, 0
      %v1612 = vsel %vm394, %v1443, 0
      %v1615 = vsel %vm394, %v1451, 0
      %v1618 = vsel %vm394, %v1459, 0
      %v1621 = vsel %vm394, %v1467, 0
      %v1624 = vsel %vm394, %v1475, 0
      %v1627 = vsel %vm394, %v1483, 0
      %v1630 = vsel %vm394, %v1491, 0
      %v1633 = vsel %vm394, %v1499, 0
      %v1636 = vsel %vm394, %v1507, 0
      %v1639 = vsel %vm394, %v1515, 0
      %v1642 = vsel %vm394, %v1523, 0
      %v1645 = vsel %vm394, %v1531, 0
      %v1648 = vsel %vm394, %v1539, 0
      %v1651 = vsel %vm394, %v1547, 0
      %v1654 = vsel %vm394, %v1555, 0
      %v1657 = vsel %vm394, %v1563, 0
      %v1660 = vsel %vm394, %v1571, 0
      %1662 = vmatprep.subr.bf16.mxu0 0
      %1663 = vmatpush1.bf16.msra.mxu0 %v1596
      %1664 = vmatprep.subr.bf16.mxu0 0
      %1665 = vmatpush1.bf16.msra.mxu0 %v1597
      %1666 = vmatprep.subr.bf16.mxu0 0
      %1667 = vmatpush1.bf16.msra.mxu0 %v1598
      %1668 = vmatprep.subr.bf16.mxu0 0
      %1669 = vmatpush1.bf16.msra.mxu0 %v1599
      %1670 = vmatprep.subr.bf16.mxu0 0
      %1671 = vmatpush1.bf16.msra.mxu0 %v1600
      %1672 = vmatprep.subr.bf16.mxu0 0
      %1673 = vmatpush1.bf16.msra.mxu0 %v1601
      %1674 = vmatprep.subr.bf16.mxu0 0
      %1675 = vmatpush1.bf16.msra.mxu0 0
      %1676 = vmatprep.subr.bf16.mxu0 0
      %1677 = vmatpush1.bf16.msra.mxu0 0
      %1678 = vmatprep.subr.bf16.mxu0 0
      %1679 = vmatpush1.bf16.msra.mxu0 0
      %1680 = vmatprep.subr.bf16.mxu0 0
      %1681 = vmatpush1.bf16.msra.mxu0 0
      %1682 = vmatprep.subr.bf16.mxu0 0
      %1683 = vmatpush1.bf16.msra.mxu0 0
      %1684 = vmatprep.subr.bf16.mxu0 0
      %1685 = vmatpush1.bf16.msra.mxu0 0
      %1686 = vmatprep.subr.bf16.mxu0 0
      %1687 = vmatpush1.bf16.msra.mxu0 0
      %1688 = vmatprep.subr.bf16.mxu0 0
      %1689 = vmatpush1.bf16.msra.mxu0 0
      %1690 = vmatprep.subr.bf16.mxu0 0
      %1691 = vmatpush1.bf16.msra.mxu0 0
      %1692 = vmatprep.subr.bf16.mxu0 0
      %1693 = vmatpush1.bf16.msra.mxu0 0
      %1694 = vmatprep.mubr.bf16.mxu0 0
      %1695 = vmatmul.mubr.bf16.gmra.mrb[0].mxu0 %v1609
      %v1696 = vpop.f32.mrb[0].mxu0
      %v1697 = vadd.f32 0.0, %v1696
      %v1698 = vpop.f32.mrb[0].mxu0
      %v1699 = vpop.f32.mrb[0].mxu0
      %v1700 = vadd.f32 0.0, %v1699
      %v1701 = vpop.f32.mrb[0].mxu0
      %1702 = vmatprep.mubr.bf16.mxu0 0
      %1703 = vmatmul.mubr.bf16.gmra.mrb[0].mxu0 %v1612
      %v1704 = vpop.f32.mrb[0].mxu0
      %v1705 = vadd.f32 0.0, %v1704
      %v1706 = vpop.f32.mrb[0].mxu0
      %v1707 = vpop.f32.mrb[0].mxu0
      %v1708 = vadd.f32 0.0, %v1707
      %v1709 = vpop.f32.mrb[0].mxu0
      %1710 = vmatprep.mubr.bf16.mxu0 0
      %1711 = vmatmul.mubr.bf16.gmra.mrb[0].mxu0 %v1615
      %v1712 = vpop.f32.mrb[0].mxu0
      %v1713 = vadd.f32 0.0, %v1712
      %v1714 = vpop.f32.mrb[0].mxu0
      %v1715 = vpop.f32.mrb[0].mxu0
      %v1716 = vadd.f32 0.0, %v1715
      %v1717 = vpop.f32.mrb[0].mxu0
      %1718 = vmatprep.mubr.bf16.mxu0 0
      %1719 = vmatmul.mubr.bf16.gmra.mrb[0].mxu0 %v1618
      %v1720 = vpop.f32.mrb[0].mxu0
      %v1721 = vadd.f32 0.0, %v1720
      %v1722 = vpop.f32.mrb[0].mxu0
      %v1723 = vpop.f32.mrb[0].mxu0
      %v1724 = vadd.f32 0.0, %v1723
      %v1725 = vpop.f32.mrb[0].mxu0
      %1726 = vmatprep.mubr.bf16.mxu0 0
      %1727 = vmatmul.mubr.bf16.gmra.mrb[0].mxu0 %v1621
      %v1728 = vpop.f32.mrb[0].mxu0
      %v1729 = vadd.f32 0.0, %v1728
      %v1730 = vpop.f32.mrb[0].mxu0
      %v1731 = vpop.f32.mrb[0].mxu0
      %v1732 = vadd.f32 0.0, %v1731
      %v1733 = vpop.f32.mrb[0].mxu0
      %1734 = vmatprep.mubr.bf16.mxu0 0
      %1735 = vmatmul.mubr.bf16.gmra.mrb[0].mxu0 %v1624
      %v1736 = vpop.f32.mrb[0].mxu0
      %v1737 = vadd.f32 0.0, %v1736
      %v1738 = vpop.f32.mrb[0].mxu0
      %v1739 = vpop.f32.mrb[0].mxu0
      %v1740 = vadd.f32 0.0, %v1739
      %v1741 = vpop.f32.mrb[0].mxu0
      %1742 = vmatprep.mubr.bf16.mxu0 0
      %1743 = vmatmul.mubr.bf16.gmra.mrb[0].mxu0 %v1627
      %v1744 = vpop.f32.mrb[0].mxu0
      %v1745 = vadd.f32 0.0, %v1744
      %v1746 = vpop.f32.mrb[0].mxu0
      %v1747 = vpop.f32.mrb[0].mxu0
      %v1748 = vadd.f32 0.0, %v1747
      %v1749 = vpop.f32.mrb[0].mxu0
      %1750 = vmatprep.mubr.bf16.mxu0 0
      %1751 = vmatmul.mubr.bf16.gmra.mrb[0].mxu0 %v1630
      %v1752 = vpop.f32.mrb[0].mxu0
      %v1753 = vadd.f32 0.0, %v1752
      %v1754 = vpop.f32.mrb[0].mxu0
      %v1755 = vpop.f32.mrb[0].mxu0
      %v1756 = vadd.f32 0.0, %v1755
      %v1757 = vpop.f32.mrb[0].mxu0
      %1758 = vmatprep.mubr.bf16.mxu0 0
      %1759 = vmatmul.mubr.bf16.gmra.mrb[0].mxu0 %v1633
      %v1760 = vpop.f32.mrb[0].mxu0
      %v1761 = vadd.f32 0.0, %v1760
      %v1762 = vpop.f32.mrb[0].mxu0
      %v1763 = vpop.f32.mrb[0].mxu0
      %v1764 = vadd.f32 0.0, %v1763
      %v1765 = vpop.f32.mrb[0].mxu0
      %1766 = vmatprep.mubr.bf16.mxu0 0
      %1767 = vmatmul.mubr.bf16.gmra.mrb[0].mxu0 %v1636
      %v1768 = vpop.f32.mrb[0].mxu0
      %v1769 = vadd.f32 0.0, %v1768
      %v1770 = vpop.f32.mrb[0].mxu0
      %v1771 = vpop.f32.mrb[0].mxu0
      %v1772 = vadd.f32 0.0, %v1771
      %v1773 = vpop.f32.mrb[0].mxu0
      %1774 = vmatprep.mubr.bf16.mxu0 0
      %1775 = vmatmul.mubr.bf16.gmra.mrb[0].mxu0 %v1639
      %v1776 = vpop.f32.mrb[0].mxu0
      %v1777 = vadd.f32 0.0, %v1776
      %v1778 = vpop.f32.mrb[0].mxu0
      %v1779 = vpop.f32.mrb[0].mxu0
      %v1780 = vadd.f32 0.0, %v1779
      %v1781 = vpop.f32.mrb[0].mxu0
      %1782 = vmatprep.mubr.bf16.mxu0 0
      %1783 = vmatmul.mubr.bf16.gmra.mrb[0].mxu0 %v1642
      %v1784 = vpop.f32.mrb[0].mxu0
      %v1785 = vadd.f32 0.0, %v1784
      %v1786 = vpop.f32.mrb[0].mxu0
      %v1787 = vpop.f32.mrb[0].mxu0
      %v1788 = vadd.f32 0.0, %v1787
      %v1789 = vpop.f32.mrb[0].mxu0
      %1790 = vmatprep.mubr.bf16.mxu0 0
      %1791 = vmatmul.mubr.bf16.gmra.mrb[0].mxu0 %v1645
      %v1792 = vpop.f32.mrb[0].mxu0
      %v1793 = vadd.f32 0.0, %v1792
      %v1794 = vpop.f32.mrb[0].mxu0
      %v1795 = vpop.f32.mrb[0].mxu0
      %v1796 = vadd.f32 0.0, %v1795
      %v1797 = vpop.f32.mrb[0].mxu0
      %1798 = vmatprep.mubr.bf16.mxu0 0
      %1799 = vmatmul.mubr.bf16.gmra.mrb[0].mxu0 %v1648
      %v1800 = vpop.f32.mrb[0].mxu0
      %v1801 = vadd.f32 0.0, %v1800
      %v1802 = vpop.f32.mrb[0].mxu0
      %v1803 = vpop.f32.mrb[0].mxu0
      %v1804 = vadd.f32 0.0, %v1803
      %v1805 = vpop.f32.mrb[0].mxu0
      %1806 = vmatprep.mubr.bf16.mxu0 0
      %1807 = vmatmul.mubr.bf16.gmra.mrb[0].mxu0 %v1651
      %v1808 = vpop.f32.mrb[0].mxu0
      %v1809 = vadd.f32 0.0, %v1808
      %v1810 = vpop.f32.mrb[0].mxu0
      %v1811 = vpop.f32.mrb[0].mxu0
      %v1812 = vadd.f32 0.0, %v1811
      %v1813 = vpop.f32.mrb[0].mxu0
      %1814 = vmatprep.mubr.bf16.mxu0 0
      %1815 = vmatmul.mubr.bf16.gmra.mrb[0].mxu0 %v1654
      %v1816 = vpop.f32.mrb[0].mxu0
      %v1817 = vadd.f32 0.0, %v1816
      %v1818 = vpop.f32.mrb[0].mxu0
      %v1819 = vpop.f32.mrb[0].mxu0
      %v1820 = vadd.f32 0.0, %v1819
      %v1821 = vpop.f32.mrb[0].mxu0
      %1822 = vmatprep.mubr.bf16.mxu0 0
      %1823 = vmatmul.mubr.bf16.gmra.mrb[0].mxu0 %v1657
      %v1824 = vpop.f32.mrb[0].mxu0
      %v1825 = vadd.f32 0.0, %v1824
      %v1826 = vpop.f32.mrb[0].mxu0
      %v1827 = vpop.f32.mrb[0].mxu0
      %v1828 = vadd.f32 0.0, %v1827
      %v1829 = vpop.f32.mrb[0].mxu0
      %1830 = vmatprep.mubr.bf16.mxu0 0
      %1831 = vmatmul.mubr.bf16.gmra.mrb[0].mxu0 %v1660
      %v1832 = vpop.f32.mrb[0].mxu0
      %v1833 = vadd.f32 0.0, %v1832
      %v1834 = vpop.f32.mrb[0].mxu0
      %v1835 = vpop.f32.mrb[0].mxu0
      %v1836 = vadd.f32 0.0, %v1835
      %v1837 = vpop.f32.mrb[0].mxu0
      %1838 = vdwg.mxu0
      %v1851 = vunpack.c.l.b16 %v1304
      %v1852 = vunpack.c.l.b16 %v1305
      %v1853 = vunpack.c.l.b16 %v1306
      %v1854 = vunpack.c.l.b16 %v1307
      %v1855 = vunpack.c.l.b16 %v1308
      %v1856 = vunpack.c.l.b16 %v1309
      %v1857 = vunpack.c.l.b16 %v1310
      %v1858 = vunpack.c.l.b16 %v1311
      %v1859 = vunpack.c.l.b16 %v1312
      %v1860 = vunpack.c.l.b16 %v1313
      %v1861 = vunpack.c.l.b16 %v1314
      %v1862 = vunpack.c.l.b16 %v1315
      %v1863 = vpack.c.b16 %v1852, %v1851
      %v1864 = vpack.c.b16 %v1854, %v1853
      %v1865 = vpack.c.b16 %v1856, %v1855
      %v1866 = vpack.c.b16 %v1858, %v1857
      %v1867 = vpack.c.b16 %v1860, %v1859
      %v1868 = vpack.c.b16 %v1862, %v1861
      %v1875 = vsel %vm394, %v1404, 0
      %v1877 = vsel %vm394, %v1405, 0
      %v1879 = vsel %vm394, %v1406, 0
      %v1881 = vsel %vm394, %v1407, 0
      %v1883 = vsel %vm394, %v1408, 0
      %v1885 = vsel %vm394, %v1409, 0
      %v1887 = vsel %vm394, %v1410, 0
      %v1889 = vsel %vm394, %v1411, 0
      %v1891 = vsel %vm394, %v1412, 0
      %v1893 = vsel %vm394, %v1413, 0
      %v1895 = vsel %vm394, %v1414, 0
      %v1897 = vsel %vm394, %v1415, 0
      %v1899 = vsel %vm394, %v1416, 0
      %v1901 = vsel %vm394, %v1417, 0
      %v1903 = vsel %vm394, %v1418, 0
      %v1905 = vsel %vm394, %v1419, 0
      %v1907 = vsel %vm394, %v1420, 0
      %v1909 = vsel %vm394, %v1421, 0
      %1911 = vmatprep.subr.bf16.mxu0 0
      %1912 = vmatpush1.bf16.msra.mxu0 %v1863
      %1913 = vmatprep.subr.bf16.mxu0 0
      %1914 = vmatpush1.bf16.msra.mxu0 %v1864
      %1915 = vmatprep.subr.bf16.mxu0 0
      %1916 = vmatpush1.bf16.msra.mxu0 %v1865
      %1917 = vmatprep.subr.bf16.mxu0 0
      %1918 = vmatpush1.bf16.msra.mxu0 %v1866
      %1919 = vmatprep.subr.bf16.mxu0 0
      %1920 = vmatpush1.bf16.msra.mxu0 %v1867
      %1921 = vmatprep.subr.bf16.mxu0 0
      %1922 = vmatpush1.bf16.msra.mxu0 %v1868
      %1923 = vmatprep.subr.bf16.mxu0 0
      %1924 = vmatpush1.bf16.msra.mxu0 0
      %1925 = vmatprep.subr.bf16.mxu0 0
      %1926 = vmatpush1.bf16.msra.mxu0 0
      %1927 = vmatprep.subr.bf16.mxu0 0
      %1928 = vmatpush1.bf16.msra.mxu0 0
      %1929 = vmatprep.subr.bf16.mxu0 0
      %1930 = vmatpush1.bf16.msra.mxu0 0
      %1931 = vmatprep.subr.bf16.mxu0 0
      %1932 = vmatpush1.bf16.msra.mxu0 0
      %1933 = vmatprep.subr.bf16.mxu0 0
      %1934 = vmatpush1.bf16.msra.mxu0 0
      %1935 = vmatprep.subr.bf16.mxu0 0
      %1936 = vmatpush1.bf16.msra.mxu0 0
      %1937 = vmatprep.subr.bf16.mxu0 0
      %1938 = vmatpush1.bf16.msra.mxu0 0
      %1939 = vmatprep.subr.bf16.mxu0 0
      %1940 = vmatpush1.bf16.msra.mxu0 0
      %1941 = vmatprep.subr.bf16.mxu0 0
      %1942 = vmatpush1.bf16.msra.mxu0 0
      %1943 = vmatprep.mubr.bf16.mxu0 0
      %1944 = vmatmul.mubr.bf16.gmra.mrb[0].mxu0 %v1875
      %v1945 = vpop.f32.mrb[0].mxu0
      %v1946 = vadd.f32 %v1697, %v1945
      %v1947 = vpop.f32.mrb[0].mxu0
      %v1948 = vpop.f32.mrb[0].mxu0
      %v1949 = vadd.f32 %v1700, %v1948
      %v1950 = vpop.f32.mrb[0].mxu0
      %1951 = vmatprep.mubr.bf16.mxu0 0
      %1952 = vmatmul.mubr.bf16.gmra.mrb[0].mxu0 %v1877
      %v1953 = vpop.f32.mrb[0].mxu0
      %v1954 = vadd.f32 %v1705, %v1953
      %v1955 = vpop.f32.mrb[0].mxu0
      %v1956 = vpop.f32.mrb[0].mxu0
      %v1957 = vadd.f32 %v1708, %v1956
      %v1958 = vpop.f32.mrb[0].mxu0
      %1959 = vmatprep.mubr.bf16.mxu0 0
      %1960 = vmatmul.mubr.bf16.gmra.mrb[0].mxu0 %v1879
      %v1961 = vpop.f32.mrb[0].mxu0
      %v1962 = vadd.f32 %v1713, %v1961
      %v1963 = vpop.f32.mrb[0].mxu0
      %v1964 = vpop.f32.mrb[0].mxu0
      %v1965 = vadd.f32 %v1716, %v1964
      %v1966 = vpop.f32.mrb[0].mxu0
      %1967 = vmatprep.mubr.bf16.mxu0 0
      %1968 = vmatmul.mubr.bf16.gmra.mrb[0].mxu0 %v1881
      %v1969 = vpop.f32.mrb[0].mxu0
      %v1970 = vadd.f32 %v1721, %v1969
      %v1971 = vpop.f32.mrb[0].mxu0
      %v1972 = vpop.f32.mrb[0].mxu0
      %v1973 = vadd.f32 %v1724, %v1972
      %v1974 = vpop.f32.mrb[0].mxu0
      %1975 = vmatprep.mubr.bf16.mxu0 0
      %1976 = vmatmul.mubr.bf16.gmra.mrb[0].mxu0 %v1883
      %v1977 = vpop.f32.mrb[0].mxu0
      %v1978 = vadd.f32 %v1729, %v1977
      %v1979 = vpop.f32.mrb[0].mxu0
      %v1980 = vpop.f32.mrb[0].mxu0
      %v1981 = vadd.f32 %v1732, %v1980
      %v1982 = vpop.f32.mrb[0].mxu0
      %1983 = vmatprep.mubr.bf16.mxu0 0
      %1984 = vmatmul.mubr.bf16.gmra.mrb[0].mxu0 %v1885
      %v1985 = vpop.f32.mrb[0].mxu0
      %v1986 = vadd.f32 %v1737, %v1985
      %v1987 = vpop.f32.mrb[0].mxu0
      %v1988 = vpop.f32.mrb[0].mxu0
      %v1989 = vadd.f32 %v1740, %v1988
      %v1990 = vpop.f32.mrb[0].mxu0
      %1991 = vmatprep.mubr.bf16.mxu0 0
      %1992 = vmatmul.mubr.bf16.gmra.mrb[0].mxu0 %v1887
      %v1993 = vpop.f32.mrb[0].mxu0
      %v1994 = vadd.f32 %v1745, %v1993
      %v1995 = vpop.f32.mrb[0].mxu0
      %v1996 = vpop.f32.mrb[0].mxu0
      %v1997 = vadd.f32 %v1748, %v1996
      %v1998 = vpop.f32.mrb[0].mxu0
      %1999 = vmatprep.mubr.bf16.mxu0 0
      %2000 = vmatmul.mubr.bf16.gmra.mrb[0].mxu0 %v1889
      %v2001 = vpop.f32.mrb[0].mxu0
      %v2002 = vadd.f32 %v1753, %v2001
      %v2003 = vpop.f32.mrb[0].mxu0
      %v2004 = vpop.f32.mrb[0].mxu0
      %v2005 = vadd.f32 %v1756, %v2004
      %v2006 = vpop.f32.mrb[0].mxu0
      %2007 = vmatprep.mubr.bf16.mxu0 0
      %2008 = vmatmul.mubr.bf16.gmra.mrb[0].mxu0 %v1891
      %v2009 = vpop.f32.mrb[0].mxu0
      %v2010 = vadd.f32 %v1761, %v2009
      %v2011 = vpop.f32.mrb[0].mxu0
      %v2012 = vpop.f32.mrb[0].mxu0
      %v2013 = vadd.f32 %v1764, %v2012
      %v2014 = vpop.f32.mrb[0].mxu0
      %2015 = vmatprep.mubr.bf16.mxu0 0
      %2016 = vmatmul.mubr.bf16.gmra.mrb[0].mxu0 %v1893
      %v2017 = vpop.f32.mrb[0].mxu0
      %v2018 = vadd.f32 %v1769, %v2017
      %v2019 = vpop.f32.mrb[0].mxu0
      %v2020 = vpop.f32.mrb[0].mxu0
      %v2021 = vadd.f32 %v1772, %v2020
      %v2022 = vpop.f32.mrb[0].mxu0
      %2023 = vmatprep.mubr.bf16.mxu0 0
      %2024 = vmatmul.mubr.bf16.gmra.mrb[0].mxu0 %v1895
      %v2025 = vpop.f32.mrb[0].mxu0
      %v2026 = vadd.f32 %v1777, %v2025
      %v2027 = vpop.f32.mrb[0].mxu0
      %v2028 = vpop.f32.mrb[0].mxu0
      %v2029 = vadd.f32 %v1780, %v2028
      %v2030 = vpop.f32.mrb[0].mxu0
      %2031 = vmatprep.mubr.bf16.mxu0 0
      %2032 = vmatmul.mubr.bf16.gmra.mrb[0].mxu0 %v1897
      %v2033 = vpop.f32.mrb[0].mxu0
      %v2034 = vadd.f32 %v1785, %v2033
      %v2035 = vpop.f32.mrb[0].mxu0
      %v2036 = vpop.f32.mrb[0].mxu0
      %v2037 = vadd.f32 %v1788, %v2036
      %v2038 = vpop.f32.mrb[0].mxu0
      %2039 = vmatprep.mubr.bf16.mxu0 0
      %2040 = vmatmul.mubr.bf16.gmra.mrb[0].mxu0 %v1899
      %v2041 = vpop.f32.mrb[0].mxu0
      %v2042 = vadd.f32 %v1793, %v2041
      %v2043 = vpop.f32.mrb[0].mxu0
      %v2044 = vpop.f32.mrb[0].mxu0
      %v2045 = vadd.f32 %v1796, %v2044
      %v2046 = vpop.f32.mrb[0].mxu0
      %2047 = vmatprep.mubr.bf16.mxu0 0
      %2048 = vmatmul.mubr.bf16.gmra.mrb[0].mxu0 %v1901
      %v2049 = vpop.f32.mrb[0].mxu0
      %v2050 = vadd.f32 %v1801, %v2049
      %v2051 = vpop.f32.mrb[0].mxu0
      %v2052 = vpop.f32.mrb[0].mxu0
      %v2053 = vadd.f32 %v1804, %v2052
      %v2054 = vpop.f32.mrb[0].mxu0
      %2055 = vmatprep.mubr.bf16.mxu0 0
      %2056 = vmatmul.mubr.bf16.gmra.mrb[0].mxu0 %v1903
      %v2057 = vpop.f32.mrb[0].mxu0
      %v2058 = vadd.f32 %v1809, %v2057
      %v2059 = vpop.f32.mrb[0].mxu0
      %v2060 = vpop.f32.mrb[0].mxu0
      %v2061 = vadd.f32 %v1812, %v2060
      %v2062 = vpop.f32.mrb[0].mxu0
      %2063 = vmatprep.mubr.bf16.mxu0 0
      %2064 = vmatmul.mubr.bf16.gmra.mrb[0].mxu0 %v1905
      %v2065 = vpop.f32.mrb[0].mxu0
      %v2066 = vadd.f32 %v1817, %v2065
      %v2067 = vpop.f32.mrb[0].mxu0
      %v2068 = vpop.f32.mrb[0].mxu0
      %v2069 = vadd.f32 %v1820, %v2068
      %v2070 = vpop.f32.mrb[0].mxu0
      %2071 = vmatprep.mubr.bf16.mxu0 0
      %2072 = vmatmul.mubr.bf16.gmra.mrb[0].mxu0 %v1907
      %v2073 = vpop.f32.mrb[0].mxu0
      %v2074 = vadd.f32 %v1825, %v2073
      %v2075 = vpop.f32.mrb[0].mxu0
      %v2076 = vpop.f32.mrb[0].mxu0
      %v2077 = vadd.f32 %v1828, %v2076
      %v2078 = vpop.f32.mrb[0].mxu0
      %2079 = vmatprep.mubr.bf16.mxu0 0
      %2080 = vmatmul.mubr.bf16.gmra.mrb[0].mxu0 %v1909
      %v2081 = vpop.f32.mrb[0].mxu0
      %v2082 = vadd.f32 %v1833, %v2081
      %v2083 = vpop.f32.mrb[0].mxu0
      %v2084 = vpop.f32.mrb[0].mxu0
      %v2085 = vadd.f32 %v1836, %v2084
      %v2086 = vpop.f32.mrb[0].mxu0
      %2087 = vdwg.mxu0
      %v2088 = vld [vmem:[#allocation2] sm:$0xe]
      %s2089 = scalar_lea.vmem %s3, 96
      %v2090 = vld [vmem:[%s2089] sm:$0xf]
      %v2091 = vld [vmem:[%s2089 + $0x4] sm:$0xf]
      %v2092 = vld [vmem:[%s2089 + $0x8] sm:$0xf]
      %v2093 = vld [vmem:[%s2089 + $0xc] sm:$0xf]
      %v2094 = vld [vmem:[%s2089 + $0x10] sm:$0xf]
      %v2095 = vld [vmem:[%s2089 + $0x14] sm:$0xf]
      %v2096 = vld [vmem:[%s2089 + $0x18] sm:$0xf]
      %v2097 = vld [vmem:[%s2089 + $0x1c] sm:$0xf]
      %v2098 = vld [vmem:[%s2089 + $0x20] sm:$0xf]
      %v2099 = vld [vmem:[%s2089 + $0x24] sm:$0xf]
      %v2100 = vld [vmem:[%s2089 + $0x28] sm:$0xf]
      %v2101 = vld [vmem:[%s2089 + $0x2c] sm:$0xf]
      %v2103 = vunpack.c.l.b16 %v2088
      %v2104 = vpack.c.b16 %v1368, %v2103
      %vm2105 = vcmask 1046528
      %v2106 = vrot.slane %v2104, 1
      %v2107 = vrot.slane %v1405, 1
      %v2108 = vsel %vm2105, %v2106, %v2107
      %v2109 = vrot.slane %v1406, 1
      %v2110 = vsel %vm2105, %v2107, %v2109
      %v2111 = vrot.slane %v1407, 1
      %v2112 = vsel %vm2105, %v2109, %v2111
      %v2113 = vrot.slane %v1408, 1
      %v2114 = vsel %vm2105, %v2111, %v2113
      %v2115 = vrot.slane %v1409, 1
      %v2116 = vsel %vm2105, %v2113, %v2115
      %v2117 = vrot.slane %v1410, 1
      %v2118 = vsel %vm2105, %v2115, %v2117
      %v2119 = vrot.slane %v1411, 1
      %v2120 = vsel %vm2105, %v2117, %v2119
      %v2121 = vrot.slane %v1412, 1
      %v2122 = vsel %vm2105, %v2119, %v2121
      %v2123 = vrot.slane %v1413, 1
      %v2124 = vsel %vm2105, %v2121, %v2123
      %v2125 = vrot.slane %v1414, 1
      %v2126 = vsel %vm2105, %v2123, %v2125
      %v2127 = vrot.slane %v1415, 1
      %v2128 = vsel %vm2105, %v2125, %v2127
      %v2129 = vrot.slane %v1416, 1
      %v2130 = vsel %vm2105, %v2127, %v2129
      %v2131 = vrot.slane %v1417, 1
      %v2132 = vsel %vm2105, %v2129, %v2131
      %v2133 = vrot.slane %v1418, 1
      %v2134 = vsel %vm2105, %v2131, %v2133
      %v2135 = vrot.slane %v1419, 1
      %v2136 = vsel %vm2105, %v2133, %v2135
      %v2137 = vrot.slane %v1420, 1
      %v2138 = vsel %vm2105, %v2135, %v2137
      %v2139 = vrot.slane %v1421, 1
      %v2140 = vsel %vm2105, %v2137, %v2139
      %v2141 = vrot.slane %v1422, 1
      %v2142 = vsel %vm2105, %v2139, %v2141
      %v2155 = vunpack.c.l.b16 %v2090
      %v2156 = vunpack.c.l.b16 %v2091
      %v2157 = vunpack.c.l.b16 %v2092
      %v2158 = vunpack.c.l.b16 %v2093
      %v2159 = vunpack.c.l.b16 %v2094
      %v2160 = vunpack.c.l.b16 %v2095
      %v2161 = vunpack.c.l.b16 %v2096
      %v2162 = vunpack.c.l.b16 %v2097
      %v2163 = vunpack.c.l.b16 %v2098
      %v2164 = vunpack.c.l.b16 %v2099
      %v2165 = vunpack.c.l.b16 %v2100
      %v2166 = vunpack.c.l.b16 %v2101
      %v2167 = vpack.c.b16 %v2156, %v2155
      %v2168 = vpack.c.b16 %v2158, %v2157
      %v2169 = vpack.c.b16 %v2160, %v2159
      %v2170 = vpack.c.b16 %v2162, %v2161
      %v2171 = vpack.c.b16 %v2164, %v2163
      %v2172 = vpack.c.b16 %v2166, %v2165
      %v2180 = vsel %vm394, %v2108, 0
      %v2183 = vsel %vm394, %v2110, 0
      %v2186 = vsel %vm394, %v2112, 0
      %v2189 = vsel %vm394, %v2114, 0
      %v2192 = vsel %vm394, %v2116, 0
      %v2195 = vsel %vm394, %v2118, 0
      %v2198 = vsel %vm394, %v2120, 0
      %v2201 = vsel %vm394, %v2122, 0
      %v2204 = vsel %vm394, %v2124, 0
      %v2207 = vsel %vm394, %v2126, 0
      %v2210 = vsel %vm394, %v2128, 0
      %v2213 = vsel %vm394, %v2130, 0
      %v2216 = vsel %vm394, %v2132, 0
      %v2219 = vsel %vm394, %v2134, 0
      %v2222 = vsel %vm394, %v2136, 0
      %v2225 = vsel %vm394, %v2138, 0
      %v2228 = vsel %vm394, %v2140, 0
      %v2231 = vsel %vm394, %v2142, 0
      %2233 = vmatprep.subr.bf16.mxu0 0
      %2234 = vmatpush1.bf16.msra.mxu0 %v2167
      %2235 = vmatprep.subr.bf16.mxu0 0
      %2236 = vmatpush1.bf16.msra.mxu0 %v2168
      %2237 = vmatprep.subr.bf16.mxu0 0
      %2238 = vmatpush1.bf16.msra.mxu0 %v2169
      %2239 = vmatprep.subr.bf16.mxu0 0
      %2240 = vmatpush1.bf16.msra.mxu0 %v2170
      %2241 = vmatprep.subr.bf16.mxu0 0
      %2242 = vmatpush1.bf16.msra.mxu0 %v2171
      %2243 = vmatprep.subr.bf16.mxu0 0
      %2244 = vmatpush1.bf16.msra.mxu0 %v2172
      %2245 = vmatprep.subr.bf16.mxu0 0
      %2246 = vmatpush1.bf16.msra.mxu0 0
      %2247 = vmatprep.subr.bf16.mxu0 0
      %2248 = vmatpush1.bf16.msra.mxu0 0
      %2249 = vmatprep.subr.bf16.mxu0 0
      %2250 = vmatpush1.bf16.msra.mxu0 0
      %2251 = vmatprep.subr.bf16.mxu0 0
      %2252 = vmatpush1.bf16.msra.mxu0 0
      %2253 = vmatprep.subr.bf16.mxu0 0
      %2254 = vmatpush1.bf16.msra.mxu0 0
      %2255 = vmatprep.subr.bf16.mxu0 0
      %2256 = vmatpush1.bf16.msra.mxu0 0
      %2257 = vmatprep.subr.bf16.mxu0 0
      %2258 = vmatpush1.bf16.msra.mxu0 0
      %2259 = vmatprep.subr.bf16.mxu0 0
      %2260 = vmatpush1.bf16.msra.mxu0 0
      %2261 = vmatprep.subr.bf16.mxu0 0
      %2262 = vmatpush1.bf16.msra.mxu0 0
      %2263 = vmatprep.subr.bf16.mxu0 0
      %2264 = vmatpush1.bf16.msra.mxu0 0
      %2265 = vmatprep.mubr.bf16.mxu0 0
      %2266 = vmatmul.mubr.bf16.gmra.mrb[0].mxu0 %v2180
      %v2267 = vpop.f32.mrb[0].mxu0
      %v2268 = vadd.f32 0.0, %v2267
      %v2269 = vpop.f32.mrb[0].mxu0
      %v2270 = vpop.f32.mrb[0].mxu0
      %v2271 = vadd.f32 0.0, %v2270
      %v2272 = vpop.f32.mrb[0].mxu0
      %2273 = vmatprep.mubr.bf16.mxu0 0
      %2274 = vmatmul.mubr.bf16.gmra.mrb[0].mxu0 %v2183
      %v2275 = vpop.f32.mrb[0].mxu0
      %v2276 = vadd.f32 0.0, %v2275
      %v2277 = vpop.f32.mrb[0].mxu0
      %v2278 = vpop.f32.mrb[0].mxu0
      %v2279 = vadd.f32 0.0, %v2278
      %v2280 = vpop.f32.mrb[0].mxu0
      %2281 = vmatprep.mubr.bf16.mxu0 0
      %2282 = vmatmul.mubr.bf16.gmra.mrb[0].mxu0 %v2186
      %v2283 = vpop.f32.mrb[0].mxu0
      %v2284 = vadd.f32 0.0, %v2283
      %v2285 = vpop.f32.mrb[0].mxu0
      %v2286 = vpop.f32.mrb[0].mxu0
      %v2287 = vadd.f32 0.0, %v2286
      %v2288 = vpop.f32.mrb[0].mxu0
      %2289 = vmatprep.mubr.bf16.mxu0 0
      %2290 = vmatmul.mubr.bf16.gmra.mrb[0].mxu0 %v2189
      %v2291 = vpop.f32.mrb[0].mxu0
      %v2292 = vadd.f32 0.0, %v2291
      %v2293 = vpop.f32.mrb[0].mxu0
      %v2294 = vpop.f32.mrb[0].mxu0
      %v2295 = vadd.f32 0.0, %v2294
      %v2296 = vpop.f32.mrb[0].mxu0
      %2297 = vmatprep.mubr.bf16.mxu0 0
      %2298 = vmatmul.mubr.bf16.gmra.mrb[0].mxu0 %v2192
      %v2299 = vpop.f32.mrb[0].mxu0
      %v2300 = vadd.f32 0.0, %v2299
      %v2301 = vpop.f32.mrb[0].mxu0
      %v2302 = vpop.f32.mrb[0].mxu0
      %v2303 = vadd.f32 0.0, %v2302
      %v2304 = vpop.f32.mrb[0].mxu0
      %2305 = vmatprep.mubr.bf16.mxu0 0
      %2306 = vmatmul.mubr.bf16.gmra.mrb[0].mxu0 %v2195
      %v2307 = vpop.f32.mrb[0].mxu0
      %v2308 = vadd.f32 0.0, %v2307
      %v2309 = vpop.f32.mrb[0].mxu0
      %v2310 = vpop.f32.mrb[0].mxu0
      %v2311 = vadd.f32 0.0, %v2310
      %v2312 = vpop.f32.mrb[0].mxu0
      %2313 = vmatprep.mubr.bf16.mxu0 0
      %2314 = vmatmul.mubr.bf16.gmra.mrb[0].mxu0 %v2198
      %v2315 = vpop.f32.mrb[0].mxu0
      %v2316 = vadd.f32 0.0, %v2315
      %v2317 = vpop.f32.mrb[0].mxu0
      %v2318 = vpop.f32.mrb[0].mxu0
      %v2319 = vadd.f32 0.0, %v2318
      %v2320 = vpop.f32.mrb[0].mxu0
      %2321 = vmatprep.mubr.bf16.mxu0 0
      %2322 = vmatmul.mubr.bf16.gmra.mrb[0].mxu0 %v2201
      %v2323 = vpop.f32.mrb[0].mxu0
      %v2324 = vadd.f32 0.0, %v2323
      %v2325 = vpop.f32.mrb[0].mxu0
      %v2326 = vpop.f32.mrb[0].mxu0
      %v2327 = vadd.f32 0.0, %v2326
      %v2328 = vpop.f32.mrb[0].mxu0
      %2329 = vmatprep.mubr.bf16.mxu0 0
      %2330 = vmatmul.mubr.bf16.gmra.mrb[0].mxu0 %v2204
      %v2331 = vpop.f32.mrb[0].mxu0
      %v2332 = vadd.f32 0.0, %v2331
      %v2333 = vpop.f32.mrb[0].mxu0
      %v2334 = vpop.f32.mrb[0].mxu0
      %v2335 = vadd.f32 0.0, %v2334
      %v2336 = vpop.f32.mrb[0].mxu0
      %2337 = vmatprep.mubr.bf16.mxu0 0
      %2338 = vmatmul.mubr.bf16.gmra.mrb[0].mxu0 %v2207
      %v2339 = vpop.f32.mrb[0].mxu0
      %v2340 = vadd.f32 0.0, %v2339
      %v2341 = vpop.f32.mrb[0].mxu0
      %v2342 = vpop.f32.mrb[0].mxu0
      %v2343 = vadd.f32 0.0, %v2342
      %v2344 = vpop.f32.mrb[0].mxu0
      %2345 = vmatprep.mubr.bf16.mxu0 0
      %2346 = vmatmul.mubr.bf16.gmra.mrb[0].mxu0 %v2210
      %v2347 = vpop.f32.mrb[0].mxu0
      %v2348 = vadd.f32 0.0, %v2347
      %v2349 = vpop.f32.mrb[0].mxu0
      %v2350 = vpop.f32.mrb[0].mxu0
      %v2351 = vadd.f32 0.0, %v2350
      %v2352 = vpop.f32.mrb[0].mxu0
      %2353 = vmatprep.mubr.bf16.mxu0 0
      %2354 = vmatmul.mubr.bf16.gmra.mrb[0].mxu0 %v2213
      %v2355 = vpop.f32.mrb[0].mxu0
      %v2356 = vadd.f32 0.0, %v2355
      %v2357 = vpop.f32.mrb[0].mxu0
      %v2358 = vpop.f32.mrb[0].mxu0
      %v2359 = vadd.f32 0.0, %v2358
      %v2360 = vpop.f32.mrb[0].mxu0
      %2361 = vmatprep.mubr.bf16.mxu0 0
      %2362 = vmatmul.mubr.bf16.gmra.mrb[0].mxu0 %v2216
      %v2363 = vpop.f32.mrb[0].mxu0
      %v2364 = vadd.f32 0.0, %v2363
      %v2365 = vpop.f32.mrb[0].mxu0
      %v2366 = vpop.f32.mrb[0].mxu0
      %v2367 = vadd.f32 0.0, %v2366
      %v2368 = vpop.f32.mrb[0].mxu0
      %2369 = vmatprep.mubr.bf16.mxu0 0
      %2370 = vmatmul.mubr.bf16.gmra.mrb[0].mxu0 %v2219
      %v2371 = vpop.f32.mrb[0].mxu0
      %v2372 = vadd.f32 0.0, %v2371
      %v2373 = vpop.f32.mrb[0].mxu0
      %v2374 = vpop.f32.mrb[0].mxu0
      %v2375 = vadd.f32 0.0, %v2374
      %v2376 = vpop.f32.mrb[0].mxu0
      %2377 = vmatprep.mubr.bf16.mxu0 0
      %2378 = vmatmul.mubr.bf16.gmra.mrb[0].mxu0 %v2222
      %v2379 = vpop.f32.mrb[0].mxu0
      %v2380 = vadd.f32 0.0, %v2379
      %v2381 = vpop.f32.mrb[0].mxu0
      %v2382 = vpop.f32.mrb[0].mxu0
      %v2383 = vadd.f32 0.0, %v2382
      %v2384 = vpop.f32.mrb[0].mxu0
      %2385 = vmatprep.mubr.bf16.mxu0 0
      %2386 = vmatmul.mubr.bf16.gmra.mrb[0].mxu0 %v2225
      %v2387 = vpop.f32.mrb[0].mxu0
      %v2388 = vadd.f32 0.0, %v2387
      %v2389 = vpop.f32.mrb[0].mxu0
      %v2390 = vpop.f32.mrb[0].mxu0
      %v2391 = vadd.f32 0.0, %v2390
      %v2392 = vpop.f32.mrb[0].mxu0
      %2393 = vmatprep.mubr.bf16.mxu0 0
      %2394 = vmatmul.mubr.bf16.gmra.mrb[0].mxu0 %v2228
      %v2395 = vpop.f32.mrb[0].mxu0
      %v2396 = vadd.f32 0.0, %v2395
      %v2397 = vpop.f32.mrb[0].mxu0
      %v2398 = vpop.f32.mrb[0].mxu0
      %v2399 = vadd.f32 0.0, %v2398
      %v2400 = vpop.f32.mrb[0].mxu0
      %2401 = vmatprep.mubr.bf16.mxu0 0
      %2402 = vmatmul.mubr.bf16.gmra.mrb[0].mxu0 %v2231
      %v2403 = vpop.f32.mrb[0].mxu0
      %v2404 = vadd.f32 0.0, %v2403
      %v2405 = vpop.f32.mrb[0].mxu0
      %v2406 = vpop.f32.mrb[0].mxu0
      %v2407 = vadd.f32 0.0, %v2406
      %v2408 = vpop.f32.mrb[0].mxu0
      %2409 = vdwg.mxu0
      %v2410 = vadd.f32 %v1946, %v2268
      %v2411 = vadd.f32 %v1949, %v2271
      %v2412 = vadd.f32 %v1954, %v2276
      %v2413 = vadd.f32 %v1957, %v2279
      %v2414 = vadd.f32 %v1962, %v2284
      %v2415 = vadd.f32 %v1965, %v2287
      %v2416 = vadd.f32 %v1970, %v2292
      %v2417 = vadd.f32 %v1973, %v2295
      %v2418 = vadd.f32 %v1978, %v2300
      %v2419 = vadd.f32 %v1981, %v2303
      %v2420 = vadd.f32 %v1986, %v2308
      %v2421 = vadd.f32 %v1989, %v2311
      %v2422 = vadd.f32 %v1994, %v2316
      %v2423 = vadd.f32 %v1997, %v2319
      %v2424 = vadd.f32 %v2002, %v2324
      %v2425 = vadd.f32 %v2005, %v2327
      %v2426 = vadd.f32 %v2010, %v2332
      %v2427 = vadd.f32 %v2013, %v2335
      %v2428 = vadd.f32 %v2018, %v2340
      %v2429 = vadd.f32 %v2021, %v2343
      %v2430 = vadd.f32 %v2026, %v2348
      %v2431 = vadd.f32 %v2029, %v2351
      %v2432 = vadd.f32 %v2034, %v2356
      %v2433 = vadd.f32 %v2037, %v2359
      %v2434 = vadd.f32 %v2042, %v2364
      %v2435 = vadd.f32 %v2045, %v2367
      %v2436 = vadd.f32 %v2050, %v2372
      %v2437 = vadd.f32 %v2053, %v2375
      %v2438 = vadd.f32 %v2058, %v2380
      %v2439 = vadd.f32 %v2061, %v2383
      %v2440 = vadd.f32 %v2066, %v2388
      %v2441 = vadd.f32 %v2069, %v2391
      %v2442 = vadd.f32 %v2074, %v2396
      %v2443 = vadd.f32 %v2077, %v2399
      %v2444 = vadd.f32 %v2082, %v2404
      %v2445 = vadd.f32 %v2085, %v2407
      %v2446 = vld [vmem:[#allocation2 + $0x8] sm:$0xe]
      %v2447 = vld [vmem:[#allocation2 + $0xc] sm:$0xf]
      %v2448 = vld [vmem:[#allocation2 + $0x10] sm:$0xf]
      %v2449 = vld [vmem:[#allocation2 + $0x14] sm:$0xf]
      %v2450 = vld [vmem:[#allocation2 + $0x18] sm:$0xf]
      %v2451 = vld [vmem:[#allocation2 + $0x1c] sm:$0xf]
      %v2452 = vld [vmem:[#allocation2 + $0x20] sm:$0xf]
      %v2453 = vld [vmem:[#allocation2 + $0x24] sm:$0xf]
      %v2454 = vld [vmem:[#allocation2 + $0x28] sm:$0xf]
      %v2455 = vld [vmem:[#allocation2 + $0x2c] sm:$0xf]
      %v2456 = vld [vmem:[#allocation2 + $0x30] sm:$0xf]
      %v2457 = vld [vmem:[#allocation2 + $0x34] sm:$0xf]
      %v2458 = vld [vmem:[#allocation2 + $0x38] sm:$0xf]
      %v2459 = vld [vmem:[#allocation2 + $0x3c] sm:$0xf]
      %v2460 = vld [vmem:[#allocation2 + $0x40] sm:$0xf]
      %v2461 = vld [vmem:[#allocation2 + $0x44] sm:$0xf]
      %v2462 = vld [vmem:[#allocation2 + $0x48] sm:$0xf]
      %v2463 = vld [vmem:[#allocation2 + $0x4c] sm:$0xf]
      %v2464 = vld [vmem:[#allocation2 + $0x50] sm:$0xf]
      %v2465 = vld [vmem:[#allocation2 + $0x54] sm:$0xf]
      %v2466 = vld [vmem:[#allocation2 + $0x58] sm:$0xf]
      %v2467 = vld [vmem:[#allocation2 + $0x5c] sm:$0xf]
      %v2468 = vld [vmem:[#allocation2 + $0x60] sm:$0xf]
      %v2469 = vld [vmem:[#allocation2 + $0x64] sm:$0xf]
      %v2470 = vld [vmem:[#allocation2 + $0x68] sm:$0xf]
      %v2471 = vld [vmem:[#allocation2 + $0x6c] sm:$0xf]
      %v2472 = vld [vmem:[#allocation2 + $0x70] sm:$0xf]
      %v2473 = vld [vmem:[#allocation2 + $0x74] sm:$0xf]
      %v2474 = vld [vmem:[#allocation2 + $0x78] sm:$0xf]
      %v2475 = vld [vmem:[#allocation2 + $0x7c] sm:$0xf]
      %v2476 = vld [vmem:[#allocation2 + $0x80] sm:$0xf]
      %v2477 = vld [vmem:[#allocation2 + $0x84] sm:$0xf]
      %v2478 = vld [vmem:[#allocation2 + $0x88] sm:$0xf]
      %v2479 = vld [vmem:[#allocation2 + $0x8c] sm:$0xf]
      %v2480 = vld [vmem:[#allocation2 + $0x90] sm:$0xf]
      %v2481 = vld [vmem:[#allocation2 + $0x94] sm:$0xf]
      %v2482 = vld [vmem:[#allocation2 + $0x98] sm:$0x1]
      %s2483 = scalar_lea.vmem %s3, 144
      %v2484 = vld [vmem:[%s2483] sm:$0xf]
      %v2485 = vld [vmem:[%s2483 + $0x4] sm:$0xf]
      %v2486 = vld [vmem:[%s2483 + $0x8] sm:$0xf]
      %v2487 = vld [vmem:[%s2483 + $0xc] sm:$0xf]
      %v2488 = vld [vmem:[%s2483 + $0x10] sm:$0xf]
      %v2489 = vld [vmem:[%s2483 + $0x14] sm:$0xf]
      %v2490 = vld [vmem:[%s2483 + $0x18] sm:$0xf]
      %v2491 = vld [vmem:[%s2483 + $0x1c] sm:$0xf]
      %v2492 = vld [vmem:[%s2483 + $0x20] sm:$0xf]
      %v2493 = vld [vmem:[%s2483 + $0x24] sm:$0xf]
      %v2494 = vld [vmem:[%s2483 + $0x28] sm:$0xf]
      %v2495 = vld [vmem:[%s2483 + $0x2c] sm:$0xf]
      %v2533 = vunpack.c.l.b16 %v2446
      %v2534 = vunpack.c.l.b16 %v2447
      %v2535 = vunpack.c.l.b16 %v2448
      %v2536 = vunpack.c.l.b16 %v2449
      %v2537 = vunpack.c.l.b16 %v2450
      %v2538 = vunpack.c.l.b16 %v2451
      %v2539 = vunpack.c.l.b16 %v2452
      %v2540 = vunpack.c.l.b16 %v2453
      %v2541 = vunpack.c.l.b16 %v2454
      %v2542 = vunpack.c.l.b16 %v2455
      %v2543 = vunpack.c.l.b16 %v2456
      %v2544 = vunpack.c.l.b16 %v2457
      %v2545 = vunpack.c.l.b16 %v2458
      %v2546 = vunpack.c.l.b16 %v2459
      %v2547 = vunpack.c.l.b16 %v2460
      %v2548 = vunpack.c.l.b16 %v2461
      %v2549 = vunpack.c.l.b16 %v2462
      %v2550 = vunpack.c.l.b16 %v2463
      %v2551 = vunpack.c.l.b16 %v2464
      %v2552 = vunpack.c.l.b16 %v2465
      %v2553 = vunpack.c.l.b16 %v2466
      %v2554 = vunpack.c.l.b16 %v2467
      %v2555 = vunpack.c.l.b16 %v2468
      %v2556 = vunpack.c.l.b16 %v2469
      %v2557 = vunpack.c.l.b16 %v2470
      %v2558 = vunpack.c.l.b16 %v2471
      %v2559 = vunpack.c.l.b16 %v2472
      %v2560 = vunpack.c.l.b16 %v2473
      %v2561 = vunpack.c.l.b16 %v2474
      %v2562 = vunpack.c.l.b16 %v2475
      %v2563 = vunpack.c.l.b16 %v2476
      %v2564 = vunpack.c.l.b16 %v2477
      %v2565 = vunpack.c.l.b16 %v2478
      %v2566 = vunpack.c.l.b16 %v2479
      %v2567 = vunpack.c.l.b16 %v2480
      %v2568 = vunpack.c.l.b16 %v2481
      %v2569 = vunpack.c.l.b16 %v2482
      %v2570 = vpack.c.b16 %v2534, %v2533
      %v2571 = vpack.c.b16 %v2536, %v2535
      %v2572 = vpack.c.b16 %v2538, %v2537
      %v2573 = vpack.c.b16 %v2540, %v2539
      %v2574 = vpack.c.b16 %v2542, %v2541
      %v2575 = vpack.c.b16 %v2544, %v2543
      %v2576 = vpack.c.b16 %v2546, %v2545
      %v2577 = vpack.c.b16 %v2548, %v2547
      %v2578 = vpack.c.b16 %v2550, %v2549
      %v2579 = vpack.c.b16 %v2552, %v2551
      %v2580 = vpack.c.b16 %v2554, %v2553
      %v2581 = vpack.c.b16 %v2556, %v2555
      %v2582 = vpack.c.b16 %v2558, %v2557
      %v2583 = vpack.c.b16 %v2560, %v2559
      %v2584 = vpack.c.b16 %v2562, %v2561
      %v2585 = vpack.c.b16 %v2564, %v2563
      %v2586 = vpack.c.b16 %v2566, %v2565
      %v2587 = vpack.c.b16 %v2568, %v2567
      %v2588 = vpack.c.b16 %v2569, %v2569
      %v2589 = vrot.slane %v2570, 1
      %v2590 = vrot.slane %v2571, 1
      %v2591 = vsel %vm2105, %v2589, %v2590
      %v2592 = vrot.slane %v2572, 1
      %v2593 = vsel %vm2105, %v2590, %v2592
      %v2594 = vrot.slane %v2573, 1
      %v2595 = vsel %vm2105, %v2592, %v2594
      %v2596 = vrot.slane %v2574, 1
      %v2597 = vsel %vm2105, %v2594, %v2596
      %v2598 = vrot.slane %v2575, 1
      %v2599 = vsel %vm2105, %v2596, %v2598
      %v2600 = vrot.slane %v2576, 1
      %v2601 = vsel %vm2105, %v2598, %v2600
      %v2602 = vrot.slane %v2577, 1
      %v2603 = vsel %vm2105, %v2600, %v2602
      %v2604 = vrot.slane %v2578, 1
      %v2605 = vsel %vm2105, %v2602, %v2604
      %v2606 = vrot.slane %v2579, 1
      %v2607 = vsel %vm2105, %v2604, %v2606
      %v2608 = vrot.slane %v2580, 1
      %v2609 = vsel %vm2105, %v2606, %v2608
      %v2610 = vrot.slane %v2581, 1
      %v2611 = vsel %vm2105, %v2608, %v2610
      %v2612 = vrot.slane %v2582, 1
      %v2613 = vsel %vm2105, %v2610, %v2612
      %v2614 = vrot.slane %v2583, 1
      %v2615 = vsel %vm2105, %v2612, %v2614
      %v2616 = vrot.slane %v2584, 1
      %v2617 = vsel %vm2105, %v2614, %v2616
      %v2618 = vrot.slane %v2585, 1
      %v2619 = vsel %vm2105, %v2616, %v2618
      %v2620 = vrot.slane %v2586, 1
      %v2621 = vsel %vm2105, %v2618, %v2620
      %v2622 = vrot.slane %v2587, 1
      %v2623 = vsel %vm2105, %v2620, %v2622
      %v2624 = vrot.slane %v2588, 1
      %v2625 = vsel %vm2105, %v2622, %v2624
      %v2638 = vunpack.c.l.b16 %v2484
      %v2639 = vunpack.c.l.b16 %v2485
      %v2640 = vunpack.c.l.b16 %v2486
      %v2641 = vunpack.c.l.b16 %v2487
      %v2642 = vunpack.c.l.b16 %v2488
      %v2643 = vunpack.c.l.b16 %v2489
      %v2644 = vunpack.c.l.b16 %v2490
      %v2645 = vunpack.c.l.b16 %v2491
      %v2646 = vunpack.c.l.b16 %v2492
      %v2647 = vunpack.c.l.b16 %v2493
      %v2648 = vunpack.c.l.b16 %v2494
      %v2649 = vunpack.c.l.b16 %v2495
      %v2650 = vpack.c.b16 %v2639, %v2638
      %v2651 = vpack.c.b16 %v2641, %v2640
      %v2652 = vpack.c.b16 %v2643, %v2642
      %v2653 = vpack.c.b16 %v2645, %v2644
      %v2654 = vpack.c.b16 %v2647, %v2646
      %v2655 = vpack.c.b16 %v2649, %v2648
      %v2663 = vsel %vm394, %v2591, 0
      %v2666 = vsel %vm394, %v2593, 0
      %v2669 = vsel %vm394, %v2595, 0
      %v2672 = vsel %vm394, %v2597, 0
      %v2675 = vsel %vm394, %v2599, 0
      %v2678 = vsel %vm394, %v2601, 0
      %v2681 = vsel %vm394, %v2603, 0
      %v2684 = vsel %vm394, %v2605, 0
      %v2687 = vsel %vm394, %v2607, 0
      %v2690 = vsel %vm394, %v2609, 0
      %v2693 = vsel %vm394, %v2611, 0
      %v2696 = vsel %vm394, %v2613, 0
      %v2699 = vsel %vm394, %v2615, 0
      %v2702 = vsel %vm394, %v2617, 0
      %v2705 = vsel %vm394, %v2619, 0
      %v2708 = vsel %vm394, %v2621, 0
      %v2711 = vsel %vm394, %v2623, 0
      %v2714 = vsel %vm394, %v2625, 0
      %2716 = vmatprep.subr.bf16.mxu0 0
      %2717 = vmatpush1.bf16.msra.mxu0 %v2650
      %2718 = vmatprep.subr.bf16.mxu0 0
      %2719 = vmatpush1.bf16.msra.mxu0 %v2651
      %2720 = vmatprep.subr.bf16.mxu0 0
      %2721 = vmatpush1.bf16.msra.mxu0 %v2652
      %2722 = vmatprep.subr.bf16.mxu0 0
      %2723 = vmatpush1.bf16.msra.mxu0 %v2653
      %2724 = vmatprep.subr.bf16.mxu0 0
      %2725 = vmatpush1.bf16.msra.mxu0 %v2654
      %2726 = vmatprep.subr.bf16.mxu0 0
      %2727 = vmatpush1.bf16.msra.mxu0 %v2655
      %2728 = vmatprep.subr.bf16.mxu0 0
      %2729 = vmatpush1.bf16.msra.mxu0 0
      %2730 = vmatprep.subr.bf16.mxu0 0
      %2731 = vmatpush1.bf16.msra.mxu0 0
      %2732 = vmatprep.subr.bf16.mxu0 0
      %2733 = vmatpush1.bf16.msra.mxu0 0
      %2734 = vmatprep.subr.bf16.mxu0 0
      %2735 = vmatpush1.bf16.msra.mxu0 0
      %2736 = vmatprep.subr.bf16.mxu0 0
      %2737 = vmatpush1.bf16.msra.mxu0 0
      %2738 = vmatprep.subr.bf16.mxu0 0
      %2739 = vmatpush1.bf16.msra.mxu0 0
      %2740 = vmatprep.subr.bf16.mxu0 0
      %2741 = vmatpush1.bf16.msra.mxu0 0
      %2742 = vmatprep.subr.bf16.mxu0 0
      %2743 = vmatpush1.bf16.msra.mxu0 0
      %2744 = vmatprep.subr.bf16.mxu0 0
      %2745 = vmatpush1.bf16.msra.mxu0 0
      %2746 = vmatprep.subr.bf16.mxu0 0
      %2747 = vmatpush1.bf16.msra.mxu0 0
      %2748 = vmatprep.mubr.bf16.mxu0 0
      %2749 = vmatmul.mubr.bf16.gmra.mrb[0].mxu0 %v2663
      %v2750 = vpop.f32.mrb[0].mxu0
      %v2751 = vadd.f32 0.0, %v2750
      %v2752 = vpop.f32.mrb[0].mxu0
      %v2753 = vpop.f32.mrb[0].mxu0
      %v2754 = vadd.f32 0.0, %v2753
      %v2755 = vpop.f32.mrb[0].mxu0
      %2756 = vmatprep.mubr.bf16.mxu0 0
      %2757 = vmatmul.mubr.bf16.gmra.mrb[0].mxu0 %v2666
      %v2758 = vpop.f32.mrb[0].mxu0
      %v2759 = vadd.f32 0.0, %v2758
      %v2760 = vpop.f32.mrb[0].mxu0
      %v2761 = vpop.f32.mrb[0].mxu0
      %v2762 = vadd.f32 0.0, %v2761
      %v2763 = vpop.f32.mrb[0].mxu0
      %2764 = vmatprep.mubr.bf16.mxu0 0
      %2765 = vmatmul.mubr.bf16.gmra.mrb[0].mxu0 %v2669
      %v2766 = vpop.f32.mrb[0].mxu0
      %v2767 = vadd.f32 0.0, %v2766
      %v2768 = vpop.f32.mrb[0].mxu0
      %v2769 = vpop.f32.mrb[0].mxu0
      %v2770 = vadd.f32 0.0, %v2769
      %v2771 = vpop.f32.mrb[0].mxu0
      %2772 = vmatprep.mubr.bf16.mxu0 0
      %2773 = vmatmul.mubr.bf16.gmra.mrb[0].mxu0 %v2672
      %v2774 = vpop.f32.mrb[0].mxu0
      %v2775 = vadd.f32 0.0, %v2774
      %v2776 = vpop.f32.mrb[0].mxu0
      %v2777 = vpop.f32.mrb[0].mxu0
      %v2778 = vadd.f32 0.0, %v2777
      %v2779 = vpop.f32.mrb[0].mxu0
      %2780 = vmatprep.mubr.bf16.mxu0 0
      %2781 = vmatmul.mubr.bf16.gmra.mrb[0].mxu0 %v2675
      %v2782 = vpop.f32.mrb[0].mxu0
      %v2783 = vadd.f32 0.0, %v2782
      %v2784 = vpop.f32.mrb[0].mxu0
      %v2785 = vpop.f32.mrb[0].mxu0
      %v2786 = vadd.f32 0.0, %v2785
      %v2787 = vpop.f32.mrb[0].mxu0
      %2788 = vmatprep.mubr.bf16.mxu0 0
      %2789 = vmatmul.mubr.bf16.gmra.mrb[0].mxu0 %v2678
      %v2790 = vpop.f32.mrb[0].mxu0
      %v2791 = vadd.f32 0.0, %v2790
      %v2792 = vpop.f32.mrb[0].mxu0
      %v2793 = vpop.f32.mrb[0].mxu0
      %v2794 = vadd.f32 0.0, %v2793
      %v2795 = vpop.f32.mrb[0].mxu0
      %2796 = vmatprep.mubr.bf16.mxu0 0
      %2797 = vmatmul.mubr.bf16.gmra.mrb[0].mxu0 %v2681
      %v2798 = vpop.f32.mrb[0].mxu0
      %v2799 = vadd.f32 0.0, %v2798
      %v2800 = vpop.f32.mrb[0].mxu0
      %v2801 = vpop.f32.mrb[0].mxu0
      %v2802 = vadd.f32 0.0, %v2801
      %v2803 = vpop.f32.mrb[0].mxu0
      %2804 = vmatprep.mubr.bf16.mxu0 0
      %2805 = vmatmul.mubr.bf16.gmra.mrb[0].mxu0 %v2684
      %v2806 = vpop.f32.mrb[0].mxu0
      %v2807 = vadd.f32 0.0, %v2806
      %v2808 = vpop.f32.mrb[0].mxu0
      %v2809 = vpop.f32.mrb[0].mxu0
      %v2810 = vadd.f32 0.0, %v2809
      %v2811 = vpop.f32.mrb[0].mxu0
      %2812 = vmatprep.mubr.bf16.mxu0 0
      %2813 = vmatmul.mubr.bf16.gmra.mrb[0].mxu0 %v2687
      %v2814 = vpop.f32.mrb[0].mxu0
      %v2815 = vadd.f32 0.0, %v2814
      %v2816 = vpop.f32.mrb[0].mxu0
      %v2817 = vpop.f32.mrb[0].mxu0
      %v2818 = vadd.f32 0.0, %v2817
      %v2819 = vpop.f32.mrb[0].mxu0
      %2820 = vmatprep.mubr.bf16.mxu0 0
      %2821 = vmatmul.mubr.bf16.gmra.mrb[0].mxu0 %v2690
      %v2822 = vpop.f32.mrb[0].mxu0
      %v2823 = vadd.f32 0.0, %v2822
      %v2824 = vpop.f32.mrb[0].mxu0
      %v2825 = vpop.f32.mrb[0].mxu0
      %v2826 = vadd.f32 0.0, %v2825
      %v2827 = vpop.f32.mrb[0].mxu0
      %2828 = vmatprep.mubr.bf16.mxu0 0
      %2829 = vmatmul.mubr.bf16.gmra.mrb[0].mxu0 %v2693
      %v2830 = vpop.f32.mrb[0].mxu0
      %v2831 = vadd.f32 0.0, %v2830
      %v2832 = vpop.f32.mrb[0].mxu0
      %v2833 = vpop.f32.mrb[0].mxu0
      %v2834 = vadd.f32 0.0, %v2833
      %v2835 = vpop.f32.mrb[0].mxu0
      %2836 = vmatprep.mubr.bf16.mxu0 0
      %2837 = vmatmul.mubr.bf16.gmra.mrb[0].mxu0 %v2696
      %v2838 = vpop.f32.mrb[0].mxu0
      %v2839 = vadd.f32 0.0, %v2838
      %v2840 = vpop.f32.mrb[0].mxu0
      %v2841 = vpop.f32.mrb[0].mxu0
      %v2842 = vadd.f32 0.0, %v2841
      %v2843 = vpop.f32.mrb[0].mxu0
      %2844 = vmatprep.mubr.bf16.mxu0 0
      %2845 = vmatmul.mubr.bf16.gmra.mrb[0].mxu0 %v2699
      %v2846 = vpop.f32.mrb[0].mxu0
      %v2847 = vadd.f32 0.0, %v2846
      %v2848 = vpop.f32.mrb[0].mxu0
      %v2849 = vpop.f32.mrb[0].mxu0
      %v2850 = vadd.f32 0.0, %v2849
      %v2851 = vpop.f32.mrb[0].mxu0
      %2852 = vmatprep.mubr.bf16.mxu0 0
      %2853 = vmatmul.mubr.bf16.gmra.mrb[0].mxu0 %v2702
      %v2854 = vpop.f32.mrb[0].mxu0
      %v2855 = vadd.f32 0.0, %v2854
      %v2856 = vpop.f32.mrb[0].mxu0
      %v2857 = vpop.f32.mrb[0].mxu0
      %v2858 = vadd.f32 0.0, %v2857
      %v2859 = vpop.f32.mrb[0].mxu0
      %2860 = vmatprep.mubr.bf16.mxu0 0
      %2861 = vmatmul.mubr.bf16.gmra.mrb[0].mxu0 %v2705
      %v2862 = vpop.f32.mrb[0].mxu0
      %v2863 = vadd.f32 0.0, %v2862
      %v2864 = vpop.f32.mrb[0].mxu0
      %v2865 = vpop.f32.mrb[0].mxu0
      %v2866 = vadd.f32 0.0, %v2865
      %v2867 = vpop.f32.mrb[0].mxu0
      %2868 = vmatprep.mubr.bf16.mxu0 0
      %2869 = vmatmul.mubr.bf16.gmra.mrb[0].mxu0 %v2708
      %v2870 = vpop.f32.mrb[0].mxu0
      %v2871 = vadd.f32 0.0, %v2870
      %v2872 = vpop.f32.mrb[0].mxu0
      %v2873 = vpop.f32.mrb[0].mxu0
      %v2874 = vadd.f32 0.0, %v2873
      %v2875 = vpop.f32.mrb[0].mxu0
      %2876 = vmatprep.mubr.bf16.mxu0 0
      %2877 = vmatmul.mubr.bf16.gmra.mrb[0].mxu0 %v2711
      %v2878 = vpop.f32.mrb[0].mxu0
      %v2879 = vadd.f32 0.0, %v2878
      %v2880 = vpop.f32.mrb[0].mxu0
      %v2881 = vpop.f32.mrb[0].mxu0
      %v2882 = vadd.f32 0.0, %v2881
      %v2883 = vpop.f32.mrb[0].mxu0
      %2884 = vmatprep.mubr.bf16.mxu0 0
      %2885 = vmatmul.mubr.bf16.gmra.mrb[0].mxu0 %v2714
      %v2886 = vpop.f32.mrb[0].mxu0
      %v2887 = vadd.f32 0.0, %v2886
      %v2888 = vpop.f32.mrb[0].mxu0
      %v2889 = vpop.f32.mrb[0].mxu0
      %v2890 = vadd.f32 0.0, %v2889
      %v2891 = vpop.f32.mrb[0].mxu0
      %2892 = vdwg.mxu0
      %v2893 = vadd.f32 %v2410, %v2751
      %v2894 = vadd.f32 %v2411, %v2754
      %v2895 = vadd.f32 %v2412, %v2759
      %v2896 = vadd.f32 %v2413, %v2762
      %v2897 = vadd.f32 %v2414, %v2767
      %v2898 = vadd.f32 %v2415, %v2770
      %v2899 = vadd.f32 %v2416, %v2775
      %v2900 = vadd.f32 %v2417, %v2778
      %v2901 = vadd.f32 %v2418, %v2783
      %v2902 = vadd.f32 %v2419, %v2786
      %v2903 = vadd.f32 %v2420, %v2791
      %v2904 = vadd.f32 %v2421, %v2794
      %v2905 = vadd.f32 %v2422, %v2799
      %v2906 = vadd.f32 %v2423, %v2802
      %v2907 = vadd.f32 %v2424, %v2807
      %v2908 = vadd.f32 %v2425, %v2810
      %v2909 = vadd.f32 %v2426, %v2815
      %v2910 = vadd.f32 %v2427, %v2818
      %v2911 = vadd.f32 %v2428, %v2823
      %v2912 = vadd.f32 %v2429, %v2826
      %v2913 = vadd.f32 %v2430, %v2831
      %v2914 = vadd.f32 %v2431, %v2834
      %v2915 = vadd.f32 %v2432, %v2839
      %v2916 = vadd.f32 %v2433, %v2842
      %v2917 = vadd.f32 %v2434, %v2847
      %v2918 = vadd.f32 %v2435, %v2850
      %v2919 = vadd.f32 %v2436, %v2855
      %v2920 = vadd.f32 %v2437, %v2858
      %v2921 = vadd.f32 %v2438, %v2863
      %v2922 = vadd.f32 %v2439, %v2866
      %v2923 = vadd.f32 %v2440, %v2871
      %v2924 = vadd.f32 %v2441, %v2874
      %v2925 = vadd.f32 %v2442, %v2879
      %v2926 = vadd.f32 %v2443, %v2882
      %v2927 = vadd.f32 %v2444, %v2887
      %v2928 = vadd.f32 %v2445, %v2890
      %v2929 = vld [vmem:[#allocation2 + $0x98] sm:$0x3]
      %s2930 = scalar_lea.vmem %s3, 192
      %v2931 = vld [vmem:[%s2930] sm:$0xf]
      %v2932 = vld [vmem:[%s2930 + $0x4] sm:$0xf]
      %v2933 = vld [vmem:[%s2930 + $0x8] sm:$0xf]
      %v2934 = vld [vmem:[%s2930 + $0xc] sm:$0xf]
      %v2935 = vld [vmem:[%s2930 + $0x10] sm:$0xf]
      %v2936 = vld [vmem:[%s2930 + $0x14] sm:$0xf]
      %v2937 = vld [vmem:[%s2930 + $0x18] sm:$0xf]
      %v2938 = vld [vmem:[%s2930 + $0x1c] sm:$0xf]
      %v2939 = vld [vmem:[%s2930 + $0x20] sm:$0xf]
      %v2940 = vld [vmem:[%s2930 + $0x24] sm:$0xf]
      %v2941 = vld [vmem:[%s2930 + $0x28] sm:$0xf]
      %v2942 = vld [vmem:[%s2930 + $0x2c] sm:$0xf]
      %v2944 = vunpack.c.l.b16 %v2929
      %v2945 = vpack.c.b16 %v2944, %v2944
      %vm2946 = vsmask.f32 6400
      %v2948 = vshrl.u32 %v2570, 16
      %v2950 = vrot.slane %v2948, 1
      %v2951 = vshll.u32 %v2570, 16
      %v2953 = vrot.slane %v2951, 2
      %v2954 = vor.u32 %v2950, %v2953
      %v2956 = vshrl.u32 %v2571, 16
      %v2958 = vrot.slane %v2956, 1
      %v2959 = vshll.u32 %v2571, 16
      %v2961 = vrot.slane %v2959, 2
      %v2962 = vor.u32 %v2958, %v2961
      %v2963 = vsel %vm2946, %v2954, %v2962
      %v2965 = vshrl.u32 %v2572, 16
      %v2967 = vrot.slane %v2965, 1
      %v2968 = vshll.u32 %v2572, 16
      %v2970 = vrot.slane %v2968, 2
      %v2971 = vor.u32 %v2967, %v2970
      %v2972 = vsel %vm2946, %v2962, %v2971
      %v2974 = vshrl.u32 %v2573, 16
      %v2976 = vrot.slane %v2974, 1
      %v2977 = vshll.u32 %v2573, 16
      %v2979 = vrot.slane %v2977, 2
      %v2980 = vor.u32 %v2976, %v2979
      %v2981 = vsel %vm2946, %v2971, %v2980
      %v2983 = vshrl.u32 %v2574, 16
      %v2985 = vrot.slane %v2983, 1
      %v2986 = vshll.u32 %v2574, 16
      %v2988 = vrot.slane %v2986, 2
      %v2989 = vor.u32 %v2985, %v2988
      %v2990 = vsel %vm2946, %v2980, %v2989
      %v2992 = vshrl.u32 %v2575, 16
      %v2994 = vrot.slane %v2992, 1
      %v2995 = vshll.u32 %v2575, 16
      %v2997 = vrot.slane %v2995, 2
      %v2998 = vor.u32 %v2994, %v2997
      %v2999 = vsel %vm2946, %v2989, %v2998
      %v3001 = vshrl.u32 %v2576, 16
      %v3003 = vrot.slane %v3001, 1
      %v3004 = vshll.u32 %v2576, 16
      %v3006 = vrot.slane %v3004, 2
      %v3007 = vor.u32 %v3003, %v3006
      %v3008 = vsel %vm2946, %v2998, %v3007
      %v3010 = vshrl.u32 %v2577, 16
      %v3012 = vrot.slane %v3010, 1
      %v3013 = vshll.u32 %v2577, 16
      %v3015 = vrot.slane %v3013, 2
      %v3016 = vor.u32 %v3012, %v3015
      %v3017 = vsel %vm2946, %v3007, %v3016
      %v3019 = vshrl.u32 %v2578, 16
      %v3021 = vrot.slane %v3019, 1
      %v3022 = vshll.u32 %v2578, 16
      %v3024 = vrot.slane %v3022, 2
      %v3025 = vor.u32 %v3021, %v3024
      %v3026 = vsel %vm2946, %v3016, %v3025
      %v3028 = vshrl.u32 %v2579, 16
      %v3030 = vrot.slane %v3028, 1
      %v3031 = vshll.u32 %v2579, 16
      %v3033 = vrot.slane %v3031, 2
      %v3034 = vor.u32 %v3030, %v3033
      %v3035 = vsel %vm2946, %v3025, %v3034
      %v3037 = vshrl.u32 %v2580, 16
      %v3039 = vrot.slane %v3037, 1
      %v3040 = vshll.u32 %v2580, 16
      %v3042 = vrot.slane %v3040, 2
      %v3043 = vor.u32 %v3039, %v3042
      %v3044 = vsel %vm2946, %v3034, %v3043
      %v3046 = vshrl.u32 %v2581, 16
      %v3048 = vrot.slane %v3046, 1
      %v3049 = vshll.u32 %v2581, 16
      %v3051 = vrot.slane %v3049, 2
      %v3052 = vor.u32 %v3048, %v3051
      %v3053 = vsel %vm2946, %v3043, %v3052
      %v3055 = vshrl.u32 %v2582, 16
      %v3057 = vrot.slane %v3055, 1
      %v3058 = vshll.u32 %v2582, 16
      %v3060 = vrot.slane %v3058, 2
      %v3061 = vor.u32 %v3057, %v3060
      %v3062 = vsel %vm2946, %v3052, %v3061
      %v3064 = vshrl.u32 %v2583, 16
      %v3066 = vrot.slane %v3064, 1
      %v3067 = vshll.u32 %v2583, 16
      %v3069 = vrot.slane %v3067, 2
      %v3070 = vor.u32 %v3066, %v3069
      %v3071 = vsel %vm2946, %v3061, %v3070
      %v3073 = vshrl.u32 %v2584, 16
      %v3075 = vrot.slane %v3073, 1
      %v3076 = vshll.u32 %v2584, 16
      %v3078 = vrot.slane %v3076, 2
      %v3079 = vor.u32 %v3075, %v3078
      %v3080 = vsel %vm2946, %v3070, %v3079
      %v3082 = vshrl.u32 %v2585, 16
      %v3084 = vrot.slane %v3082, 1
      %v3085 = vshll.u32 %v2585, 16
      %v3087 = vrot.slane %v3085, 2
      %v3088 = vor.u32 %v3084, %v3087
      %v3089 = vsel %vm2946, %v3079, %v3088
      %v3091 = vshrl.u32 %v2586, 16
      %v3093 = vrot.slane %v3091, 1
      %v3094 = vshll.u32 %v2586, 16
      %v3096 = vrot.slane %v3094, 2
      %v3097 = vor.u32 %v3093, %v3096
      %v3098 = vsel %vm2946, %v3088, %v3097
      %v3100 = vshrl.u32 %v2587, 16
      %v3102 = vrot.slane %v3100, 1
      %v3103 = vshll.u32 %v2587, 16
      %v3105 = vrot.slane %v3103, 2
      %v3106 = vor.u32 %v3102, %v3105
      %v3107 = vsel %vm2946, %v3097, %v3106
      %v3109 = vshrl.u32 %v2945, 16
      %v3111 = vrot.slane %v3109, 1
      %v3112 = vshll.u32 %v2945, 16
      %v3114 = vrot.slane %v3112, 2
      %v3115 = vor.u32 %v3111, %v3114
      %v3116 = vsel %vm2946, %v3106, %v3115
      %v3129 = vunpack.c.l.b16 %v2931
      %v3130 = vunpack.c.l.b16 %v2932
      %v3131 = vunpack.c.l.b16 %v2933
      %v3132 = vunpack.c.l.b16 %v2934
      %v3133 = vunpack.c.l.b16 %v2935
      %v3134 = vunpack.c.l.b16 %v2936
      %v3135 = vunpack.c.l.b16 %v2937
      %v3136 = vunpack.c.l.b16 %v2938
      %v3137 = vunpack.c.l.b16 %v2939
      %v3138 = vunpack.c.l.b16 %v2940
      %v3139 = vunpack.c.l.b16 %v2941
      %v3140 = vunpack.c.l.b16 %v2942
      %v3141 = vpack.c.b16 %v3130, %v3129
      %v3142 = vpack.c.b16 %v3132, %v3131
      %v3143 = vpack.c.b16 %v3134, %v3133
      %v3144 = vpack.c.b16 %v3136, %v3135
      %v3145 = vpack.c.b16 %v3138, %v3137
      %v3146 = vpack.c.b16 %v3140, %v3139
      %v3154 = vsel %vm394, %v2963, 0
      %v3157 = vsel %vm394, %v2972, 0
      %v3160 = vsel %vm394, %v2981, 0
      %v3163 = vsel %vm394, %v2990, 0
      %v3166 = vsel %vm394, %v2999, 0
      %v3169 = vsel %vm394, %v3008, 0
      %v3172 = vsel %vm394, %v3017, 0
      %v3175 = vsel %vm394, %v3026, 0
      %v3178 = vsel %vm394, %v3035, 0
      %v3181 = vsel %vm394, %v3044, 0
      %v3184 = vsel %vm394, %v3053, 0
      %v3187 = vsel %vm394, %v3062, 0
      %v3190 = vsel %vm394, %v3071, 0
      %v3193 = vsel %vm394, %v3080, 0
      %v3196 = vsel %vm394, %v3089, 0
      %v3199 = vsel %vm394, %v3098, 0
      %v3202 = vsel %vm394, %v3107, 0
      %v3205 = vsel %vm394, %v3116, 0
      %3207 = vmatprep.subr.bf16.mxu0 0
      %3208 = vmatpush1.bf16.msra.mxu0 %v3141
      %3209 = vmatprep.subr.bf16.mxu0 0
      %3210 = vmatpush1.bf16.msra.mxu0 %v3142
      %3211 = vmatprep.subr.bf16.mxu0 0
      %3212 = vmatpush1.bf16.msra.mxu0 %v3143
      %3213 = vmatprep.subr.bf16.mxu0 0
      %3214 = vmatpush1.bf16.msra.mxu0 %v3144
      %3215 = vmatprep.subr.bf16.mxu0 0
      %3216 = vmatpush1.bf16.msra.mxu0 %v3145
      %3217 = vmatprep.subr.bf16.mxu0 0
      %3218 = vmatpush1.bf16.msra.mxu0 %v3146
      %3219 = vmatprep.subr.bf16.mxu0 0
      %3220 = vmatpush1.bf16.msra.mxu0 0
      %3221 = vmatprep.subr.bf16.mxu0 0
      %3222 = vmatpush1.bf16.msra.mxu0 0
      %3223 = vmatprep.subr.bf16.mxu0 0
      %3224 = vmatpush1.bf16.msra.mxu0 0
      %3225 = vmatprep.subr.bf16.mxu0 0
      %3226 = vmatpush1.bf16.msra.mxu0 0
      %3227 = vmatprep.subr.bf16.mxu0 0
      %3228 = vmatpush1.bf16.msra.mxu0 0
      %3229 = vmatprep.subr.bf16.mxu0 0
      %3230 = vmatpush1.bf16.msra.mxu0 0
      %3231 = vmatprep.subr.bf16.mxu0 0
      %3232 = vmatpush1.bf16.msra.mxu0 0
      %3233 = vmatprep.subr.bf16.mxu0 0
      %3234 = vmatpush1.bf16.msra.mxu0 0
      %3235 = vmatprep.subr.bf16.mxu0 0
      %3236 = vmatpush1.bf16.msra.mxu0 0
      %3237 = vmatprep.subr.bf16.mxu0 0
      %3238 = vmatpush1.bf16.msra.mxu0 0
      %3239 = vmatprep.mubr.bf16.mxu0 0
      %3240 = vmatmul.mubr.bf16.gmra.mrb[0].mxu0 %v3154
      %v3241 = vpop.f32.mrb[0].mxu0
      %v3242 = vadd.f32 0.0, %v3241
      %v3243 = vpop.f32.mrb[0].mxu0
      %v3244 = vpop.f32.mrb[0].mxu0
      %v3245 = vadd.f32 0.0, %v3244
      %v3246 = vpop.f32.mrb[0].mxu0
      %3247 = vmatprep.mubr.bf16.mxu0 0
      %3248 = vmatmul.mubr.bf16.gmra.mrb[0].mxu0 %v3157
      %v3249 = vpop.f32.mrb[0].mxu0
      %v3250 = vadd.f32 0.0, %v3249
      %v3251 = vpop.f32.mrb[0].mxu0
      %v3252 = vpop.f32.mrb[0].mxu0
      %v3253 = vadd.f32 0.0, %v3252
      %v3254 = vpop.f32.mrb[0].mxu0
      %3255 = vmatprep.mubr.bf16.mxu0 0
      %3256 = vmatmul.mubr.bf16.gmra.mrb[0].mxu0 %v3160
      %v3257 = vpop.f32.mrb[0].mxu0
      %v3258 = vadd.f32 0.0, %v3257
      %v3259 = vpop.f32.mrb[0].mxu0
      %v3260 = vpop.f32.mrb[0].mxu0
      %v3261 = vadd.f32 0.0, %v3260
      %v3262 = vpop.f32.mrb[0].mxu0
      %3263 = vmatprep.mubr.bf16.mxu0 0
      %3264 = vmatmul.mubr.bf16.gmra.mrb[0].mxu0 %v3163
      %v3265 = vpop.f32.mrb[0].mxu0
      %v3266 = vadd.f32 0.0, %v3265
      %v3267 = vpop.f32.mrb[0].mxu0
      %v3268 = vpop.f32.mrb[0].mxu0
      %v3269 = vadd.f32 0.0, %v3268
      %v3270 = vpop.f32.mrb[0].mxu0
      %3271 = vmatprep.mubr.bf16.mxu0 0
      %3272 = vmatmul.mubr.bf16.gmra.mrb[0].mxu0 %v3166
      %v3273 = vpop.f32.mrb[0].mxu0
      %v3274 = vadd.f32 0.0, %v3273
      %v3275 = vpop.f32.mrb[0].mxu0
      %v3276 = vpop.f32.mrb[0].mxu0
      %v3277 = vadd.f32 0.0, %v3276
      %v3278 = vpop.f32.mrb[0].mxu0
      %3279 = vmatprep.mubr.bf16.mxu0 0
      %3280 = vmatmul.mubr.bf16.gmra.mrb[0].mxu0 %v3169
      %v3281 = vpop.f32.mrb[0].mxu0
      %v3282 = vadd.f32 0.0, %v3281
      %v3283 = vpop.f32.mrb[0].mxu0
      %v3284 = vpop.f32.mrb[0].mxu0
      %v3285 = vadd.f32 0.0, %v3284
      %v3286 = vpop.f32.mrb[0].mxu0
      %3287 = vmatprep.mubr.bf16.mxu0 0
      %3288 = vmatmul.mubr.bf16.gmra.mrb[0].mxu0 %v3172
      %v3289 = vpop.f32.mrb[0].mxu0
      %v3290 = vadd.f32 0.0, %v3289
      %v3291 = vpop.f32.mrb[0].mxu0
      %v3292 = vpop.f32.mrb[0].mxu0
      %v3293 = vadd.f32 0.0, %v3292
      %v3294 = vpop.f32.mrb[0].mxu0
      %3295 = vmatprep.mubr.bf16.mxu0 0
      %3296 = vmatmul.mubr.bf16.gmra.mrb[0].mxu0 %v3175
      %v3297 = vpop.f32.mrb[0].mxu0
      %v3298 = vadd.f32 0.0, %v3297
      %v3299 = vpop.f32.mrb[0].mxu0
      %v3300 = vpop.f32.mrb[0].mxu0
      %v3301 = vadd.f32 0.0, %v3300
      %v3302 = vpop.f32.mrb[0].mxu0
      %3303 = vmatprep.mubr.bf16.mxu0 0
      %3304 = vmatmul.mubr.bf16.gmra.mrb[0].mxu0 %v3178
      %v3305 = vpop.f32.mrb[0].mxu0
      %v3306 = vadd.f32 0.0, %v3305
      %v3307 = vpop.f32.mrb[0].mxu0
      %v3308 = vpop.f32.mrb[0].mxu0
      %v3309 = vadd.f32 0.0, %v3308
      %v3310 = vpop.f32.mrb[0].mxu0
      %3311 = vmatprep.mubr.bf16.mxu0 0
      %3312 = vmatmul.mubr.bf16.gmra.mrb[0].mxu0 %v3181
      %v3313 = vpop.f32.mrb[0].mxu0
      %v3314 = vadd.f32 0.0, %v3313
      %v3315 = vpop.f32.mrb[0].mxu0
      %v3316 = vpop.f32.mrb[0].mxu0
      %v3317 = vadd.f32 0.0, %v3316
      %v3318 = vpop.f32.mrb[0].mxu0
      %3319 = vmatprep.mubr.bf16.mxu0 0
      %3320 = vmatmul.mubr.bf16.gmra.mrb[0].mxu0 %v3184
      %v3321 = vpop.f32.mrb[0].mxu0
      %v3322 = vadd.f32 0.0, %v3321
      %v3323 = vpop.f32.mrb[0].mxu0
      %v3324 = vpop.f32.mrb[0].mxu0
      %v3325 = vadd.f32 0.0, %v3324
      %v3326 = vpop.f32.mrb[0].mxu0
      %3327 = vmatprep.mubr.bf16.mxu0 0
      %3328 = vmatmul.mubr.bf16.gmra.mrb[0].mxu0 %v3187
      %v3329 = vpop.f32.mrb[0].mxu0
      %v3330 = vadd.f32 0.0, %v3329
      %v3331 = vpop.f32.mrb[0].mxu0
      %v3332 = vpop.f32.mrb[0].mxu0
      %v3333 = vadd.f32 0.0, %v3332
      %v3334 = vpop.f32.mrb[0].mxu0
      %3335 = vmatprep.mubr.bf16.mxu0 0
      %3336 = vmatmul.mubr.bf16.gmra.mrb[0].mxu0 %v3190
      %v3337 = vpop.f32.mrb[0].mxu0
      %v3338 = vadd.f32 0.0, %v3337
      %v3339 = vpop.f32.mrb[0].mxu0
      %v3340 = vpop.f32.mrb[0].mxu0
      %v3341 = vadd.f32 0.0, %v3340
      %v3342 = vpop.f32.mrb[0].mxu0
      %3343 = vmatprep.mubr.bf16.mxu0 0
      %3344 = vmatmul.mubr.bf16.gmra.mrb[0].mxu0 %v3193
      %v3345 = vpop.f32.mrb[0].mxu0
      %v3346 = vadd.f32 0.0, %v3345
      %v3347 = vpop.f32.mrb[0].mxu0
      %v3348 = vpop.f32.mrb[0].mxu0
      %v3349 = vadd.f32 0.0, %v3348
      %v3350 = vpop.f32.mrb[0].mxu0
      %3351 = vmatprep.mubr.bf16.mxu0 0
      %3352 = vmatmul.mubr.bf16.gmra.mrb[0].mxu0 %v3196
      %v3353 = vpop.f32.mrb[0].mxu0
      %v3354 = vadd.f32 0.0, %v3353
      %v3355 = vpop.f32.mrb[0].mxu0
      %v3356 = vpop.f32.mrb[0].mxu0
      %v3357 = vadd.f32 0.0, %v3356
      %v3358 = vpop.f32.mrb[0].mxu0
      %3359 = vmatprep.mubr.bf16.mxu0 0
      %3360 = vmatmul.mubr.bf16.gmra.mrb[0].mxu0 %v3199
      %v3361 = vpop.f32.mrb[0].mxu0
      %v3362 = vadd.f32 0.0, %v3361
      %v3363 = vpop.f32.mrb[0].mxu0
      %v3364 = vpop.f32.mrb[0].mxu0
      %v3365 = vadd.f32 0.0, %v3364
      %v3366 = vpop.f32.mrb[0].mxu0
      %3367 = vmatprep.mubr.bf16.mxu0 0
      %3368 = vmatmul.mubr.bf16.gmra.mrb[0].mxu0 %v3202
      %v3369 = vpop.f32.mrb[0].mxu0
      %v3370 = vadd.f32 0.0, %v3369
      %v3371 = vpop.f32.mrb[0].mxu0
      %v3372 = vpop.f32.mrb[0].mxu0
      %v3373 = vadd.f32 0.0, %v3372
      %v3374 = vpop.f32.mrb[0].mxu0
      %3375 = vmatprep.mubr.bf16.mxu0 0
      %3376 = vmatmul.mubr.bf16.gmra.mrb[0].mxu0 %v3205
      %v3377 = vpop.f32.mrb[0].mxu0
      %v3378 = vadd.f32 0.0, %v3377
      %v3379 = vpop.f32.mrb[0].mxu0
      %v3380 = vpop.f32.mrb[0].mxu0
      %v3381 = vadd.f32 0.0, %v3380
      %v3382 = vpop.f32.mrb[0].mxu0
      %3383 = vdwg.mxu0
      %v3384 = vadd.f32 %v2893, %v3242
      %v3385 = vadd.f32 %v2894, %v3245
      %v3386 = vadd.f32 %v2895, %v3250
      %v3387 = vadd.f32 %v2896, %v3253
      %v3388 = vadd.f32 %v2897, %v3258
      %v3389 = vadd.f32 %v2898, %v3261
      %v3390 = vadd.f32 %v2899, %v3266
      %v3391 = vadd.f32 %v2900, %v3269
      %v3392 = vadd.f32 %v2901, %v3274
      %v3393 = vadd.f32 %v2902, %v3277
      %v3394 = vadd.f32 %v2903, %v3282
      %v3395 = vadd.f32 %v2904, %v3285
      %v3396 = vadd.f32 %v2905, %v3290
      %v3397 = vadd.f32 %v2906, %v3293
      %v3398 = vadd.f32 %v2907, %v3298
      %v3399 = vadd.f32 %v2908, %v3301
      %v3400 = vadd.f32 %v2909, %v3306
      %v3401 = vadd.f32 %v2910, %v3309
      %v3402 = vadd.f32 %v2911, %v3314
      %v3403 = vadd.f32 %v2912, %v3317
      %v3404 = vadd.f32 %v2913, %v3322
      %v3405 = vadd.f32 %v2914, %v3325
      %v3406 = vadd.f32 %v2915, %v3330
      %v3407 = vadd.f32 %v2916, %v3333
      %v3408 = vadd.f32 %v2917, %v3338
      %v3409 = vadd.f32 %v2918, %v3341
      %v3410 = vadd.f32 %v2919, %v3346
      %v3411 = vadd.f32 %v2920, %v3349
      %v3412 = vadd.f32 %v2921, %v3354
      %v3413 = vadd.f32 %v2922, %v3357
      %v3414 = vadd.f32 %v2923, %v3362
      %v3415 = vadd.f32 %v2924, %v3365
      %v3416 = vadd.f32 %v2925, %v3370
      %v3417 = vadd.f32 %v2926, %v3373
      %v3418 = vadd.f32 %v2927, %v3378
      %v3419 = vadd.f32 %v2928, %v3381
      %v3420 = vld [vmem:[#allocation2 + $0x8] sm:$0xc]
      %s3421 = scalar_lea.vmem %s3, 240
      %v3422 = vld [vmem:[%s3421] sm:$0xf]
      %v3423 = vld [vmem:[%s3421 + $0x4] sm:$0xf]
      %v3424 = vld [vmem:[%s3421 + $0x8] sm:$0xf]
      %v3425 = vld [vmem:[%s3421 + $0xc] sm:$0xf]
      %v3426 = vld [vmem:[%s3421 + $0x10] sm:$0xf]
      %v3427 = vld [vmem:[%s3421 + $0x14] sm:$0xf]
      %v3428 = vld [vmem:[%s3421 + $0x18] sm:$0xf]
      %v3429 = vld [vmem:[%s3421 + $0x1c] sm:$0xf]
      %v3430 = vld [vmem:[%s3421 + $0x20] sm:$0xf]
      %v3431 = vld [vmem:[%s3421 + $0x24] sm:$0xf]
      %v3432 = vld [vmem:[%s3421 + $0x28] sm:$0xf]
      %v3433 = vld [vmem:[%s3421 + $0x2c] sm:$0xf]
      %v3435 = vunpack.c.l.b16 %v3420
      %v3436 = vpack.c.b16 %v2534, %v3435
      %vm3437 = vcmask 1045504
      %v3438 = vrot.slane %v3436, 2
      %v3439 = vrot.slane %v2571, 2
      %v3440 = vsel %vm3437, %v3438, %v3439
      %v3441 = vrot.slane %v2572, 2
      %v3442 = vsel %vm3437, %v3439, %v3441
      %v3443 = vrot.slane %v2573, 2
      %v3444 = vsel %vm3437, %v3441, %v3443
      %v3445 = vrot.slane %v2574, 2
      %v3446 = vsel %vm3437, %v3443, %v3445
      %v3447 = vrot.slane %v2575, 2
      %v3448 = vsel %vm3437, %v3445, %v3447
      %v3449 = vrot.slane %v2576, 2
      %v3450 = vsel %vm3437, %v3447, %v3449
      %v3451 = vrot.slane %v2577, 2
      %v3452 = vsel %vm3437, %v3449, %v3451
      %v3453 = vrot.slane %v2578, 2
      %v3454 = vsel %vm3437, %v3451, %v3453
      %v3455 = vrot.slane %v2579, 2
      %v3456 = vsel %vm3437, %v3453, %v3455
      %v3457 = vrot.slane %v2580, 2
      %v3458 = vsel %vm3437, %v3455, %v3457
      %v3459 = vrot.slane %v2581, 2
      %v3460 = vsel %vm3437, %v3457, %v3459
      %v3461 = vrot.slane %v2582, 2
      %v3462 = vsel %vm3437, %v3459, %v3461
      %v3463 = vrot.slane %v2583, 2
      %v3464 = vsel %vm3437, %v3461, %v3463
      %v3465 = vrot.slane %v2584, 2
      %v3466 = vsel %vm3437, %v3463, %v3465
      %v3467 = vrot.slane %v2585, 2
      %v3468 = vsel %vm3437, %v3465, %v3467
      %v3469 = vrot.slane %v2586, 2
      %v3470 = vsel %vm3437, %v3467, %v3469
      %v3471 = vrot.slane %v2587, 2
      %v3472 = vsel %vm3437, %v3469, %v3471
      %v3473 = vrot.slane %v2945, 2
      %v3474 = vsel %vm3437, %v3471, %v3473
      %v3487 = vunpack.c.l.b16 %v3422
      %v3488 = vunpack.c.l.b16 %v3423
      %v3489 = vunpack.c.l.b16 %v3424
      %v3490 = vunpack.c.l.b16 %v3425
      %v3491 = vunpack.c.l.b16 %v3426
      %v3492 = vunpack.c.l.b16 %v3427
      %v3493 = vunpack.c.l.b16 %v3428
      %v3494 = vunpack.c.l.b16 %v3429
      %v3495 = vunpack.c.l.b16 %v3430
      %v3496 = vunpack.c.l.b16 %v3431
      %v3497 = vunpack.c.l.b16 %v3432
      %v3498 = vunpack.c.l.b16 %v3433
      %v3499 = vpack.c.b16 %v3488, %v3487
      %v3500 = vpack.c.b16 %v3490, %v3489
      %v3501 = vpack.c.b16 %v3492, %v3491
      %v3502 = vpack.c.b16 %v3494, %v3493
      %v3503 = vpack.c.b16 %v3496, %v3495
      %v3504 = vpack.c.b16 %v3498, %v3497
      %v3512 = vsel %vm394, %v3440, 0
      %v3515 = vsel %vm394, %v3442, 0
      %v3518 = vsel %vm394, %v3444, 0
      %v3521 = vsel %vm394, %v3446, 0
      %v3524 = vsel %vm394, %v3448, 0
      %v3527 = vsel %vm394, %v3450, 0
      %v3530 = vsel %vm394, %v3452, 0
      %v3533 = vsel %vm394, %v3454, 0
      %v3536 = vsel %vm394, %v3456, 0
      %v3539 = vsel %vm394, %v3458, 0
      %v3542 = vsel %vm394, %v3460, 0
      %v3545 = vsel %vm394, %v3462, 0
      %v3548 = vsel %vm394, %v3464, 0
      %v3551 = vsel %vm394, %v3466, 0
      %v3554 = vsel %vm394, %v3468, 0
      %v3557 = vsel %vm394, %v3470, 0
      %v3560 = vsel %vm394, %v3472, 0
      %v3563 = vsel %vm394, %v3474, 0
      %3565 = vmatprep.subr.bf16.mxu0 0
      %3566 = vmatpush1.bf16.msra.mxu0 %v3499
      %3567 = vmatprep.subr.bf16.mxu0 0
      %3568 = vmatpush1.bf16.msra.mxu0 %v3500
      %3569 = vmatprep.subr.bf16.mxu0 0
      %3570 = vmatpush1.bf16.msra.mxu0 %v3501
      %3571 = vmatprep.subr.bf16.mxu0 0
      %3572 = vmatpush1.bf16.msra.mxu0 %v3502
      %3573 = vmatprep.subr.bf16.mxu0 0
      %3574 = vmatpush1.bf16.msra.mxu0 %v3503
      %3575 = vmatprep.subr.bf16.mxu0 0
      %3576 = vmatpush1.bf16.msra.mxu0 %v3504
      %3577 = vmatprep.subr.bf16.mxu0 0
      %3578 = vmatpush1.bf16.msra.mxu0 0
      %3579 = vmatprep.subr.bf16.mxu0 0
      %3580 = vmatpush1.bf16.msra.mxu0 0
      %3581 = vmatprep.subr.bf16.mxu0 0
      %3582 = vmatpush1.bf16.msra.mxu0 0
      %3583 = vmatprep.subr.bf16.mxu0 0
      %3584 = vmatpush1.bf16.msra.mxu0 0
      %3585 = vmatprep.subr.bf16.mxu0 0
      %3586 = vmatpush1.bf16.msra.mxu0 0
      %3587 = vmatprep.subr.bf16.mxu0 0
      %3588 = vmatpush1.bf16.msra.mxu0 0
      %3589 = vmatprep.subr.bf16.mxu0 0
      %3590 = vmatpush1.bf16.msra.mxu0 0
      %3591 = vmatprep.subr.bf16.mxu0 0
      %3592 = vmatpush1.bf16.msra.mxu0 0
      %3593 = vmatprep.subr.bf16.mxu0 0
      %3594 = vmatpush1.bf16.msra.mxu0 0
      %3595 = vmatprep.subr.bf16.mxu0 0
      %3596 = vmatpush1.bf16.msra.mxu0 0
      %3597 = vmatprep.mubr.bf16.mxu0 0
      %3598 = vmatmul.mubr.bf16.gmra.mrb[0].mxu0 %v3512
      %v3599 = vpop.f32.mrb[0].mxu0
      %v3600 = vadd.f32 0.0, %v3599
      %v3601 = vpop.f32.mrb[0].mxu0
      %v3602 = vpop.f32.mrb[0].mxu0
      %v3603 = vadd.f32 0.0, %v3602
      %v3604 = vpop.f32.mrb[0].mxu0
      %3605 = vmatprep.mubr.bf16.mxu0 0
      %3606 = vmatmul.mubr.bf16.gmra.mrb[0].mxu0 %v3515
      %v3607 = vpop.f32.mrb[0].mxu0
      %v3608 = vadd.f32 0.0, %v3607
      %v3609 = vpop.f32.mrb[0].mxu0
      %v3610 = vpop.f32.mrb[0].mxu0
      %v3611 = vadd.f32 0.0, %v3610
      %v3612 = vpop.f32.mrb[0].mxu0
      %3613 = vmatprep.mubr.bf16.mxu0 0
      %3614 = vmatmul.mubr.bf16.gmra.mrb[0].mxu0 %v3518
      %v3615 = vpop.f32.mrb[0].mxu0
      %v3616 = vadd.f32 0.0, %v3615
      %v3617 = vpop.f32.mrb[0].mxu0
      %v3618 = vpop.f32.mrb[0].mxu0
      %v3619 = vadd.f32 0.0, %v3618
      %v3620 = vpop.f32.mrb[0].mxu0
      %3621 = vmatprep.mubr.bf16.mxu0 0
      %3622 = vmatmul.mubr.bf16.gmra.mrb[0].mxu0 %v3521
      %v3623 = vpop.f32.mrb[0].mxu0
      %v3624 = vadd.f32 0.0, %v3623
      %v3625 = vpop.f32.mrb[0].mxu0
      %v3626 = vpop.f32.mrb[0].mxu0
      %v3627 = vadd.f32 0.0, %v3626
      %v3628 = vpop.f32.mrb[0].mxu0
      %3629 = vmatprep.mubr.bf16.mxu0 0
      %3630 = vmatmul.mubr.bf16.gmra.mrb[0].mxu0 %v3524
      %v3631 = vpop.f32.mrb[0].mxu0
      %v3632 = vadd.f32 0.0, %v3631
      %v3633 = vpop.f32.mrb[0].mxu0
      %v3634 = vpop.f32.mrb[0].mxu0
      %v3635 = vadd.f32 0.0, %v3634
      %v3636 = vpop.f32.mrb[0].mxu0
      %3637 = vmatprep.mubr.bf16.mxu0 0
      %3638 = vmatmul.mubr.bf16.gmra.mrb[0].mxu0 %v3527
      %v3639 = vpop.f32.mrb[0].mxu0
      %v3640 = vadd.f32 0.0, %v3639
      %v3641 = vpop.f32.mrb[0].mxu0
      %v3642 = vpop.f32.mrb[0].mxu0
      %v3643 = vadd.f32 0.0, %v3642
      %v3644 = vpop.f32.mrb[0].mxu0
      %3645 = vmatprep.mubr.bf16.mxu0 0
      %3646 = vmatmul.mubr.bf16.gmra.mrb[0].mxu0 %v3530
      %v3647 = vpop.f32.mrb[0].mxu0
      %v3648 = vadd.f32 0.0, %v3647
      %v3649 = vpop.f32.mrb[0].mxu0
      %v3650 = vpop.f32.mrb[0].mxu0
      %v3651 = vadd.f32 0.0, %v3650
      %v3652 = vpop.f32.mrb[0].mxu0
      %3653 = vmatprep.mubr.bf16.mxu0 0
      %3654 = vmatmul.mubr.bf16.gmra.mrb[0].mxu0 %v3533
      %v3655 = vpop.f32.mrb[0].mxu0
      %v3656 = vadd.f32 0.0, %v3655
      %v3657 = vpop.f32.mrb[0].mxu0
      %v3658 = vpop.f32.mrb[0].mxu0
      %v3659 = vadd.f32 0.0, %v3658
      %v3660 = vpop.f32.mrb[0].mxu0
      %3661 = vmatprep.mubr.bf16.mxu0 0
      %3662 = vmatmul.mubr.bf16.gmra.mrb[0].mxu0 %v3536
      %v3663 = vpop.f32.mrb[0].mxu0
      %v3664 = vadd.f32 0.0, %v3663
      %v3665 = vpop.f32.mrb[0].mxu0
      %v3666 = vpop.f32.mrb[0].mxu0
      %v3667 = vadd.f32 0.0, %v3666
      %v3668 = vpop.f32.mrb[0].mxu0
      %3669 = vmatprep.mubr.bf16.mxu0 0
      %3670 = vmatmul.mubr.bf16.gmra.mrb[0].mxu0 %v3539
      %v3671 = vpop.f32.mrb[0].mxu0
      %v3672 = vadd.f32 0.0, %v3671
      %v3673 = vpop.f32.mrb[0].mxu0
      %v3674 = vpop.f32.mrb[0].mxu0
      %v3675 = vadd.f32 0.0, %v3674
      %v3676 = vpop.f32.mrb[0].mxu0
      %3677 = vmatprep.mubr.bf16.mxu0 0
      %3678 = vmatmul.mubr.bf16.gmra.mrb[0].mxu0 %v3542
      %v3679 = vpop.f32.mrb[0].mxu0
      %v3680 = vadd.f32 0.0, %v3679
      %v3681 = vpop.f32.mrb[0].mxu0
      %v3682 = vpop.f32.mrb[0].mxu0
      %v3683 = vadd.f32 0.0, %v3682
      %v3684 = vpop.f32.mrb[0].mxu0
      %3685 = vmatprep.mubr.bf16.mxu0 0
      %3686 = vmatmul.mubr.bf16.gmra.mrb[0].mxu0 %v3545
      %v3687 = vpop.f32.mrb[0].mxu0
      %v3688 = vadd.f32 0.0, %v3687
      %v3689 = vpop.f32.mrb[0].mxu0
      %v3690 = vpop.f32.mrb[0].mxu0
      %v3691 = vadd.f32 0.0, %v3690
      %v3692 = vpop.f32.mrb[0].mxu0
      %3693 = vmatprep.mubr.bf16.mxu0 0
      %3694 = vmatmul.mubr.bf16.gmra.mrb[0].mxu0 %v3548
      %v3695 = vpop.f32.mrb[0].mxu0
      %v3696 = vadd.f32 0.0, %v3695
      %v3697 = vpop.f32.mrb[0].mxu0
      %v3698 = vpop.f32.mrb[0].mxu0
      %v3699 = vadd.f32 0.0, %v3698
      %v3700 = vpop.f32.mrb[0].mxu0
      %3701 = vmatprep.mubr.bf16.mxu0 0
      %3702 = vmatmul.mubr.bf16.gmra.mrb[0].mxu0 %v3551
      %v3703 = vpop.f32.mrb[0].mxu0
      %v3704 = vadd.f32 0.0, %v3703
      %v3705 = vpop.f32.mrb[0].mxu0
      %v3706 = vpop.f32.mrb[0].mxu0
      %v3707 = vadd.f32 0.0, %v3706
      %v3708 = vpop.f32.mrb[0].mxu0
      %3709 = vmatprep.mubr.bf16.mxu0 0
      %3710 = vmatmul.mubr.bf16.gmra.mrb[0].mxu0 %v3554
      %v3711 = vpop.f32.mrb[0].mxu0
      %v3712 = vadd.f32 0.0, %v3711
      %v3713 = vpop.f32.mrb[0].mxu0
      %v3714 = vpop.f32.mrb[0].mxu0
      %v3715 = vadd.f32 0.0, %v3714
      %v3716 = vpop.f32.mrb[0].mxu0
      %3717 = vmatprep.mubr.bf16.mxu0 0
      %3718 = vmatmul.mubr.bf16.gmra.mrb[0].mxu0 %v3557
      %v3719 = vpop.f32.mrb[0].mxu0
      %v3720 = vadd.f32 0.0, %v3719
      %v3721 = vpop.f32.mrb[0].mxu0
      %v3722 = vpop.f32.mrb[0].mxu0
      %v3723 = vadd.f32 0.0, %v3722
      %v3724 = vpop.f32.mrb[0].mxu0
      %3725 = vmatprep.mubr.bf16.mxu0 0
      %3726 = vmatmul.mubr.bf16.gmra.mrb[0].mxu0 %v3560
      %v3727 = vpop.f32.mrb[0].mxu0
      %v3728 = vadd.f32 0.0, %v3727
      %v3729 = vpop.f32.mrb[0].mxu0
      %v3730 = vpop.f32.mrb[0].mxu0
      %v3731 = vadd.f32 0.0, %v3730
      %v3732 = vpop.f32.mrb[0].mxu0
      %3733 = vmatprep.mubr.bf16.mxu0 0
      %3734 = vmatmul.mubr.bf16.gmra.mrb[0].mxu0 %v3563
      %v3735 = vpop.f32.mrb[0].mxu0
      %v3736 = vadd.f32 0.0, %v3735
      %v3737 = vpop.f32.mrb[0].mxu0
      %v3738 = vpop.f32.mrb[0].mxu0
      %v3739 = vadd.f32 0.0, %v3738
      %v3740 = vpop.f32.mrb[0].mxu0
      %3741 = vdwg.mxu0
      %v3742 = vadd.f32 %v3384, %v3600
      %v3743 = vadd.f32 %v3385, %v3603
      %v3744 = vadd.f32 %v3386, %v3608
      %v3745 = vadd.f32 %v3387, %v3611
      %v3746 = vadd.f32 %v3388, %v3616
      %v3747 = vadd.f32 %v3389, %v3619
      %v3748 = vadd.f32 %v3390, %v3624
      %v3749 = vadd.f32 %v3391, %v3627
      %v3750 = vadd.f32 %v3392, %v3632
      %v3751 = vadd.f32 %v3393, %v3635
      %v3752 = vadd.f32 %v3394, %v3640
      %v3753 = vadd.f32 %v3395, %v3643
      %v3754 = vadd.f32 %v3396, %v3648
      %v3755 = vadd.f32 %v3397, %v3651
      %v3756 = vadd.f32 %v3398, %v3656
      %v3757 = vadd.f32 %v3399, %v3659
      %v3758 = vadd.f32 %v3400, %v3664
      %v3759 = vadd.f32 %v3401, %v3667
      %v3760 = vadd.f32 %v3402, %v3672
      %v3761 = vadd.f32 %v3403, %v3675
      %v3762 = vadd.f32 %v3404, %v3680
      %v3763 = vadd.f32 %v3405, %v3683
      %v3764 = vadd.f32 %v3406, %v3688
      %v3765 = vadd.f32 %v3407, %v3691
      %v3766 = vadd.f32 %v3408, %v3696
      %v3767 = vadd.f32 %v3409, %v3699
      %v3768 = vadd.f32 %v3410, %v3704
      %v3769 = vadd.f32 %v3411, %v3707
      %v3770 = vadd.f32 %v3412, %v3712
      %v3771 = vadd.f32 %v3413, %v3715
      %v3772 = vadd.f32 %v3414, %v3720
      %v3773 = vadd.f32 %v3415, %v3723
      %v3774 = vadd.f32 %v3416, %v3728
      %v3775 = vadd.f32 %v3417, %v3731
      %v3776 = vadd.f32 %v3418, %v3736
      %v3777 = vadd.f32 %v3419, %v3739
      %v3778 = vld [vmem:[#allocation2 + $0x10] sm:$0xc]
      %v3779 = vld [vmem:[#allocation2 + $0x14] sm:$0xf]
      %v3780 = vld [vmem:[#allocation2 + $0x18] sm:$0xf]
      %v3781 = vld [vmem:[#allocation2 + $0x1c] sm:$0xf]
      %v3782 = vld [vmem:[#allocation2 + $0x20] sm:$0xf]
      %v3783 = vld [vmem:[#allocation2 + $0x24] sm:$0xf]
      %v3784 = vld [vmem:[#allocation2 + $0x28] sm:$0xf]
      %v3785 = vld [vmem:[#allocation2 + $0x2c] sm:$0xf]
      %v3786 = vld [vmem:[#allocation2 + $0x30] sm:$0xf]
      %v3787 = vld [vmem:[#allocation2 + $0x34] sm:$0xf]
      %v3788 = vld [vmem:[#allocation2 + $0x38] sm:$0xf]
      %v3789 = vld [vmem:[#allocation2 + $0x3c] sm:$0xf]
      %v3790 = vld [vmem:[#allocation2 + $0x40] sm:$0xf]
      %v3791 = vld [vmem:[#allocation2 + $0x44] sm:$0xf]
      %v3792 = vld [vmem:[#allocation2 + $0x48] sm:$0xf]
      %v3793 = vld [vmem:[#allocation2 + $0x4c] sm:$0xf]
      %v3794 = vld [vmem:[#allocation2 + $0x50] sm:$0xf]
      %v3795 = vld [vmem:[#allocation2 + $0x54] sm:$0xf]
      %v3796 = vld [vmem:[#allocation2 + $0x58] sm:$0xf]
      %v3797 = vld [vmem:[#allocation2 + $0x5c] sm:$0xf]
      %v3798 = vld [vmem:[#allocation2 + $0x60] sm:$0xf]
      %v3799 = vld [vmem:[#allocation2 + $0x64] sm:$0xf]
      %v3800 = vld [vmem:[#allocation2 + $0x68] sm:$0xf]
      %v3801 = vld [vmem:[#allocation2 + $0x6c] sm:$0xf]
      %v3802 = vld [vmem:[#allocation2 + $0x70] sm:$0xf]
      %v3803 = vld [vmem:[#allocation2 + $0x74] sm:$0xf]
      %v3804 = vld [vmem:[#allocation2 + $0x78] sm:$0xf]
      %v3805 = vld [vmem:[#allocation2 + $0x7c] sm:$0xf]
      %v3806 = vld [vmem:[#allocation2 + $0x80] sm:$0xf]
      %v3807 = vld [vmem:[#allocation2 + $0x84] sm:$0xf]
      %v3808 = vld [vmem:[#allocation2 + $0x88] sm:$0xf]
      %v3809 = vld [vmem:[#allocation2 + $0x8c] sm:$0xf]
      %v3810 = vld [vmem:[#allocation2 + $0x90] sm:$0xf]
      %v3811 = vld [vmem:[#allocation2 + $0x94] sm:$0xf]
      %v3812 = vld [vmem:[#allocation2 + $0x98] sm:$0xf]
      %v3813 = vld [vmem:[#allocation2 + $0x9c] sm:$0xf]
      %v3814 = vld [vmem:[#allocation2 + $0xa0] sm:$0x3]
      %s3815 = scalar_lea.vmem %s3, 288
      %v3816 = vld [vmem:[%s3815] sm:$0xf]
      %v3817 = vld [vmem:[%s3815 + $0x4] sm:$0xf]
      %v3818 = vld [vmem:[%s3815 + $0x8] sm:$0xf]
      %v3819 = vld [vmem:[%s3815 + $0xc] sm:$0xf]
      %v3820 = vld [vmem:[%s3815 + $0x10] sm:$0xf]
      %v3821 = vld [vmem:[%s3815 + $0x14] sm:$0xf]
      %v3822 = vld [vmem:[%s3815 + $0x18] sm:$0xf]
      %v3823 = vld [vmem:[%s3815 + $0x1c] sm:$0xf]
      %v3824 = vld [vmem:[%s3815 + $0x20] sm:$0xf]
      %v3825 = vld [vmem:[%s3815 + $0x24] sm:$0xf]
      %v3826 = vld [vmem:[%s3815 + $0x28] sm:$0xf]
      %v3827 = vld [vmem:[%s3815 + $0x2c] sm:$0xf]
      %v3865 = vunpack.c.l.b16 %v3778
      %v3866 = vunpack.c.l.b16 %v3779
      %v3867 = vunpack.c.l.b16 %v3780
      %v3868 = vunpack.c.l.b16 %v3781
      %v3869 = vunpack.c.l.b16 %v3782
      %v3870 = vunpack.c.l.b16 %v3783
      %v3871 = vunpack.c.l.b16 %v3784
      %v3872 = vunpack.c.l.b16 %v3785
      %v3873 = vunpack.c.l.b16 %v3786
      %v3874 = vunpack.c.l.b16 %v3787
      %v3875 = vunpack.c.l.b16 %v3788
      %v3876 = vunpack.c.l.b16 %v3789
      %v3877 = vunpack.c.l.b16 %v3790
      %v3878 = vunpack.c.l.b16 %v3791
      %v3879 = vunpack.c.l.b16 %v3792
      %v3880 = vunpack.c.l.b16 %v3793
      %v3881 = vunpack.c.l.b16 %v3794
      %v3882 = vunpack.c.l.b16 %v3795
      %v3883 = vunpack.c.l.b16 %v3796
      %v3884 = vunpack.c.l.b16 %v3797
      %v3885 = vunpack.c.l.b16 %v3798
      %v3886 = vunpack.c.l.b16 %v3799
      %v3887 = vunpack.c.l.b16 %v3800
      %v3888 = vunpack.c.l.b16 %v3801
      %v3889 = vunpack.c.l.b16 %v3802
      %v3890 = vunpack.c.l.b16 %v3803
      %v3891 = vunpack.c.l.b16 %v3804
      %v3892 = vunpack.c.l.b16 %v3805
      %v3893 = vunpack.c.l.b16 %v3806
      %v3894 = vunpack.c.l.b16 %v3807
      %v3895 = vunpack.c.l.b16 %v3808
      %v3896 = vunpack.c.l.b16 %v3809
      %v3897 = vunpack.c.l.b16 %v3810
      %v3898 = vunpack.c.l.b16 %v3811
      %v3899 = vunpack.c.l.b16 %v3812
      %v3900 = vunpack.c.l.b16 %v3813
      %v3901 = vunpack.c.l.b16 %v3814
      %v3902 = vpack.c.b16 %v3866, %v3865
      %v3903 = vpack.c.b16 %v3868, %v3867
      %v3904 = vpack.c.b16 %v3870, %v3869
      %v3905 = vpack.c.b16 %v3872, %v3871
      %v3906 = vpack.c.b16 %v3874, %v3873
      %v3907 = vpack.c.b16 %v3876, %v3875
      %v3908 = vpack.c.b16 %v3878, %v3877
      %v3909 = vpack.c.b16 %v3880, %v3879
      %v3910 = vpack.c.b16 %v3882, %v3881
      %v3911 = vpack.c.b16 %v3884, %v3883
      %v3912 = vpack.c.b16 %v3886, %v3885
      %v3913 = vpack.c.b16 %v3888, %v3887
      %v3914 = vpack.c.b16 %v3890, %v3889
      %v3915 = vpack.c.b16 %v3892, %v3891
      %v3916 = vpack.c.b16 %v3894, %v3893
      %v3917 = vpack.c.b16 %v3896, %v3895
      %v3918 = vpack.c.b16 %v3898, %v3897
      %v3919 = vpack.c.b16 %v3900, %v3899
      %v3920 = vpack.c.b16 %v3901, %v3901
      %v3921 = vrot.slane %v3902, 2
      %v3922 = vrot.slane %v3903, 2
      %v3923 = vsel %vm3437, %v3921, %v3922
      %v3924 = vrot.slane %v3904, 2
      %v3925 = vsel %vm3437, %v3922, %v3924
      %v3926 = vrot.slane %v3905, 2
      %v3927 = vsel %vm3437, %v3924, %v3926
      %v3928 = vrot.slane %v3906, 2
      %v3929 = vsel %vm3437, %v3926, %v3928
      %v3930 = vrot.slane %v3907, 2
      %v3931 = vsel %vm3437, %v3928, %v3930
      %v3932 = vrot.slane %v3908, 2
      %v3933 = vsel %vm3437, %v3930, %v3932
      %v3934 = vrot.slane %v3909, 2
      %v3935 = vsel %vm3437, %v3932, %v3934
      %v3936 = vrot.slane %v3910, 2
      %v3937 = vsel %vm3437, %v3934, %v3936
      %v3938 = vrot.slane %v3911, 2
      %v3939 = vsel %vm3437, %v3936, %v3938
      %v3940 = vrot.slane %v3912, 2
      %v3941 = vsel %vm3437, %v3938, %v3940
      %v3942 = vrot.slane %v3913, 2
      %v3943 = vsel %vm3437, %v3940, %v3942
      %v3944 = vrot.slane %v3914, 2
      %v3945 = vsel %vm3437, %v3942, %v3944
      %v3946 = vrot.slane %v3915, 2
      %v3947 = vsel %vm3437, %v3944, %v3946
      %v3948 = vrot.slane %v3916, 2
      %v3949 = vsel %vm3437, %v3946, %v3948
      %v3950 = vrot.slane %v3917, 2
      %v3951 = vsel %vm3437, %v3948, %v3950
      %v3952 = vrot.slane %v3918, 2
      %v3953 = vsel %vm3437, %v3950, %v3952
      %v3954 = vrot.slane %v3919, 2
      %v3955 = vsel %vm3437, %v3952, %v3954
      %v3956 = vrot.slane %v3920, 2
      %v3957 = vsel %vm3437, %v3954, %v3956
      %v3970 = vunpack.c.l.b16 %v3816
      %v3971 = vunpack.c.l.b16 %v3817
      %v3972 = vunpack.c.l.b16 %v3818
      %v3973 = vunpack.c.l.b16 %v3819
      %v3974 = vunpack.c.l.b16 %v3820
      %v3975 = vunpack.c.l.b16 %v3821
      %v3976 = vunpack.c.l.b16 %v3822
      %v3977 = vunpack.c.l.b16 %v3823
      %v3978 = vunpack.c.l.b16 %v3824
      %v3979 = vunpack.c.l.b16 %v3825
      %v3980 = vunpack.c.l.b16 %v3826
      %v3981 = vunpack.c.l.b16 %v3827
      %v3982 = vpack.c.b16 %v3971, %v3970
      %v3983 = vpack.c.b16 %v3973, %v3972
      %v3984 = vpack.c.b16 %v3975, %v3974
      %v3985 = vpack.c.b16 %v3977, %v3976
      %v3986 = vpack.c.b16 %v3979, %v3978
      %v3987 = vpack.c.b16 %v3981, %v3980
      %v3995 = vsel %vm394, %v3923, 0
      %v3998 = vsel %vm394, %v3925, 0
      %v4001 = vsel %vm394, %v3927, 0
      %v4004 = vsel %vm394, %v3929, 0
      %v4007 = vsel %vm394, %v3931, 0
      %v4010 = vsel %vm394, %v3933, 0
      %v4013 = vsel %vm394, %v3935, 0
      %v4016 = vsel %vm394, %v3937, 0
      %v4019 = vsel %vm394, %v3939, 0
      %v4022 = vsel %vm394, %v3941, 0
      %v4025 = vsel %vm394, %v3943, 0
      %v4028 = vsel %vm394, %v3945, 0
      %v4031 = vsel %vm394, %v3947, 0
      %v4034 = vsel %vm394, %v3949, 0
      %v4037 = vsel %vm394, %v3951, 0
      %v4040 = vsel %vm394, %v3953, 0
      %v4043 = vsel %vm394, %v3955, 0
      %v4046 = vsel %vm394, %v3957, 0
      %4048 = vmatprep.subr.bf16.mxu0 0
      %4049 = vmatpush1.bf16.msra.mxu0 %v3982
      %4050 = vmatprep.subr.bf16.mxu0 0
      %4051 = vmatpush1.bf16.msra.mxu0 %v3983
      %4052 = vmatprep.subr.bf16.mxu0 0
      %4053 = vmatpush1.bf16.msra.mxu0 %v3984
      %4054 = vmatprep.subr.bf16.mxu0 0
      %4055 = vmatpush1.bf16.msra.mxu0 %v3985
      %4056 = vmatprep.subr.bf16.mxu0 0
      %4057 = vmatpush1.bf16.msra.mxu0 %v3986
      %4058 = vmatprep.subr.bf16.mxu0 0
      %4059 = vmatpush1.bf16.msra.mxu0 %v3987
      %4060 = vmatprep.subr.bf16.mxu0 0
      %4061 = vmatpush1.bf16.msra.mxu0 0
      %4062 = vmatprep.subr.bf16.mxu0 0
      %4063 = vmatpush1.bf16.msra.mxu0 0
      %4064 = vmatprep.subr.bf16.mxu0 0
      %4065 = vmatpush1.bf16.msra.mxu0 0
      %4066 = vmatprep.subr.bf16.mxu0 0
      %4067 = vmatpush1.bf16.msra.mxu0 0
      %4068 = vmatprep.subr.bf16.mxu0 0
      %4069 = vmatpush1.bf16.msra.mxu0 0
      %4070 = vmatprep.subr.bf16.mxu0 0
      %4071 = vmatpush1.bf16.msra.mxu0 0
      %4072 = vmatprep.subr.bf16.mxu0 0
      %4073 = vmatpush1.bf16.msra.mxu0 0
      %4074 = vmatprep.subr.bf16.mxu0 0
      %4075 = vmatpush1.bf16.msra.mxu0 0
      %4076 = vmatprep.subr.bf16.mxu0 0
      %4077 = vmatpush1.bf16.msra.mxu0 0
      %4078 = vmatprep.subr.bf16.mxu0 0
      %4079 = vmatpush1.bf16.msra.mxu0 0
      %4080 = vmatprep.mubr.bf16.mxu0 0
      %4081 = vmatmul.mubr.bf16.gmra.mrb[0].mxu0 %v3995
      %v4082 = vpop.f32.mrb[0].mxu0
      %v4083 = vadd.f32 0.0, %v4082
      %v4084 = vpop.f32.mrb[0].mxu0
      %v4085 = vpop.f32.mrb[0].mxu0
      %v4086 = vadd.f32 0.0, %v4085
      %v4087 = vpop.f32.mrb[0].mxu0
      %4088 = vmatprep.mubr.bf16.mxu0 0
      %4089 = vmatmul.mubr.bf16.gmra.mrb[0].mxu0 %v3998
      %v4090 = vpop.f32.mrb[0].mxu0
      %v4091 = vadd.f32 0.0, %v4090
      %v4092 = vpop.f32.mrb[0].mxu0
      %v4093 = vpop.f32.mrb[0].mxu0
      %v4094 = vadd.f32 0.0, %v4093
      %v4095 = vpop.f32.mrb[0].mxu0
      %4096 = vmatprep.mubr.bf16.mxu0 0
      %4097 = vmatmul.mubr.bf16.gmra.mrb[0].mxu0 %v4001
      %v4098 = vpop.f32.mrb[0].mxu0
      %v4099 = vadd.f32 0.0, %v4098
      %v4100 = vpop.f32.mrb[0].mxu0
      %v4101 = vpop.f32.mrb[0].mxu0
      %v4102 = vadd.f32 0.0, %v4101
      %v4103 = vpop.f32.mrb[0].mxu0
      %4104 = vmatprep.mubr.bf16.mxu0 0
      %4105 = vmatmul.mubr.bf16.gmra.mrb[0].mxu0 %v4004
      %v4106 = vpop.f32.mrb[0].mxu0
      %v4107 = vadd.f32 0.0, %v4106
      %v4108 = vpop.f32.mrb[0].mxu0
      %v4109 = vpop.f32.mrb[0].mxu0
      %v4110 = vadd.f32 0.0, %v4109
      %v4111 = vpop.f32.mrb[0].mxu0
      %4112 = vmatprep.mubr.bf16.mxu0 0
      %4113 = vmatmul.mubr.bf16.gmra.mrb[0].mxu0 %v4007
      %v4114 = vpop.f32.mrb[0].mxu0
      %v4115 = vadd.f32 0.0, %v4114
      %v4116 = vpop.f32.mrb[0].mxu0
      %v4117 = vpop.f32.mrb[0].mxu0
      %v4118 = vadd.f32 0.0, %v4117
      %v4119 = vpop.f32.mrb[0].mxu0
      %4120 = vmatprep.mubr.bf16.mxu0 0
      %4121 = vmatmul.mubr.bf16.gmra.mrb[0].mxu0 %v4010
      %v4122 = vpop.f32.mrb[0].mxu0
      %v4123 = vadd.f32 0.0, %v4122
      %v4124 = vpop.f32.mrb[0].mxu0
      %v4125 = vpop.f32.mrb[0].mxu0
      %v4126 = vadd.f32 0.0, %v4125
      %v4127 = vpop.f32.mrb[0].mxu0
      %4128 = vmatprep.mubr.bf16.mxu0 0
      %4129 = vmatmul.mubr.bf16.gmra.mrb[0].mxu0 %v4013
      %v4130 = vpop.f32.mrb[0].mxu0
      %v4131 = vadd.f32 0.0, %v4130
      %v4132 = vpop.f32.mrb[0].mxu0
      %v4133 = vpop.f32.mrb[0].mxu0
      %v4134 = vadd.f32 0.0, %v4133
      %v4135 = vpop.f32.mrb[0].mxu0
      %4136 = vmatprep.mubr.bf16.mxu0 0
      %4137 = vmatmul.mubr.bf16.gmra.mrb[0].mxu0 %v4016
      %v4138 = vpop.f32.mrb[0].mxu0
      %v4139 = vadd.f32 0.0, %v4138
      %v4140 = vpop.f32.mrb[0].mxu0
      %v4141 = vpop.f32.mrb[0].mxu0
      %v4142 = vadd.f32 0.0, %v4141
      %v4143 = vpop.f32.mrb[0].mxu0
      %4144 = vmatprep.mubr.bf16.mxu0 0
      %4145 = vmatmul.mubr.bf16.gmra.mrb[0].mxu0 %v4019
      %v4146 = vpop.f32.mrb[0].mxu0
      %v4147 = vadd.f32 0.0, %v4146
      %v4148 = vpop.f32.mrb[0].mxu0
      %v4149 = vpop.f32.mrb[0].mxu0
      %v4150 = vadd.f32 0.0, %v4149
      %v4151 = vpop.f32.mrb[0].mxu0
      %4152 = vmatprep.mubr.bf16.mxu0 0
      %4153 = vmatmul.mubr.bf16.gmra.mrb[0].mxu0 %v4022
      %v4154 = vpop.f32.mrb[0].mxu0
      %v4155 = vadd.f32 0.0, %v4154
      %v4156 = vpop.f32.mrb[0].mxu0
      %v4157 = vpop.f32.mrb[0].mxu0
      %v4158 = vadd.f32 0.0, %v4157
      %v4159 = vpop.f32.mrb[0].mxu0
      %4160 = vmatprep.mubr.bf16.mxu0 0
      %4161 = vmatmul.mubr.bf16.gmra.mrb[0].mxu0 %v4025
      %v4162 = vpop.f32.mrb[0].mxu0
      %v4163 = vadd.f32 0.0, %v4162
      %v4164 = vpop.f32.mrb[0].mxu0
      %v4165 = vpop.f32.mrb[0].mxu0
      %v4166 = vadd.f32 0.0, %v4165
      %v4167 = vpop.f32.mrb[0].mxu0
      %4168 = vmatprep.mubr.bf16.mxu0 0
      %4169 = vmatmul.mubr.bf16.gmra.mrb[0].mxu0 %v4028
      %v4170 = vpop.f32.mrb[0].mxu0
      %v4171 = vadd.f32 0.0, %v4170
      %v4172 = vpop.f32.mrb[0].mxu0
      %v4173 = vpop.f32.mrb[0].mxu0
      %v4174 = vadd.f32 0.0, %v4173
      %v4175 = vpop.f32.mrb[0].mxu0
      %4176 = vmatprep.mubr.bf16.mxu0 0
      %4177 = vmatmul.mubr.bf16.gmra.mrb[0].mxu0 %v4031
      %v4178 = vpop.f32.mrb[0].mxu0
      %v4179 = vadd.f32 0.0, %v4178
      %v4180 = vpop.f32.mrb[0].mxu0
      %v4181 = vpop.f32.mrb[0].mxu0
      %v4182 = vadd.f32 0.0, %v4181
      %v4183 = vpop.f32.mrb[0].mxu0
      %4184 = vmatprep.mubr.bf16.mxu0 0
      %4185 = vmatmul.mubr.bf16.gmra.mrb[0].mxu0 %v4034
      %v4186 = vpop.f32.mrb[0].mxu0
      %v4187 = vadd.f32 0.0, %v4186
      %v4188 = vpop.f32.mrb[0].mxu0
      %v4189 = vpop.f32.mrb[0].mxu0
      %v4190 = vadd.f32 0.0, %v4189
      %v4191 = vpop.f32.mrb[0].mxu0
      %4192 = vmatprep.mubr.bf16.mxu0 0
      %4193 = vmatmul.mubr.bf16.gmra.mrb[0].mxu0 %v4037
      %v4194 = vpop.f32.mrb[0].mxu0
      %v4195 = vadd.f32 0.0, %v4194
      %v4196 = vpop.f32.mrb[0].mxu0
      %v4197 = vpop.f32.mrb[0].mxu0
      %v4198 = vadd.f32 0.0, %v4197
      %v4199 = vpop.f32.mrb[0].mxu0
      %4200 = vmatprep.mubr.bf16.mxu0 0
      %4201 = vmatmul.mubr.bf16.gmra.mrb[0].mxu0 %v4040
      %v4202 = vpop.f32.mrb[0].mxu0
      %v4203 = vadd.f32 0.0, %v4202
      %v4204 = vpop.f32.mrb[0].mxu0
      %v4205 = vpop.f32.mrb[0].mxu0
      %v4206 = vadd.f32 0.0, %v4205
      %v4207 = vpop.f32.mrb[0].mxu0
      %4208 = vmatprep.mubr.bf16.mxu0 0
      %4209 = vmatmul.mubr.bf16.gmra.mrb[0].mxu0 %v4043
      %v4210 = vpop.f32.mrb[0].mxu0
      %v4211 = vadd.f32 0.0, %v4210
      %v4212 = vpop.f32.mrb[0].mxu0
      %v4213 = vpop.f32.mrb[0].mxu0
      %v4214 = vadd.f32 0.0, %v4213
      %v4215 = vpop.f32.mrb[0].mxu0
      %4216 = vmatprep.mubr.bf16.mxu0 0
      %4217 = vmatmul.mubr.bf16.gmra.mrb[0].mxu0 %v4046
      %v4218 = vpop.f32.mrb[0].mxu0
      %v4219 = vadd.f32 0.0, %v4218
      %v4220 = vpop.f32.mrb[0].mxu0
      %v4221 = vpop.f32.mrb[0].mxu0
      %v4222 = vadd.f32 0.0, %v4221
      %v4223 = vpop.f32.mrb[0].mxu0
      %4224 = vdwg.mxu0
      %v4225 = vadd.f32 %v3742, %v4083
      %v4226 = vadd.f32 %v3743, %v4086
      %v4227 = vadd.f32 %v3744, %v4091
      %v4228 = vadd.f32 %v3745, %v4094
      %v4229 = vadd.f32 %v3746, %v4099
      %v4230 = vadd.f32 %v3747, %v4102
      %v4231 = vadd.f32 %v3748, %v4107
      %v4232 = vadd.f32 %v3749, %v4110
      %v4233 = vadd.f32 %v3750, %v4115
      %v4234 = vadd.f32 %v3751, %v4118
      %v4235 = vadd.f32 %v3752, %v4123
      %v4236 = vadd.f32 %v3753, %v4126
      %v4237 = vadd.f32 %v3754, %v4131
      %v4238 = vadd.f32 %v3755, %v4134
      %v4239 = vadd.f32 %v3756, %v4139
      %v4240 = vadd.f32 %v3757, %v4142
      %v4241 = vadd.f32 %v3758, %v4147
      %v4242 = vadd.f32 %v3759, %v4150
      %v4243 = vadd.f32 %v3760, %v4155
      %v4244 = vadd.f32 %v3761, %v4158
      %v4245 = vadd.f32 %v3762, %v4163
      %v4246 = vadd.f32 %v3763, %v4166
      %v4247 = vadd.f32 %v3764, %v4171
      %v4248 = vadd.f32 %v3765, %v4174
      %v4249 = vadd.f32 %v3766, %v4179
      %v4250 = vadd.f32 %v3767, %v4182
      %v4251 = vadd.f32 %v3768, %v4187
      %v4252 = vadd.f32 %v3769, %v4190
      %v4253 = vadd.f32 %v3770, %v4195
      %v4254 = vadd.f32 %v3771, %v4198
      %v4255 = vadd.f32 %v3772, %v4203
      %v4256 = vadd.f32 %v3773, %v4206
      %v4257 = vadd.f32 %v3774, %v4211
      %v4258 = vadd.f32 %v3775, %v4214
      %v4259 = vadd.f32 %v3776, %v4219
      %v4260 = vadd.f32 %v3777, %v4222
      %v4261 = vld [vmem:[#allocation2 + $0xa0] sm:$0x7]
      %s4262 = scalar_lea.vmem %s3, 336
      %v4263 = vld [vmem:[%s4262] sm:$0xf]
      %v4264 = vld [vmem:[%s4262 + $0x4] sm:$0xf]
      %v4265 = vld [vmem:[%s4262 + $0x8] sm:$0xf]
      %v4266 = vld [vmem:[%s4262 + $0xc] sm:$0xf]
      %v4267 = vld [vmem:[%s4262 + $0x10] sm:$0xf]
      %v4268 = vld [vmem:[%s4262 + $0x14] sm:$0xf]
      %v4269 = vld [vmem:[%s4262 + $0x18] sm:$0xf]
      %v4270 = vld [vmem:[%s4262 + $0x1c] sm:$0xf]
      %v4271 = vld [vmem:[%s4262 + $0x20] sm:$0xf]
      %v4272 = vld [vmem:[%s4262 + $0x24] sm:$0xf]
      %v4273 = vld [vmem:[%s4262 + $0x28] sm:$0xf]
      %v4274 = vld [vmem:[%s4262 + $0x2c] sm:$0xf]
      %v4276 = vunpack.c.l.b16 %v4261
      %v4277 = vpack.c.b16 %v4276, %v4276
      %vm4278 = vsmask.f32 5376
      %v4280 = vshrl.u32 %v3902, 16
      %v4282 = vrot.slane %v4280, 2
      %v4283 = vshll.u32 %v3902, 16
      %v4285 = vrot.slane %v4283, 3
      %v4286 = vor.u32 %v4282, %v4285
      %v4288 = vshrl.u32 %v3903, 16
      %v4290 = vrot.slane %v4288, 2
      %v4291 = vshll.u32 %v3903, 16
      %v4293 = vrot.slane %v4291, 3
      %v4294 = vor.u32 %v4290, %v4293
      %v4295 = vsel %vm4278, %v4286, %v4294
      %v4297 = vshrl.u32 %v3904, 16
      %v4299 = vrot.slane %v4297, 2
      %v4300 = vshll.u32 %v3904, 16
      %v4302 = vrot.slane %v4300, 3
      %v4303 = vor.u32 %v4299, %v4302
      %v4304 = vsel %vm4278, %v4294, %v4303
      %v4306 = vshrl.u32 %v3905, 16
      %v4308 = vrot.slane %v4306, 2
      %v4309 = vshll.u32 %v3905, 16
      %v4311 = vrot.slane %v4309, 3
      %v4312 = vor.u32 %v4308, %v4311
      %v4313 = vsel %vm4278, %v4303, %v4312
      %v4315 = vshrl.u32 %v3906, 16
      %v4317 = vrot.slane %v4315, 2
      %v4318 = vshll.u32 %v3906, 16
      %v4320 = vrot.slane %v4318, 3
      %v4321 = vor.u32 %v4317, %v4320
      %v4322 = vsel %vm4278, %v4312, %v4321
      %v4324 = vshrl.u32 %v3907, 16
      %v4326 = vrot.slane %v4324, 2
      %v4327 = vshll.u32 %v3907, 16
      %v4329 = vrot.slane %v4327, 3
      %v4330 = vor.u32 %v4326, %v4329
      %v4331 = vsel %vm4278, %v4321, %v4330
      %v4333 = vshrl.u32 %v3908, 16
      %v4335 = vrot.slane %v4333, 2
      %v4336 = vshll.u32 %v3908, 16
      %v4338 = vrot.slane %v4336, 3
      %v4339 = vor.u32 %v4335, %v4338
      %v4340 = vsel %vm4278, %v4330, %v4339
      %v4342 = vshrl.u32 %v3909, 16
      %v4344 = vrot.slane %v4342, 2
      %v4345 = vshll.u32 %v3909, 16
      %v4347 = vrot.slane %v4345, 3
      %v4348 = vor.u32 %v4344, %v4347
      %v4349 = vsel %vm4278, %v4339, %v4348
      %v4351 = vshrl.u32 %v3910, 16
      %v4353 = vrot.slane %v4351, 2
      %v4354 = vshll.u32 %v3910, 16
      %v4356 = vrot.slane %v4354, 3
      %v4357 = vor.u32 %v4353, %v4356
      %v4358 = vsel %vm4278, %v4348, %v4357
      %v4360 = vshrl.u32 %v3911, 16
      %v4362 = vrot.slane %v4360, 2
      %v4363 = vshll.u32 %v3911, 16
      %v4365 = vrot.slane %v4363, 3
      %v4366 = vor.u32 %v4362, %v4365
      %v4367 = vsel %vm4278, %v4357, %v4366
      %v4369 = vshrl.u32 %v3912, 16
      %v4371 = vrot.slane %v4369, 2
      %v4372 = vshll.u32 %v3912, 16
      %v4374 = vrot.slane %v4372, 3
      %v4375 = vor.u32 %v4371, %v4374
      %v4376 = vsel %vm4278, %v4366, %v4375
      %v4378 = vshrl.u32 %v3913, 16
      %v4380 = vrot.slane %v4378, 2
      %v4381 = vshll.u32 %v3913, 16
      %v4383 = vrot.slane %v4381, 3
      %v4384 = vor.u32 %v4380, %v4383
      %v4385 = vsel %vm4278, %v4375, %v4384
      %v4387 = vshrl.u32 %v3914, 16
      %v4389 = vrot.slane %v4387, 2
      %v4390 = vshll.u32 %v3914, 16
      %v4392 = vrot.slane %v4390, 3
      %v4393 = vor.u32 %v4389, %v4392
      %v4394 = vsel %vm4278, %v4384, %v4393
      %v4396 = vshrl.u32 %v3915, 16
      %v4398 = vrot.slane %v4396, 2
      %v4399 = vshll.u32 %v3915, 16
      %v4401 = vrot.slane %v4399, 3
      %v4402 = vor.u32 %v4398, %v4401
      %v4403 = vsel %vm4278, %v4393, %v4402
      %v4405 = vshrl.u32 %v3916, 16
      %v4407 = vrot.slane %v4405, 2
      %v4408 = vshll.u32 %v3916, 16
      %v4410 = vrot.slane %v4408, 3
      %v4411 = vor.u32 %v4407, %v4410
      %v4412 = vsel %vm4278, %v4402, %v4411
      %v4414 = vshrl.u32 %v3917, 16
      %v4416 = vrot.slane %v4414, 2
      %v4417 = vshll.u32 %v3917, 16
      %v4419 = vrot.slane %v4417, 3
      %v4420 = vor.u32 %v4416, %v4419
      %v4421 = vsel %vm4278, %v4411, %v4420
      %v4423 = vshrl.u32 %v3918, 16
      %v4425 = vrot.slane %v4423, 2
      %v4426 = vshll.u32 %v3918, 16
      %v4428 = vrot.slane %v4426, 3
      %v4429 = vor.u32 %v4425, %v4428
      %v4430 = vsel %vm4278, %v4420, %v4429
      %v4432 = vshrl.u32 %v3919, 16
      %v4434 = vrot.slane %v4432, 2
      %v4435 = vshll.u32 %v3919, 16
      %v4437 = vrot.slane %v4435, 3
      %v4438 = vor.u32 %v4434, %v4437
      %v4439 = vsel %vm4278, %v4429, %v4438
      %v4441 = vshrl.u32 %v4277, 16
      %v4443 = vrot.slane %v4441, 2
      %v4444 = vshll.u32 %v4277, 16
      %v4446 = vrot.slane %v4444, 3
      %v4447 = vor.u32 %v4443, %v4446
      %v4448 = vsel %vm4278, %v4438, %v4447
      %v4461 = vunpack.c.l.b16 %v4263
      %v4462 = vunpack.c.l.b16 %v4264
      %v4463 = vunpack.c.l.b16 %v4265
      %v4464 = vunpack.c.l.b16 %v4266
      %v4465 = vunpack.c.l.b16 %v4267
      %v4466 = vunpack.c.l.b16 %v4268
      %v4467 = vunpack.c.l.b16 %v4269
      %v4468 = vunpack.c.l.b16 %v4270
      %v4469 = vunpack.c.l.b16 %v4271
      %v4470 = vunpack.c.l.b16 %v4272
      %v4471 = vunpack.c.l.b16 %v4273
      %v4472 = vunpack.c.l.b16 %v4274
      %v4473 = vpack.c.b16 %v4462, %v4461
      %v4474 = vpack.c.b16 %v4464, %v4463
      %v4475 = vpack.c.b16 %v4466, %v4465
      %v4476 = vpack.c.b16 %v4468, %v4467
      %v4477 = vpack.c.b16 %v4470, %v4469
      %v4478 = vpack.c.b16 %v4472, %v4471
      %v4486 = vsel %vm394, %v4295, 0
      %v4489 = vsel %vm394, %v4304, 0
      %v4492 = vsel %vm394, %v4313, 0
      %v4495 = vsel %vm394, %v4322, 0
      %v4498 = vsel %vm394, %v4331, 0
      %v4501 = vsel %vm394, %v4340, 0
      %v4504 = vsel %vm394, %v4349, 0
      %v4507 = vsel %vm394, %v4358, 0
      %v4510 = vsel %vm394, %v4367, 0
      %v4513 = vsel %vm394, %v4376, 0
      %v4516 = vsel %vm394, %v4385, 0
      %v4519 = vsel %vm394, %v4394, 0
      %v4522 = vsel %vm394, %v4403, 0
      %v4525 = vsel %vm394, %v4412, 0
      %v4528 = vsel %vm394, %v4421, 0
      %v4531 = vsel %vm394, %v4430, 0
      %v4534 = vsel %vm394, %v4439, 0
      %v4537 = vsel %vm394, %v4448, 0
      %4539 = vmatprep.subr.bf16.mxu0 0
      %4540 = vmatpush1.bf16.msra.mxu0 %v4473
      %4541 = vmatprep.subr.bf16.mxu0 0
      %4542 = vmatpush1.bf16.msra.mxu0 %v4474
      %4543 = vmatprep.subr.bf16.mxu0 0
      %4544 = vmatpush1.bf16.msra.mxu0 %v4475
      %4545 = vmatprep.subr.bf16.mxu0 0
      %4546 = vmatpush1.bf16.msra.mxu0 %v4476
      %4547 = vmatprep.subr.bf16.mxu0 0
      %4548 = vmatpush1.bf16.msra.mxu0 %v4477
      %4549 = vmatprep.subr.bf16.mxu0 0
      %4550 = vmatpush1.bf16.msra.mxu0 %v4478
      %4551 = vmatprep.subr.bf16.mxu0 0
      %4552 = vmatpush1.bf16.msra.mxu0 0
      %4553 = vmatprep.subr.bf16.mxu0 0
      %4554 = vmatpush1.bf16.msra.mxu0 0
      %4555 = vmatprep.subr.bf16.mxu0 0
      %4556 = vmatpush1.bf16.msra.mxu0 0
      %4557 = vmatprep.subr.bf16.mxu0 0
      %4558 = vmatpush1.bf16.msra.mxu0 0
      %4559 = vmatprep.subr.bf16.mxu0 0
      %4560 = vmatpush1.bf16.msra.mxu0 0
      %4561 = vmatprep.subr.bf16.mxu0 0
      %4562 = vmatpush1.bf16.msra.mxu0 0
      %4563 = vmatprep.subr.bf16.mxu0 0
      %4564 = vmatpush1.bf16.msra.mxu0 0
      %4565 = vmatprep.subr.bf16.mxu0 0
      %4566 = vmatpush1.bf16.msra.mxu0 0
      %4567 = vmatprep.subr.bf16.mxu0 0
      %4568 = vmatpush1.bf16.msra.mxu0 0
      %4569 = vmatprep.subr.bf16.mxu0 0
      %4570 = vmatpush1.bf16.msra.mxu0 0
      %4571 = vmatprep.mubr.bf16.mxu0 0
      %4572 = vmatmul.mubr.bf16.gmra.mrb[0].mxu0 %v4486
      %v4573 = vpop.f32.mrb[0].mxu0
      %v4574 = vadd.f32 0.0, %v4573
      %v4575 = vpop.f32.mrb[0].mxu0
      %v4576 = vpop.f32.mrb[0].mxu0
      %v4577 = vadd.f32 0.0, %v4576
      %v4578 = vpop.f32.mrb[0].mxu0
      %4579 = vmatprep.mubr.bf16.mxu0 0
      %4580 = vmatmul.mubr.bf16.gmra.mrb[0].mxu0 %v4489
      %v4581 = vpop.f32.mrb[0].mxu0
      %v4582 = vadd.f32 0.0, %v4581
      %v4583 = vpop.f32.mrb[0].mxu0
      %v4584 = vpop.f32.mrb[0].mxu0
      %v4585 = vadd.f32 0.0, %v4584
      %v4586 = vpop.f32.mrb[0].mxu0
      %4587 = vmatprep.mubr.bf16.mxu0 0
      %4588 = vmatmul.mubr.bf16.gmra.mrb[0].mxu0 %v4492
      %v4589 = vpop.f32.mrb[0].mxu0
      %v4590 = vadd.f32 0.0, %v4589
      %v4591 = vpop.f32.mrb[0].mxu0
      %v4592 = vpop.f32.mrb[0].mxu0
      %v4593 = vadd.f32 0.0, %v4592
      %v4594 = vpop.f32.mrb[0].mxu0
      %4595 = vmatprep.mubr.bf16.mxu0 0
      %4596 = vmatmul.mubr.bf16.gmra.mrb[0].mxu0 %v4495
      %v4597 = vpop.f32.mrb[0].mxu0
      %v4598 = vadd.f32 0.0, %v4597
      %v4599 = vpop.f32.mrb[0].mxu0
      %v4600 = vpop.f32.mrb[0].mxu0
      %v4601 = vadd.f32 0.0, %v4600
      %v4602 = vpop.f32.mrb[0].mxu0
      %4603 = vmatprep.mubr.bf16.mxu0 0
      %4604 = vmatmul.mubr.bf16.gmra.mrb[0].mxu0 %v4498
      %v4605 = vpop.f32.mrb[0].mxu0
      %v4606 = vadd.f32 0.0, %v4605
      %v4607 = vpop.f32.mrb[0].mxu0
      %v4608 = vpop.f32.mrb[0].mxu0
      %v4609 = vadd.f32 0.0, %v4608
      %v4610 = vpop.f32.mrb[0].mxu0
      %4611 = vmatprep.mubr.bf16.mxu0 0
      %4612 = vmatmul.mubr.bf16.gmra.mrb[0].mxu0 %v4501
      %v4613 = vpop.f32.mrb[0].mxu0
      %v4614 = vadd.f32 0.0, %v4613
      %v4615 = vpop.f32.mrb[0].mxu0
      %v4616 = vpop.f32.mrb[0].mxu0
      %v4617 = vadd.f32 0.0, %v4616
      %v4618 = vpop.f32.mrb[0].mxu0
      %4619 = vmatprep.mubr.bf16.mxu0 0
      %4620 = vmatmul.mubr.bf16.gmra.mrb[0].mxu0 %v4504
      %v4621 = vpop.f32.mrb[0].mxu0
      %v4622 = vadd.f32 0.0, %v4621
      %v4623 = vpop.f32.mrb[0].mxu0
      %v4624 = vpop.f32.mrb[0].mxu0
      %v4625 = vadd.f32 0.0, %v4624
      %v4626 = vpop.f32.mrb[0].mxu0
      %4627 = vmatprep.mubr.bf16.mxu0 0
      %4628 = vmatmul.mubr.bf16.gmra.mrb[0].mxu0 %v4507
      %v4629 = vpop.f32.mrb[0].mxu0
      %v4630 = vadd.f32 0.0, %v4629
      %v4631 = vpop.f32.mrb[0].mxu0
      %v4632 = vpop.f32.mrb[0].mxu0
      %v4633 = vadd.f32 0.0, %v4632
      %v4634 = vpop.f32.mrb[0].mxu0
      %4635 = vmatprep.mubr.bf16.mxu0 0
      %4636 = vmatmul.mubr.bf16.gmra.mrb[0].mxu0 %v4510
      %v4637 = vpop.f32.mrb[0].mxu0
      %v4638 = vadd.f32 0.0, %v4637
      %v4639 = vpop.f32.mrb[0].mxu0
      %v4640 = vpop.f32.mrb[0].mxu0
      %v4641 = vadd.f32 0.0, %v4640
      %v4642 = vpop.f32.mrb[0].mxu0
      %4643 = vmatprep.mubr.bf16.mxu0 0
      %4644 = vmatmul.mubr.bf16.gmra.mrb[0].mxu0 %v4513
      %v4645 = vpop.f32.mrb[0].mxu0
      %v4646 = vadd.f32 0.0, %v4645
      %v4647 = vpop.f32.mrb[0].mxu0
      %v4648 = vpop.f32.mrb[0].mxu0
      %v4649 = vadd.f32 0.0, %v4648
      %v4650 = vpop.f32.mrb[0].mxu0
      %4651 = vmatprep.mubr.bf16.mxu0 0
      %4652 = vmatmul.mubr.bf16.gmra.mrb[0].mxu0 %v4516
      %v4653 = vpop.f32.mrb[0].mxu0
      %v4654 = vadd.f32 0.0, %v4653
      %v4655 = vpop.f32.mrb[0].mxu0
      %v4656 = vpop.f32.mrb[0].mxu0
      %v4657 = vadd.f32 0.0, %v4656
      %v4658 = vpop.f32.mrb[0].mxu0
      %4659 = vmatprep.mubr.bf16.mxu0 0
      %4660 = vmatmul.mubr.bf16.gmra.mrb[0].mxu0 %v4519
      %v4661 = vpop.f32.mrb[0].mxu0
      %v4662 = vadd.f32 0.0, %v4661
      %v4663 = vpop.f32.mrb[0].mxu0
      %v4664 = vpop.f32.mrb[0].mxu0
      %v4665 = vadd.f32 0.0, %v4664
      %v4666 = vpop.f32.mrb[0].mxu0
      %4667 = vmatprep.mubr.bf16.mxu0 0
      %4668 = vmatmul.mubr.bf16.gmra.mrb[0].mxu0 %v4522
      %v4669 = vpop.f32.mrb[0].mxu0
      %v4670 = vadd.f32 0.0, %v4669
      %v4671 = vpop.f32.mrb[0].mxu0
      %v4672 = vpop.f32.mrb[0].mxu0
      %v4673 = vadd.f32 0.0, %v4672
      %v4674 = vpop.f32.mrb[0].mxu0
      %4675 = vmatprep.mubr.bf16.mxu0 0
      %4676 = vmatmul.mubr.bf16.gmra.mrb[0].mxu0 %v4525
      %v4677 = vpop.f32.mrb[0].mxu0
      %v4678 = vadd.f32 0.0, %v4677
      %v4679 = vpop.f32.mrb[0].mxu0
      %v4680 = vpop.f32.mrb[0].mxu0
      %v4681 = vadd.f32 0.0, %v4680
      %v4682 = vpop.f32.mrb[0].mxu0
      %4683 = vmatprep.mubr.bf16.mxu0 0
      %4684 = vmatmul.mubr.bf16.gmra.mrb[0].mxu0 %v4528
      %v4685 = vpop.f32.mrb[0].mxu0
      %v4686 = vadd.f32 0.0, %v4685
      %v4687 = vpop.f32.mrb[0].mxu0
      %v4688 = vpop.f32.mrb[0].mxu0
      %v4689 = vadd.f32 0.0, %v4688
      %v4690 = vpop.f32.mrb[0].mxu0
      %4691 = vmatprep.mubr.bf16.mxu0 0
      %4692 = vmatmul.mubr.bf16.gmra.mrb[0].mxu0 %v4531
      %v4693 = vpop.f32.mrb[0].mxu0
      %v4694 = vadd.f32 0.0, %v4693
      %v4695 = vpop.f32.mrb[0].mxu0
      %v4696 = vpop.f32.mrb[0].mxu0
      %v4697 = vadd.f32 0.0, %v4696
      %v4698 = vpop.f32.mrb[0].mxu0
      %4699 = vmatprep.mubr.bf16.mxu0 0
      %4700 = vmatmul.mubr.bf16.gmra.mrb[0].mxu0 %v4534
      %v4701 = vpop.f32.mrb[0].mxu0
      %v4702 = vadd.f32 0.0, %v4701
      %v4703 = vpop.f32.mrb[0].mxu0
      %v4704 = vpop.f32.mrb[0].mxu0
      %v4705 = vadd.f32 0.0, %v4704
      %v4706 = vpop.f32.mrb[0].mxu0
      %4707 = vmatprep.mubr.bf16.mxu0 0
      %4708 = vmatmul.mubr.bf16.gmra.mrb[0].mxu0 %v4537
      %v4709 = vpop.f32.mrb[0].mxu0
      %v4710 = vadd.f32 0.0, %v4709
      %v4711 = vpop.f32.mrb[0].mxu0
      %v4712 = vpop.f32.mrb[0].mxu0
      %v4713 = vadd.f32 0.0, %v4712
      %v4714 = vpop.f32.mrb[0].mxu0
      %4715 = vdwg.mxu0
      %v4716 = vadd.f32 %v4225, %v4574
      %v4717 = vadd.f32 %v4226, %v4577
      %v4718 = vadd.f32 %v4227, %v4582
      %v4719 = vadd.f32 %v4228, %v4585
      %v4720 = vadd.f32 %v4229, %v4590
      %v4721 = vadd.f32 %v4230, %v4593
      %v4722 = vadd.f32 %v4231, %v4598
      %v4723 = vadd.f32 %v4232, %v4601
      %v4724 = vadd.f32 %v4233, %v4606
      %v4725 = vadd.f32 %v4234, %v4609
      %v4726 = vadd.f32 %v4235, %v4614
      %v4727 = vadd.f32 %v4236, %v4617
      %v4728 = vadd.f32 %v4237, %v4622
      %v4729 = vadd.f32 %v4238, %v4625
      %v4730 = vadd.f32 %v4239, %v4630
      %v4731 = vadd.f32 %v4240, %v4633
      %v4732 = vadd.f32 %v4241, %v4638
      %v4733 = vadd.f32 %v4242, %v4641
      %v4734 = vadd.f32 %v4243, %v4646
      %v4735 = vadd.f32 %v4244, %v4649
      %v4736 = vadd.f32 %v4245, %v4654
      %v4737 = vadd.f32 %v4246, %v4657
      %v4738 = vadd.f32 %v4247, %v4662
      %v4739 = vadd.f32 %v4248, %v4665
      %v4740 = vadd.f32 %v4249, %v4670
      %v4741 = vadd.f32 %v4250, %v4673
      %v4742 = vadd.f32 %v4251, %v4678
      %v4743 = vadd.f32 %v4252, %v4681
      %v4744 = vadd.f32 %v4253, %v4686
      %v4745 = vadd.f32 %v4254, %v4689
      %v4746 = vadd.f32 %v4255, %v4694
      %v4747 = vadd.f32 %v4256, %v4697
      %v4748 = vadd.f32 %v4257, %v4702
      %v4749 = vadd.f32 %v4258, %v4705
      %v4750 = vadd.f32 %v4259, %v4710
      %v4751 = vadd.f32 %v4260, %v4713
      %v4752 = vld [vmem:[#allocation2 + $0x10] sm:$0x8]
      %s4753 = scalar_lea.vmem %s3, 384
      %v4754 = vld [vmem:[%s4753] sm:$0xf]
      %v4755 = vld [vmem:[%s4753 + $0x4] sm:$0xf]
      %v4756 = vld [vmem:[%s4753 + $0x8] sm:$0xf]
      %v4757 = vld [vmem:[%s4753 + $0xc] sm:$0xf]
      %v4758 = vld [vmem:[%s4753 + $0x10] sm:$0xf]
      %v4759 = vld [vmem:[%s4753 + $0x14] sm:$0xf]
      %v4760 = vld [vmem:[%s4753 + $0x18] sm:$0xf]
      %v4761 = vld [vmem:[%s4753 + $0x1c] sm:$0xf]
      %v4762 = vld [vmem:[%s4753 + $0x20] sm:$0xf]
      %v4763 = vld [vmem:[%s4753 + $0x24] sm:$0xf]
      %v4764 = vld [vmem:[%s4753 + $0x28] sm:$0xf]
      %v4765 = vld [vmem:[%s4753 + $0x2c] sm:$0xf]
      %v4767 = vunpack.c.l.b16 %v4752
      %v4768 = vpack.c.b16 %v3866, %v4767
      %vm4769 = vcmask 1044480
      %v4770 = vrot.slane %v4768, 3
      %v4771 = vrot.slane %v3903, 3
      %v4772 = vsel %vm4769, %v4770, %v4771
      %v4773 = vrot.slane %v3904, 3
      %v4774 = vsel %vm4769, %v4771, %v4773
      %v4775 = vrot.slane %v3905, 3
      %v4776 = vsel %vm4769, %v4773, %v4775
      %v4777 = vrot.slane %v3906, 3
      %v4778 = vsel %vm4769, %v4775, %v4777
      %v4779 = vrot.slane %v3907, 3
      %v4780 = vsel %vm4769, %v4777, %v4779
      %v4781 = vrot.slane %v3908, 3
      %v4782 = vsel %vm4769, %v4779, %v4781
      %v4783 = vrot.slane %v3909, 3
      %v4784 = vsel %vm4769, %v4781, %v4783
      %v4785 = vrot.slane %v3910, 3
      %v4786 = vsel %vm4769, %v4783, %v4785
      %v4787 = vrot.slane %v3911, 3
      %v4788 = vsel %vm4769, %v4785, %v4787
      %v4789 = vrot.slane %v3912, 3
      %v4790 = vsel %vm4769, %v4787, %v4789
      %v4791 = vrot.slane %v3913, 3
      %v4792 = vsel %vm4769, %v4789, %v4791
      %v4793 = vrot.slane %v3914, 3
      %v4794 = vsel %vm4769, %v4791, %v4793
      %v4795 = vrot.slane %v3915, 3
      %v4796 = vsel %vm4769, %v4793, %v4795
      %v4797 = vrot.slane %v3916, 3
      %v4798 = vsel %vm4769, %v4795, %v4797
      %v4799 = vrot.slane %v3917, 3
      %v4800 = vsel %vm4769, %v4797, %v4799
      %v4801 = vrot.slane %v3918, 3
      %v4802 = vsel %vm4769, %v4799, %v4801
      %v4803 = vrot.slane %v3919, 3
      %v4804 = vsel %vm4769, %v4801, %v4803
      %v4805 = vrot.slane %v4277, 3
      %v4806 = vsel %vm4769, %v4803, %v4805
      %v4819 = vunpack.c.l.b16 %v4754
      %v4820 = vunpack.c.l.b16 %v4755
      %v4821 = vunpack.c.l.b16 %v4756
      %v4822 = vunpack.c.l.b16 %v4757
      %v4823 = vunpack.c.l.b16 %v4758
      %v4824 = vunpack.c.l.b16 %v4759
      %v4825 = vunpack.c.l.b16 %v4760
      %v4826 = vunpack.c.l.b16 %v4761
      %v4827 = vunpack.c.l.b16 %v4762
      %v4828 = vunpack.c.l.b16 %v4763
      %v4829 = vunpack.c.l.b16 %v4764
      %v4830 = vunpack.c.l.b16 %v4765
      %v4831 = vpack.c.b16 %v4820, %v4819
      %v4832 = vpack.c.b16 %v4822, %v4821
      %v4833 = vpack.c.b16 %v4824, %v4823
      %v4834 = vpack.c.b16 %v4826, %v4825
      %v4835 = vpack.c.b16 %v4828, %v4827
      %v4836 = vpack.c.b16 %v4830, %v4829
      %v4844 = vsel %vm394, %v4772, 0
      %v4847 = vsel %vm394, %v4774, 0
      %v4850 = vsel %vm394, %v4776, 0
      %v4853 = vsel %vm394, %v4778, 0
      %v4856 = vsel %vm394, %v4780, 0
      %v4859 = vsel %vm394, %v4782, 0
      %v4862 = vsel %vm394, %v4784, 0
      %v4865 = vsel %vm394, %v4786, 0
      %v4868 = vsel %vm394, %v4788, 0
      %v4871 = vsel %vm394, %v4790, 0
      %v4874 = vsel %vm394, %v4792, 0
      %v4877 = vsel %vm394, %v4794, 0
      %v4880 = vsel %vm394, %v4796, 0
      %v4883 = vsel %vm394, %v4798, 0
      %v4886 = vsel %vm394, %v4800, 0
      %v4889 = vsel %vm394, %v4802, 0
      %v4892 = vsel %vm394, %v4804, 0
      %v4895 = vsel %vm394, %v4806, 0
      %4897 = vmatprep.subr.bf16.mxu0 0
      %4898 = vmatpush1.bf16.msra.mxu0 %v4831
      %4899 = vmatprep.subr.bf16.mxu0 0
      %4900 = vmatpush1.bf16.msra.mxu0 %v4832
      %4901 = vmatprep.subr.bf16.mxu0 0
      %4902 = vmatpush1.bf16.msra.mxu0 %v4833
      %4903 = vmatprep.subr.bf16.mxu0 0
      %4904 = vmatpush1.bf16.msra.mxu0 %v4834
      %4905 = vmatprep.subr.bf16.mxu0 0
      %4906 = vmatpush1.bf16.msra.mxu0 %v4835
      %4907 = vmatprep.subr.bf16.mxu0 0
      %4908 = vmatpush1.bf16.msra.mxu0 %v4836
      %4909 = vmatprep.subr.bf16.mxu0 0
      %4910 = vmatpush1.bf16.msra.mxu0 0
      %4911 = vmatprep.subr.bf16.mxu0 0
      %4912 = vmatpush1.bf16.msra.mxu0 0
      %4913 = vmatprep.subr.bf16.mxu0 0
      %4914 = vmatpush1.bf16.msra.mxu0 0
      %4915 = vmatprep.subr.bf16.mxu0 0
      %4916 = vmatpush1.bf16.msra.mxu0 0
      %4917 = vmatprep.subr.bf16.mxu0 0
      %4918 = vmatpush1.bf16.msra.mxu0 0
      %4919 = vmatprep.subr.bf16.mxu0 0
      %4920 = vmatpush1.bf16.msra.mxu0 0
      %4921 = vmatprep.subr.bf16.mxu0 0
      %4922 = vmatpush1.bf16.msra.mxu0 0
      %4923 = vmatprep.subr.bf16.mxu0 0
      %4924 = vmatpush1.bf16.msra.mxu0 0
      %4925 = vmatprep.subr.bf16.mxu0 0
      %4926 = vmatpush1.bf16.msra.mxu0 0
      %4927 = vmatprep.subr.bf16.mxu0 0
      %4928 = vmatpush1.bf16.msra.mxu0 0
      %4929 = vmatprep.mubr.bf16.mxu0 0
      %4930 = vmatmul.mubr.bf16.gmra.mrb[0].mxu0 %v4844
      %v4931 = vpop.f32.mrb[0].mxu0
      %v4932 = vadd.f32 0.0, %v4931
      %v4933 = vpop.f32.mrb[0].mxu0
      %v4934 = vpop.f32.mrb[0].mxu0
      %v4935 = vadd.f32 0.0, %v4934
      %v4936 = vpop.f32.mrb[0].mxu0
      %4937 = vmatprep.mubr.bf16.mxu0 0
      %4938 = vmatmul.mubr.bf16.gmra.mrb[0].mxu0 %v4847
      %v4939 = vpop.f32.mrb[0].mxu0
      %v4940 = vadd.f32 0.0, %v4939
      %v4941 = vpop.f32.mrb[0].mxu0
      %v4942 = vpop.f32.mrb[0].mxu0
      %v4943 = vadd.f32 0.0, %v4942
      %v4944 = vpop.f32.mrb[0].mxu0
      %4945 = vmatprep.mubr.bf16.mxu0 0
      %4946 = vmatmul.mubr.bf16.gmra.mrb[0].mxu0 %v4850
      %v4947 = vpop.f32.mrb[0].mxu0
      %v4948 = vadd.f32 0.0, %v4947
      %v4949 = vpop.f32.mrb[0].mxu0
      %v4950 = vpop.f32.mrb[0].mxu0
      %v4951 = vadd.f32 0.0, %v4950
      %v4952 = vpop.f32.mrb[0].mxu0
      %4953 = vmatprep.mubr.bf16.mxu0 0
      %4954 = vmatmul.mubr.bf16.gmra.mrb[0].mxu0 %v4853
      %v4955 = vpop.f32.mrb[0].mxu0
      %v4956 = vadd.f32 0.0, %v4955
      %v4957 = vpop.f32.mrb[0].mxu0
      %v4958 = vpop.f32.mrb[0].mxu0
      %v4959 = vadd.f32 0.0, %v4958
      %v4960 = vpop.f32.mrb[0].mxu0
      %4961 = vmatprep.mubr.bf16.mxu0 0
      %4962 = vmatmul.mubr.bf16.gmra.mrb[0].mxu0 %v4856
      %v4963 = vpop.f32.mrb[0].mxu0
      %v4964 = vadd.f32 0.0, %v4963
      %v4965 = vpop.f32.mrb[0].mxu0
      %v4966 = vpop.f32.mrb[0].mxu0
      %v4967 = vadd.f32 0.0, %v4966
      %v4968 = vpop.f32.mrb[0].mxu0
      %4969 = vmatprep.mubr.bf16.mxu0 0
      %4970 = vmatmul.mubr.bf16.gmra.mrb[0].mxu0 %v4859
      %v4971 = vpop.f32.mrb[0].mxu0
      %v4972 = vadd.f32 0.0, %v4971
      %v4973 = vpop.f32.mrb[0].mxu0
      %v4974 = vpop.f32.mrb[0].mxu0
      %v4975 = vadd.f32 0.0, %v4974
      %v4976 = vpop.f32.mrb[0].mxu0
      %4977 = vmatprep.mubr.bf16.mxu0 0
      %4978 = vmatmul.mubr.bf16.gmra.mrb[0].mxu0 %v4862
      %v4979 = vpop.f32.mrb[0].mxu0
      %v4980 = vadd.f32 0.0, %v4979
      %v4981 = vpop.f32.mrb[0].mxu0
      %v4982 = vpop.f32.mrb[0].mxu0
      %v4983 = vadd.f32 0.0, %v4982
      %v4984 = vpop.f32.mrb[0].mxu0
      %4985 = vmatprep.mubr.bf16.mxu0 0
      %4986 = vmatmul.mubr.bf16.gmra.mrb[0].mxu0 %v4865
      %v4987 = vpop.f32.mrb[0].mxu0
      %v4988 = vadd.f32 0.0, %v4987
      %v4989 = vpop.f32.mrb[0].mxu0
      %v4990 = vpop.f32.mrb[0].mxu0
      %v4991 = vadd.f32 0.0, %v4990
      %v4992 = vpop.f32.mrb[0].mxu0
      %4993 = vmatprep.mubr.bf16.mxu0 0
      %4994 = vmatmul.mubr.bf16.gmra.mrb[0].mxu0 %v4868
      %v4995 = vpop.f32.mrb[0].mxu0
      %v4996 = vadd.f32 0.0, %v4995
      %v4997 = vpop.f32.mrb[0].mxu0
      %v4998 = vpop.f32.mrb[0].mxu0
      %v4999 = vadd.f32 0.0, %v4998
      %v5000 = vpop.f32.mrb[0].mxu0
      %5001 = vmatprep.mubr.bf16.mxu0 0
      %5002 = vmatmul.mubr.bf16.gmra.mrb[0].mxu0 %v4871
      %v5003 = vpop.f32.mrb[0].mxu0
      %v5004 = vadd.f32 0.0, %v5003
      %v5005 = vpop.f32.mrb[0].mxu0
      %v5006 = vpop.f32.mrb[0].mxu0
      %v5007 = vadd.f32 0.0, %v5006
      %v5008 = vpop.f32.mrb[0].mxu0
      %5009 = vmatprep.mubr.bf16.mxu0 0
      %5010 = vmatmul.mubr.bf16.gmra.mrb[0].mxu0 %v4874
      %v5011 = vpop.f32.mrb[0].mxu0
      %v5012 = vadd.f32 0.0, %v5011
      %v5013 = vpop.f32.mrb[0].mxu0
      %v5014 = vpop.f32.mrb[0].mxu0
      %v5015 = vadd.f32 0.0, %v5014
      %v5016 = vpop.f32.mrb[0].mxu0
      %5017 = vmatprep.mubr.bf16.mxu0 0
      %5018 = vmatmul.mubr.bf16.gmra.mrb[0].mxu0 %v4877
      %v5019 = vpop.f32.mrb[0].mxu0
      %v5020 = vadd.f32 0.0, %v5019
      %v5021 = vpop.f32.mrb[0].mxu0
      %v5022 = vpop.f32.mrb[0].mxu0
      %v5023 = vadd.f32 0.0, %v5022
      %v5024 = vpop.f32.mrb[0].mxu0
      %5025 = vmatprep.mubr.bf16.mxu0 0
      %5026 = vmatmul.mubr.bf16.gmra.mrb[0].mxu0 %v4880
      %v5027 = vpop.f32.mrb[0].mxu0
      %v5028 = vadd.f32 0.0, %v5027
      %v5029 = vpop.f32.mrb[0].mxu0
      %v5030 = vpop.f32.mrb[0].mxu0
      %v5031 = vadd.f32 0.0, %v5030
      %v5032 = vpop.f32.mrb[0].mxu0
      %5033 = vmatprep.mubr.bf16.mxu0 0
      %5034 = vmatmul.mubr.bf16.gmra.mrb[0].mxu0 %v4883
      %v5035 = vpop.f32.mrb[0].mxu0
      %v5036 = vadd.f32 0.0, %v5035
      %v5037 = vpop.f32.mrb[0].mxu0
      %v5038 = vpop.f32.mrb[0].mxu0
      %v5039 = vadd.f32 0.0, %v5038
      %v5040 = vpop.f32.mrb[0].mxu0
      %5041 = vmatprep.mubr.bf16.mxu0 0
      %5042 = vmatmul.mubr.bf16.gmra.mrb[0].mxu0 %v4886
      %v5043 = vpop.f32.mrb[0].mxu0
      %v5044 = vadd.f32 0.0, %v5043
      %v5045 = vpop.f32.mrb[0].mxu0
      %v5046 = vpop.f32.mrb[0].mxu0
      %v5047 = vadd.f32 0.0, %v5046
      %v5048 = vpop.f32.mrb[0].mxu0
      %5049 = vmatprep.mubr.bf16.mxu0 0
      %5050 = vmatmul.mubr.bf16.gmra.mrb[0].mxu0 %v4889
      %v5051 = vpop.f32.mrb[0].mxu0
      %v5052 = vadd.f32 0.0, %v5051
      %v5053 = vpop.f32.mrb[0].mxu0
      %v5054 = vpop.f32.mrb[0].mxu0
      %v5055 = vadd.f32 0.0, %v5054
      %v5056 = vpop.f32.mrb[0].mxu0
      %5057 = vmatprep.mubr.bf16.mxu0 0
      %5058 = vmatmul.mubr.bf16.gmra.mrb[0].mxu0 %v4892
      %v5059 = vpop.f32.mrb[0].mxu0
      %v5060 = vadd.f32 0.0, %v5059
      %v5061 = vpop.f32.mrb[0].mxu0
      %v5062 = vpop.f32.mrb[0].mxu0
      %v5063 = vadd.f32 0.0, %v5062
      %v5064 = vpop.f32.mrb[0].mxu0
      %5065 = vmatprep.mubr.bf16.mxu0 0
      %5066 = vmatmul.mubr.bf16.gmra.mrb[0].mxu0 %v4895
      %v5067 = vpop.f32.mrb[0].mxu0
      %v5068 = vadd.f32 0.0, %v5067
      %v5069 = vpop.f32.mrb[0].mxu0
      %v5070 = vpop.f32.mrb[0].mxu0
      %v5071 = vadd.f32 0.0, %v5070
      %v5072 = vpop.f32.mrb[0].mxu0
      %5073 = vdwg.mxu0
      %v5074 = vadd.f32 %v4716, %v4932
      %v5075 = vadd.f32 %v4717, %v4935
      %v5076 = vadd.f32 %v4718, %v4940
      %v5077 = vadd.f32 %v4719, %v4943
      %v5078 = vadd.f32 %v4720, %v4948
      %v5079 = vadd.f32 %v4721, %v4951
      %v5080 = vadd.f32 %v4722, %v4956
      %v5081 = vadd.f32 %v4723, %v4959
      %v5082 = vadd.f32 %v4724, %v4964
      %v5083 = vadd.f32 %v4725, %v4967
      %v5084 = vadd.f32 %v4726, %v4972
      %v5085 = vadd.f32 %v4727, %v4975
      %v5086 = vadd.f32 %v4728, %v4980
      %v5087 = vadd.f32 %v4729, %v4983
      %v5088 = vadd.f32 %v4730, %v4988
      %v5089 = vadd.f32 %v4731, %v4991
      %v5090 = vadd.f32 %v4732, %v4996
      %v5091 = vadd.f32 %v4733, %v4999
      %v5092 = vadd.f32 %v4734, %v5004
      %v5093 = vadd.f32 %v4735, %v5007
      %v5094 = vadd.f32 %v4736, %v5012
      %v5095 = vadd.f32 %v4737, %v5015
      %v5096 = vadd.f32 %v4738, %v5020
      %v5097 = vadd.f32 %v4739, %v5023
      %v5098 = vadd.f32 %v4740, %v5028
      %v5099 = vadd.f32 %v4741, %v5031
      %v5100 = vadd.f32 %v4742, %v5036
      %v5101 = vadd.f32 %v4743, %v5039
      %v5102 = vadd.f32 %v4744, %v5044
      %v5103 = vadd.f32 %v4745, %v5047
      %v5104 = vadd.f32 %v4746, %v5052
      %v5105 = vadd.f32 %v4747, %v5055
      %v5106 = vadd.f32 %v4748, %v5060
      %v5107 = vadd.f32 %v4749, %v5063
      %v5108 = vadd.f32 %v4750, %v5068
      %v5109 = vadd.f32 %v4751, %v5071
      %v5110 = vlaneseq
      %v5111 = vshrl.u32 %v5110, 7
      %v5112 = vsub.s32 0, %v5111
      %v5113 = vrot.slane %v228, %v5112
      %v5114 = vadd.f32 %v5074, %v5113
      %v5115 = vadd.f32 %v5075, %v5113
      %v5116 = vadd.f32 %v5076, %v5113
      %v5117 = vadd.f32 %v5077, %v5113
      %v5118 = vadd.f32 %v5078, %v5113
      %v5119 = vadd.f32 %v5079, %v5113
      %v5120 = vadd.f32 %v5080, %v5113
      %v5121 = vadd.f32 %v5081, %v5113
      %v5122 = vadd.f32 %v5082, %v5113
      %v5123 = vadd.f32 %v5083, %v5113
      %v5124 = vadd.f32 %v5084, %v5113
      %v5125 = vadd.f32 %v5085, %v5113
      %v5126 = vadd.f32 %v5086, %v5113
      %v5127 = vadd.f32 %v5087, %v5113
      %v5128 = vadd.f32 %v5088, %v5113
      %v5129 = vadd.f32 %v5089, %v5113
      %v5130 = vadd.f32 %v5090, %v5113
      %v5131 = vadd.f32 %v5091, %v5113
      %v5132 = vadd.f32 %v5092, %v5113
      %v5133 = vadd.f32 %v5093, %v5113
      %v5134 = vadd.f32 %v5094, %v5113
      %v5135 = vadd.f32 %v5095, %v5113
      %v5136 = vadd.f32 %v5096, %v5113
      %v5137 = vadd.f32 %v5097, %v5113
      %v5138 = vadd.f32 %v5098, %v5113
      %v5139 = vadd.f32 %v5099, %v5113
      %v5140 = vadd.f32 %v5100, %v5113
      %v5141 = vadd.f32 %v5101, %v5113
      %v5142 = vadd.f32 %v5102, %v5113
      %v5143 = vadd.f32 %v5103, %v5113
      %v5144 = vadd.f32 %v5104, %v5113
      %v5145 = vadd.f32 %v5105, %v5113
      %v5146 = vadd.f32 %v5106, %v5113
      %v5147 = vadd.f32 %v5107, %v5113
      %v5148 = vadd.f32 %v5108, %v5113
      %v5149 = vadd.f32 %v5109, %v5113
      %v5150 = vmax.f32 %v5114, 0.0
      %v5151 = vmax.f32 %v5115, 0.0
      %v5152 = vmax.f32 %v5116, 0.0
      %v5153 = vmax.f32 %v5117, 0.0
      %v5154 = vmax.f32 %v5118, 0.0
      %v5155 = vmax.f32 %v5119, 0.0
      %v5156 = vmax.f32 %v5120, 0.0
      %v5157 = vmax.f32 %v5121, 0.0
      %v5158 = vmax.f32 %v5122, 0.0
      %v5159 = vmax.f32 %v5123, 0.0
      %v5160 = vmax.f32 %v5124, 0.0
      %v5161 = vmax.f32 %v5125, 0.0
      %v5162 = vmax.f32 %v5126, 0.0
      %v5163 = vmax.f32 %v5127, 0.0
      %v5164 = vmax.f32 %v5128, 0.0
      %v5165 = vmax.f32 %v5129, 0.0
      %v5166 = vmax.f32 %v5130, 0.0
      %v5167 = vmax.f32 %v5131, 0.0
      %v5168 = vmax.f32 %v5132, 0.0
      %v5169 = vmax.f32 %v5133, 0.0
      %v5170 = vmax.f32 %v5134, 0.0
      %v5171 = vmax.f32 %v5135, 0.0
      %v5172 = vmax.f32 %v5136, 0.0
      %v5173 = vmax.f32 %v5137, 0.0
      %v5174 = vmax.f32 %v5138, 0.0
      %v5175 = vmax.f32 %v5139, 0.0
      %v5176 = vmax.f32 %v5140, 0.0
      %v5177 = vmax.f32 %v5141, 0.0
      %v5178 = vmax.f32 %v5142, 0.0
      %v5179 = vmax.f32 %v5143, 0.0
      %v5180 = vmax.f32 %v5144, 0.0
      %v5181 = vmax.f32 %v5145, 0.0
      %v5182 = vmax.f32 %v5146, 0.0
      %v5183 = vmax.f32 %v5147, 0.0
      %v5184 = vmax.f32 %v5148, 0.0
      %v5185 = vmax.f32 %v5149, 0.0
      %v5186 = vpack.c.bf16 %v5151, %v5150
      %v5187 = vpack.c.bf16 %v5153, %v5152
      %v5188 = vpack.c.bf16 %v5155, %v5154
      %v5189 = vpack.c.bf16 %v5157, %v5156
      %v5190 = vpack.c.bf16 %v5159, %v5158
      %v5191 = vpack.c.bf16 %v5161, %v5160
      %v5192 = vpack.c.bf16 %v5163, %v5162
      %v5193 = vpack.c.bf16 %v5165, %v5164
      %v5194 = vpack.c.bf16 %v5167, %v5166
      %v5195 = vpack.c.bf16 %v5169, %v5168
      %v5196 = vpack.c.bf16 %v5171, %v5170
      %v5197 = vpack.c.bf16 %v5173, %v5172
      %v5198 = vpack.c.bf16 %v5175, %v5174
      %v5199 = vpack.c.bf16 %v5177, %v5176
      %v5200 = vpack.c.bf16 %v5179, %v5178
      %v5201 = vpack.c.bf16 %v5181, %v5180
      %v5202 = vpack.c.bf16 %v5183, %v5182
      %v5203 = vpack.c.bf16 %v5185, %v5184
      %v5205 = vunpack.c.l.b16 %v5186
      %v5206 = vunpack.c.h.b16 %v5186
      %v5207 = vpack.c.b16 %v5205, %v5205
      %v5208 = vpack.c.b16 %v5206, %v5206
      %v5210 = vshrl.u32 %v5207, 16
      %v5212 = vrot.slane %v5210, 6
      %v5213 = vshll.u32 %v5207, 16
      %v5215 = vrot.slane %v5213, 7
      %v5216 = vor.u32 %v5212, %v5215
      %v5217 = vrot.slane %v5216, 4
      %v5219 = vshrl.u32 %v5208, 16
      %v5221 = vrot.slane %v5219, 6
      %v5222 = vshll.u32 %v5208, 16
      %v5224 = vrot.slane %v5222, 7
      %v5225 = vor.u32 %v5221, %v5224
      %v5226 = vsel %vm708, %v5217, %v5225
      %v5227 = vrot.slane %v5225, 4
      %v5231 = vld [vmem:[#allocation2 + $0x8] sm:$0xe]
      %v5232 = vsel %vm733, %v5216, %v5231
      %5233 = vst [vmem:[#allocation2 + $0x8] sm:$0xe] %v5232
      %5234 = vst.msk [vmem:[#allocation2 + $0xc] sm:$0xf] %vm656, %v5226
      %v5235 = vld [vmem:[#allocation2 + $0x10] sm:$0x3]
      %v5236 = vsel %vm739, %v5227, %v5235
      %5237 = vst [vmem:[#allocation2 + $0x10] sm:$0x3] %v5236
      %v5240 = vunpack.c.l.b16 %v5187
      %v5241 = vunpack.c.h.b16 %v5187
      %v5242 = vunpack.c.l.b16 %v5188
      %v5243 = vpack.c.b16 %v5240, %v5240
      %v5244 = vpack.c.b16 %v5241, %v5241
      %v5245 = vpack.c.b16 %v5242, %v5242
      %v5247 = vshrl.u32 %v5243, 16
      %v5249 = vrot.slane %v5247, 6
      %v5250 = vshll.u32 %v5243, 16
      %v5252 = vrot.slane %v5250, 7
      %v5253 = vor.u32 %v5249, %v5252
      %v5254 = vrot.slane %v5253, 4
      %v5256 = vshrl.u32 %v5244, 16
      %v5258 = vrot.slane %v5256, 6
      %v5259 = vshll.u32 %v5244, 16
      %v5261 = vrot.slane %v5259, 7
      %v5262 = vor.u32 %v5258, %v5261
      %v5263 = vsel %vm708, %v5254, %v5262
      %v5264 = vrot.slane %v5262, 4
      %v5266 = vshrl.u32 %v5245, 16
      %v5268 = vrot.slane %v5266, 6
      %v5269 = vshll.u32 %v5245, 16
      %v5271 = vrot.slane %v5269, 7
      %v5272 = vor.u32 %v5268, %v5271
      %v5273 = vsel %vm708, %v5264, %v5272
      %v5277 = vld [vmem:[#allocation2 + $0x10] sm:$0xc]
      %v5278 = vsel %vm775, %v5253, %v5277
      %5279 = vst [vmem:[#allocation2 + $0x10] sm:$0xc] %v5278
      %5280 = vst.msk [vmem:[#allocation2 + $0x14] sm:$0xf] %vm656, %v5263
      %v5281 = vld [vmem:[#allocation2 + $0x18] sm:$0x7]
      %v5282 = vsel %vm781, %v5273, %v5281
      %5283 = vst [vmem:[#allocation2 + $0x18] sm:$0x7] %v5282
      %v5285 = vunpack.c.h.b16 %v5188
      %v5286 = vunpack.c.l.b16 %v5189
      %v5287 = vpack.c.b16 %v5285, %v5285
      %v5288 = vpack.c.b16 %v5286, %v5286
      %v5289 = vrot.slane %v5272, 4
      %v5291 = vshrl.u32 %v5287, 16
      %v5293 = vrot.slane %v5291, 6
      %v5294 = vshll.u32 %v5287, 16
      %v5296 = vrot.slane %v5294, 7
      %v5297 = vor.u32 %v5293, %v5296
      %v5298 = vsel %vm708, %v5289, %v5297
      %v5299 = vrot.slane %v5297, 4
      %v5301 = vshrl.u32 %v5288, 16
      %v5303 = vrot.slane %v5301, 6
      %v5304 = vshll.u32 %v5288, 16
      %v5306 = vrot.slane %v5304, 7
      %v5307 = vor.u32 %v5303, %v5306
      %v5308 = vsel %vm708, %v5299, %v5307
      %v5312 = vld [vmem:[#allocation2 + $0x18] sm:$0x8]
      %v5313 = vsel %vm817, %v5271, %v5312
      %5314 = vst [vmem:[#allocation2 + $0x18] sm:$0x8] %v5313
      %5315 = vst.msk [vmem:[#allocation2 + $0x1c] sm:$0xf] %vm656, %v5298
      %v5316 = vld [vmem:[#allocation2 + $0x20] sm:$0xf]
      %v5317 = vsel %vm823, %v5308, %v5316
      %5318 = vst [vmem:[#allocation2 + $0x20] sm:$0xf] %v5317
      %v5320 = vunpack.c.h.b16 %v5189
      %v5321 = vunpack.c.l.b16 %v5190
      %v5322 = vpack.c.b16 %v5320, %v5320
      %v5323 = vpack.c.b16 %v5321, %v5321
      %v5324 = vrot.slane %v5307, 4
      %v5326 = vshrl.u32 %v5322, 16
      %v5328 = vrot.slane %v5326, 6
      %v5329 = vshll.u32 %v5322, 16
      %v5331 = vrot.slane %v5329, 7
      %v5332 = vor.u32 %v5328, %v5331
      %v5333 = vsel %vm708, %v5324, %v5332
      %v5334 = vrot.slane %v5332, 4
      %v5336 = vshrl.u32 %v5323, 16
      %v5338 = vrot.slane %v5336, 6
      %v5339 = vshll.u32 %v5323, 16
      %v5341 = vrot.slane %v5339, 7
      %v5342 = vor.u32 %v5338, %v5341
      %v5343 = vsel %vm708, %v5334, %v5342
      %v5344 = vrot.slane %v5338, 4
      %v5348 = vld [vmem:[#allocation2 + $0x24] sm:$0xf]
      %v5349 = vsel %vm856, %v5333, %v5348
      %5350 = vst [vmem:[#allocation2 + $0x24] sm:$0xf] %v5349
      %5351 = vst.msk [vmem:[#allocation2 + $0x28] sm:$0xf] %vm656, %v5343
      %v5352 = vld [vmem:[#allocation2 + $0x2c] sm:$0x1]
      %v5353 = vsel %vm862, %v5344, %v5352
      %5354 = vst [vmem:[#allocation2 + $0x2c] sm:$0x1] %v5353
      %v5356 = vunpack.c.h.b16 %v5190
      %v5357 = vunpack.c.l.b16 %v5191
      %v5358 = vpack.c.b16 %v5356, %v5356
      %v5359 = vpack.c.b16 %v5357, %v5357
      %v5361 = vshrl.u32 %v5358, 16
      %v5363 = vrot.slane %v5361, 6
      %v5364 = vshll.u32 %v5358, 16
      %v5366 = vrot.slane %v5364, 7
      %v5367 = vor.u32 %v5363, %v5366
      %v5368 = vrot.slane %v5367, 4
      %v5370 = vshrl.u32 %v5359, 16
      %v5372 = vrot.slane %v5370, 6
      %v5373 = vshll.u32 %v5359, 16
      %v5375 = vrot.slane %v5373, 7
      %v5376 = vor.u32 %v5372, %v5375
      %v5377 = vsel %vm708, %v5368, %v5376
      %v5378 = vrot.slane %v5376, 4
      %v5382 = vld [vmem:[#allocation2 + $0x2c] sm:$0xe]
      %v5383 = vsel %vm733, %v5367, %v5382
      %5384 = vst [vmem:[#allocation2 + $0x2c] sm:$0xe] %v5383
      %5385 = vst.msk [vmem:[#allocation2 + $0x30] sm:$0xf] %vm656, %v5377
      %v5386 = vld [vmem:[#allocation2 + $0x34] sm:$0x3]
      %v5387 = vsel %vm739, %v5378, %v5386
      %5388 = vst [vmem:[#allocation2 + $0x34] sm:$0x3] %v5387
      %v5390 = vunpack.c.h.b16 %v5191
      %v5391 = vunpack.c.l.b16 %v5192
      %v5392 = vunpack.c.h.b16 %v5192
      %v5393 = vpack.c.b16 %v5390, %v5390
      %v5394 = vpack.c.b16 %v5391, %v5391
      %v5395 = vpack.c.b16 %v5392, %v5392
      %v5397 = vshrl.u32 %v5393, 16
      %v5399 = vrot.slane %v5397, 6
      %v5400 = vshll.u32 %v5393, 16
      %v5402 = vrot.slane %v5400, 7
      %v5403 = vor.u32 %v5399, %v5402
      %v5404 = vrot.slane %v5403, 4
      %v5406 = vshrl.u32 %v5394, 16
      %v5408 = vrot.slane %v5406, 6
      %v5409 = vshll.u32 %v5394, 16
      %v5411 = vrot.slane %v5409, 7
      %v5412 = vor.u32 %v5408, %v5411
      %v5413 = vsel %vm708, %v5404, %v5412
      %v5414 = vrot.slane %v5412, 4
      %v5416 = vshrl.u32 %v5395, 16
      %v5418 = vrot.slane %v5416, 6
      %v5419 = vshll.u32 %v5395, 16
      %v5421 = vrot.slane %v5419, 7
      %v5422 = vor.u32 %v5418, %v5421
      %v5423 = vsel %vm708, %v5414, %v5422
      %v5427 = vld [vmem:[#allocation2 + $0x34] sm:$0xc]
      %v5428 = vsel %vm775, %v5403, %v5427
      %5429 = vst [vmem:[#allocation2 + $0x34] sm:$0xc] %v5428
      %5430 = vst.msk [vmem:[#allocation2 + $0x38] sm:$0xf] %vm656, %v5413
      %v5431 = vld [vmem:[#allocation2 + $0x3c] sm:$0x7]
      %v5432 = vsel %vm781, %v5423, %v5431
      %5433 = vst [vmem:[#allocation2 + $0x3c] sm:$0x7] %v5432
      %v5435 = vunpack.c.l.b16 %v5193
      %v5436 = vunpack.c.h.b16 %v5193
      %v5437 = vpack.c.b16 %v5435, %v5435
      %v5438 = vpack.c.b16 %v5436, %v5436
      %v5439 = vrot.slane %v5422, 4
      %v5441 = vshrl.u32 %v5437, 16
      %v5443 = vrot.slane %v5441, 6
      %v5444 = vshll.u32 %v5437, 16
      %v5446 = vrot.slane %v5444, 7
      %v5447 = vor.u32 %v5443, %v5446
      %v5448 = vsel %vm708, %v5439, %v5447
      %v5449 = vrot.slane %v5447, 4
      %v5451 = vshrl.u32 %v5438, 16
      %v5453 = vrot.slane %v5451, 6
      %v5454 = vshll.u32 %v5438, 16
      %v5456 = vrot.slane %v5454, 7
      %v5457 = vor.u32 %v5453, %v5456
      %v5458 = vsel %vm708, %v5449, %v5457
      %v5462 = vld [vmem:[#allocation2 + $0x3c] sm:$0x8]
      %v5463 = vsel %vm817, %v5421, %v5462
      %5464 = vst [vmem:[#allocation2 + $0x3c] sm:$0x8] %v5463
      %5465 = vst.msk [vmem:[#allocation2 + $0x40] sm:$0xf] %vm656, %v5448
      %v5466 = vld [vmem:[#allocation2 + $0x44] sm:$0xf]
      %v5467 = vsel %vm823, %v5458, %v5466
      %5468 = vst [vmem:[#allocation2 + $0x44] sm:$0xf] %v5467
      %v5470 = vunpack.c.l.b16 %v5194
      %v5471 = vunpack.c.h.b16 %v5194
      %v5472 = vpack.c.b16 %v5470, %v5470
      %v5473 = vpack.c.b16 %v5471, %v5471
      %v5474 = vrot.slane %v5457, 4
      %v5476 = vshrl.u32 %v5472, 16
      %v5478 = vrot.slane %v5476, 6
      %v5479 = vshll.u32 %v5472, 16
      %v5481 = vrot.slane %v5479, 7
      %v5482 = vor.u32 %v5478, %v5481
      %v5483 = vsel %vm708, %v5474, %v5482
      %v5484 = vrot.slane %v5482, 4
      %v5486 = vshrl.u32 %v5473, 16
      %v5488 = vrot.slane %v5486, 6
      %v5489 = vshll.u32 %v5473, 16
      %v5491 = vrot.slane %v5489, 7
      %v5492 = vor.u32 %v5488, %v5491
      %v5493 = vsel %vm708, %v5484, %v5492
      %v5494 = vrot.slane %v5488, 4
      %v5498 = vld [vmem:[#allocation2 + $0x48] sm:$0xf]
      %v5499 = vsel %vm856, %v5483, %v5498
      %5500 = vst [vmem:[#allocation2 + $0x48] sm:$0xf] %v5499
      %5501 = vst.msk [vmem:[#allocation2 + $0x4c] sm:$0xf] %vm656, %v5493
      %v5502 = vld [vmem:[#allocation2 + $0x50] sm:$0x1]
      %v5503 = vsel %vm862, %v5494, %v5502
      %5504 = vst [vmem:[#allocation2 + $0x50] sm:$0x1] %v5503
      %v5506 = vunpack.c.l.b16 %v5195
      %v5507 = vunpack.c.h.b16 %v5195
      %v5508 = vpack.c.b16 %v5506, %v5506
      %v5509 = vpack.c.b16 %v5507, %v5507
      %v5511 = vshrl.u32 %v5508, 16
      %v5513 = vrot.slane %v5511, 6
      %v5514 = vshll.u32 %v5508, 16
      %v5516 = vrot.slane %v5514, 7
      %v5517 = vor.u32 %v5513, %v5516
      %v5518 = vrot.slane %v5517, 4
      %v5520 = vshrl.u32 %v5509, 16
      %v5522 = vrot.slane %v5520, 6
      %v5523 = vshll.u32 %v5509, 16
      %v5525 = vrot.slane %v5523, 7
      %v5526 = vor.u32 %v5522, %v5525
      %v5527 = vsel %vm708, %v5518, %v5526
      %v5528 = vrot.slane %v5526, 4
      %v5532 = vld [vmem:[#allocation2 + $0x50] sm:$0xe]
      %v5533 = vsel %vm733, %v5517, %v5532
      %5534 = vst [vmem:[#allocation2 + $0x50] sm:$0xe] %v5533
      %5535 = vst.msk [vmem:[#allocation2 + $0x54] sm:$0xf] %vm656, %v5527
      %v5536 = vld [vmem:[#allocation2 + $0x58] sm:$0x3]
      %v5537 = vsel %vm739, %v5528, %v5536
      %5538 = vst [vmem:[#allocation2 + $0x58] sm:$0x3] %v5537
      %v5541 = vunpack.c.l.b16 %v5196
      %v5542 = vunpack.c.h.b16 %v5196
      %v5543 = vunpack.c.l.b16 %v5197
      %v5544 = vpack.c.b16 %v5541, %v5541
      %v5545 = vpack.c.b16 %v5542, %v5542
      %v5546 = vpack.c.b16 %v5543, %v5543
      %v5548 = vshrl.u32 %v5544, 16
      %v5550 = vrot.slane %v5548, 6
      %v5551 = vshll.u32 %v5544, 16
      %v5553 = vrot.slane %v5551, 7
      %v5554 = vor.u32 %v5550, %v5553
      %v5555 = vrot.slane %v5554, 4
      %v5557 = vshrl.u32 %v5545, 16
      %v5559 = vrot.slane %v5557, 6
      %v5560 = vshll.u32 %v5545, 16
      %v5562 = vrot.slane %v5560, 7
      %v5563 = vor.u32 %v5559, %v5562
      %v5564 = vsel %vm708, %v5555, %v5563
      %v5565 = vrot.slane %v5563, 4
      %v5567 = vshrl.u32 %v5546, 16
      %v5569 = vrot.slane %v5567, 6
      %v5570 = vshll.u32 %v5546, 16
      %v5572 = vrot.slane %v5570, 7
      %v5573 = vor.u32 %v5569, %v5572
      %v5574 = vsel %vm708, %v5565, %v5573
      %v5578 = vld [vmem:[#allocation2 + $0x58] sm:$0xc]
      %v5579 = vsel %vm775, %v5554, %v5578
      %5580 = vst [vmem:[#allocation2 + $0x58] sm:$0xc] %v5579
      %5581 = vst.msk [vmem:[#allocation2 + $0x5c] sm:$0xf] %vm656, %v5564
      %v5582 = vld [vmem:[#allocation2 + $0x60] sm:$0x7]
      %v5583 = vsel %vm781, %v5574, %v5582
      %5584 = vst [vmem:[#allocation2 + $0x60] sm:$0x7] %v5583
      %v5586 = vunpack.c.h.b16 %v5197
      %v5587 = vunpack.c.l.b16 %v5198
      %v5588 = vpack.c.b16 %v5586, %v5586
      %v5589 = vpack.c.b16 %v5587, %v5587
      %v5590 = vrot.slane %v5573, 4
      %v5592 = vshrl.u32 %v5588, 16
      %v5594 = vrot.slane %v5592, 6
      %v5595 = vshll.u32 %v5588, 16
      %v5597 = vrot.slane %v5595, 7
      %v5598 = vor.u32 %v5594, %v5597
      %v5599 = vsel %vm708, %v5590, %v5598
      %v5600 = vrot.slane %v5598, 4
      %v5602 = vshrl.u32 %v5589, 16
      %v5604 = vrot.slane %v5602, 6
      %v5605 = vshll.u32 %v5589, 16
      %v5607 = vrot.slane %v5605, 7
      %v5608 = vor.u32 %v5604, %v5607
      %v5609 = vsel %vm708, %v5600, %v5608
      %v5613 = vld [vmem:[#allocation2 + $0x60] sm:$0x8]
      %v5614 = vsel %vm817, %v5572, %v5613
      %5615 = vst [vmem:[#allocation2 + $0x60] sm:$0x8] %v5614
      %5616 = vst.msk [vmem:[#allocation2 + $0x64] sm:$0xf] %vm656, %v5599
      %v5617 = vld [vmem:[#allocation2 + $0x68] sm:$0xf]
      %v5618 = vsel %vm823, %v5609, %v5617
      %5619 = vst [vmem:[#allocation2 + $0x68] sm:$0xf] %v5618
      %v5621 = vunpack.c.h.b16 %v5198
      %v5622 = vunpack.c.l.b16 %v5199
      %v5623 = vpack.c.b16 %v5621, %v5621
      %v5624 = vpack.c.b16 %v5622, %v5622
      %v5625 = vrot.slane %v5608, 4
      %v5627 = vshrl.u32 %v5623, 16
      %v5629 = vrot.slane %v5627, 6
      %v5630 = vshll.u32 %v5623, 16
      %v5632 = vrot.slane %v5630, 7
      %v5633 = vor.u32 %v5629, %v5632
      %v5634 = vsel %vm708, %v5625, %v5633
      %v5635 = vrot.slane %v5633, 4
      %v5637 = vshrl.u32 %v5624, 16
      %v5639 = vrot.slane %v5637, 6
      %v5640 = vshll.u32 %v5624, 16
      %v5642 = vrot.slane %v5640, 7
      %v5643 = vor.u32 %v5639, %v5642
      %v5644 = vsel %vm708, %v5635, %v5643
      %v5645 = vrot.slane %v5639, 4
      %v5649 = vld [vmem:[#allocation2 + $0x6c] sm:$0xf]
      %v5650 = vsel %vm856, %v5634, %v5649
      %5651 = vst [vmem:[#allocation2 + $0x6c] sm:$0xf] %v5650
      %5652 = vst.msk [vmem:[#allocation2 + $0x70] sm:$0xf] %vm656, %v5644
      %v5653 = vld [vmem:[#allocation2 + $0x74] sm:$0x1]
      %v5654 = vsel %vm862, %v5645, %v5653
      %5655 = vst [vmem:[#allocation2 + $0x74] sm:$0x1] %v5654
      %v5657 = vunpack.c.h.b16 %v5199
      %v5658 = vunpack.c.l.b16 %v5200
      %v5659 = vpack.c.b16 %v5657, %v5657
      %v5660 = vpack.c.b16 %v5658, %v5658
      %v5662 = vshrl.u32 %v5659, 16
      %v5664 = vrot.slane %v5662, 6
      %v5665 = vshll.u32 %v5659, 16
      %v5667 = vrot.slane %v5665, 7
      %v5668 = vor.u32 %v5664, %v5667
      %v5669 = vrot.slane %v5668, 4
      %v5671 = vshrl.u32 %v5660, 16
      %v5673 = vrot.slane %v5671, 6
      %v5674 = vshll.u32 %v5660, 16
      %v5676 = vrot.slane %v5674, 7
      %v5677 = vor.u32 %v5673, %v5676
      %v5678 = vsel %vm708, %v5669, %v5677
      %v5679 = vrot.slane %v5677, 4
      %v5683 = vld [vmem:[#allocation2 + $0x74] sm:$0xe]
      %v5684 = vsel %vm733, %v5668, %v5683
      %5685 = vst [vmem:[#allocation2 + $0x74] sm:$0xe] %v5684
      %5686 = vst.msk [vmem:[#allocation2 + $0x78] sm:$0xf] %vm656, %v5678
      %v5687 = vld [vmem:[#allocation2 + $0x7c] sm:$0x3]
      %v5688 = vsel %vm739, %v5679, %v5687
      %5689 = vst [vmem:[#allocation2 + $0x7c] sm:$0x3] %v5688
      %v5691 = vunpack.c.h.b16 %v5200
      %v5692 = vunpack.c.l.b16 %v5201
      %v5693 = vunpack.c.h.b16 %v5201
      %v5694 = vpack.c.b16 %v5691, %v5691
      %v5695 = vpack.c.b16 %v5692, %v5692
      %v5696 = vpack.c.b16 %v5693, %v5693
      %v5698 = vshrl.u32 %v5694, 16
      %v5700 = vrot.slane %v5698, 6
      %v5701 = vshll.u32 %v5694, 16
      %v5703 = vrot.slane %v5701, 7
      %v5704 = vor.u32 %v5700, %v5703
      %v5705 = vrot.slane %v5704, 4
      %v5707 = vshrl.u32 %v5695, 16
      %v5709 = vrot.slane %v5707, 6
      %v5710 = vshll.u32 %v5695, 16
      %v5712 = vrot.slane %v5710, 7
      %v5713 = vor.u32 %v5709, %v5712
      %v5714 = vsel %vm708, %v5705, %v5713
      %v5715 = vrot.slane %v5713, 4
      %v5717 = vshrl.u32 %v5696, 16
      %v5719 = vrot.slane %v5717, 6
      %v5720 = vshll.u32 %v5696, 16
      %v5722 = vrot.slane %v5720, 7
      %v5723 = vor.u32 %v5719, %v5722
      %v5724 = vsel %vm708, %v5715, %v5723
      %v5728 = vld [vmem:[#allocation2 + $0x7c] sm:$0xc]
      %v5729 = vsel %vm775, %v5704, %v5728
      %5730 = vst [vmem:[#allocation2 + $0x7c] sm:$0xc] %v5729
      %5731 = vst.msk [vmem:[#allocation2 + $0x80] sm:$0xf] %vm656, %v5714
      %v5732 = vld [vmem:[#allocation2 + $0x84] sm:$0x7]
      %v5733 = vsel %vm781, %v5724, %v5732
      %5734 = vst [vmem:[#allocation2 + $0x84] sm:$0x7] %v5733
      %v5736 = vunpack.c.l.b16 %v5202
      %v5737 = vunpack.c.h.b16 %v5202
      %v5738 = vpack.c.b16 %v5736, %v5736
      %v5739 = vpack.c.b16 %v5737, %v5737
      %v5740 = vrot.slane %v5723, 4
      %v5742 = vshrl.u32 %v5738, 16
      %v5744 = vrot.slane %v5742, 6
      %v5745 = vshll.u32 %v5738, 16
      %v5747 = vrot.slane %v5745, 7
      %v5748 = vor.u32 %v5744, %v5747
      %v5749 = vsel %vm708, %v5740, %v5748
      %v5750 = vrot.slane %v5748, 4
      %v5752 = vshrl.u32 %v5739, 16
      %v5754 = vrot.slane %v5752, 6
      %v5755 = vshll.u32 %v5739, 16
      %v5757 = vrot.slane %v5755, 7
      %v5758 = vor.u32 %v5754, %v5757
      %v5759 = vsel %vm708, %v5750, %v5758
      %v5763 = vld [vmem:[#allocation2 + $0x84] sm:$0x8]
      %v5764 = vsel %vm817, %v5722, %v5763
      %5765 = vst [vmem:[#allocation2 + $0x84] sm:$0x8] %v5764
      %5766 = vst.msk [vmem:[#allocation2 + $0x88] sm:$0xf] %vm656, %v5749
      %v5767 = vld [vmem:[#allocation2 + $0x8c] sm:$0xf]
      %v5768 = vsel %vm823, %v5759, %v5767
      %5769 = vst [vmem:[#allocation2 + $0x8c] sm:$0xf] %v5768
      %v5771 = vunpack.c.l.b16 %v5203
      %v5772 = vunpack.c.h.b16 %v5203
      %v5773 = vpack.c.b16 %v5771, %v5771
      %v5774 = vpack.c.b16 %v5772, %v5772
      %v5775 = vrot.slane %v5758, 4
      %v5777 = vshrl.u32 %v5773, 16
      %v5779 = vrot.slane %v5777, 6
      %v5780 = vshll.u32 %v5773, 16
      %v5782 = vrot.slane %v5780, 7
      %v5783 = vor.u32 %v5779, %v5782
      %v5784 = vsel %vm708, %v5775, %v5783
      %v5785 = vrot.slane %v5783, 4
      %v5787 = vshrl.u32 %v5774, 16
      %v5789 = vrot.slane %v5787, 6
      %v5790 = vshll.u32 %v5774, 16
      %v5792 = vrot.slane %v5790, 7
      %v5793 = vor.u32 %v5789, %v5792
      %v5794 = vsel %vm708, %v5785, %v5793
      %v5795 = vrot.slane %v5789, 4
      %v5799 = vld [vmem:[#allocation2 + $0x90] sm:$0xf]
      %v5800 = vsel %vm856, %v5784, %v5799
      %5801 = vst [vmem:[#allocation2 + $0x90] sm:$0xf] %v5800
      %5802 = vst.msk [vmem:[#allocation2 + $0x94] sm:$0xf] %vm656, %v5794
      %v5803 = vld [vmem:[#allocation2 + $0x98] sm:$0x1]
      %v5804 = vsel %vm862, %v5795, %v5803
      %5805 = vst [vmem:[#allocation2 + $0x98] sm:$0x1] %v5804
      %v5806 = vld [vmem:[#allocation2] sm:$0xf]
      %v5807 = vld [vmem:[#allocation2 + $0x4] sm:$0xf]
      %v5808 = vld [vmem:[#allocation2 + $0x8] sm:$0xf]
      %v5809 = vld [vmem:[#allocation2 + $0xc] sm:$0xf]
      %v5810 = vld [vmem:[#allocation2 + $0x10] sm:$0xf]
      %v5811 = vld [vmem:[#allocation2 + $0x14] sm:$0xf]
      %v5812 = vld [vmem:[#allocation2 + $0x18] sm:$0xf]
      %v5813 = vld [vmem:[#allocation2 + $0x1c] sm:$0xf]
      %v5814 = vld [vmem:[#allocation2 + $0x20] sm:$0xf]
      %v5815 = vld [vmem:[#allocation2 + $0x24] sm:$0xf]
      %v5816 = vld [vmem:[#allocation2 + $0x28] sm:$0xf]
      %v5817 = vld [vmem:[#allocation2 + $0x2c] sm:$0xf]
      %v5818 = vld [vmem:[#allocation2 + $0x30] sm:$0xf]
      %v5819 = vld [vmem:[#allocation2 + $0x34] sm:$0xf]
      %v5820 = vld [vmem:[#allocation2 + $0x38] sm:$0xf]
      %v5821 = vld [vmem:[#allocation2 + $0x3c] sm:$0xf]
      %v5822 = vld [vmem:[#allocation2 + $0x40] sm:$0xf]
      %v5823 = vld [vmem:[#allocation2 + $0x44] sm:$0xf]
      %v5824 = vld [vmem:[#allocation2 + $0x48] sm:$0xf]
      %v5825 = vld [vmem:[#allocation2 + $0x4c] sm:$0xf]
      %v5826 = vld [vmem:[#allocation2 + $0x50] sm:$0xf]
      %v5827 = vld [vmem:[#allocation2 + $0x54] sm:$0xf]
      %v5828 = vld [vmem:[#allocation2 + $0x58] sm:$0xf]
      %v5829 = vld [vmem:[#allocation2 + $0x5c] sm:$0xf]
      %v5830 = vld [vmem:[#allocation2 + $0x60] sm:$0xf]
      %v5831 = vld [vmem:[#allocation2 + $0x64] sm:$0xf]
      %v5832 = vld [vmem:[#allocation2 + $0x68] sm:$0xf]
      %v5833 = vld [vmem:[#allocation2 + $0x6c] sm:$0xf]
      %v5834 = vld [vmem:[#allocation2 + $0x70] sm:$0xf]
      %v5835 = vld [vmem:[#allocation2 + $0x74] sm:$0xf]
      %v5836 = vld [vmem:[#allocation2 + $0x78] sm:$0xf]
      %v5837 = vld [vmem:[#allocation2 + $0x7c] sm:$0xf]
      %v5838 = vld [vmem:[#allocation2 + $0x80] sm:$0xf]
      %v5839 = vld [vmem:[#allocation2 + $0x84] sm:$0xf]
      %v5840 = vld [vmem:[#allocation2 + $0x88] sm:$0xf]
      %v5841 = vld [vmem:[#allocation2 + $0x8c] sm:$0xf]
      %v5842 = vld [vmem:[%s4] sm:$0xf]
      %v5843 = vld [vmem:[%s4 + $0x4] sm:$0xf]
      %v5844 = vld [vmem:[%s4 + $0x8] sm:$0xf]
      %v5845 = vld [vmem:[%s4 + $0xc] sm:$0xf]
      %v5846 = vld [vmem:[%s4 + $0x10] sm:$0xf]
      %v5847 = vld [vmem:[%s4 + $0x14] sm:$0xf]
      %v5848 = vld [vmem:[%s4 + $0x18] sm:$0xf]
      %v5849 = vld [vmem:[%s4 + $0x1c] sm:$0xf]
      %v5850 = vld [vmem:[%s4 + $0x20] sm:$0xf]
      %v5851 = vld [vmem:[%s4 + $0x24] sm:$0xf]
      %v5852 = vld [vmem:[%s4 + $0x28] sm:$0xf]
      %v5853 = vld [vmem:[%s4 + $0x2c] sm:$0xf]
      %v5854 = vld [vmem:[#allocation2 + $0x90] sm:$0x1]
      %s5855 = scalar_lea.vmem %s4, 48
      %v5856 = vld [vmem:[%s5855] sm:$0xf]
      %v5857 = vld [vmem:[%s5855 + $0x4] sm:$0xf]
      %v5858 = vld [vmem:[%s5855 + $0x8] sm:$0xf]
      %v5859 = vld [vmem:[%s5855 + $0xc] sm:$0xf]
      %v5860 = vld [vmem:[%s5855 + $0x10] sm:$0xf]
      %v5861 = vld [vmem:[%s5855 + $0x14] sm:$0xf]
      %v5862 = vld [vmem:[%s5855 + $0x18] sm:$0xf]
      %v5863 = vld [vmem:[%s5855 + $0x1c] sm:$0xf]
      %v5864 = vld [vmem:[%s5855 + $0x20] sm:$0xf]
      %v5865 = vld [vmem:[%s5855 + $0x24] sm:$0xf]
      %v5866 = vld [vmem:[%s5855 + $0x28] sm:$0xf]
      %v5867 = vld [vmem:[%s5855 + $0x2c] sm:$0xf]
      %v5905 = vunpack.c.l.b16 %v5806
      %v5906 = vunpack.c.l.b16 %v5807
      %v5907 = vunpack.c.l.b16 %v5808
      %v5908 = vunpack.c.l.b16 %v5809
      %v5909 = vunpack.c.l.b16 %v5810
      %v5910 = vunpack.c.l.b16 %v5811
      %v5911 = vunpack.c.l.b16 %v5812
      %v5912 = vunpack.c.l.b16 %v5813
      %v5913 = vunpack.c.l.b16 %v5814
      %v5914 = vunpack.c.l.b16 %v5815
      %v5915 = vunpack.c.l.b16 %v5816
      %v5916 = vunpack.c.l.b16 %v5817
      %v5917 = vunpack.c.l.b16 %v5818
      %v5918 = vunpack.c.l.b16 %v5819
      %v5919 = vunpack.c.l.b16 %v5820
      %v5920 = vunpack.c.l.b16 %v5821
      %v5921 = vunpack.c.l.b16 %v5822
      %v5922 = vunpack.c.l.b16 %v5823
      %v5923 = vunpack.c.l.b16 %v5824
      %v5924 = vunpack.c.l.b16 %v5825
      %v5925 = vunpack.c.l.b16 %v5826
      %v5926 = vunpack.c.l.b16 %v5827
      %v5927 = vunpack.c.l.b16 %v5828
      %v5928 = vunpack.c.l.b16 %v5829
      %v5929 = vunpack.c.l.b16 %v5830
      %v5930 = vunpack.c.l.b16 %v5831
      %v5931 = vunpack.c.l.b16 %v5832
      %v5932 = vunpack.c.l.b16 %v5833
      %v5933 = vunpack.c.l.b16 %v5834
      %v5934 = vunpack.c.l.b16 %v5835
      %v5935 = vunpack.c.l.b16 %v5836
      %v5936 = vunpack.c.l.b16 %v5837
      %v5937 = vunpack.c.l.b16 %v5838
      %v5938 = vunpack.c.l.b16 %v5839
      %v5939 = vunpack.c.l.b16 %v5840
      %v5940 = vunpack.c.l.b16 %v5841
      %v5941 = vunpack.c.l.b16 %v5854
      %v5942 = vpack.c.b16 %v5906, %v5905
      %v5943 = vpack.c.b16 %v5908, %v5907
      %v5944 = vpack.c.b16 %v5910, %v5909
      %v5945 = vpack.c.b16 %v5912, %v5911
      %v5946 = vpack.c.b16 %v5914, %v5913
      %v5947 = vpack.c.b16 %v5916, %v5915
      %v5948 = vpack.c.b16 %v5918, %v5917
      %v5949 = vpack.c.b16 %v5920, %v5919
      %v5950 = vpack.c.b16 %v5922, %v5921
      %v5951 = vpack.c.b16 %v5924, %v5923
      %v5952 = vpack.c.b16 %v5926, %v5925
      %v5953 = vpack.c.b16 %v5928, %v5927
      %v5954 = vpack.c.b16 %v5930, %v5929
      %v5955 = vpack.c.b16 %v5932, %v5931
      %v5956 = vpack.c.b16 %v5934, %v5933
      %v5957 = vpack.c.b16 %v5936, %v5935
      %v5958 = vpack.c.b16 %v5938, %v5937
      %v5959 = vpack.c.b16 %v5940, %v5939
      %v5960 = vpack.c.b16 %v5941, %v5941
      %v5962 = vshrl.u32 %v5942, 16
      %v5964 = vshll.u32 %v5942, 16
      %v5966 = vrot.slane %v5964, 1
      %v5967 = vor.u32 %v5962, %v5966
      %v5969 = vshll.u32 %v5943, 16
      %v5971 = vrot.slane %v5969, 1
      %v5972 = vsel %vm1423, %v5967, %v5971
      %v5973 = vshrl.u32 %v5943, 16
      %v5975 = vor.u32 %v5973, %v5971
      %v5977 = vshll.u32 %v5944, 16
      %v5979 = vrot.slane %v5977, 1
      %v5980 = vsel %vm1423, %v5975, %v5979
      %v5981 = vshrl.u32 %v5944, 16
      %v5983 = vor.u32 %v5981, %v5979
      %v5985 = vshll.u32 %v5945, 16
      %v5987 = vrot.slane %v5985, 1
      %v5988 = vsel %vm1423, %v5983, %v5987
      %v5989 = vshrl.u32 %v5945, 16
      %v5991 = vor.u32 %v5989, %v5987
      %v5993 = vshll.u32 %v5946, 16
      %v5995 = vrot.slane %v5993, 1
      %v5996 = vsel %vm1423, %v5991, %v5995
      %v5997 = vshrl.u32 %v5946, 16
      %v5999 = vor.u32 %v5997, %v5995
      %v6001 = vshll.u32 %v5947, 16
      %v6003 = vrot.slane %v6001, 1
      %v6004 = vsel %vm1423, %v5999, %v6003
      %v6005 = vshrl.u32 %v5947, 16
      %v6007 = vor.u32 %v6005, %v6003
      %v6009 = vshll.u32 %v5948, 16
      %v6011 = vrot.slane %v6009, 1
      %v6012 = vsel %vm1423, %v6007, %v6011
      %v6013 = vshrl.u32 %v5948, 16
      %v6015 = vor.u32 %v6013, %v6011
      %v6017 = vshll.u32 %v5949, 16
      %v6019 = vrot.slane %v6017, 1
      %v6020 = vsel %vm1423, %v6015, %v6019
      %v6021 = vshrl.u32 %v5949, 16
      %v6023 = vor.u32 %v6021, %v6019
      %v6025 = vshll.u32 %v5950, 16
      %v6027 = vrot.slane %v6025, 1
      %v6028 = vsel %vm1423, %v6023, %v6027
      %v6029 = vshrl.u32 %v5950, 16
      %v6031 = vor.u32 %v6029, %v6027
      %v6033 = vshll.u32 %v5951, 16
      %v6035 = vrot.slane %v6033, 1
      %v6036 = vsel %vm1423, %v6031, %v6035
      %v6037 = vshrl.u32 %v5951, 16
      %v6039 = vor.u32 %v6037, %v6035
      %v6041 = vshll.u32 %v5952, 16
      %v6043 = vrot.slane %v6041, 1
      %v6044 = vsel %vm1423, %v6039, %v6043
      %v6045 = vshrl.u32 %v5952, 16
      %v6047 = vor.u32 %v6045, %v6043
      %v6049 = vshll.u32 %v5953, 16
      %v6051 = vrot.slane %v6049, 1
      %v6052 = vsel %vm1423, %v6047, %v6051
      %v6053 = vshrl.u32 %v5953, 16
      %v6055 = vor.u32 %v6053, %v6051
      %v6057 = vshll.u32 %v5954, 16
      %v6059 = vrot.slane %v6057, 1
      %v6060 = vsel %vm1423, %v6055, %v6059
      %v6061 = vshrl.u32 %v5954, 16
      %v6063 = vor.u32 %v6061, %v6059
      %v6065 = vshll.u32 %v5955, 16
      %v6067 = vrot.slane %v6065, 1
      %v6068 = vsel %vm1423, %v6063, %v6067
      %v6069 = vshrl.u32 %v5955, 16
      %v6071 = vor.u32 %v6069, %v6067
      %v6073 = vshll.u32 %v5956, 16
      %v6075 = vrot.slane %v6073, 1
      %v6076 = vsel %vm1423, %v6071, %v6075
      %v6077 = vshrl.u32 %v5956, 16
      %v6079 = vor.u32 %v6077, %v6075
      %v6081 = vshll.u32 %v5957, 16
      %v6083 = vrot.slane %v6081, 1
      %v6084 = vsel %vm1423, %v6079, %v6083
      %v6085 = vshrl.u32 %v5957, 16
      %v6087 = vor.u32 %v6085, %v6083
      %v6089 = vshll.u32 %v5958, 16
      %v6091 = vrot.slane %v6089, 1
      %v6092 = vsel %vm1423, %v6087, %v6091
      %v6093 = vshrl.u32 %v5958, 16
      %v6095 = vor.u32 %v6093, %v6091
      %v6097 = vshll.u32 %v5959, 16
      %v6099 = vrot.slane %v6097, 1
      %v6100 = vsel %vm1423, %v6095, %v6099
      %v6101 = vshrl.u32 %v5959, 16
      %v6103 = vor.u32 %v6101, %v6099
      %v6105 = vshll.u32 %v5960, 16
      %v6107 = vrot.slane %v6105, 1
      %v6108 = vsel %vm1423, %v6103, %v6107
      %v6121 = vunpack.c.l.b16 %v5856
      %v6122 = vunpack.c.l.b16 %v5857
      %v6123 = vunpack.c.l.b16 %v5858
      %v6124 = vunpack.c.l.b16 %v5859
      %v6125 = vunpack.c.l.b16 %v5860
      %v6126 = vunpack.c.l.b16 %v5861
      %v6127 = vunpack.c.l.b16 %v5862
      %v6128 = vunpack.c.l.b16 %v5863
      %v6129 = vunpack.c.l.b16 %v5864
      %v6130 = vunpack.c.l.b16 %v5865
      %v6131 = vunpack.c.l.b16 %v5866
      %v6132 = vunpack.c.l.b16 %v5867
      %v6133 = vpack.c.b16 %v6122, %v6121
      %v6134 = vpack.c.b16 %v6124, %v6123
      %v6135 = vpack.c.b16 %v6126, %v6125
      %v6136 = vpack.c.b16 %v6128, %v6127
      %v6137 = vpack.c.b16 %v6130, %v6129
      %v6138 = vpack.c.b16 %v6132, %v6131
      %v6146 = vsel %vm394, %v5972, 0
      %v6149 = vsel %vm394, %v5980, 0
      %v6152 = vsel %vm394, %v5988, 0
      %v6155 = vsel %vm394, %v5996, 0
      %v6158 = vsel %vm394, %v6004, 0
      %v6161 = vsel %vm394, %v6012, 0
      %v6164 = vsel %vm394, %v6020, 0
      %v6167 = vsel %vm394, %v6028, 0
      %v6170 = vsel %vm394, %v6036, 0
      %v6173 = vsel %vm394, %v6044, 0
      %v6176 = vsel %vm394, %v6052, 0
      %v6179 = vsel %vm394, %v6060, 0
      %v6182 = vsel %vm394, %v6068, 0
      %v6185 = vsel %vm394, %v6076, 0
      %v6188 = vsel %vm394, %v6084, 0
      %v6191 = vsel %vm394, %v6092, 0
      %v6194 = vsel %vm394, %v6100, 0
      %v6197 = vsel %vm394, %v6108, 0
      %6199 = vmatprep.subr.bf16.mxu0 0
      %6200 = vmatpush1.bf16.msra.mxu0 %v6133
      %6201 = vmatprep.subr.bf16.mxu0 0
      %6202 = vmatpush1.bf16.msra.mxu0 %v6134
      %6203 = vmatprep.subr.bf16.mxu0 0
      %6204 = vmatpush1.bf16.msra.mxu0 %v6135
      %6205 = vmatprep.subr.bf16.mxu0 0
      %6206 = vmatpush1.bf16.msra.mxu0 %v6136
      %6207 = vmatprep.subr.bf16.mxu0 0
      %6208 = vmatpush1.bf16.msra.mxu0 %v6137
      %6209 = vmatprep.subr.bf16.mxu0 0
      %6210 = vmatpush1.bf16.msra.mxu0 %v6138
      %6211 = vmatprep.subr.bf16.mxu0 0
      %6212 = vmatpush1.bf16.msra.mxu0 0
      %6213 = vmatprep.subr.bf16.mxu0 0
      %6214 = vmatpush1.bf16.msra.mxu0 0
      %6215 = vmatprep.subr.bf16.mxu0 0
      %6216 = vmatpush1.bf16.msra.mxu0 0
      %6217 = vmatprep.subr.bf16.mxu0 0
      %6218 = vmatpush1.bf16.msra.mxu0 0
      %6219 = vmatprep.subr.bf16.mxu0 0
      %6220 = vmatpush1.bf16.msra.mxu0 0
      %6221 = vmatprep.subr.bf16.mxu0 0
      %6222 = vmatpush1.bf16.msra.mxu0 0
      %6223 = vmatprep.subr.bf16.mxu0 0
      %6224 = vmatpush1.bf16.msra.mxu0 0
      %6225 = vmatprep.subr.bf16.mxu0 0
      %6226 = vmatpush1.bf16.msra.mxu0 0
      %6227 = vmatprep.subr.bf16.mxu0 0
      %6228 = vmatpush1.bf16.msra.mxu0 0
      %6229 = vmatprep.subr.bf16.mxu0 0
      %6230 = vmatpush1.bf16.msra.mxu0 0
      %6231 = vmatprep.mubr.bf16.mxu0 0
      %6232 = vmatmul.mubr.bf16.gmra.mrb[0].mxu0 %v6146
      %v6233 = vpop.f32.mrb[0].mxu0
      %v6234 = vadd.f32 0.0, %v6233
      %v6235 = vpop.f32.mrb[0].mxu0
      %v6236 = vpop.f32.mrb[0].mxu0
      %v6237 = vadd.f32 0.0, %v6236
      %v6238 = vpop.f32.mrb[0].mxu0
      %6239 = vmatprep.mubr.bf16.mxu0 0
      %6240 = vmatmul.mubr.bf16.gmra.mrb[0].mxu0 %v6149
      %v6241 = vpop.f32.mrb[0].mxu0
      %v6242 = vadd.f32 0.0, %v6241
      %v6243 = vpop.f32.mrb[0].mxu0
      %v6244 = vpop.f32.mrb[0].mxu0
      %v6245 = vadd.f32 0.0, %v6244
      %v6246 = vpop.f32.mrb[0].mxu0
      %6247 = vmatprep.mubr.bf16.mxu0 0
      %6248 = vmatmul.mubr.bf16.gmra.mrb[0].mxu0 %v6152
      %v6249 = vpop.f32.mrb[0].mxu0
      %v6250 = vadd.f32 0.0, %v6249
      %v6251 = vpop.f32.mrb[0].mxu0
      %v6252 = vpop.f32.mrb[0].mxu0
      %v6253 = vadd.f32 0.0, %v6252
      %v6254 = vpop.f32.mrb[0].mxu0
      %6255 = vmatprep.mubr.bf16.mxu0 0
      %6256 = vmatmul.mubr.bf16.gmra.mrb[0].mxu0 %v6155
      %v6257 = vpop.f32.mrb[0].mxu0
      %v6258 = vadd.f32 0.0, %v6257
      %v6259 = vpop.f32.mrb[0].mxu0
      %v6260 = vpop.f32.mrb[0].mxu0
      %v6261 = vadd.f32 0.0, %v6260
      %v6262 = vpop.f32.mrb[0].mxu0
      %6263 = vmatprep.mubr.bf16.mxu0 0
      %6264 = vmatmul.mubr.bf16.gmra.mrb[0].mxu0 %v6158
      %v6265 = vpop.f32.mrb[0].mxu0
      %v6266 = vadd.f32 0.0, %v6265
      %v6267 = vpop.f32.mrb[0].mxu0
      %v6268 = vpop.f32.mrb[0].mxu0
      %v6269 = vadd.f32 0.0, %v6268
      %v6270 = vpop.f32.mrb[0].mxu0
      %6271 = vmatprep.mubr.bf16.mxu0 0
      %6272 = vmatmul.mubr.bf16.gmra.mrb[0].mxu0 %v6161
      %v6273 = vpop.f32.mrb[0].mxu0
      %v6274 = vadd.f32 0.0, %v6273
      %v6275 = vpop.f32.mrb[0].mxu0
      %v6276 = vpop.f32.mrb[0].mxu0
      %v6277 = vadd.f32 0.0, %v6276
      %v6278 = vpop.f32.mrb[0].mxu0
      %6279 = vmatprep.mubr.bf16.mxu0 0
      %6280 = vmatmul.mubr.bf16.gmra.mrb[0].mxu0 %v6164
      %v6281 = vpop.f32.mrb[0].mxu0
      %v6282 = vadd.f32 0.0, %v6281
      %v6283 = vpop.f32.mrb[0].mxu0
      %v6284 = vpop.f32.mrb[0].mxu0
      %v6285 = vadd.f32 0.0, %v6284
      %v6286 = vpop.f32.mrb[0].mxu0
      %6287 = vmatprep.mubr.bf16.mxu0 0
      %6288 = vmatmul.mubr.bf16.gmra.mrb[0].mxu0 %v6167
      %v6289 = vpop.f32.mrb[0].mxu0
      %v6290 = vadd.f32 0.0, %v6289
      %v6291 = vpop.f32.mrb[0].mxu0
      %v6292 = vpop.f32.mrb[0].mxu0
      %v6293 = vadd.f32 0.0, %v6292
      %v6294 = vpop.f32.mrb[0].mxu0
      %6295 = vmatprep.mubr.bf16.mxu0 0
      %6296 = vmatmul.mubr.bf16.gmra.mrb[0].mxu0 %v6170
      %v6297 = vpop.f32.mrb[0].mxu0
      %v6298 = vadd.f32 0.0, %v6297
      %v6299 = vpop.f32.mrb[0].mxu0
      %v6300 = vpop.f32.mrb[0].mxu0
      %v6301 = vadd.f32 0.0, %v6300
      %v6302 = vpop.f32.mrb[0].mxu0
      %6303 = vmatprep.mubr.bf16.mxu0 0
      %6304 = vmatmul.mubr.bf16.gmra.mrb[0].mxu0 %v6173
      %v6305 = vpop.f32.mrb[0].mxu0
      %v6306 = vadd.f32 0.0, %v6305
      %v6307 = vpop.f32.mrb[0].mxu0
      %v6308 = vpop.f32.mrb[0].mxu0
      %v6309 = vadd.f32 0.0, %v6308
      %v6310 = vpop.f32.mrb[0].mxu0
      %6311 = vmatprep.mubr.bf16.mxu0 0
      %6312 = vmatmul.mubr.bf16.gmra.mrb[0].mxu0 %v6176
      %v6313 = vpop.f32.mrb[0].mxu0
      %v6314 = vadd.f32 0.0, %v6313
      %v6315 = vpop.f32.mrb[0].mxu0
      %v6316 = vpop.f32.mrb[0].mxu0
      %v6317 = vadd.f32 0.0, %v6316
      %v6318 = vpop.f32.mrb[0].mxu0
      %6319 = vmatprep.mubr.bf16.mxu0 0
      %6320 = vmatmul.mubr.bf16.gmra.mrb[0].mxu0 %v6179
      %v6321 = vpop.f32.mrb[0].mxu0
      %v6322 = vadd.f32 0.0, %v6321
      %v6323 = vpop.f32.mrb[0].mxu0
      %v6324 = vpop.f32.mrb[0].mxu0
      %v6325 = vadd.f32 0.0, %v6324
      %v6326 = vpop.f32.mrb[0].mxu0
      %6327 = vmatprep.mubr.bf16.mxu0 0
      %6328 = vmatmul.mubr.bf16.gmra.mrb[0].mxu0 %v6182
      %v6329 = vpop.f32.mrb[0].mxu0
      %v6330 = vadd.f32 0.0, %v6329
      %v6331 = vpop.f32.mrb[0].mxu0
      %v6332 = vpop.f32.mrb[0].mxu0
      %v6333 = vadd.f32 0.0, %v6332
      %v6334 = vpop.f32.mrb[0].mxu0
      %6335 = vmatprep.mubr.bf16.mxu0 0
      %6336 = vmatmul.mubr.bf16.gmra.mrb[0].mxu0 %v6185
      %v6337 = vpop.f32.mrb[0].mxu0
      %v6338 = vadd.f32 0.0, %v6337
      %v6339 = vpop.f32.mrb[0].mxu0
      %v6340 = vpop.f32.mrb[0].mxu0
      %v6341 = vadd.f32 0.0, %v6340
      %v6342 = vpop.f32.mrb[0].mxu0
      %6343 = vmatprep.mubr.bf16.mxu0 0
      %6344 = vmatmul.mubr.bf16.gmra.mrb[0].mxu0 %v6188
      %v6345 = vpop.f32.mrb[0].mxu0
      %v6346 = vadd.f32 0.0, %v6345
      %v6347 = vpop.f32.mrb[0].mxu0
      %v6348 = vpop.f32.mrb[0].mxu0
      %v6349 = vadd.f32 0.0, %v6348
      %v6350 = vpop.f32.mrb[0].mxu0
      %6351 = vmatprep.mubr.bf16.mxu0 0
      %6352 = vmatmul.mubr.bf16.gmra.mrb[0].mxu0 %v6191
      %v6353 = vpop.f32.mrb[0].mxu0
      %v6354 = vadd.f32 0.0, %v6353
      %v6355 = vpop.f32.mrb[0].mxu0
      %v6356 = vpop.f32.mrb[0].mxu0
      %v6357 = vadd.f32 0.0, %v6356
      %v6358 = vpop.f32.mrb[0].mxu0
      %6359 = vmatprep.mubr.bf16.mxu0 0
      %6360 = vmatmul.mubr.bf16.gmra.mrb[0].mxu0 %v6194
      %v6361 = vpop.f32.mrb[0].mxu0
      %v6362 = vadd.f32 0.0, %v6361
      %v6363 = vpop.f32.mrb[0].mxu0
      %v6364 = vpop.f32.mrb[0].mxu0
      %v6365 = vadd.f32 0.0, %v6364
      %v6366 = vpop.f32.mrb[0].mxu0
      %6367 = vmatprep.mubr.bf16.mxu0 0
      %6368 = vmatmul.mubr.bf16.gmra.mrb[0].mxu0 %v6197
      %v6369 = vpop.f32.mrb[0].mxu0
      %v6370 = vadd.f32 0.0, %v6369
      %v6371 = vpop.f32.mrb[0].mxu0
      %v6372 = vpop.f32.mrb[0].mxu0
      %v6373 = vadd.f32 0.0, %v6372
      %v6374 = vpop.f32.mrb[0].mxu0
      %6375 = vdwg.mxu0
      %v6388 = vunpack.c.l.b16 %v5842
      %v6389 = vunpack.c.l.b16 %v5843
      %v6390 = vunpack.c.l.b16 %v5844
      %v6391 = vunpack.c.l.b16 %v5845
      %v6392 = vunpack.c.l.b16 %v5846
      %v6393 = vunpack.c.l.b16 %v5847
      %v6394 = vunpack.c.l.b16 %v5848
      %v6395 = vunpack.c.l.b16 %v5849
      %v6396 = vunpack.c.l.b16 %v5850
      %v6397 = vunpack.c.l.b16 %v5851
      %v6398 = vunpack.c.l.b16 %v5852
      %v6399 = vunpack.c.l.b16 %v5853
      %v6400 = vpack.c.b16 %v6389, %v6388
      %v6401 = vpack.c.b16 %v6391, %v6390
      %v6402 = vpack.c.b16 %v6393, %v6392
      %v6403 = vpack.c.b16 %v6395, %v6394
      %v6404 = vpack.c.b16 %v6397, %v6396
      %v6405 = vpack.c.b16 %v6399, %v6398
      %v6412 = vsel %vm394, %v5942, 0
      %v6414 = vsel %vm394, %v5943, 0
      %v6416 = vsel %vm394, %v5944, 0
      %v6418 = vsel %vm394, %v5945, 0
      %v6420 = vsel %vm394, %v5946, 0
      %v6422 = vsel %vm394, %v5947, 0
      %v6424 = vsel %vm394, %v5948, 0
      %v6426 = vsel %vm394, %v5949, 0
      %v6428 = vsel %vm394, %v5950, 0
      %v6430 = vsel %vm394, %v5951, 0
      %v6432 = vsel %vm394, %v5952, 0
      %v6434 = vsel %vm394, %v5953, 0
      %v6436 = vsel %vm394, %v5954, 0
      %v6438 = vsel %vm394, %v5955, 0
      %v6440 = vsel %vm394, %v5956, 0
      %v6442 = vsel %vm394, %v5957, 0
      %v6444 = vsel %vm394, %v5958, 0
      %v6446 = vsel %vm394, %v5959, 0
      %6448 = vmatprep.subr.bf16.mxu0 0
      %6449 = vmatpush1.bf16.msra.mxu0 %v6400
      %6450 = vmatprep.subr.bf16.mxu0 0
      %6451 = vmatpush1.bf16.msra.mxu0 %v6401
      %6452 = vmatprep.subr.bf16.mxu0 0
      %6453 = vmatpush1.bf16.msra.mxu0 %v6402
      %6454 = vmatprep.subr.bf16.mxu0 0
      %6455 = vmatpush1.bf16.msra.mxu0 %v6403
      %6456 = vmatprep.subr.bf16.mxu0 0
      %6457 = vmatpush1.bf16.msra.mxu0 %v6404
      %6458 = vmatprep.subr.bf16.mxu0 0
      %6459 = vmatpush1.bf16.msra.mxu0 %v6405
      %6460 = vmatprep.subr.bf16.mxu0 0
      %6461 = vmatpush1.bf16.msra.mxu0 0
      %6462 = vmatprep.subr.bf16.mxu0 0
      %6463 = vmatpush1.bf16.msra.mxu0 0
      %6464 = vmatprep.subr.bf16.mxu0 0
      %6465 = vmatpush1.bf16.msra.mxu0 0
      %6466 = vmatprep.subr.bf16.mxu0 0
      %6467 = vmatpush1.bf16.msra.mxu0 0
      %6468 = vmatprep.subr.bf16.mxu0 0
      %6469 = vmatpush1.bf16.msra.mxu0 0
      %6470 = vmatprep.subr.bf16.mxu0 0
      %6471 = vmatpush1.bf16.msra.mxu0 0
      %6472 = vmatprep.subr.bf16.mxu0 0
      %6473 = vmatpush1.bf16.msra.mxu0 0
      %6474 = vmatprep.subr.bf16.mxu0 0
      %6475 = vmatpush1.bf16.msra.mxu0 0
      %6476 = vmatprep.subr.bf16.mxu0 0
      %6477 = vmatpush1.bf16.msra.mxu0 0
      %6478 = vmatprep.subr.bf16.mxu0 0
      %6479 = vmatpush1.bf16.msra.mxu0 0
      %6480 = vmatprep.mubr.bf16.mxu0 0
      %6481 = vmatmul.mubr.bf16.gmra.mrb[0].mxu0 %v6412
      %v6482 = vpop.f32.mrb[0].mxu0
      %v6483 = vadd.f32 %v6234, %v6482
      %v6484 = vpop.f32.mrb[0].mxu0
      %v6485 = vpop.f32.mrb[0].mxu0
      %v6486 = vadd.f32 %v6237, %v6485
      %v6487 = vpop.f32.mrb[0].mxu0
      %6488 = vmatprep.mubr.bf16.mxu0 0
      %6489 = vmatmul.mubr.bf16.gmra.mrb[0].mxu0 %v6414
      %v6490 = vpop.f32.mrb[0].mxu0
      %v6491 = vadd.f32 %v6242, %v6490
      %v6492 = vpop.f32.mrb[0].mxu0
      %v6493 = vpop.f32.mrb[0].mxu0
      %v6494 = vadd.f32 %v6245, %v6493
      %v6495 = vpop.f32.mrb[0].mxu0
      %6496 = vmatprep.mubr.bf16.mxu0 0
      %6497 = vmatmul.mubr.bf16.gmra.mrb[0].mxu0 %v6416
      %v6498 = vpop.f32.mrb[0].mxu0
      %v6499 = vadd.f32 %v6250, %v6498
      %v6500 = vpop.f32.mrb[0].mxu0
      %v6501 = vpop.f32.mrb[0].mxu0
      %v6502 = vadd.f32 %v6253, %v6501
      %v6503 = vpop.f32.mrb[0].mxu0
      %6504 = vmatprep.mubr.bf16.mxu0 0
      %6505 = vmatmul.mubr.bf16.gmra.mrb[0].mxu0 %v6418
      %v6506 = vpop.f32.mrb[0].mxu0
      %v6507 = vadd.f32 %v6258, %v6506
      %v6508 = vpop.f32.mrb[0].mxu0
      %v6509 = vpop.f32.mrb[0].mxu0
      %v6510 = vadd.f32 %v6261, %v6509
      %v6511 = vpop.f32.mrb[0].mxu0
      %6512 = vmatprep.mubr.bf16.mxu0 0
      %6513 = vmatmul.mubr.bf16.gmra.mrb[0].mxu0 %v6420
      %v6514 = vpop.f32.mrb[0].mxu0
      %v6515 = vadd.f32 %v6266, %v6514
      %v6516 = vpop.f32.mrb[0].mxu0
      %v6517 = vpop.f32.mrb[0].mxu0
      %v6518 = vadd.f32 %v6269, %v6517
      %v6519 = vpop.f32.mrb[0].mxu0
      %6520 = vmatprep.mubr.bf16.mxu0 0
      %6521 = vmatmul.mubr.bf16.gmra.mrb[0].mxu0 %v6422
      %v6522 = vpop.f32.mrb[0].mxu0
      %v6523 = vadd.f32 %v6274, %v6522
      %v6524 = vpop.f32.mrb[0].mxu0
      %v6525 = vpop.f32.mrb[0].mxu0
      %v6526 = vadd.f32 %v6277, %v6525
      %v6527 = vpop.f32.mrb[0].mxu0
      %6528 = vmatprep.mubr.bf16.mxu0 0
      %6529 = vmatmul.mubr.bf16.gmra.mrb[0].mxu0 %v6424
      %v6530 = vpop.f32.mrb[0].mxu0
      %v6531 = vadd.f32 %v6282, %v6530
      %v6532 = vpop.f32.mrb[0].mxu0
      %v6533 = vpop.f32.mrb[0].mxu0
      %v6534 = vadd.f32 %v6285, %v6533
      %v6535 = vpop.f32.mrb[0].mxu0
      %6536 = vmatprep.mubr.bf16.mxu0 0
      %6537 = vmatmul.mubr.bf16.gmra.mrb[0].mxu0 %v6426
      %v6538 = vpop.f32.mrb[0].mxu0
      %v6539 = vadd.f32 %v6290, %v6538
      %v6540 = vpop.f32.mrb[0].mxu0
      %v6541 = vpop.f32.mrb[0].mxu0
      %v6542 = vadd.f32 %v6293, %v6541
      %v6543 = vpop.f32.mrb[0].mxu0
      %6544 = vmatprep.mubr.bf16.mxu0 0
      %6545 = vmatmul.mubr.bf16.gmra.mrb[0].mxu0 %v6428
      %v6546 = vpop.f32.mrb[0].mxu0
      %v6547 = vadd.f32 %v6298, %v6546
      %v6548 = vpop.f32.mrb[0].mxu0
      %v6549 = vpop.f32.mrb[0].mxu0
      %v6550 = vadd.f32 %v6301, %v6549
      %v6551 = vpop.f32.mrb[0].mxu0
      %6552 = vmatprep.mubr.bf16.mxu0 0
      %6553 = vmatmul.mubr.bf16.gmra.mrb[0].mxu0 %v6430
      %v6554 = vpop.f32.mrb[0].mxu0
      %v6555 = vadd.f32 %v6306, %v6554
      %v6556 = vpop.f32.mrb[0].mxu0
      %v6557 = vpop.f32.mrb[0].mxu0
      %v6558 = vadd.f32 %v6309, %v6557
      %v6559 = vpop.f32.mrb[0].mxu0
      %6560 = vmatprep.mubr.bf16.mxu0 0
      %6561 = vmatmul.mubr.bf16.gmra.mrb[0].mxu0 %v6432
      %v6562 = vpop.f32.mrb[0].mxu0
      %v6563 = vadd.f32 %v6314, %v6562
      %v6564 = vpop.f32.mrb[0].mxu0
      %v6565 = vpop.f32.mrb[0].mxu0
      %v6566 = vadd.f32 %v6317, %v6565
      %v6567 = vpop.f32.mrb[0].mxu0
      %6568 = vmatprep.mubr.bf16.mxu0 0
      %6569 = vmatmul.mubr.bf16.gmra.mrb[0].mxu0 %v6434
      %v6570 = vpop.f32.mrb[0].mxu0
      %v6571 = vadd.f32 %v6322, %v6570
      %v6572 = vpop.f32.mrb[0].mxu0
      %v6573 = vpop.f32.mrb[0].mxu0
      %v6574 = vadd.f32 %v6325, %v6573
      %v6575 = vpop.f32.mrb[0].mxu0
      %6576 = vmatprep.mubr.bf16.mxu0 0
      %6577 = vmatmul.mubr.bf16.gmra.mrb[0].mxu0 %v6436
      %v6578 = vpop.f32.mrb[0].mxu0
      %v6579 = vadd.f32 %v6330, %v6578
      %v6580 = vpop.f32.mrb[0].mxu0
      %v6581 = vpop.f32.mrb[0].mxu0
      %v6582 = vadd.f32 %v6333, %v6581
      %v6583 = vpop.f32.mrb[0].mxu0
      %6584 = vmatprep.mubr.bf16.mxu0 0
      %6585 = vmatmul.mubr.bf16.gmra.mrb[0].mxu0 %v6438
      %v6586 = vpop.f32.mrb[0].mxu0
      %v6587 = vadd.f32 %v6338, %v6586
      %v6588 = vpop.f32.mrb[0].mxu0
      %v6589 = vpop.f32.mrb[0].mxu0
      %v6590 = vadd.f32 %v6341, %v6589
      %v6591 = vpop.f32.mrb[0].mxu0
      %6592 = vmatprep.mubr.bf16.mxu0 0
      %6593 = vmatmul.mubr.bf16.gmra.mrb[0].mxu0 %v6440
      %v6594 = vpop.f32.mrb[0].mxu0
      %v6595 = vadd.f32 %v6346, %v6594
      %v6596 = vpop.f32.mrb[0].mxu0
      %v6597 = vpop.f32.mrb[0].mxu0
      %v6598 = vadd.f32 %v6349, %v6597
      %v6599 = vpop.f32.mrb[0].mxu0
      %6600 = vmatprep.mubr.bf16.mxu0 0
      %6601 = vmatmul.mubr.bf16.gmra.mrb[0].mxu0 %v6442
      %v6602 = vpop.f32.mrb[0].mxu0
      %v6603 = vadd.f32 %v6354, %v6602
      %v6604 = vpop.f32.mrb[0].mxu0
      %v6605 = vpop.f32.mrb[0].mxu0
      %v6606 = vadd.f32 %v6357, %v6605
      %v6607 = vpop.f32.mrb[0].mxu0
      %6608 = vmatprep.mubr.bf16.mxu0 0
      %6609 = vmatmul.mubr.bf16.gmra.mrb[0].mxu0 %v6444
      %v6610 = vpop.f32.mrb[0].mxu0
      %v6611 = vadd.f32 %v6362, %v6610
      %v6612 = vpop.f32.mrb[0].mxu0
      %v6613 = vpop.f32.mrb[0].mxu0
      %v6614 = vadd.f32 %v6365, %v6613
      %v6615 = vpop.f32.mrb[0].mxu0
      %6616 = vmatprep.mubr.bf16.mxu0 0
      %6617 = vmatmul.mubr.bf16.gmra.mrb[0].mxu0 %v6446
      %v6618 = vpop.f32.mrb[0].mxu0
      %v6619 = vadd.f32 %v6370, %v6618
      %v6620 = vpop.f32.mrb[0].mxu0
      %v6621 = vpop.f32.mrb[0].mxu0
      %v6622 = vadd.f32 %v6373, %v6621
      %v6623 = vpop.f32.mrb[0].mxu0
      %6624 = vdwg.mxu0
      %v6625 = vld [vmem:[#allocation2] sm:$0xe]
      %s6626 = scalar_lea.vmem %s4, 96
      %v6627 = vld [vmem:[%s6626] sm:$0xf]
      %v6628 = vld [vmem:[%s6626 + $0x4] sm:$0xf]
      %v6629 = vld [vmem:[%s6626 + $0x8] sm:$0xf]
      %v6630 = vld [vmem:[%s6626 + $0xc] sm:$0xf]
      %v6631 = vld [vmem:[%s6626 + $0x10] sm:$0xf]
      %v6632 = vld [vmem:[%s6626 + $0x14] sm:$0xf]
      %v6633 = vld [vmem:[%s6626 + $0x18] sm:$0xf]
      %v6634 = vld [vmem:[%s6626 + $0x1c] sm:$0xf]
      %v6635 = vld [vmem:[%s6626 + $0x20] sm:$0xf]
      %v6636 = vld [vmem:[%s6626 + $0x24] sm:$0xf]
      %v6637 = vld [vmem:[%s6626 + $0x28] sm:$0xf]
      %v6638 = vld [vmem:[%s6626 + $0x2c] sm:$0xf]
      %v6640 = vunpack.c.l.b16 %v6625
      %v6641 = vpack.c.b16 %v5906, %v6640
      %v6642 = vrot.slane %v6641, 1
      %v6643 = vrot.slane %v5943, 1
      %v6644 = vsel %vm2105, %v6642, %v6643
      %v6645 = vrot.slane %v5944, 1
      %v6646 = vsel %vm2105, %v6643, %v6645
      %v6647 = vrot.slane %v5945, 1
      %v6648 = vsel %vm2105, %v6645, %v6647
      %v6649 = vrot.slane %v5946, 1
      %v6650 = vsel %vm2105, %v6647, %v6649
      %v6651 = vrot.slane %v5947, 1
      %v6652 = vsel %vm2105, %v6649, %v6651
      %v6653 = vrot.slane %v5948, 1
      %v6654 = vsel %vm2105, %v6651, %v6653
      %v6655 = vrot.slane %v5949, 1
      %v6656 = vsel %vm2105, %v6653, %v6655
      %v6657 = vrot.slane %v5950, 1
      %v6658 = vsel %vm2105, %v6655, %v6657
      %v6659 = vrot.slane %v5951, 1
      %v6660 = vsel %vm2105, %v6657, %v6659
      %v6661 = vrot.slane %v5952, 1
      %v6662 = vsel %vm2105, %v6659, %v6661
      %v6663 = vrot.slane %v5953, 1
      %v6664 = vsel %vm2105, %v6661, %v6663
      %v6665 = vrot.slane %v5954, 1
      %v6666 = vsel %vm2105, %v6663, %v6665
      %v6667 = vrot.slane %v5955, 1
      %v6668 = vsel %vm2105, %v6665, %v6667
      %v6669 = vrot.slane %v5956, 1
      %v6670 = vsel %vm2105, %v6667, %v6669
      %v6671 = vrot.slane %v5957, 1
      %v6672 = vsel %vm2105, %v6669, %v6671
      %v6673 = vrot.slane %v5958, 1
      %v6674 = vsel %vm2105, %v6671, %v6673
      %v6675 = vrot.slane %v5959, 1
      %v6676 = vsel %vm2105, %v6673, %v6675
      %v6677 = vrot.slane %v5960, 1
      %v6678 = vsel %vm2105, %v6675, %v6677
      %v6691 = vunpack.c.l.b16 %v6627
      %v6692 = vunpack.c.l.b16 %v6628
      %v6693 = vunpack.c.l.b16 %v6629
      %v6694 = vunpack.c.l.b16 %v6630
      %v6695 = vunpack.c.l.b16 %v6631
      %v6696 = vunpack.c.l.b16 %v6632
      %v6697 = vunpack.c.l.b16 %v6633
      %v6698 = vunpack.c.l.b16 %v6634
      %v6699 = vunpack.c.l.b16 %v6635
      %v6700 = vunpack.c.l.b16 %v6636
      %v6701 = vunpack.c.l.b16 %v6637
      %v6702 = vunpack.c.l.b16 %v6638
      %v6703 = vpack.c.b16 %v6692, %v6691
      %v6704 = vpack.c.b16 %v6694, %v6693
      %v6705 = vpack.c.b16 %v6696, %v6695
      %v6706 = vpack.c.b16 %v6698, %v6697
      %v6707 = vpack.c.b16 %v6700, %v6699
      %v6708 = vpack.c.b16 %v6702, %v6701
      %v6716 = vsel %vm394, %v6644, 0
      %v6719 = vsel %vm394, %v6646, 0
      %v6722 = vsel %vm394, %v6648, 0
      %v6725 = vsel %vm394, %v6650, 0
      %v6728 = vsel %vm394, %v6652, 0
      %v6731 = vsel %vm394, %v6654, 0
      %v6734 = vsel %vm394, %v6656, 0
      %v6737 = vsel %vm394, %v6658, 0
      %v6740 = vsel %vm394, %v6660, 0
      %v6743 = vsel %vm394, %v6662, 0
      %v6746 = vsel %vm394, %v6664, 0
      %v6749 = vsel %vm394, %v6666, 0
      %v6752 = vsel %vm394, %v6668, 0
      %v6755 = vsel %vm394, %v6670, 0
      %v6758 = vsel %vm394, %v6672, 0
      %v6761 = vsel %vm394, %v6674, 0
      %v6764 = vsel %vm394, %v6676, 0
      %v6767 = vsel %vm394, %v6678, 0
      %6769 = vmatprep.subr.bf16.mxu0 0
      %6770 = vmatpush1.bf16.msra.mxu0 %v6703
      %6771 = vmatprep.subr.bf16.mxu0 0
      %6772 = vmatpush1.bf16.msra.mxu0 %v6704
      %6773 = vmatprep.subr.bf16.mxu0 0
      %6774 = vmatpush1.bf16.msra.mxu0 %v6705
      %6775 = vmatprep.subr.bf16.mxu0 0
      %6776 = vmatpush1.bf16.msra.mxu0 %v6706
      %6777 = vmatprep.subr.bf16.mxu0 0
      %6778 = vmatpush1.bf16.msra.mxu0 %v6707
      %6779 = vmatprep.subr.bf16.mxu0 0
      %6780 = vmatpush1.bf16.msra.mxu0 %v6708
      %6781 = vmatprep.subr.bf16.mxu0 0
      %6782 = vmatpush1.bf16.msra.mxu0 0
      %6783 = vmatprep.subr.bf16.mxu0 0
      %6784 = vmatpush1.bf16.msra.mxu0 0
      %6785 = vmatprep.subr.bf16.mxu0 0
      %6786 = vmatpush1.bf16.msra.mxu0 0
      %6787 = vmatprep.subr.bf16.mxu0 0
      %6788 = vmatpush1.bf16.msra.mxu0 0
      %6789 = vmatprep.subr.bf16.mxu0 0
      %6790 = vmatpush1.bf16.msra.mxu0 0
      %6791 = vmatprep.subr.bf16.mxu0 0
      %6792 = vmatpush1.bf16.msra.mxu0 0
      %6793 = vmatprep.subr.bf16.mxu0 0
      %6794 = vmatpush1.bf16.msra.mxu0 0
      %6795 = vmatprep.subr.bf16.mxu0 0
      %6796 = vmatpush1.bf16.msra.mxu0 0
      %6797 = vmatprep.subr.bf16.mxu0 0
      %6798 = vmatpush1.bf16.msra.mxu0 0
      %6799 = vmatprep.subr.bf16.mxu0 0
      %6800 = vmatpush1.bf16.msra.mxu0 0
      %6801 = vmatprep.mubr.bf16.mxu0 0
      %6802 = vmatmul.mubr.bf16.gmra.mrb[0].mxu0 %v6716
      %v6803 = vpop.f32.mrb[0].mxu0
      %v6804 = vadd.f32 0.0, %v6803
      %v6805 = vpop.f32.mrb[0].mxu0
      %v6806 = vpop.f32.mrb[0].mxu0
      %v6807 = vadd.f32 0.0, %v6806
      %v6808 = vpop.f32.mrb[0].mxu0
      %6809 = vmatprep.mubr.bf16.mxu0 0
      %6810 = vmatmul.mubr.bf16.gmra.mrb[0].mxu0 %v6719
      %v6811 = vpop.f32.mrb[0].mxu0
      %v6812 = vadd.f32 0.0, %v6811
      %v6813 = vpop.f32.mrb[0].mxu0
      %v6814 = vpop.f32.mrb[0].mxu0
      %v6815 = vadd.f32 0.0, %v6814
      %v6816 = vpop.f32.mrb[0].mxu0
      %6817 = vmatprep.mubr.bf16.mxu0 0
      %6818 = vmatmul.mubr.bf16.gmra.mrb[0].mxu0 %v6722
      %v6819 = vpop.f32.mrb[0].mxu0
      %v6820 = vadd.f32 0.0, %v6819
      %v6821 = vpop.f32.mrb[0].mxu0
      %v6822 = vpop.f32.mrb[0].mxu0
      %v6823 = vadd.f32 0.0, %v6822
      %v6824 = vpop.f32.mrb[0].mxu0
      %6825 = vmatprep.mubr.bf16.mxu0 0
      %6826 = vmatmul.mubr.bf16.gmra.mrb[0].mxu0 %v6725
      %v6827 = vpop.f32.mrb[0].mxu0
      %v6828 = vadd.f32 0.0, %v6827
      %v6829 = vpop.f32.mrb[0].mxu0
      %v6830 = vpop.f32.mrb[0].mxu0
      %v6831 = vadd.f32 0.0, %v6830
      %v6832 = vpop.f32.mrb[0].mxu0
      %6833 = vmatprep.mubr.bf16.mxu0 0
      %6834 = vmatmul.mubr.bf16.gmra.mrb[0].mxu0 %v6728
      %v6835 = vpop.f32.mrb[0].mxu0
      %v6836 = vadd.f32 0.0, %v6835
      %v6837 = vpop.f32.mrb[0].mxu0
      %v6838 = vpop.f32.mrb[0].mxu0
      %v6839 = vadd.f32 0.0, %v6838
      %v6840 = vpop.f32.mrb[0].mxu0
      %6841 = vmatprep.mubr.bf16.mxu0 0
      %6842 = vmatmul.mubr.bf16.gmra.mrb[0].mxu0 %v6731
      %v6843 = vpop.f32.mrb[0].mxu0
      %v6844 = vadd.f32 0.0, %v6843
      %v6845 = vpop.f32.mrb[0].mxu0
      %v6846 = vpop.f32.mrb[0].mxu0
      %v6847 = vadd.f32 0.0, %v6846
      %v6848 = vpop.f32.mrb[0].mxu0
      %6849 = vmatprep.mubr.bf16.mxu0 0
      %6850 = vmatmul.mubr.bf16.gmra.mrb[0].mxu0 %v6734
      %v6851 = vpop.f32.mrb[0].mxu0
      %v6852 = vadd.f32 0.0, %v6851
      %v6853 = vpop.f32.mrb[0].mxu0
      %v6854 = vpop.f32.mrb[0].mxu0
      %v6855 = vadd.f32 0.0, %v6854
      %v6856 = vpop.f32.mrb[0].mxu0
      %6857 = vmatprep.mubr.bf16.mxu0 0
      %6858 = vmatmul.mubr.bf16.gmra.mrb[0].mxu0 %v6737
      %v6859 = vpop.f32.mrb[0].mxu0
      %v6860 = vadd.f32 0.0, %v6859
      %v6861 = vpop.f32.mrb[0].mxu0
      %v6862 = vpop.f32.mrb[0].mxu0
      %v6863 = vadd.f32 0.0, %v6862
      %v6864 = vpop.f32.mrb[0].mxu0
      %6865 = vmatprep.mubr.bf16.mxu0 0
      %6866 = vmatmul.mubr.bf16.gmra.mrb[0].mxu0 %v6740
      %v6867 = vpop.f32.mrb[0].mxu0
      %v6868 = vadd.f32 0.0, %v6867
      %v6869 = vpop.f32.mrb[0].mxu0
      %v6870 = vpop.f32.mrb[0].mxu0
      %v6871 = vadd.f32 0.0, %v6870
      %v6872 = vpop.f32.mrb[0].mxu0
      %6873 = vmatprep.mubr.bf16.mxu0 0
      %6874 = vmatmul.mubr.bf16.gmra.mrb[0].mxu0 %v6743
      %v6875 = vpop.f32.mrb[0].mxu0
      %v6876 = vadd.f32 0.0, %v6875
      %v6877 = vpop.f32.mrb[0].mxu0
      %v6878 = vpop.f32.mrb[0].mxu0
      %v6879 = vadd.f32 0.0, %v6878
      %v6880 = vpop.f32.mrb[0].mxu0
      %6881 = vmatprep.mubr.bf16.mxu0 0
      %6882 = vmatmul.mubr.bf16.gmra.mrb[0].mxu0 %v6746
      %v6883 = vpop.f32.mrb[0].mxu0
      %v6884 = vadd.f32 0.0, %v6883
      %v6885 = vpop.f32.mrb[0].mxu0
      %v6886 = vpop.f32.mrb[0].mxu0
      %v6887 = vadd.f32 0.0, %v6886
      %v6888 = vpop.f32.mrb[0].mxu0
      %6889 = vmatprep.mubr.bf16.mxu0 0
      %6890 = vmatmul.mubr.bf16.gmra.mrb[0].mxu0 %v6749
      %v6891 = vpop.f32.mrb[0].mxu0
      %v6892 = vadd.f32 0.0, %v6891
      %v6893 = vpop.f32.mrb[0].mxu0
      %v6894 = vpop.f32.mrb[0].mxu0
      %v6895 = vadd.f32 0.0, %v6894
      %v6896 = vpop.f32.mrb[0].mxu0
      %6897 = vmatprep.mubr.bf16.mxu0 0
      %6898 = vmatmul.mubr.bf16.gmra.mrb[0].mxu0 %v6752
      %v6899 = vpop.f32.mrb[0].mxu0
      %v6900 = vadd.f32 0.0, %v6899
      %v6901 = vpop.f32.mrb[0].mxu0
      %v6902 = vpop.f32.mrb[0].mxu0
      %v6903 = vadd.f32 0.0, %v6902
      %v6904 = vpop.f32.mrb[0].mxu0
      %6905 = vmatprep.mubr.bf16.mxu0 0
      %6906 = vmatmul.mubr.bf16.gmra.mrb[0].mxu0 %v6755
      %v6907 = vpop.f32.mrb[0].mxu0
      %v6908 = vadd.f32 0.0, %v6907
      %v6909 = vpop.f32.mrb[0].mxu0
      %v6910 = vpop.f32.mrb[0].mxu0
      %v6911 = vadd.f32 0.0, %v6910
      %v6912 = vpop.f32.mrb[0].mxu0
      %6913 = vmatprep.mubr.bf16.mxu0 0
      %6914 = vmatmul.mubr.bf16.gmra.mrb[0].mxu0 %v6758
      %v6915 = vpop.f32.mrb[0].mxu0
      %v6916 = vadd.f32 0.0, %v6915
      %v6917 = vpop.f32.mrb[0].mxu0
      %v6918 = vpop.f32.mrb[0].mxu0
      %v6919 = vadd.f32 0.0, %v6918
      %v6920 = vpop.f32.mrb[0].mxu0
      %6921 = vmatprep.mubr.bf16.mxu0 0
      %6922 = vmatmul.mubr.bf16.gmra.mrb[0].mxu0 %v6761
      %v6923 = vpop.f32.mrb[0].mxu0
      %v6924 = vadd.f32 0.0, %v6923
      %v6925 = vpop.f32.mrb[0].mxu0
      %v6926 = vpop.f32.mrb[0].mxu0
      %v6927 = vadd.f32 0.0, %v6926
      %v6928 = vpop.f32.mrb[0].mxu0
      %6929 = vmatprep.mubr.bf16.mxu0 0
      %6930 = vmatmul.mubr.bf16.gmra.mrb[0].mxu0 %v6764
      %v6931 = vpop.f32.mrb[0].mxu0
      %v6932 = vadd.f32 0.0, %v6931
      %v6933 = vpop.f32.mrb[0].mxu0
      %v6934 = vpop.f32.mrb[0].mxu0
      %v6935 = vadd.f32 0.0, %v6934
      %v6936 = vpop.f32.mrb[0].mxu0
      %6937 = vmatprep.mubr.bf16.mxu0 0
      %6938 = vmatmul.mubr.bf16.gmra.mrb[0].mxu0 %v6767
      %v6939 = vpop.f32.mrb[0].mxu0
      %v6940 = vadd.f32 0.0, %v6939
      %v6941 = vpop.f32.mrb[0].mxu0
      %v6942 = vpop.f32.mrb[0].mxu0
      %v6943 = vadd.f32 0.0, %v6942
      %v6944 = vpop.f32.mrb[0].mxu0
      %6945 = vdwg.mxu0
      %v6946 = vadd.f32 %v6483, %v6804
      %v6947 = vadd.f32 %v6486, %v6807
      %v6948 = vadd.f32 %v6491, %v6812
      %v6949 = vadd.f32 %v6494, %v6815
      %v6950 = vadd.f32 %v6499, %v6820
      %v6951 = vadd.f32 %v6502, %v6823
      %v6952 = vadd.f32 %v6507, %v6828
      %v6953 = vadd.f32 %v6510, %v6831
      %v6954 = vadd.f32 %v6515, %v6836
      %v6955 = vadd.f32 %v6518, %v6839
      %v6956 = vadd.f32 %v6523, %v6844
      %v6957 = vadd.f32 %v6526, %v6847
      %v6958 = vadd.f32 %v6531, %v6852
      %v6959 = vadd.f32 %v6534, %v6855
      %v6960 = vadd.f32 %v6539, %v6860
      %v6961 = vadd.f32 %v6542, %v6863
      %v6962 = vadd.f32 %v6547, %v6868
      %v6963 = vadd.f32 %v6550, %v6871
      %v6964 = vadd.f32 %v6555, %v6876
      %v6965 = vadd.f32 %v6558, %v6879
      %v6966 = vadd.f32 %v6563, %v6884
      %v6967 = vadd.f32 %v6566, %v6887
      %v6968 = vadd.f32 %v6571, %v6892
      %v6969 = vadd.f32 %v6574, %v6895
      %v6970 = vadd.f32 %v6579, %v6900
      %v6971 = vadd.f32 %v6582, %v6903
      %v6972 = vadd.f32 %v6587, %v6908
      %v6973 = vadd.f32 %v6590, %v6911
      %v6974 = vadd.f32 %v6595, %v6916
      %v6975 = vadd.f32 %v6598, %v6919
      %v6976 = vadd.f32 %v6603, %v6924
      %v6977 = vadd.f32 %v6606, %v6927
      %v6978 = vadd.f32 %v6611, %v6932
      %v6979 = vadd.f32 %v6614, %v6935
      %v6980 = vadd.f32 %v6619, %v6940
      %v6981 = vadd.f32 %v6622, %v6943
      %v6982 = vld [vmem:[#allocation2 + $0x8] sm:$0xe]
      %v6983 = vld [vmem:[#allocation2 + $0xc] sm:$0xf]
      %v6984 = vld [vmem:[#allocation2 + $0x10] sm:$0xf]
      %v6985 = vld [vmem:[#allocation2 + $0x14] sm:$0xf]
      %v6986 = vld [vmem:[#allocation2 + $0x18] sm:$0xf]
      %v6987 = vld [vmem:[#allocation2 + $0x1c] sm:$0xf]
      %v6988 = vld [vmem:[#allocation2 + $0x20] sm:$0xf]
      %v6989 = vld [vmem:[#allocation2 + $0x24] sm:$0xf]
      %v6990 = vld [vmem:[#allocation2 + $0x28] sm:$0xf]
      %v6991 = vld [vmem:[#allocation2 + $0x2c] sm:$0xf]
      %v6992 = vld [vmem:[#allocation2 + $0x30] sm:$0xf]
      %v6993 = vld [vmem:[#allocation2 + $0x34] sm:$0xf]
      %v6994 = vld [vmem:[#allocation2 + $0x38] sm:$0xf]
      %v6995 = vld [vmem:[#allocation2 + $0x3c] sm:$0xf]
      %v6996 = vld [vmem:[#allocation2 + $0x40] sm:$0xf]
      %v6997 = vld [vmem:[#allocation2 + $0x44] sm:$0xf]
      %v6998 = vld [vmem:[#allocation2 + $0x48] sm:$0xf]
      %v6999 = vld [vmem:[#allocation2 + $0x4c] sm:$0xf]
      %v7000 = vld [vmem:[#allocation2 + $0x50] sm:$0xf]
      %v7001 = vld [vmem:[#allocation2 + $0x54] sm:$0xf]
      %v7002 = vld [vmem:[#allocation2 + $0x58] sm:$0xf]
      %v7003 = vld [vmem:[#allocation2 + $0x5c] sm:$0xf]
      %v7004 = vld [vmem:[#allocation2 + $0x60] sm:$0xf]
      %v7005 = vld [vmem:[#allocation2 + $0x64] sm:$0xf]
      %v7006 = vld [vmem:[#allocation2 + $0x68] sm:$0xf]
      %v7007 = vld [vmem:[#allocation2 + $0x6c] sm:$0xf]
      %v7008 = vld [vmem:[#allocation2 + $0x70] sm:$0xf]
      %v7009 = vld [vmem:[#allocation2 + $0x74] sm:$0xf]
      %v7010 = vld [vmem:[#allocation2 + $0x78] sm:$0xf]
      %v7011 = vld [vmem:[#allocation2 + $0x7c] sm:$0xf]
      %v7012 = vld [vmem:[#allocation2 + $0x80] sm:$0xf]
      %v7013 = vld [vmem:[#allocation2 + $0x84] sm:$0xf]
      %v7014 = vld [vmem:[#allocation2 + $0x88] sm:$0xf]
      %v7015 = vld [vmem:[#allocation2 + $0x8c] sm:$0xf]
      %v7016 = vld [vmem:[#allocation2 + $0x90] sm:$0xf]
      %v7017 = vld [vmem:[#allocation2 + $0x94] sm:$0xf]
      %v7018 = vld [vmem:[#allocation2 + $0x98] sm:$0x1]
      %s7019 = scalar_lea.vmem %s4, 144
      %v7020 = vld [vmem:[%s7019] sm:$0xf]
      %v7021 = vld [vmem:[%s7019 + $0x4] sm:$0xf]
      %v7022 = vld [vmem:[%s7019 + $0x8] sm:$0xf]
      %v7023 = vld [vmem:[%s7019 + $0xc] sm:$0xf]
      %v7024 = vld [vmem:[%s7019 + $0x10] sm:$0xf]
      %v7025 = vld [vmem:[%s7019 + $0x14] sm:$0xf]
      %v7026 = vld [vmem:[%s7019 + $0x18] sm:$0xf]
      %v7027 = vld [vmem:[%s7019 + $0x1c] sm:$0xf]
      %v7028 = vld [vmem:[%s7019 + $0x20] sm:$0xf]
      %v7029 = vld [vmem:[%s7019 + $0x24] sm:$0xf]
      %v7030 = vld [vmem:[%s7019 + $0x28] sm:$0xf]
      %v7031 = vld [vmem:[%s7019 + $0x2c] sm:$0xf]
      %v7069 = vunpack.c.l.b16 %v6982
      %v7070 = vunpack.c.l.b16 %v6983
      %v7071 = vunpack.c.l.b16 %v6984
      %v7072 = vunpack.c.l.b16 %v6985
      %v7073 = vunpack.c.l.b16 %v6986
      %v7074 = vunpack.c.l.b16 %v6987
      %v7075 = vunpack.c.l.b16 %v6988
      %v7076 = vunpack.c.l.b16 %v6989
      %v7077 = vunpack.c.l.b16 %v6990
      %v7078 = vunpack.c.l.b16 %v6991
      %v7079 = vunpack.c.l.b16 %v6992
      %v7080 = vunpack.c.l.b16 %v6993
      %v7081 = vunpack.c.l.b16 %v6994
      %v7082 = vunpack.c.l.b16 %v6995
      %v7083 = vunpack.c.l.b16 %v6996
      %v7084 = vunpack.c.l.b16 %v6997
      %v7085 = vunpack.c.l.b16 %v6998
      %v7086 = vunpack.c.l.b16 %v6999
      %v7087 = vunpack.c.l.b16 %v7000
      %v7088 = vunpack.c.l.b16 %v7001
      %v7089 = vunpack.c.l.b16 %v7002
      %v7090 = vunpack.c.l.b16 %v7003
      %v7091 = vunpack.c.l.b16 %v7004
      %v7092 = vunpack.c.l.b16 %v7005
      %v7093 = vunpack.c.l.b16 %v7006
      %v7094 = vunpack.c.l.b16 %v7007
      %v7095 = vunpack.c.l.b16 %v7008
      %v7096 = vunpack.c.l.b16 %v7009
      %v7097 = vunpack.c.l.b16 %v7010
      %v7098 = vunpack.c.l.b16 %v7011
      %v7099 = vunpack.c.l.b16 %v7012
      %v7100 = vunpack.c.l.b16 %v7013
      %v7101 = vunpack.c.l.b16 %v7014
      %v7102 = vunpack.c.l.b16 %v7015
      %v7103 = vunpack.c.l.b16 %v7016
      %v7104 = vunpack.c.l.b16 %v7017
      %v7105 = vunpack.c.l.b16 %v7018
      %v7106 = vpack.c.b16 %v7070, %v7069
      %v7107 = vpack.c.b16 %v7072, %v7071
      %v7108 = vpack.c.b16 %v7074, %v7073
      %v7109 = vpack.c.b16 %v7076, %v7075
      %v7110 = vpack.c.b16 %v7078, %v7077
      %v7111 = vpack.c.b16 %v7080, %v7079
      %v7112 = vpack.c.b16 %v7082, %v7081
      %v7113 = vpack.c.b16 %v7084, %v7083
      %v7114 = vpack.c.b16 %v7086, %v7085
      %v7115 = vpack.c.b16 %v7088, %v7087
      %v7116 = vpack.c.b16 %v7090, %v7089
      %v7117 = vpack.c.b16 %v7092, %v7091
      %v7118 = vpack.c.b16 %v7094, %v7093
      %v7119 = vpack.c.b16 %v7096, %v7095
      %v7120 = vpack.c.b16 %v7098, %v7097
      %v7121 = vpack.c.b16 %v7100, %v7099
      %v7122 = vpack.c.b16 %v7102, %v7101
      %v7123 = vpack.c.b16 %v7104, %v7103
      %v7124 = vpack.c.b16 %v7105, %v7105
      %v7125 = vrot.slane %v7106, 1
      %v7126 = vrot.slane %v7107, 1
      %v7127 = vsel %vm2105, %v7125, %v7126
      %v7128 = vrot.slane %v7108, 1
      %v7129 = vsel %vm2105, %v7126, %v7128
      %v7130 = vrot.slane %v7109, 1
      %v7131 = vsel %vm2105, %v7128, %v7130
      %v7132 = vrot.slane %v7110, 1
      %v7133 = vsel %vm2105, %v7130, %v7132
      %v7134 = vrot.slane %v7111, 1
      %v7135 = vsel %vm2105, %v7132, %v7134
      %v7136 = vrot.slane %v7112, 1
      %v7137 = vsel %vm2105, %v7134, %v7136
      %v7138 = vrot.slane %v7113, 1
      %v7139 = vsel %vm2105, %v7136, %v7138
      %v7140 = vrot.slane %v7114, 1
      %v7141 = vsel %vm2105, %v7138, %v7140
      %v7142 = vrot.slane %v7115, 1
      %v7143 = vsel %vm2105, %v7140, %v7142
      %v7144 = vrot.slane %v7116, 1
      %v7145 = vsel %vm2105, %v7142, %v7144
      %v7146 = vrot.slane %v7117, 1
      %v7147 = vsel %vm2105, %v7144, %v7146
      %v7148 = vrot.slane %v7118, 1
      %v7149 = vsel %vm2105, %v7146, %v7148
      %v7150 = vrot.slane %v7119, 1
      %v7151 = vsel %vm2105, %v7148, %v7150
      %v7152 = vrot.slane %v7120, 1
      %v7153 = vsel %vm2105, %v7150, %v7152
      %v7154 = vrot.slane %v7121, 1
      %v7155 = vsel %vm2105, %v7152, %v7154
      %v7156 = vrot.slane %v7122, 1
      %v7157 = vsel %vm2105, %v7154, %v7156
      %v7158 = vrot.slane %v7123, 1
      %v7159 = vsel %vm2105, %v7156, %v7158
      %v7160 = vrot.slane %v7124, 1
      %v7161 = vsel %vm2105, %v7158, %v7160
      %v7174 = vunpack.c.l.b16 %v7020
      %v7175 = vunpack.c.l.b16 %v7021
      %v7176 = vunpack.c.l.b16 %v7022
      %v7177 = vunpack.c.l.b16 %v7023
      %v7178 = vunpack.c.l.b16 %v7024
      %v7179 = vunpack.c.l.b16 %v7025
      %v7180 = vunpack.c.l.b16 %v7026
      %v7181 = vunpack.c.l.b16 %v7027
      %v7182 = vunpack.c.l.b16 %v7028
      %v7183 = vunpack.c.l.b16 %v7029
      %v7184 = vunpack.c.l.b16 %v7030
      %v7185 = vunpack.c.l.b16 %v7031
      %v7186 = vpack.c.b16 %v7175, %v7174
      %v7187 = vpack.c.b16 %v7177, %v7176
      %v7188 = vpack.c.b16 %v7179, %v7178
      %v7189 = vpack.c.b16 %v7181, %v7180
      %v7190 = vpack.c.b16 %v7183, %v7182
      %v7191 = vpack.c.b16 %v7185, %v7184
      %v7199 = vsel %vm394, %v7127, 0
      %v7202 = vsel %vm394, %v7129, 0
      %v7205 = vsel %vm394, %v7131, 0
      %v7208 = vsel %vm394, %v7133, 0
      %v7211 = vsel %vm394, %v7135, 0
      %v7214 = vsel %vm394, %v7137, 0
      %v7217 = vsel %vm394, %v7139, 0
      %v7220 = vsel %vm394, %v7141, 0
      %v7223 = vsel %vm394, %v7143, 0
      %v7226 = vsel %vm394, %v7145, 0
      %v7229 = vsel %vm394, %v7147, 0
      %v7232 = vsel %vm394, %v7149, 0
      %v7235 = vsel %vm394, %v7151, 0
      %v7238 = vsel %vm394, %v7153, 0
      %v7241 = vsel %vm394, %v7155, 0
      %v7244 = vsel %vm394, %v7157, 0
      %v7247 = vsel %vm394, %v7159, 0
      %v7250 = vsel %vm394, %v7161, 0
      %7252 = vmatprep.subr.bf16.mxu0 0
      %7253 = vmatpush1.bf16.msra.mxu0 %v7186
      %7254 = vmatprep.subr.bf16.mxu0 0
      %7255 = vmatpush1.bf16.msra.mxu0 %v7187
      %7256 = vmatprep.subr.bf16.mxu0 0
      %7257 = vmatpush1.bf16.msra.mxu0 %v7188
      %7258 = vmatprep.subr.bf16.mxu0 0
      %7259 = vmatpush1.bf16.msra.mxu0 %v7189
      %7260 = vmatprep.subr.bf16.mxu0 0
      %7261 = vmatpush1.bf16.msra.mxu0 %v7190
      %7262 = vmatprep.subr.bf16.mxu0 0
      %7263 = vmatpush1.bf16.msra.mxu0 %v7191
      %7264 = vmatprep.subr.bf16.mxu0 0
      %7265 = vmatpush1.bf16.msra.mxu0 0
      %7266 = vmatprep.subr.bf16.mxu0 0
      %7267 = vmatpush1.bf16.msra.mxu0 0
      %7268 = vmatprep.subr.bf16.mxu0 0
      %7269 = vmatpush1.bf16.msra.mxu0 0
      %7270 = vmatprep.subr.bf16.mxu0 0
      %7271 = vmatpush1.bf16.msra.mxu0 0
      %7272 = vmatprep.subr.bf16.mxu0 0
      %7273 = vmatpush1.bf16.msra.mxu0 0
      %7274 = vmatprep.subr.bf16.mxu0 0
      %7275 = vmatpush1.bf16.msra.mxu0 0
      %7276 = vmatprep.subr.bf16.mxu0 0
      %7277 = vmatpush1.bf16.msra.mxu0 0
      %7278 = vmatprep.subr.bf16.mxu0 0
      %7279 = vmatpush1.bf16.msra.mxu0 0
      %7280 = vmatprep.subr.bf16.mxu0 0
      %7281 = vmatpush1.bf16.msra.mxu0 0
      %7282 = vmatprep.subr.bf16.mxu0 0
      %7283 = vmatpush1.bf16.msra.mxu0 0
      %7284 = vmatprep.mubr.bf16.mxu0 0
      %7285 = vmatmul.mubr.bf16.gmra.mrb[0].mxu0 %v7199
      %v7286 = vpop.f32.mrb[0].mxu0
      %v7287 = vadd.f32 0.0, %v7286
      %v7288 = vpop.f32.mrb[0].mxu0
      %v7289 = vpop.f32.mrb[0].mxu0
      %v7290 = vadd.f32 0.0, %v7289
      %v7291 = vpop.f32.mrb[0].mxu0
      %7292 = vmatprep.mubr.bf16.mxu0 0
      %7293 = vmatmul.mubr.bf16.gmra.mrb[0].mxu0 %v7202
      %v7294 = vpop.f32.mrb[0].mxu0
      %v7295 = vadd.f32 0.0, %v7294
      %v7296 = vpop.f32.mrb[0].mxu0
      %v7297 = vpop.f32.mrb[0].mxu0
      %v7298 = vadd.f32 0.0, %v7297
      %v7299 = vpop.f32.mrb[0].mxu0
      %7300 = vmatprep.mubr.bf16.mxu0 0
      %7301 = vmatmul.mubr.bf16.gmra.mrb[0].mxu0 %v7205
      %v7302 = vpop.f32.mrb[0].mxu0
      %v7303 = vadd.f32 0.0, %v7302
      %v7304 = vpop.f32.mrb[0].mxu0
      %v7305 = vpop.f32.mrb[0].mxu0
      %v7306 = vadd.f32 0.0, %v7305
      %v7307 = vpop.f32.mrb[0].mxu0
      %7308 = vmatprep.mubr.bf16.mxu0 0
      %7309 = vmatmul.mubr.bf16.gmra.mrb[0].mxu0 %v7208
      %v7310 = vpop.f32.mrb[0].mxu0
      %v7311 = vadd.f32 0.0, %v7310
      %v7312 = vpop.f32.mrb[0].mxu0
      %v7313 = vpop.f32.mrb[0].mxu0
      %v7314 = vadd.f32 0.0, %v7313
      %v7315 = vpop.f32.mrb[0].mxu0
      %7316 = vmatprep.mubr.bf16.mxu0 0
      %7317 = vmatmul.mubr.bf16.gmra.mrb[0].mxu0 %v7211
      %v7318 = vpop.f32.mrb[0].mxu0
      %v7319 = vadd.f32 0.0, %v7318
      %v7320 = vpop.f32.mrb[0].mxu0
      %v7321 = vpop.f32.mrb[0].mxu0
      %v7322 = vadd.f32 0.0, %v7321
      %v7323 = vpop.f32.mrb[0].mxu0
      %7324 = vmatprep.mubr.bf16.mxu0 0
      %7325 = vmatmul.mubr.bf16.gmra.mrb[0].mxu0 %v7214
      %v7326 = vpop.f32.mrb[0].mxu0
      %v7327 = vadd.f32 0.0, %v7326
      %v7328 = vpop.f32.mrb[0].mxu0
      %v7329 = vpop.f32.mrb[0].mxu0
      %v7330 = vadd.f32 0.0, %v7329
      %v7331 = vpop.f32.mrb[0].mxu0
      %7332 = vmatprep.mubr.bf16.mxu0 0
      %7333 = vmatmul.mubr.bf16.gmra.mrb[0].mxu0 %v7217
      %v7334 = vpop.f32.mrb[0].mxu0
      %v7335 = vadd.f32 0.0, %v7334
      %v7336 = vpop.f32.mrb[0].mxu0
      %v7337 = vpop.f32.mrb[0].mxu0
      %v7338 = vadd.f32 0.0, %v7337
      %v7339 = vpop.f32.mrb[0].mxu0
      %7340 = vmatprep.mubr.bf16.mxu0 0
      %7341 = vmatmul.mubr.bf16.gmra.mrb[0].mxu0 %v7220
      %v7342 = vpop.f32.mrb[0].mxu0
      %v7343 = vadd.f32 0.0, %v7342
      %v7344 = vpop.f32.mrb[0].mxu0
      %v7345 = vpop.f32.mrb[0].mxu0
      %v7346 = vadd.f32 0.0, %v7345
      %v7347 = vpop.f32.mrb[0].mxu0
      %7348 = vmatprep.mubr.bf16.mxu0 0
      %7349 = vmatmul.mubr.bf16.gmra.mrb[0].mxu0 %v7223
      %v7350 = vpop.f32.mrb[0].mxu0
      %v7351 = vadd.f32 0.0, %v7350
      %v7352 = vpop.f32.mrb[0].mxu0
      %v7353 = vpop.f32.mrb[0].mxu0
      %v7354 = vadd.f32 0.0, %v7353
      %v7355 = vpop.f32.mrb[0].mxu0
      %7356 = vmatprep.mubr.bf16.mxu0 0
      %7357 = vmatmul.mubr.bf16.gmra.mrb[0].mxu0 %v7226
      %v7358 = vpop.f32.mrb[0].mxu0
      %v7359 = vadd.f32 0.0, %v7358
      %v7360 = vpop.f32.mrb[0].mxu0
      %v7361 = vpop.f32.mrb[0].mxu0
      %v7362 = vadd.f32 0.0, %v7361
      %v7363 = vpop.f32.mrb[0].mxu0
      %7364 = vmatprep.mubr.bf16.mxu0 0
      %7365 = vmatmul.mubr.bf16.gmra.mrb[0].mxu0 %v7229
      %v7366 = vpop.f32.mrb[0].mxu0
      %v7367 = vadd.f32 0.0, %v7366
      %v7368 = vpop.f32.mrb[0].mxu0
      %v7369 = vpop.f32.mrb[0].mxu0
      %v7370 = vadd.f32 0.0, %v7369
      %v7371 = vpop.f32.mrb[0].mxu0
      %7372 = vmatprep.mubr.bf16.mxu0 0
      %7373 = vmatmul.mubr.bf16.gmra.mrb[0].mxu0 %v7232
      %v7374 = vpop.f32.mrb[0].mxu0
      %v7375 = vadd.f32 0.0, %v7374
      %v7376 = vpop.f32.mrb[0].mxu0
      %v7377 = vpop.f32.mrb[0].mxu0
      %v7378 = vadd.f32 0.0, %v7377
      %v7379 = vpop.f32.mrb[0].mxu0
      %7380 = vmatprep.mubr.bf16.mxu0 0
      %7381 = vmatmul.mubr.bf16.gmra.mrb[0].mxu0 %v7235
      %v7382 = vpop.f32.mrb[0].mxu0
      %v7383 = vadd.f32 0.0, %v7382
      %v7384 = vpop.f32.mrb[0].mxu0
      %v7385 = vpop.f32.mrb[0].mxu0
      %v7386 = vadd.f32 0.0, %v7385
      %v7387 = vpop.f32.mrb[0].mxu0
      %7388 = vmatprep.mubr.bf16.mxu0 0
      %7389 = vmatmul.mubr.bf16.gmra.mrb[0].mxu0 %v7238
      %v7390 = vpop.f32.mrb[0].mxu0
      %v7391 = vadd.f32 0.0, %v7390
      %v7392 = vpop.f32.mrb[0].mxu0
      %v7393 = vpop.f32.mrb[0].mxu0
      %v7394 = vadd.f32 0.0, %v7393
      %v7395 = vpop.f32.mrb[0].mxu0
      %7396 = vmatprep.mubr.bf16.mxu0 0
      %7397 = vmatmul.mubr.bf16.gmra.mrb[0].mxu0 %v7241
      %v7398 = vpop.f32.mrb[0].mxu0
      %v7399 = vadd.f32 0.0, %v7398
      %v7400 = vpop.f32.mrb[0].mxu0
      %v7401 = vpop.f32.mrb[0].mxu0
      %v7402 = vadd.f32 0.0, %v7401
      %v7403 = vpop.f32.mrb[0].mxu0
      %7404 = vmatprep.mubr.bf16.mxu0 0
      %7405 = vmatmul.mubr.bf16.gmra.mrb[0].mxu0 %v7244
      %v7406 = vpop.f32.mrb[0].mxu0
      %v7407 = vadd.f32 0.0, %v7406
      %v7408 = vpop.f32.mrb[0].mxu0
      %v7409 = vpop.f32.mrb[0].mxu0
      %v7410 = vadd.f32 0.0, %v7409
      %v7411 = vpop.f32.mrb[0].mxu0
      %7412 = vmatprep.mubr.bf16.mxu0 0
      %7413 = vmatmul.mubr.bf16.gmra.mrb[0].mxu0 %v7247
      %v7414 = vpop.f32.mrb[0].mxu0
      %v7415 = vadd.f32 0.0, %v7414
      %v7416 = vpop.f32.mrb[0].mxu0
      %v7417 = vpop.f32.mrb[0].mxu0
      %v7418 = vadd.f32 0.0, %v7417
      %v7419 = vpop.f32.mrb[0].mxu0
      %7420 = vmatprep.mubr.bf16.mxu0 0
      %7421 = vmatmul.mubr.bf16.gmra.mrb[0].mxu0 %v7250
      %v7422 = vpop.f32.mrb[0].mxu0
      %v7423 = vadd.f32 0.0, %v7422
      %v7424 = vpop.f32.mrb[0].mxu0
      %v7425 = vpop.f32.mrb[0].mxu0
      %v7426 = vadd.f32 0.0, %v7425
      %v7427 = vpop.f32.mrb[0].mxu0
      %7428 = vdwg.mxu0
      %v7429 = vadd.f32 %v6946, %v7287
      %v7430 = vadd.f32 %v6947, %v7290
      %v7431 = vadd.f32 %v6948, %v7295
      %v7432 = vadd.f32 %v6949, %v7298
      %v7433 = vadd.f32 %v6950, %v7303
      %v7434 = vadd.f32 %v6951, %v7306
      %v7435 = vadd.f32 %v6952, %v7311
      %v7436 = vadd.f32 %v6953, %v7314
      %v7437 = vadd.f32 %v6954, %v7319
      %v7438 = vadd.f32 %v6955, %v7322
      %v7439 = vadd.f32 %v6956, %v7327
      %v7440 = vadd.f32 %v6957, %v7330
      %v7441 = vadd.f32 %v6958, %v7335
      %v7442 = vadd.f32 %v6959, %v7338
      %v7443 = vadd.f32 %v6960, %v7343
      %v7444 = vadd.f32 %v6961, %v7346
      %v7445 = vadd.f32 %v6962, %v7351
      %v7446 = vadd.f32 %v6963, %v7354
      %v7447 = vadd.f32 %v6964, %v7359
      %v7448 = vadd.f32 %v6965, %v7362
      %v7449 = vadd.f32 %v6966, %v7367
      %v7450 = vadd.f32 %v6967, %v7370
      %v7451 = vadd.f32 %v6968, %v7375
      %v7452 = vadd.f32 %v6969, %v7378
      %v7453 = vadd.f32 %v6970, %v7383
      %v7454 = vadd.f32 %v6971, %v7386
      %v7455 = vadd.f32 %v6972, %v7391
      %v7456 = vadd.f32 %v6973, %v7394
      %v7457 = vadd.f32 %v6974, %v7399
      %v7458 = vadd.f32 %v6975, %v7402
      %v7459 = vadd.f32 %v6976, %v7407
      %v7460 = vadd.f32 %v6977, %v7410
      %v7461 = vadd.f32 %v6978, %v7415
      %v7462 = vadd.f32 %v6979, %v7418
      %v7463 = vadd.f32 %v6980, %v7423
      %v7464 = vadd.f32 %v6981, %v7426
      %v7465 = vld [vmem:[#allocation2 + $0x98] sm:$0x3]
      %s7466 = scalar_lea.vmem %s4, 192
      %v7467 = vld [vmem:[%s7466] sm:$0xf]
      %v7468 = vld [vmem:[%s7466 + $0x4] sm:$0xf]
      %v7469 = vld [vmem:[%s7466 + $0x8] sm:$0xf]
      %v7470 = vld [vmem:[%s7466 + $0xc] sm:$0xf]
      %v7471 = vld [vmem:[%s7466 + $0x10] sm:$0xf]
      %v7472 = vld [vmem:[%s7466 + $0x14] sm:$0xf]
      %v7473 = vld [vmem:[%s7466 + $0x18] sm:$0xf]
      %v7474 = vld [vmem:[%s7466 + $0x1c] sm:$0xf]
      %v7475 = vld [vmem:[%s7466 + $0x20] sm:$0xf]
      %v7476 = vld [vmem:[%s7466 + $0x24] sm:$0xf]
      %v7477 = vld [vmem:[%s7466 + $0x28] sm:$0xf]
      %v7478 = vld [vmem:[%s7466 + $0x2c] sm:$0xf]
      %v7480 = vunpack.c.l.b16 %v7465
      %v7481 = vpack.c.b16 %v7480, %v7480
      %v7483 = vshrl.u32 %v7106, 16
      %v7485 = vrot.slane %v7483, 1
      %v7486 = vshll.u32 %v7106, 16
      %v7488 = vrot.slane %v7486, 2
      %v7489 = vor.u32 %v7485, %v7488
      %v7491 = vshrl.u32 %v7107, 16
      %v7493 = vrot.slane %v7491, 1
      %v7494 = vshll.u32 %v7107, 16
      %v7496 = vrot.slane %v7494, 2
      %v7497 = vor.u32 %v7493, %v7496
      %v7498 = vsel %vm2946, %v7489, %v7497
      %v7500 = vshrl.u32 %v7108, 16
      %v7502 = vrot.slane %v7500, 1
      %v7503 = vshll.u32 %v7108, 16
      %v7505 = vrot.slane %v7503, 2
      %v7506 = vor.u32 %v7502, %v7505
      %v7507 = vsel %vm2946, %v7497, %v7506
      %v7509 = vshrl.u32 %v7109, 16
      %v7511 = vrot.slane %v7509, 1
      %v7512 = vshll.u32 %v7109, 16
      %v7514 = vrot.slane %v7512, 2
      %v7515 = vor.u32 %v7511, %v7514
      %v7516 = vsel %vm2946, %v7506, %v7515
      %v7518 = vshrl.u32 %v7110, 16
      %v7520 = vrot.slane %v7518, 1
      %v7521 = vshll.u32 %v7110, 16
      %v7523 = vrot.slane %v7521, 2
      %v7524 = vor.u32 %v7520, %v7523
      %v7525 = vsel %vm2946, %v7515, %v7524
      %v7527 = vshrl.u32 %v7111, 16
      %v7529 = vrot.slane %v7527, 1
      %v7530 = vshll.u32 %v7111, 16
      %v7532 = vrot.slane %v7530, 2
      %v7533 = vor.u32 %v7529, %v7532
      %v7534 = vsel %vm2946, %v7524, %v7533
      %v7536 = vshrl.u32 %v7112, 16
      %v7538 = vrot.slane %v7536, 1
      %v7539 = vshll.u32 %v7112, 16
      %v7541 = vrot.slane %v7539, 2
      %v7542 = vor.u32 %v7538, %v7541
      %v7543 = vsel %vm2946, %v7533, %v7542
      %v7545 = vshrl.u32 %v7113, 16
      %v7547 = vrot.slane %v7545, 1
      %v7548 = vshll.u32 %v7113, 16
      %v7550 = vrot.slane %v7548, 2
      %v7551 = vor.u32 %v7547, %v7550
      %v7552 = vsel %vm2946, %v7542, %v7551
      %v7554 = vshrl.u32 %v7114, 16
      %v7556 = vrot.slane %v7554, 1
      %v7557 = vshll.u32 %v7114, 16
      %v7559 = vrot.slane %v7557, 2
      %v7560 = vor.u32 %v7556, %v7559
      %v7561 = vsel %vm2946, %v7551, %v7560
      %v7563 = vshrl.u32 %v7115, 16
      %v7565 = vrot.slane %v7563, 1
      %v7566 = vshll.u32 %v7115, 16
      %v7568 = vrot.slane %v7566, 2
      %v7569 = vor.u32 %v7565, %v7568
      %v7570 = vsel %vm2946, %v7560, %v7569
      %v7572 = vshrl.u32 %v7116, 16
      %v7574 = vrot.slane %v7572, 1
      %v7575 = vshll.u32 %v7116, 16
      %v7577 = vrot.slane %v7575, 2
      %v7578 = vor.u32 %v7574, %v7577
      %v7579 = vsel %vm2946, %v7569, %v7578
      %v7581 = vshrl.u32 %v7117, 16
      %v7583 = vrot.slane %v7581, 1
      %v7584 = vshll.u32 %v7117, 16
      %v7586 = vrot.slane %v7584, 2
      %v7587 = vor.u32 %v7583, %v7586
      %v7588 = vsel %vm2946, %v7578, %v7587
      %v7590 = vshrl.u32 %v7118, 16
      %v7592 = vrot.slane %v7590, 1
      %v7593 = vshll.u32 %v7118, 16
      %v7595 = vrot.slane %v7593, 2
      %v7596 = vor.u32 %v7592, %v7595
      %v7597 = vsel %vm2946, %v7587, %v7596
      %v7599 = vshrl.u32 %v7119, 16
      %v7601 = vrot.slane %v7599, 1
      %v7602 = vshll.u32 %v7119, 16
      %v7604 = vrot.slane %v7602, 2
      %v7605 = vor.u32 %v7601, %v7604
      %v7606 = vsel %vm2946, %v7596, %v7605
      %v7608 = vshrl.u32 %v7120, 16
      %v7610 = vrot.slane %v7608, 1
      %v7611 = vshll.u32 %v7120, 16
      %v7613 = vrot.slane %v7611, 2
      %v7614 = vor.u32 %v7610, %v7613
      %v7615 = vsel %vm2946, %v7605, %v7614
      %v7617 = vshrl.u32 %v7121, 16
      %v7619 = vrot.slane %v7617, 1
      %v7620 = vshll.u32 %v7121, 16
      %v7622 = vrot.slane %v7620, 2
      %v7623 = vor.u32 %v7619, %v7622
      %v7624 = vsel %vm2946, %v7614, %v7623
      %v7626 = vshrl.u32 %v7122, 16
      %v7628 = vrot.slane %v7626, 1
      %v7629 = vshll.u32 %v7122, 16
      %v7631 = vrot.slane %v7629, 2
      %v7632 = vor.u32 %v7628, %v7631
      %v7633 = vsel %vm2946, %v7623, %v7632
      %v7635 = vshrl.u32 %v7123, 16
      %v7637 = vrot.slane %v7635, 1
      %v7638 = vshll.u32 %v7123, 16
      %v7640 = vrot.slane %v7638, 2
      %v7641 = vor.u32 %v7637, %v7640
      %v7642 = vsel %vm2946, %v7632, %v7641
      %v7644 = vshrl.u32 %v7481, 16
      %v7646 = vrot.slane %v7644, 1
      %v7647 = vshll.u32 %v7481, 16
      %v7649 = vrot.slane %v7647, 2
      %v7650 = vor.u32 %v7646, %v7649
      %v7651 = vsel %vm2946, %v7641, %v7650
      %v7664 = vunpack.c.l.b16 %v7467
      %v7665 = vunpack.c.l.b16 %v7468
      %v7666 = vunpack.c.l.b16 %v7469
      %v7667 = vunpack.c.l.b16 %v7470
      %v7668 = vunpack.c.l.b16 %v7471
      %v7669 = vunpack.c.l.b16 %v7472
      %v7670 = vunpack.c.l.b16 %v7473
      %v7671 = vunpack.c.l.b16 %v7474
      %v7672 = vunpack.c.l.b16 %v7475
      %v7673 = vunpack.c.l.b16 %v7476
      %v7674 = vunpack.c.l.b16 %v7477
      %v7675 = vunpack.c.l.b16 %v7478
      %v7676 = vpack.c.b16 %v7665, %v7664
      %v7677 = vpack.c.b16 %v7667, %v7666
      %v7678 = vpack.c.b16 %v7669, %v7668
      %v7679 = vpack.c.b16 %v7671, %v7670
      %v7680 = vpack.c.b16 %v7673, %v7672
      %v7681 = vpack.c.b16 %v7675, %v7674
      %v7689 = vsel %vm394, %v7498, 0
      %v7692 = vsel %vm394, %v7507, 0
      %v7695 = vsel %vm394, %v7516, 0
      %v7698 = vsel %vm394, %v7525, 0
      %v7701 = vsel %vm394, %v7534, 0
      %v7704 = vsel %vm394, %v7543, 0
      %v7707 = vsel %vm394, %v7552, 0
      %v7710 = vsel %vm394, %v7561, 0
      %v7713 = vsel %vm394, %v7570, 0
      %v7716 = vsel %vm394, %v7579, 0
      %v7719 = vsel %vm394, %v7588, 0
      %v7722 = vsel %vm394, %v7597, 0
      %v7725 = vsel %vm394, %v7606, 0
      %v7728 = vsel %vm394, %v7615, 0
      %v7731 = vsel %vm394, %v7624, 0
      %v7734 = vsel %vm394, %v7633, 0
      %v7737 = vsel %vm394, %v7642, 0
      %v7740 = vsel %vm394, %v7651, 0
      %7742 = vmatprep.subr.bf16.mxu0 0
      %7743 = vmatpush1.bf16.msra.mxu0 %v7676
      %7744 = vmatprep.subr.bf16.mxu0 0
      %7745 = vmatpush1.bf16.msra.mxu0 %v7677
      %7746 = vmatprep.subr.bf16.mxu0 0
      %7747 = vmatpush1.bf16.msra.mxu0 %v7678
      %7748 = vmatprep.subr.bf16.mxu0 0
      %7749 = vmatpush1.bf16.msra.mxu0 %v7679
      %7750 = vmatprep.subr.bf16.mxu0 0
      %7751 = vmatpush1.bf16.msra.mxu0 %v7680
      %7752 = vmatprep.subr.bf16.mxu0 0
      %7753 = vmatpush1.bf16.msra.mxu0 %v7681
      %7754 = vmatprep.subr.bf16.mxu0 0
      %7755 = vmatpush1.bf16.msra.mxu0 0
      %7756 = vmatprep.subr.bf16.mxu0 0
      %7757 = vmatpush1.bf16.msra.mxu0 0
      %7758 = vmatprep.subr.bf16.mxu0 0
      %7759 = vmatpush1.bf16.msra.mxu0 0
      %7760 = vmatprep.subr.bf16.mxu0 0
      %7761 = vmatpush1.bf16.msra.mxu0 0
      %7762 = vmatprep.subr.bf16.mxu0 0
      %7763 = vmatpush1.bf16.msra.mxu0 0
      %7764 = vmatprep.subr.bf16.mxu0 0
      %7765 = vmatpush1.bf16.msra.mxu0 0
      %7766 = vmatprep.subr.bf16.mxu0 0
      %7767 = vmatpush1.bf16.msra.mxu0 0
      %7768 = vmatprep.subr.bf16.mxu0 0
      %7769 = vmatpush1.bf16.msra.mxu0 0
      %7770 = vmatprep.subr.bf16.mxu0 0
      %7771 = vmatpush1.bf16.msra.mxu0 0
      %7772 = vmatprep.subr.bf16.mxu0 0
      %7773 = vmatpush1.bf16.msra.mxu0 0
      %7774 = vmatprep.mubr.bf16.mxu0 0
      %7775 = vmatmul.mubr.bf16.gmra.mrb[0].mxu0 %v7689
      %v7776 = vpop.f32.mrb[0].mxu0
      %v7777 = vadd.f32 0.0, %v7776
      %v7778 = vpop.f32.mrb[0].mxu0
      %v7779 = vpop.f32.mrb[0].mxu0
      %v7780 = vadd.f32 0.0, %v7779
      %v7781 = vpop.f32.mrb[0].mxu0
      %7782 = vmatprep.mubr.bf16.mxu0 0
      %7783 = vmatmul.mubr.bf16.gmra.mrb[0].mxu0 %v7692
      %v7784 = vpop.f32.mrb[0].mxu0
      %v7785 = vadd.f32 0.0, %v7784
      %v7786 = vpop.f32.mrb[0].mxu0
      %v7787 = vpop.f32.mrb[0].mxu0
      %v7788 = vadd.f32 0.0, %v7787
      %v7789 = vpop.f32.mrb[0].mxu0
      %7790 = vmatprep.mubr.bf16.mxu0 0
      %7791 = vmatmul.mubr.bf16.gmra.mrb[0].mxu0 %v7695
      %v7792 = vpop.f32.mrb[0].mxu0
      %v7793 = vadd.f32 0.0, %v7792
      %v7794 = vpop.f32.mrb[0].mxu0
      %v7795 = vpop.f32.mrb[0].mxu0
      %v7796 = vadd.f32 0.0, %v7795
      %v7797 = vpop.f32.mrb[0].mxu0
      %7798 = vmatprep.mubr.bf16.mxu0 0
      %7799 = vmatmul.mubr.bf16.gmra.mrb[0].mxu0 %v7698
      %v7800 = vpop.f32.mrb[0].mxu0
      %v7801 = vadd.f32 0.0, %v7800
      %v7802 = vpop.f32.mrb[0].mxu0
      %v7803 = vpop.f32.mrb[0].mxu0
      %v7804 = vadd.f32 0.0, %v7803
      %v7805 = vpop.f32.mrb[0].mxu0
      %7806 = vmatprep.mubr.bf16.mxu0 0
      %7807 = vmatmul.mubr.bf16.gmra.mrb[0].mxu0 %v7701
      %v7808 = vpop.f32.mrb[0].mxu0
      %v7809 = vadd.f32 0.0, %v7808
      %v7810 = vpop.f32.mrb[0].mxu0
      %v7811 = vpop.f32.mrb[0].mxu0
      %v7812 = vadd.f32 0.0, %v7811
      %v7813 = vpop.f32.mrb[0].mxu0
      %7814 = vmatprep.mubr.bf16.mxu0 0
      %7815 = vmatmul.mubr.bf16.gmra.mrb[0].mxu0 %v7704
      %v7816 = vpop.f32.mrb[0].mxu0
      %v7817 = vadd.f32 0.0, %v7816
      %v7818 = vpop.f32.mrb[0].mxu0
      %v7819 = vpop.f32.mrb[0].mxu0
      %v7820 = vadd.f32 0.0, %v7819
      %v7821 = vpop.f32.mrb[0].mxu0
      %7822 = vmatprep.mubr.bf16.mxu0 0
      %7823 = vmatmul.mubr.bf16.gmra.mrb[0].mxu0 %v7707
      %v7824 = vpop.f32.mrb[0].mxu0
      %v7825 = vadd.f32 0.0, %v7824
      %v7826 = vpop.f32.mrb[0].mxu0
      %v7827 = vpop.f32.mrb[0].mxu0
      %v7828 = vadd.f32 0.0, %v7827
      %v7829 = vpop.f32.mrb[0].mxu0
      %7830 = vmatprep.mubr.bf16.mxu0 0
      %7831 = vmatmul.mubr.bf16.gmra.mrb[0].mxu0 %v7710
      %v7832 = vpop.f32.mrb[0].mxu0
      %v7833 = vadd.f32 0.0, %v7832
      %v7834 = vpop.f32.mrb[0].mxu0
      %v7835 = vpop.f32.mrb[0].mxu0
      %v7836 = vadd.f32 0.0, %v7835
      %v7837 = vpop.f32.mrb[0].mxu0
      %7838 = vmatprep.mubr.bf16.mxu0 0
      %7839 = vmatmul.mubr.bf16.gmra.mrb[0].mxu0 %v7713
      %v7840 = vpop.f32.mrb[0].mxu0
      %v7841 = vadd.f32 0.0, %v7840
      %v7842 = vpop.f32.mrb[0].mxu0
      %v7843 = vpop.f32.mrb[0].mxu0
      %v7844 = vadd.f32 0.0, %v7843
      %v7845 = vpop.f32.mrb[0].mxu0
      %7846 = vmatprep.mubr.bf16.mxu0 0
      %7847 = vmatmul.mubr.bf16.gmra.mrb[0].mxu0 %v7716
      %v7848 = vpop.f32.mrb[0].mxu0
      %v7849 = vadd.f32 0.0, %v7848
      %v7850 = vpop.f32.mrb[0].mxu0
      %v7851 = vpop.f32.mrb[0].mxu0
      %v7852 = vadd.f32 0.0, %v7851
      %v7853 = vpop.f32.mrb[0].mxu0
      %7854 = vmatprep.mubr.bf16.mxu0 0
      %7855 = vmatmul.mubr.bf16.gmra.mrb[0].mxu0 %v7719
      %v7856 = vpop.f32.mrb[0].mxu0
      %v7857 = vadd.f32 0.0, %v7856
      %v7858 = vpop.f32.mrb[0].mxu0
      %v7859 = vpop.f32.mrb[0].mxu0
      %v7860 = vadd.f32 0.0, %v7859
      %v7861 = vpop.f32.mrb[0].mxu0
      %7862 = vmatprep.mubr.bf16.mxu0 0
      %7863 = vmatmul.mubr.bf16.gmra.mrb[0].mxu0 %v7722
      %v7864 = vpop.f32.mrb[0].mxu0
      %v7865 = vadd.f32 0.0, %v7864
      %v7866 = vpop.f32.mrb[0].mxu0
      %v7867 = vpop.f32.mrb[0].mxu0
      %v7868 = vadd.f32 0.0, %v7867
      %v7869 = vpop.f32.mrb[0].mxu0
      %7870 = vmatprep.mubr.bf16.mxu0 0
      %7871 = vmatmul.mubr.bf16.gmra.mrb[0].mxu0 %v7725
      %v7872 = vpop.f32.mrb[0].mxu0
      %v7873 = vadd.f32 0.0, %v7872
      %v7874 = vpop.f32.mrb[0].mxu0
      %v7875 = vpop.f32.mrb[0].mxu0
      %v7876 = vadd.f32 0.0, %v7875
      %v7877 = vpop.f32.mrb[0].mxu0
      %7878 = vmatprep.mubr.bf16.mxu0 0
      %7879 = vmatmul.mubr.bf16.gmra.mrb[0].mxu0 %v7728
      %v7880 = vpop.f32.mrb[0].mxu0
      %v7881 = vadd.f32 0.0, %v7880
      %v7882 = vpop.f32.mrb[0].mxu0
      %v7883 = vpop.f32.mrb[0].mxu0
      %v7884 = vadd.f32 0.0, %v7883
      %v7885 = vpop.f32.mrb[0].mxu0
      %7886 = vmatprep.mubr.bf16.mxu0 0
      %7887 = vmatmul.mubr.bf16.gmra.mrb[0].mxu0 %v7731
      %v7888 = vpop.f32.mrb[0].mxu0
      %v7889 = vadd.f32 0.0, %v7888
      %v7890 = vpop.f32.mrb[0].mxu0
      %v7891 = vpop.f32.mrb[0].mxu0
      %v7892 = vadd.f32 0.0, %v7891
      %v7893 = vpop.f32.mrb[0].mxu0
      %7894 = vmatprep.mubr.bf16.mxu0 0
      %7895 = vmatmul.mubr.bf16.gmra.mrb[0].mxu0 %v7734
      %v7896 = vpop.f32.mrb[0].mxu0
      %v7897 = vadd.f32 0.0, %v7896
      %v7898 = vpop.f32.mrb[0].mxu0
      %v7899 = vpop.f32.mrb[0].mxu0
      %v7900 = vadd.f32 0.0, %v7899
      %v7901 = vpop.f32.mrb[0].mxu0
      %7902 = vmatprep.mubr.bf16.mxu0 0
      %7903 = vmatmul.mubr.bf16.gmra.mrb[0].mxu0 %v7737
      %v7904 = vpop.f32.mrb[0].mxu0
      %v7905 = vadd.f32 0.0, %v7904
      %v7906 = vpop.f32.mrb[0].mxu0
      %v7907 = vpop.f32.mrb[0].mxu0
      %v7908 = vadd.f32 0.0, %v7907
      %v7909 = vpop.f32.mrb[0].mxu0
      %7910 = vmatprep.mubr.bf16.mxu0 0
      %7911 = vmatmul.mubr.bf16.gmra.mrb[0].mxu0 %v7740
      %v7912 = vpop.f32.mrb[0].mxu0
      %v7913 = vadd.f32 0.0, %v7912
      %v7914 = vpop.f32.mrb[0].mxu0
      %v7915 = vpop.f32.mrb[0].mxu0
      %v7916 = vadd.f32 0.0, %v7915
      %v7917 = vpop.f32.mrb[0].mxu0
      %7918 = vdwg.mxu0
      %v7919 = vadd.f32 %v7429, %v7777
      %v7920 = vadd.f32 %v7430, %v7780
      %v7921 = vadd.f32 %v7431, %v7785
      %v7922 = vadd.f32 %v7432, %v7788
      %v7923 = vadd.f32 %v7433, %v7793
      %v7924 = vadd.f32 %v7434, %v7796
      %v7925 = vadd.f32 %v7435, %v7801
      %v7926 = vadd.f32 %v7436, %v7804
      %v7927 = vadd.f32 %v7437, %v7809
      %v7928 = vadd.f32 %v7438, %v7812
      %v7929 = vadd.f32 %v7439, %v7817
      %v7930 = vadd.f32 %v7440, %v7820
      %v7931 = vadd.f32 %v7441, %v7825
      %v7932 = vadd.f32 %v7442, %v7828
      %v7933 = vadd.f32 %v7443, %v7833
      %v7934 = vadd.f32 %v7444, %v7836
      %v7935 = vadd.f32 %v7445, %v7841
      %v7936 = vadd.f32 %v7446, %v7844
      %v7937 = vadd.f32 %v7447, %v7849
      %v7938 = vadd.f32 %v7448, %v7852
      %v7939 = vadd.f32 %v7449, %v7857
      %v7940 = vadd.f32 %v7450, %v7860
      %v7941 = vadd.f32 %v7451, %v7865
      %v7942 = vadd.f32 %v7452, %v7868
      %v7943 = vadd.f32 %v7453, %v7873
      %v7944 = vadd.f32 %v7454, %v7876
      %v7945 = vadd.f32 %v7455, %v7881
      %v7946 = vadd.f32 %v7456, %v7884
      %v7947 = vadd.f32 %v7457, %v7889
      %v7948 = vadd.f32 %v7458, %v7892
      %v7949 = vadd.f32 %v7459, %v7897
      %v7950 = vadd.f32 %v7460, %v7900
      %v7951 = vadd.f32 %v7461, %v7905
      %v7952 = vadd.f32 %v7462, %v7908
      %v7953 = vadd.f32 %v7463, %v7913
      %v7954 = vadd.f32 %v7464, %v7916
      %v7955 = vld [vmem:[#allocation2 + $0x8] sm:$0xc]
      %s7956 = scalar_lea.vmem %s4, 240
      %v7957 = vld [vmem:[%s7956] sm:$0xf]
      %v7958 = vld [vmem:[%s7956 + $0x4] sm:$0xf]
      %v7959 = vld [vmem:[%s7956 + $0x8] sm:$0xf]
      %v7960 = vld [vmem:[%s7956 + $0xc] sm:$0xf]
      %v7961 = vld [vmem:[%s7956 + $0x10] sm:$0xf]
      %v7962 = vld [vmem:[%s7956 + $0x14] sm:$0xf]
      %v7963 = vld [vmem:[%s7956 + $0x18] sm:$0xf]
      %v7964 = vld [vmem:[%s7956 + $0x1c] sm:$0xf]
      %v7965 = vld [vmem:[%s7956 + $0x20] sm:$0xf]
      %v7966 = vld [vmem:[%s7956 + $0x24] sm:$0xf]
      %v7967 = vld [vmem:[%s7956 + $0x28] sm:$0xf]
      %v7968 = vld [vmem:[%s7956 + $0x2c] sm:$0xf]
      %v7970 = vunpack.c.l.b16 %v7955
      %v7971 = vpack.c.b16 %v7070, %v7970
      %v7972 = vrot.slane %v7971, 2
      %v7973 = vrot.slane %v7107, 2
      %v7974 = vsel %vm3437, %v7972, %v7973
      %v7975 = vrot.slane %v7108, 2
      %v7976 = vsel %vm3437, %v7973, %v7975
      %v7977 = vrot.slane %v7109, 2
      %v7978 = vsel %vm3437, %v7975, %v7977
      %v7979 = vrot.slane %v7110, 2
      %v7980 = vsel %vm3437, %v7977, %v7979
      %v7981 = vrot.slane %v7111, 2
      %v7982 = vsel %vm3437, %v7979, %v7981
      %v7983 = vrot.slane %v7112, 2
      %v7984 = vsel %vm3437, %v7981, %v7983
      %v7985 = vrot.slane %v7113, 2
      %v7986 = vsel %vm3437, %v7983, %v7985
      %v7987 = vrot.slane %v7114, 2
      %v7988 = vsel %vm3437, %v7985, %v7987
      %v7989 = vrot.slane %v7115, 2
      %v7990 = vsel %vm3437, %v7987, %v7989
      %v7991 = vrot.slane %v7116, 2
      %v7992 = vsel %vm3437, %v7989, %v7991
      %v7993 = vrot.slane %v7117, 2
      %v7994 = vsel %vm3437, %v7991, %v7993
      %v7995 = vrot.slane %v7118, 2
      %v7996 = vsel %vm3437, %v7993, %v7995
      %v7997 = vrot.slane %v7119, 2
      %v7998 = vsel %vm3437, %v7995, %v7997
      %v7999 = vrot.slane %v7120, 2
      %v8000 = vsel %vm3437, %v7997, %v7999
      %v8001 = vrot.slane %v7121, 2
      %v8002 = vsel %vm3437, %v7999, %v8001
      %v8003 = vrot.slane %v7122, 2
      %v8004 = vsel %vm3437, %v8001, %v8003
      %v8005 = vrot.slane %v7123, 2
      %v8006 = vsel %vm3437, %v8003, %v8005
      %v8007 = vrot.slane %v7481, 2
      %v8008 = vsel %vm3437, %v8005, %v8007
      %v8021 = vunpack.c.l.b16 %v7957
      %v8022 = vunpack.c.l.b16 %v7958
      %v8023 = vunpack.c.l.b16 %v7959
      %v8024 = vunpack.c.l.b16 %v7960
      %v8025 = vunpack.c.l.b16 %v7961
      %v8026 = vunpack.c.l.b16 %v7962
      %v8027 = vunpack.c.l.b16 %v7963
      %v8028 = vunpack.c.l.b16 %v7964
      %v8029 = vunpack.c.l.b16 %v7965
      %v8030 = vunpack.c.l.b16 %v7966
      %v8031 = vunpack.c.l.b16 %v7967
      %v8032 = vunpack.c.l.b16 %v7968
      %v8033 = vpack.c.b16 %v8022, %v8021
      %v8034 = vpack.c.b16 %v8024, %v8023
      %v8035 = vpack.c.b16 %v8026, %v8025
      %v8036 = vpack.c.b16 %v8028, %v8027
      %v8037 = vpack.c.b16 %v8030, %v8029
      %v8038 = vpack.c.b16 %v8032, %v8031
      %v8046 = vsel %vm394, %v7974, 0
      %v8049 = vsel %vm394, %v7976, 0
      %v8052 = vsel %vm394, %v7978, 0
      %v8055 = vsel %vm394, %v7980, 0
      %v8058 = vsel %vm394, %v7982, 0
      %v8061 = vsel %vm394, %v7984, 0
      %v8064 = vsel %vm394, %v7986, 0
      %v8067 = vsel %vm394, %v7988, 0
      %v8070 = vsel %vm394, %v7990, 0
      %v8073 = vsel %vm394, %v7992, 0
      %v8076 = vsel %vm394, %v7994, 0
      %v8079 = vsel %vm394, %v7996, 0
      %v8082 = vsel %vm394, %v7998, 0
      %v8085 = vsel %vm394, %v8000, 0
      %v8088 = vsel %vm394, %v8002, 0
      %v8091 = vsel %vm394, %v8004, 0
      %v8094 = vsel %vm394, %v8006, 0
      %v8097 = vsel %vm394, %v8008, 0
      %8099 = vmatprep.subr.bf16.mxu0 0
      %8100 = vmatpush1.bf16.msra.mxu0 %v8033
      %8101 = vmatprep.subr.bf16.mxu0 0
      %8102 = vmatpush1.bf16.msra.mxu0 %v8034
      %8103 = vmatprep.subr.bf16.mxu0 0
      %8104 = vmatpush1.bf16.msra.mxu0 %v8035
      %8105 = vmatprep.subr.bf16.mxu0 0
      %8106 = vmatpush1.bf16.msra.mxu0 %v8036
      %8107 = vmatprep.subr.bf16.mxu0 0
      %8108 = vmatpush1.bf16.msra.mxu0 %v8037
      %8109 = vmatprep.subr.bf16.mxu0 0
      %8110 = vmatpush1.bf16.msra.mxu0 %v8038
      %8111 = vmatprep.subr.bf16.mxu0 0
      %8112 = vmatpush1.bf16.msra.mxu0 0
      %8113 = vmatprep.subr.bf16.mxu0 0
      %8114 = vmatpush1.bf16.msra.mxu0 0
      %8115 = vmatprep.subr.bf16.mxu0 0
      %8116 = vmatpush1.bf16.msra.mxu0 0
      %8117 = vmatprep.subr.bf16.mxu0 0
      %8118 = vmatpush1.bf16.msra.mxu0 0
      %8119 = vmatprep.subr.bf16.mxu0 0
      %8120 = vmatpush1.bf16.msra.mxu0 0
      %8121 = vmatprep.subr.bf16.mxu0 0
      %8122 = vmatpush1.bf16.msra.mxu0 0
      %8123 = vmatprep.subr.bf16.mxu0 0
      %8124 = vmatpush1.bf16.msra.mxu0 0
      %8125 = vmatprep.subr.bf16.mxu0 0
      %8126 = vmatpush1.bf16.msra.mxu0 0
      %8127 = vmatprep.subr.bf16.mxu0 0
      %8128 = vmatpush1.bf16.msra.mxu0 0
      %8129 = vmatprep.subr.bf16.mxu0 0
      %8130 = vmatpush1.bf16.msra.mxu0 0
      %8131 = vmatprep.mubr.bf16.mxu0 0
      %8132 = vmatmul.mubr.bf16.gmra.mrb[0].mxu0 %v8046
      %v8133 = vpop.f32.mrb[0].mxu0
      %v8134 = vadd.f32 0.0, %v8133
      %v8135 = vpop.f32.mrb[0].mxu0
      %v8136 = vpop.f32.mrb[0].mxu0
      %v8137 = vadd.f32 0.0, %v8136
      %v8138 = vpop.f32.mrb[0].mxu0
      %8139 = vmatprep.mubr.bf16.mxu0 0
      %8140 = vmatmul.mubr.bf16.gmra.mrb[0].mxu0 %v8049
      %v8141 = vpop.f32.mrb[0].mxu0
      %v8142 = vadd.f32 0.0, %v8141
      %v8143 = vpop.f32.mrb[0].mxu0
      %v8144 = vpop.f32.mrb[0].mxu0
      %v8145 = vadd.f32 0.0, %v8144
      %v8146 = vpop.f32.mrb[0].mxu0
      %8147 = vmatprep.mubr.bf16.mxu0 0
      %8148 = vmatmul.mubr.bf16.gmra.mrb[0].mxu0 %v8052
      %v8149 = vpop.f32.mrb[0].mxu0
      %v8150 = vadd.f32 0.0, %v8149
      %v8151 = vpop.f32.mrb[0].mxu0
      %v8152 = vpop.f32.mrb[0].mxu0
      %v8153 = vadd.f32 0.0, %v8152
      %v8154 = vpop.f32.mrb[0].mxu0
      %8155 = vmatprep.mubr.bf16.mxu0 0
      %8156 = vmatmul.mubr.bf16.gmra.mrb[0].mxu0 %v8055
      %v8157 = vpop.f32.mrb[0].mxu0
      %v8158 = vadd.f32 0.0, %v8157
      %v8159 = vpop.f32.mrb[0].mxu0
      %v8160 = vpop.f32.mrb[0].mxu0
      %v8161 = vadd.f32 0.0, %v8160
      %v8162 = vpop.f32.mrb[0].mxu0
      %8163 = vmatprep.mubr.bf16.mxu0 0
      %8164 = vmatmul.mubr.bf16.gmra.mrb[0].mxu0 %v8058
      %v8165 = vpop.f32.mrb[0].mxu0
      %v8166 = vadd.f32 0.0, %v8165
      %v8167 = vpop.f32.mrb[0].mxu0
      %v8168 = vpop.f32.mrb[0].mxu0
      %v8169 = vadd.f32 0.0, %v8168
      %v8170 = vpop.f32.mrb[0].mxu0
      %8171 = vmatprep.mubr.bf16.mxu0 0
      %8172 = vmatmul.mubr.bf16.gmra.mrb[0].mxu0 %v8061
      %v8173 = vpop.f32.mrb[0].mxu0
      %v8174 = vadd.f32 0.0, %v8173
      %v8175 = vpop.f32.mrb[0].mxu0
      %v8176 = vpop.f32.mrb[0].mxu0
      %v8177 = vadd.f32 0.0, %v8176
      %v8178 = vpop.f32.mrb[0].mxu0
      %8179 = vmatprep.mubr.bf16.mxu0 0
      %8180 = vmatmul.mubr.bf16.gmra.mrb[0].mxu0 %v8064
      %v8181 = vpop.f32.mrb[0].mxu0
      %v8182 = vadd.f32 0.0, %v8181
      %v8183 = vpop.f32.mrb[0].mxu0
      %v8184 = vpop.f32.mrb[0].mxu0
      %v8185 = vadd.f32 0.0, %v8184
      %v8186 = vpop.f32.mrb[0].mxu0
      %8187 = vmatprep.mubr.bf16.mxu0 0
      %8188 = vmatmul.mubr.bf16.gmra.mrb[0].mxu0 %v8067
      %v8189 = vpop.f32.mrb[0].mxu0
      %v8190 = vadd.f32 0.0, %v8189
      %v8191 = vpop.f32.mrb[0].mxu0
      %v8192 = vpop.f32.mrb[0].mxu0
      %v8193 = vadd.f32 0.0, %v8192
      %v8194 = vpop.f32.mrb[0].mxu0
      %8195 = vmatprep.mubr.bf16.mxu0 0
      %8196 = vmatmul.mubr.bf16.gmra.mrb[0].mxu0 %v8070
      %v8197 = vpop.f32.mrb[0].mxu0
      %v8198 = vadd.f32 0.0, %v8197
      %v8199 = vpop.f32.mrb[0].mxu0
      %v8200 = vpop.f32.mrb[0].mxu0
      %v8201 = vadd.f32 0.0, %v8200
      %v8202 = vpop.f32.mrb[0].mxu0
      %8203 = vmatprep.mubr.bf16.mxu0 0
      %8204 = vmatmul.mubr.bf16.gmra.mrb[0].mxu0 %v8073
      %v8205 = vpop.f32.mrb[0].mxu0
      %v8206 = vadd.f32 0.0, %v8205
      %v8207 = vpop.f32.mrb[0].mxu0
      %v8208 = vpop.f32.mrb[0].mxu0
      %v8209 = vadd.f32 0.0, %v8208
      %v8210 = vpop.f32.mrb[0].mxu0
      %8211 = vmatprep.mubr.bf16.mxu0 0
      %8212 = vmatmul.mubr.bf16.gmra.mrb[0].mxu0 %v8076
      %v8213 = vpop.f32.mrb[0].mxu0
      %v8214 = vadd.f32 0.0, %v8213
      %v8215 = vpop.f32.mrb[0].mxu0
      %v8216 = vpop.f32.mrb[0].mxu0
      %v8217 = vadd.f32 0.0, %v8216
      %v8218 = vpop.f32.mrb[0].mxu0
      %8219 = vmatprep.mubr.bf16.mxu0 0
      %8220 = vmatmul.mubr.bf16.gmra.mrb[0].mxu0 %v8079
      %v8221 = vpop.f32.mrb[0].mxu0
      %v8222 = vadd.f32 0.0, %v8221
      %v8223 = vpop.f32.mrb[0].mxu0
      %v8224 = vpop.f32.mrb[0].mxu0
      %v8225 = vadd.f32 0.0, %v8224
      %v8226 = vpop.f32.mrb[0].mxu0
      %8227 = vmatprep.mubr.bf16.mxu0 0
      %8228 = vmatmul.mubr.bf16.gmra.mrb[0].mxu0 %v8082
      %v8229 = vpop.f32.mrb[0].mxu0
      %v8230 = vadd.f32 0.0, %v8229
      %v8231 = vpop.f32.mrb[0].mxu0
      %v8232 = vpop.f32.mrb[0].mxu0
      %v8233 = vadd.f32 0.0, %v8232
      %v8234 = vpop.f32.mrb[0].mxu0
      %8235 = vmatprep.mubr.bf16.mxu0 0
      %8236 = vmatmul.mubr.bf16.gmra.mrb[0].mxu0 %v8085
      %v8237 = vpop.f32.mrb[0].mxu0
      %v8238 = vadd.f32 0.0, %v8237
      %v8239 = vpop.f32.mrb[0].mxu0
      %v8240 = vpop.f32.mrb[0].mxu0
      %v8241 = vadd.f32 0.0, %v8240
      %v8242 = vpop.f32.mrb[0].mxu0
      %8243 = vmatprep.mubr.bf16.mxu0 0
      %8244 = vmatmul.mubr.bf16.gmra.mrb[0].mxu0 %v8088
      %v8245 = vpop.f32.mrb[0].mxu0
      %v8246 = vadd.f32 0.0, %v8245
      %v8247 = vpop.f32.mrb[0].mxu0
      %v8248 = vpop.f32.mrb[0].mxu0
      %v8249 = vadd.f32 0.0, %v8248
      %v8250 = vpop.f32.mrb[0].mxu0
      %8251 = vmatprep.mubr.bf16.mxu0 0
      %8252 = vmatmul.mubr.bf16.gmra.mrb[0].mxu0 %v8091
      %v8253 = vpop.f32.mrb[0].mxu0
      %v8254 = vadd.f32 0.0, %v8253
      %v8255 = vpop.f32.mrb[0].mxu0
      %v8256 = vpop.f32.mrb[0].mxu0
      %v8257 = vadd.f32 0.0, %v8256
      %v8258 = vpop.f32.mrb[0].mxu0
      %8259 = vmatprep.mubr.bf16.mxu0 0
      %8260 = vmatmul.mubr.bf16.gmra.mrb[0].mxu0 %v8094
      %v8261 = vpop.f32.mrb[0].mxu0
      %v8262 = vadd.f32 0.0, %v8261
      %v8263 = vpop.f32.mrb[0].mxu0
      %v8264 = vpop.f32.mrb[0].mxu0
      %v8265 = vadd.f32 0.0, %v8264
      %v8266 = vpop.f32.mrb[0].mxu0
      %8267 = vmatprep.mubr.bf16.mxu0 0
      %8268 = vmatmul.mubr.bf16.gmra.mrb[0].mxu0 %v8097
      %v8269 = vpop.f32.mrb[0].mxu0
      %v8270 = vadd.f32 0.0, %v8269
      %v8271 = vpop.f32.mrb[0].mxu0
      %v8272 = vpop.f32.mrb[0].mxu0
      %v8273 = vadd.f32 0.0, %v8272
      %v8274 = vpop.f32.mrb[0].mxu0
      %8275 = vdwg.mxu0
      %v8276 = vadd.f32 %v7919, %v8134
      %v8277 = vadd.f32 %v7920, %v8137
      %v8278 = vadd.f32 %v7921, %v8142
      %v8279 = vadd.f32 %v7922, %v8145
      %v8280 = vadd.f32 %v7923, %v8150
      %v8281 = vadd.f32 %v7924, %v8153
      %v8282 = vadd.f32 %v7925, %v8158
      %v8283 = vadd.f32 %v7926, %v8161
      %v8284 = vadd.f32 %v7927, %v8166
      %v8285 = vadd.f32 %v7928, %v8169
      %v8286 = vadd.f32 %v7929, %v8174
      %v8287 = vadd.f32 %v7930, %v8177
      %v8288 = vadd.f32 %v7931, %v8182
      %v8289 = vadd.f32 %v7932, %v8185
      %v8290 = vadd.f32 %v7933, %v8190
      %v8291 = vadd.f32 %v7934, %v8193
      %v8292 = vadd.f32 %v7935, %v8198
      %v8293 = vadd.f32 %v7936, %v8201
      %v8294 = vadd.f32 %v7937, %v8206
      %v8295 = vadd.f32 %v7938, %v8209
      %v8296 = vadd.f32 %v7939, %v8214
      %v8297 = vadd.f32 %v7940, %v8217
      %v8298 = vadd.f32 %v7941, %v8222
      %v8299 = vadd.f32 %v7942, %v8225
      %v8300 = vadd.f32 %v7943, %v8230
      %v8301 = vadd.f32 %v7944, %v8233
      %v8302 = vadd.f32 %v7945, %v8238
      %v8303 = vadd.f32 %v7946, %v8241
      %v8304 = vadd.f32 %v7947, %v8246
      %v8305 = vadd.f32 %v7948, %v8249
      %v8306 = vadd.f32 %v7949, %v8254
      %v8307 = vadd.f32 %v7950, %v8257
      %v8308 = vadd.f32 %v7951, %v8262
      %v8309 = vadd.f32 %v7952, %v8265
      %v8310 = vadd.f32 %v7953, %v8270
      %v8311 = vadd.f32 %v7954, %v8273
      %v8312 = vld [vmem:[#allocation2 + $0x10] sm:$0xc]
      %v8313 = vld [vmem:[#allocation2 + $0x14] sm:$0xf]
      %v8314 = vld [vmem:[#allocation2 + $0x18] sm:$0xf]
      %v8315 = vld [vmem:[#allocation2 + $0x1c] sm:$0xf]
      %v8316 = vld [vmem:[#allocation2 + $0x20] sm:$0xf]
      %v8317 = vld [vmem:[#allocation2 + $0x24] sm:$0xf]
      %v8318 = vld [vmem:[#allocation2 + $0x28] sm:$0xf]
      %v8319 = vld [vmem:[#allocation2 + $0x2c] sm:$0xf]
      %v8320 = vld [vmem:[#allocation2 + $0x30] sm:$0xf]
      %v8321 = vld [vmem:[#allocation2 + $0x34] sm:$0xf]
      %v8322 = vld [vmem:[#allocation2 + $0x38] sm:$0xf]
      %v8323 = vld [vmem:[#allocation2 + $0x3c] sm:$0xf]
      %v8324 = vld [vmem:[#allocation2 + $0x40] sm:$0xf]
      %v8325 = vld [vmem:[#allocation2 + $0x44] sm:$0xf]
      %v8326 = vld [vmem:[#allocation2 + $0x48] sm:$0xf]
      %v8327 = vld [vmem:[#allocation2 + $0x4c] sm:$0xf]
      %v8328 = vld [vmem:[#allocation2 + $0x50] sm:$0xf]
      %v8329 = vld [vmem:[#allocation2 + $0x54] sm:$0xf]
      %v8330 = vld [vmem:[#allocation2 + $0x58] sm:$0xf]
      %v8331 = vld [vmem:[#allocation2 + $0x5c] sm:$0xf]
      %v8332 = vld [vmem:[#allocation2 + $0x60] sm:$0xf]
      %v8333 = vld [vmem:[#allocation2 + $0x64] sm:$0xf]
      %v8334 = vld [vmem:[#allocation2 + $0x68] sm:$0xf]
      %v8335 = vld [vmem:[#allocation2 + $0x6c] sm:$0xf]
      %v8336 = vld [vmem:[#allocation2 + $0x70] sm:$0xf]
      %v8337 = vld [vmem:[#allocation2 + $0x74] sm:$0xf]
      %v8338 = vld [vmem:[#allocation2 + $0x78] sm:$0xf]
      %v8339 = vld [vmem:[#allocation2 + $0x7c] sm:$0xf]
      %v8340 = vld [vmem:[#allocation2 + $0x80] sm:$0xf]
      %v8341 = vld [vmem:[#allocation2 + $0x84] sm:$0xf]
      %v8342 = vld [vmem:[#allocation2 + $0x88] sm:$0xf]
      %v8343 = vld [vmem:[#allocation2 + $0x8c] sm:$0xf]
      %v8344 = vld [vmem:[#allocation2 + $0x90] sm:$0xf]
      %v8345 = vld [vmem:[#allocation2 + $0x94] sm:$0xf]
      %v8346 = vld [vmem:[#allocation2 + $0x98] sm:$0xf]
      %v8347 = vld [vmem:[#allocation2 + $0x9c] sm:$0xf]
      %v8348 = vld [vmem:[#allocation2 + $0xa0] sm:$0x3]
      %s8349 = scalar_lea.vmem %s4, 288
      %v8350 = vld [vmem:[%s8349] sm:$0xf]
      %v8351 = vld [vmem:[%s8349 + $0x4] sm:$0xf]
      %v8352 = vld [vmem:[%s8349 + $0x8] sm:$0xf]
      %v8353 = vld [vmem:[%s8349 + $0xc] sm:$0xf]
      %v8354 = vld [vmem:[%s8349 + $0x10] sm:$0xf]
      %v8355 = vld [vmem:[%s8349 + $0x14] sm:$0xf]
      %v8356 = vld [vmem:[%s8349 + $0x18] sm:$0xf]
      %v8357 = vld [vmem:[%s8349 + $0x1c] sm:$0xf]
      %v8358 = vld [vmem:[%s8349 + $0x20] sm:$0xf]
      %v8359 = vld [vmem:[%s8349 + $0x24] sm:$0xf]
      %v8360 = vld [vmem:[%s8349 + $0x28] sm:$0xf]
      %v8361 = vld [vmem:[%s8349 + $0x2c] sm:$0xf]
      %v8399 = vunpack.c.l.b16 %v8312
      %v8400 = vunpack.c.l.b16 %v8313
      %v8401 = vunpack.c.l.b16 %v8314
      %v8402 = vunpack.c.l.b16 %v8315
      %v8403 = vunpack.c.l.b16 %v8316
      %v8404 = vunpack.c.l.b16 %v8317
      %v8405 = vunpack.c.l.b16 %v8318
      %v8406 = vunpack.c.l.b16 %v8319
      %v8407 = vunpack.c.l.b16 %v8320
      %v8408 = vunpack.c.l.b16 %v8321
      %v8409 = vunpack.c.l.b16 %v8322
      %v8410 = vunpack.c.l.b16 %v8323
      %v8411 = vunpack.c.l.b16 %v8324
      %v8412 = vunpack.c.l.b16 %v8325
      %v8413 = vunpack.c.l.b16 %v8326
      %v8414 = vunpack.c.l.b16 %v8327
      %v8415 = vunpack.c.l.b16 %v8328
      %v8416 = vunpack.c.l.b16 %v8329
      %v8417 = vunpack.c.l.b16 %v8330
      %v8418 = vunpack.c.l.b16 %v8331
      %v8419 = vunpack.c.l.b16 %v8332
      %v8420 = vunpack.c.l.b16 %v8333
      %v8421 = vunpack.c.l.b16 %v8334
      %v8422 = vunpack.c.l.b16 %v8335
      %v8423 = vunpack.c.l.b16 %v8336
      %v8424 = vunpack.c.l.b16 %v8337
      %v8425 = vunpack.c.l.b16 %v8338
      %v8426 = vunpack.c.l.b16 %v8339
      %v8427 = vunpack.c.l.b16 %v8340
      %v8428 = vunpack.c.l.b16 %v8341
      %v8429 = vunpack.c.l.b16 %v8342
      %v8430 = vunpack.c.l.b16 %v8343
      %v8431 = vunpack.c.l.b16 %v8344
      %v8432 = vunpack.c.l.b16 %v8345
      %v8433 = vunpack.c.l.b16 %v8346
      %v8434 = vunpack.c.l.b16 %v8347
      %v8435 = vunpack.c.l.b16 %v8348
      %v8436 = vpack.c.b16 %v8400, %v8399
      %v8437 = vpack.c.b16 %v8402, %v8401
      %v8438 = vpack.c.b16 %v8404, %v8403
      %v8439 = vpack.c.b16 %v8406, %v8405
      %v8440 = vpack.c.b16 %v8408, %v8407
      %v8441 = vpack.c.b16 %v8410, %v8409
      %v8442 = vpack.c.b16 %v8412, %v8411
      %v8443 = vpack.c.b16 %v8414, %v8413
      %v8444 = vpack.c.b16 %v8416, %v8415
      %v8445 = vpack.c.b16 %v8418, %v8417
      %v8446 = vpack.c.b16 %v8420, %v8419
      %v8447 = vpack.c.b16 %v8422, %v8421
      %v8448 = vpack.c.b16 %v8424, %v8423
      %v8449 = vpack.c.b16 %v8426, %v8425
      %v8450 = vpack.c.b16 %v8428, %v8427
      %v8451 = vpack.c.b16 %v8430, %v8429
      %v8452 = vpack.c.b16 %v8432, %v8431
      %v8453 = vpack.c.b16 %v8434, %v8433
      %v8454 = vpack.c.b16 %v8435, %v8435
      %v8455 = vrot.slane %v8436, 2
      %v8456 = vrot.slane %v8437, 2
      %v8457 = vsel %vm3437, %v8455, %v8456
      %v8458 = vrot.slane %v8438, 2
      %v8459 = vsel %vm3437, %v8456, %v8458
      %v8460 = vrot.slane %v8439, 2
      %v8461 = vsel %vm3437, %v8458, %v8460
      %v8462 = vrot.slane %v8440, 2
      %v8463 = vsel %vm3437, %v8460, %v8462
      %v8464 = vrot.slane %v8441, 2
      %v8465 = vsel %vm3437, %v8462, %v8464
      %v8466 = vrot.slane %v8442, 2
      %v8467 = vsel %vm3437, %v8464, %v8466
      %v8468 = vrot.slane %v8443, 2
      %v8469 = vsel %vm3437, %v8466, %v8468
      %v8470 = vrot.slane %v8444, 2
      %v8471 = vsel %vm3437, %v8468, %v8470
      %v8472 = vrot.slane %v8445, 2
      %v8473 = vsel %vm3437, %v8470, %v8472
      %v8474 = vrot.slane %v8446, 2
      %v8475 = vsel %vm3437, %v8472, %v8474
      %v8476 = vrot.slane %v8447, 2
      %v8477 = vsel %vm3437, %v8474, %v8476
      %v8478 = vrot.slane %v8448, 2
      %v8479 = vsel %vm3437, %v8476, %v8478
      %v8480 = vrot.slane %v8449, 2
      %v8481 = vsel %vm3437, %v8478, %v8480
      %v8482 = vrot.slane %v8450, 2
      %v8483 = vsel %vm3437, %v8480, %v8482
      %v8484 = vrot.slane %v8451, 2
      %v8485 = vsel %vm3437, %v8482, %v8484
      %v8486 = vrot.slane %v8452, 2
      %v8487 = vsel %vm3437, %v8484, %v8486
      %v8488 = vrot.slane %v8453, 2
      %v8489 = vsel %vm3437, %v8486, %v8488
      %v8490 = vrot.slane %v8454, 2
      %v8491 = vsel %vm3437, %v8488, %v8490
      %v8504 = vunpack.c.l.b16 %v8350
      %v8505 = vunpack.c.l.b16 %v8351
      %v8506 = vunpack.c.l.b16 %v8352
      %v8507 = vunpack.c.l.b16 %v8353
      %v8508 = vunpack.c.l.b16 %v8354
      %v8509 = vunpack.c.l.b16 %v8355
      %v8510 = vunpack.c.l.b16 %v8356
      %v8511 = vunpack.c.l.b16 %v8357
      %v8512 = vunpack.c.l.b16 %v8358
      %v8513 = vunpack.c.l.b16 %v8359
      %v8514 = vunpack.c.l.b16 %v8360
      %v8515 = vunpack.c.l.b16 %v8361
      %v8516 = vpack.c.b16 %v8505, %v8504
      %v8517 = vpack.c.b16 %v8507, %v8506
      %v8518 = vpack.c.b16 %v8509, %v8508
      %v8519 = vpack.c.b16 %v8511, %v8510
      %v8520 = vpack.c.b16 %v8513, %v8512
      %v8521 = vpack.c.b16 %v8515, %v8514
      %v8529 = vsel %vm394, %v8457, 0
      %v8532 = vsel %vm394, %v8459, 0
      %v8535 = vsel %vm394, %v8461, 0
      %v8538 = vsel %vm394, %v8463, 0
      %v8541 = vsel %vm394, %v8465, 0
      %v8544 = vsel %vm394, %v8467, 0
      %v8547 = vsel %vm394, %v8469, 0
      %v8550 = vsel %vm394, %v8471, 0
      %v8553 = vsel %vm394, %v8473, 0
      %v8556 = vsel %vm394, %v8475, 0
      %v8559 = vsel %vm394, %v8477, 0
      %v8562 = vsel %vm394, %v8479, 0
      %v8565 = vsel %vm394, %v8481, 0
      %v8568 = vsel %vm394, %v8483, 0
      %v8571 = vsel %vm394, %v8485, 0
      %v8574 = vsel %vm394, %v8487, 0
      %v8577 = vsel %vm394, %v8489, 0
      %v8580 = vsel %vm394, %v8491, 0
      %8582 = vmatprep.subr.bf16.mxu0 0
      %8583 = vmatpush1.bf16.msra.mxu0 %v8516
      %8584 = vmatprep.subr.bf16.mxu0 0
      %8585 = vmatpush1.bf16.msra.mxu0 %v8517
      %8586 = vmatprep.subr.bf16.mxu0 0
      %8587 = vmatpush1.bf16.msra.mxu0 %v8518
      %8588 = vmatprep.subr.bf16.mxu0 0
      %8589 = vmatpush1.bf16.msra.mxu0 %v8519
      %8590 = vmatprep.subr.bf16.mxu0 0
      %8591 = vmatpush1.bf16.msra.mxu0 %v8520
      %8592 = vmatprep.subr.bf16.mxu0 0
      %8593 = vmatpush1.bf16.msra.mxu0 %v8521
      %8594 = vmatprep.subr.bf16.mxu0 0
      %8595 = vmatpush1.bf16.msra.mxu0 0
      %8596 = vmatprep.subr.bf16.mxu0 0
      %8597 = vmatpush1.bf16.msra.mxu0 0
      %8598 = vmatprep.subr.bf16.mxu0 0
      %8599 = vmatpush1.bf16.msra.mxu0 0
      %8600 = vmatprep.subr.bf16.mxu0 0
      %8601 = vmatpush1.bf16.msra.mxu0 0
      %8602 = vmatprep.subr.bf16.mxu0 0
      %8603 = vmatpush1.bf16.msra.mxu0 0
      %8604 = vmatprep.subr.bf16.mxu0 0
      %8605 = vmatpush1.bf16.msra.mxu0 0
      %8606 = vmatprep.subr.bf16.mxu0 0
      %8607 = vmatpush1.bf16.msra.mxu0 0
      %8608 = vmatprep.subr.bf16.mxu0 0
      %8609 = vmatpush1.bf16.msra.mxu0 0
      %8610 = vmatprep.subr.bf16.mxu0 0
      %8611 = vmatpush1.bf16.msra.mxu0 0
      %8612 = vmatprep.subr.bf16.mxu0 0
      %8613 = vmatpush1.bf16.msra.mxu0 0
      %8614 = vmatprep.mubr.bf16.mxu0 0
      %8615 = vmatmul.mubr.bf16.gmra.mrb[0].mxu0 %v8529
      %v8616 = vpop.f32.mrb[0].mxu0
      %v8617 = vadd.f32 0.0, %v8616
      %v8618 = vpop.f32.mrb[0].mxu0
      %v8619 = vpop.f32.mrb[0].mxu0
      %v8620 = vadd.f32 0.0, %v8619
      %v8621 = vpop.f32.mrb[0].mxu0
      %8622 = vmatprep.mubr.bf16.mxu0 0
      %8623 = vmatmul.mubr.bf16.gmra.mrb[0].mxu0 %v8532
      %v8624 = vpop.f32.mrb[0].mxu0
      %v8625 = vadd.f32 0.0, %v8624
      %v8626 = vpop.f32.mrb[0].mxu0
      %v8627 = vpop.f32.mrb[0].mxu0
      %v8628 = vadd.f32 0.0, %v8627
      %v8629 = vpop.f32.mrb[0].mxu0
      %8630 = vmatprep.mubr.bf16.mxu0 0
      %8631 = vmatmul.mubr.bf16.gmra.mrb[0].mxu0 %v8535
      %v8632 = vpop.f32.mrb[0].mxu0
      %v8633 = vadd.f32 0.0, %v8632
      %v8634 = vpop.f32.mrb[0].mxu0
      %v8635 = vpop.f32.mrb[0].mxu0
      %v8636 = vadd.f32 0.0, %v8635
      %v8637 = vpop.f32.mrb[0].mxu0
      %8638 = vmatprep.mubr.bf16.mxu0 0
      %8639 = vmatmul.mubr.bf16.gmra.mrb[0].mxu0 %v8538
      %v8640 = vpop.f32.mrb[0].mxu0
      %v8641 = vadd.f32 0.0, %v8640
      %v8642 = vpop.f32.mrb[0].mxu0
      %v8643 = vpop.f32.mrb[0].mxu0
      %v8644 = vadd.f32 0.0, %v8643
      %v8645 = vpop.f32.mrb[0].mxu0
      %8646 = vmatprep.mubr.bf16.mxu0 0
      %8647 = vmatmul.mubr.bf16.gmra.mrb[0].mxu0 %v8541
      %v8648 = vpop.f32.mrb[0].mxu0
      %v8649 = vadd.f32 0.0, %v8648
      %v8650 = vpop.f32.mrb[0].mxu0
      %v8651 = vpop.f32.mrb[0].mxu0
      %v8652 = vadd.f32 0.0, %v8651
      %v8653 = vpop.f32.mrb[0].mxu0
      %8654 = vmatprep.mubr.bf16.mxu0 0
      %8655 = vmatmul.mubr.bf16.gmra.mrb[0].mxu0 %v8544
      %v8656 = vpop.f32.mrb[0].mxu0
      %v8657 = vadd.f32 0.0, %v8656
      %v8658 = vpop.f32.mrb[0].mxu0
      %v8659 = vpop.f32.mrb[0].mxu0
      %v8660 = vadd.f32 0.0, %v8659
      %v8661 = vpop.f32.mrb[0].mxu0
      %8662 = vmatprep.mubr.bf16.mxu0 0
      %8663 = vmatmul.mubr.bf16.gmra.mrb[0].mxu0 %v8547
      %v8664 = vpop.f32.mrb[0].mxu0
      %v8665 = vadd.f32 0.0, %v8664
      %v8666 = vpop.f32.mrb[0].mxu0
      %v8667 = vpop.f32.mrb[0].mxu0
      %v8668 = vadd.f32 0.0, %v8667
      %v8669 = vpop.f32.mrb[0].mxu0
      %8670 = vmatprep.mubr.bf16.mxu0 0
      %8671 = vmatmul.mubr.bf16.gmra.mrb[0].mxu0 %v8550
      %v8672 = vpop.f32.mrb[0].mxu0
      %v8673 = vadd.f32 0.0, %v8672
      %v8674 = vpop.f32.mrb[0].mxu0
      %v8675 = vpop.f32.mrb[0].mxu0
      %v8676 = vadd.f32 0.0, %v8675
      %v8677 = vpop.f32.mrb[0].mxu0
      %8678 = vmatprep.mubr.bf16.mxu0 0
      %8679 = vmatmul.mubr.bf16.gmra.mrb[0].mxu0 %v8553
      %v8680 = vpop.f32.mrb[0].mxu0
      %v8681 = vadd.f32 0.0, %v8680
      %v8682 = vpop.f32.mrb[0].mxu0
      %v8683 = vpop.f32.mrb[0].mxu0
      %v8684 = vadd.f32 0.0, %v8683
      %v8685 = vpop.f32.mrb[0].mxu0
      %8686 = vmatprep.mubr.bf16.mxu0 0
      %8687 = vmatmul.mubr.bf16.gmra.mrb[0].mxu0 %v8556
      %v8688 = vpop.f32.mrb[0].mxu0
      %v8689 = vadd.f32 0.0, %v8688
      %v8690 = vpop.f32.mrb[0].mxu0
      %v8691 = vpop.f32.mrb[0].mxu0
      %v8692 = vadd.f32 0.0, %v8691
      %v8693 = vpop.f32.mrb[0].mxu0
      %8694 = vmatprep.mubr.bf16.mxu0 0
      %8695 = vmatmul.mubr.bf16.gmra.mrb[0].mxu0 %v8559
      %v8696 = vpop.f32.mrb[0].mxu0
      %v8697 = vadd.f32 0.0, %v8696
      %v8698 = vpop.f32.mrb[0].mxu0
      %v8699 = vpop.f32.mrb[0].mxu0
      %v8700 = vadd.f32 0.0, %v8699
      %v8701 = vpop.f32.mrb[0].mxu0
      %8702 = vmatprep.mubr.bf16.mxu0 0
      %8703 = vmatmul.mubr.bf16.gmra.mrb[0].mxu0 %v8562
      %v8704 = vpop.f32.mrb[0].mxu0
      %v8705 = vadd.f32 0.0, %v8704
      %v8706 = vpop.f32.mrb[0].mxu0
      %v8707 = vpop.f32.mrb[0].mxu0
      %v8708 = vadd.f32 0.0, %v8707
      %v8709 = vpop.f32.mrb[0].mxu0
      %8710 = vmatprep.mubr.bf16.mxu0 0
      %8711 = vmatmul.mubr.bf16.gmra.mrb[0].mxu0 %v8565
      %v8712 = vpop.f32.mrb[0].mxu0
      %v8713 = vadd.f32 0.0, %v8712
      %v8714 = vpop.f32.mrb[0].mxu0
      %v8715 = vpop.f32.mrb[0].mxu0
      %v8716 = vadd.f32 0.0, %v8715
      %v8717 = vpop.f32.mrb[0].mxu0
      %8718 = vmatprep.mubr.bf16.mxu0 0
      %8719 = vmatmul.mubr.bf16.gmra.mrb[0].mxu0 %v8568
      %v8720 = vpop.f32.mrb[0].mxu0
      %v8721 = vadd.f32 0.0, %v8720
      %v8722 = vpop.f32.mrb[0].mxu0
      %v8723 = vpop.f32.mrb[0].mxu0
      %v8724 = vadd.f32 0.0, %v8723
      %v8725 = vpop.f32.mrb[0].mxu0
      %8726 = vmatprep.mubr.bf16.mxu0 0
      %8727 = vmatmul.mubr.bf16.gmra.mrb[0].mxu0 %v8571
      %v8728 = vpop.f32.mrb[0].mxu0
      %v8729 = vadd.f32 0.0, %v8728
      %v8730 = vpop.f32.mrb[0].mxu0
      %v8731 = vpop.f32.mrb[0].mxu0
      %v8732 = vadd.f32 0.0, %v8731
      %v8733 = vpop.f32.mrb[0].mxu0
      %8734 = vmatprep.mubr.bf16.mxu0 0
      %8735 = vmatmul.mubr.bf16.gmra.mrb[0].mxu0 %v8574
      %v8736 = vpop.f32.mrb[0].mxu0
      %v8737 = vadd.f32 0.0, %v8736
      %v8738 = vpop.f32.mrb[0].mxu0
      %v8739 = vpop.f32.mrb[0].mxu0
      %v8740 = vadd.f32 0.0, %v8739
      %v8741 = vpop.f32.mrb[0].mxu0
      %8742 = vmatprep.mubr.bf16.mxu0 0
      %8743 = vmatmul.mubr.bf16.gmra.mrb[0].mxu0 %v8577
      %v8744 = vpop.f32.mrb[0].mxu0
      %v8745 = vadd.f32 0.0, %v8744
      %v8746 = vpop.f32.mrb[0].mxu0
      %v8747 = vpop.f32.mrb[0].mxu0
      %v8748 = vadd.f32 0.0, %v8747
      %v8749 = vpop.f32.mrb[0].mxu0
      %8750 = vmatprep.mubr.bf16.mxu0 0
      %8751 = vmatmul.mubr.bf16.gmra.mrb[0].mxu0 %v8580
      %v8752 = vpop.f32.mrb[0].mxu0
      %v8753 = vadd.f32 0.0, %v8752
      %v8754 = vpop.f32.mrb[0].mxu0
      %v8755 = vpop.f32.mrb[0].mxu0
      %v8756 = vadd.f32 0.0, %v8755
      %v8757 = vpop.f32.mrb[0].mxu0
      %8758 = vdwg.mxu0
      %v8759 = vadd.f32 %v8276, %v8617
      %v8760 = vadd.f32 %v8277, %v8620
      %v8761 = vadd.f32 %v8278, %v8625
      %v8762 = vadd.f32 %v8279, %v8628
      %v8763 = vadd.f32 %v8280, %v8633
      %v8764 = vadd.f32 %v8281, %v8636
      %v8765 = vadd.f32 %v8282, %v8641
      %v8766 = vadd.f32 %v8283, %v8644
      %v8767 = vadd.f32 %v8284, %v8649
      %v8768 = vadd.f32 %v8285, %v8652
      %v8769 = vadd.f32 %v8286, %v8657
      %v8770 = vadd.f32 %v8287, %v8660
      %v8771 = vadd.f32 %v8288, %v8665
      %v8772 = vadd.f32 %v8289, %v8668
      %v8773 = vadd.f32 %v8290, %v8673
      %v8774 = vadd.f32 %v8291, %v8676
      %v8775 = vadd.f32 %v8292, %v8681
      %v8776 = vadd.f32 %v8293, %v8684
      %v8777 = vadd.f32 %v8294, %v8689
      %v8778 = vadd.f32 %v8295, %v8692
      %v8779 = vadd.f32 %v8296, %v8697
      %v8780 = vadd.f32 %v8297, %v8700
      %v8781 = vadd.f32 %v8298, %v8705
      %v8782 = vadd.f32 %v8299, %v8708
      %v8783 = vadd.f32 %v8300, %v8713
      %v8784 = vadd.f32 %v8301, %v8716
      %v8785 = vadd.f32 %v8302, %v8721
      %v8786 = vadd.f32 %v8303, %v8724
      %v8787 = vadd.f32 %v8304, %v8729
      %v8788 = vadd.f32 %v8305, %v8732
      %v8789 = vadd.f32 %v8306, %v8737
      %v8790 = vadd.f32 %v8307, %v8740
      %v8791 = vadd.f32 %v8308, %v8745
      %v8792 = vadd.f32 %v8309, %v8748
      %v8793 = vadd.f32 %v8310, %v8753
      %v8794 = vadd.f32 %v8311, %v8756
      %v8795 = vld [vmem:[#allocation2 + $0xa0] sm:$0x7]
      %s8796 = scalar_lea.vmem %s4, 336
      %v8797 = vld [vmem:[%s8796] sm:$0xf]
      %v8798 = vld [vmem:[%s8796 + $0x4] sm:$0xf]
      %v8799 = vld [vmem:[%s8796 + $0x8] sm:$0xf]
      %v8800 = vld [vmem:[%s8796 + $0xc] sm:$0xf]
      %v8801 = vld [vmem:[%s8796 + $0x10] sm:$0xf]
      %v8802 = vld [vmem:[%s8796 + $0x14] sm:$0xf]
      %v8803 = vld [vmem:[%s8796 + $0x18] sm:$0xf]
      %v8804 = vld [vmem:[%s8796 + $0x1c] sm:$0xf]
      %v8805 = vld [vmem:[%s8796 + $0x20] sm:$0xf]
      %v8806 = vld [vmem:[%s8796 + $0x24] sm:$0xf]
      %v8807 = vld [vmem:[%s8796 + $0x28] sm:$0xf]
      %v8808 = vld [vmem:[%s8796 + $0x2c] sm:$0xf]
      %v8810 = vunpack.c.l.b16 %v8795
      %v8811 = vpack.c.b16 %v8810, %v8810
      %v8813 = vshrl.u32 %v8436, 16
      %v8815 = vrot.slane %v8813, 2
      %v8816 = vshll.u32 %v8436, 16
      %v8818 = vrot.slane %v8816, 3
      %v8819 = vor.u32 %v8815, %v8818
      %v8821 = vshrl.u32 %v8437, 16
      %v8823 = vrot.slane %v8821, 2
      %v8824 = vshll.u32 %v8437, 16
      %v8826 = vrot.slane %v8824, 3
      %v8827 = vor.u32 %v8823, %v8826
      %v8828 = vsel %vm4278, %v8819, %v8827
      %v8830 = vshrl.u32 %v8438, 16
      %v8832 = vrot.slane %v8830, 2
      %v8833 = vshll.u32 %v8438, 16
      %v8835 = vrot.slane %v8833, 3
      %v8836 = vor.u32 %v8832, %v8835
      %v8837 = vsel %vm4278, %v8827, %v8836
      %v8839 = vshrl.u32 %v8439, 16
      %v8841 = vrot.slane %v8839, 2
      %v8842 = vshll.u32 %v8439, 16
      %v8844 = vrot.slane %v8842, 3
      %v8845 = vor.u32 %v8841, %v8844
      %v8846 = vsel %vm4278, %v8836, %v8845
      %v8848 = vshrl.u32 %v8440, 16
      %v8850 = vrot.slane %v8848, 2
      %v8851 = vshll.u32 %v8440, 16
      %v8853 = vrot.slane %v8851, 3
      %v8854 = vor.u32 %v8850, %v8853
      %v8855 = vsel %vm4278, %v8845, %v8854
      %v8857 = vshrl.u32 %v8441, 16
      %v8859 = vrot.slane %v8857, 2
      %v8860 = vshll.u32 %v8441, 16
      %v8862 = vrot.slane %v8860, 3
      %v8863 = vor.u32 %v8859, %v8862
      %v8864 = vsel %vm4278, %v8854, %v8863
      %v8866 = vshrl.u32 %v8442, 16
      %v8868 = vrot.slane %v8866, 2
      %v8869 = vshll.u32 %v8442, 16
      %v8871 = vrot.slane %v8869, 3
      %v8872 = vor.u32 %v8868, %v8871
      %v8873 = vsel %vm4278, %v8863, %v8872
      %v8875 = vshrl.u32 %v8443, 16
      %v8877 = vrot.slane %v8875, 2
      %v8878 = vshll.u32 %v8443, 16
      %v8880 = vrot.slane %v8878, 3
      %v8881 = vor.u32 %v8877, %v8880
      %v8882 = vsel %vm4278, %v8872, %v8881
      %v8884 = vshrl.u32 %v8444, 16
      %v8886 = vrot.slane %v8884, 2
      %v8887 = vshll.u32 %v8444, 16
      %v8889 = vrot.slane %v8887, 3
      %v8890 = vor.u32 %v8886, %v8889
      %v8891 = vsel %vm4278, %v8881, %v8890
      %v8893 = vshrl.u32 %v8445, 16
      %v8895 = vrot.slane %v8893, 2
      %v8896 = vshll.u32 %v8445, 16
      %v8898 = vrot.slane %v8896, 3
      %v8899 = vor.u32 %v8895, %v8898
      %v8900 = vsel %vm4278, %v8890, %v8899
      %v8902 = vshrl.u32 %v8446, 16
      %v8904 = vrot.slane %v8902, 2
      %v8905 = vshll.u32 %v8446, 16
      %v8907 = vrot.slane %v8905, 3
      %v8908 = vor.u32 %v8904, %v8907
      %v8909 = vsel %vm4278, %v8899, %v8908
      %v8911 = vshrl.u32 %v8447, 16
      %v8913 = vrot.slane %v8911, 2
      %v8914 = vshll.u32 %v8447, 16
      %v8916 = vrot.slane %v8914, 3
      %v8917 = vor.u32 %v8913, %v8916
      %v8918 = vsel %vm4278, %v8908, %v8917
      %v8920 = vshrl.u32 %v8448, 16
      %v8922 = vrot.slane %v8920, 2
      %v8923 = vshll.u32 %v8448, 16
      %v8925 = vrot.slane %v8923, 3
      %v8926 = vor.u32 %v8922, %v8925
      %v8927 = vsel %vm4278, %v8917, %v8926
      %v8929 = vshrl.u32 %v8449, 16
      %v8931 = vrot.slane %v8929, 2
      %v8932 = vshll.u32 %v8449, 16
      %v8934 = vrot.slane %v8932, 3
      %v8935 = vor.u32 %v8931, %v8934
      %v8936 = vsel %vm4278, %v8926, %v8935
      %v8938 = vshrl.u32 %v8450, 16
      %v8940 = vrot.slane %v8938, 2
      %v8941 = vshll.u32 %v8450, 16
      %v8943 = vrot.slane %v8941, 3
      %v8944 = vor.u32 %v8940, %v8943
      %v8945 = vsel %vm4278, %v8935, %v8944
      %v8947 = vshrl.u32 %v8451, 16
      %v8949 = vrot.slane %v8947, 2
      %v8950 = vshll.u32 %v8451, 16
      %v8952 = vrot.slane %v8950, 3
      %v8953 = vor.u32 %v8949, %v8952
      %v8954 = vsel %vm4278, %v8944, %v8953
      %v8956 = vshrl.u32 %v8452, 16
      %v8958 = vrot.slane %v8956, 2
      %v8959 = vshll.u32 %v8452, 16
      %v8961 = vrot.slane %v8959, 3
      %v8962 = vor.u32 %v8958, %v8961
      %v8963 = vsel %vm4278, %v8953, %v8962
      %v8965 = vshrl.u32 %v8453, 16
      %v8967 = vrot.slane %v8965, 2
      %v8968 = vshll.u32 %v8453, 16
      %v8970 = vrot.slane %v8968, 3
      %v8971 = vor.u32 %v8967, %v8970
      %v8972 = vsel %vm4278, %v8962, %v8971
      %v8974 = vshrl.u32 %v8811, 16
      %v8976 = vrot.slane %v8974, 2
      %v8977 = vshll.u32 %v8811, 16
      %v8979 = vrot.slane %v8977, 3
      %v8980 = vor.u32 %v8976, %v8979
      %v8981 = vsel %vm4278, %v8971, %v8980
      %v8994 = vunpack.c.l.b16 %v8797
      %v8995 = vunpack.c.l.b16 %v8798
      %v8996 = vunpack.c.l.b16 %v8799
      %v8997 = vunpack.c.l.b16 %v8800
      %v8998 = vunpack.c.l.b16 %v8801
      %v8999 = vunpack.c.l.b16 %v8802
      %v9000 = vunpack.c.l.b16 %v8803
      %v9001 = vunpack.c.l.b16 %v8804
      %v9002 = vunpack.c.l.b16 %v8805
      %v9003 = vunpack.c.l.b16 %v8806
      %v9004 = vunpack.c.l.b16 %v8807
      %v9005 = vunpack.c.l.b16 %v8808
      %v9006 = vpack.c.b16 %v8995, %v8994
      %v9007 = vpack.c.b16 %v8997, %v8996
      %v9008 = vpack.c.b16 %v8999, %v8998
      %v9009 = vpack.c.b16 %v9001, %v9000
      %v9010 = vpack.c.b16 %v9003, %v9002
      %v9011 = vpack.c.b16 %v9005, %v9004
      %v9019 = vsel %vm394, %v8828, 0
      %v9022 = vsel %vm394, %v8837, 0
      %v9025 = vsel %vm394, %v8846, 0
      %v9028 = vsel %vm394, %v8855, 0
      %v9031 = vsel %vm394, %v8864, 0
      %v9034 = vsel %vm394, %v8873, 0
      %v9037 = vsel %vm394, %v8882, 0
      %v9040 = vsel %vm394, %v8891, 0
      %v9043 = vsel %vm394, %v8900, 0
      %v9046 = vsel %vm394, %v8909, 0
      %v9049 = vsel %vm394, %v8918, 0
      %v9052 = vsel %vm394, %v8927, 0
      %v9055 = vsel %vm394, %v8936, 0
      %v9058 = vsel %vm394, %v8945, 0
      %v9061 = vsel %vm394, %v8954, 0
      %v9064 = vsel %vm394, %v8963, 0
      %v9067 = vsel %vm394, %v8972, 0
      %v9070 = vsel %vm394, %v8981, 0
      %9072 = vmatprep.subr.bf16.mxu0 0
      %9073 = vmatpush1.bf16.msra.mxu0 %v9006
      %9074 = vmatprep.subr.bf16.mxu0 0
      %9075 = vmatpush1.bf16.msra.mxu0 %v9007
      %9076 = vmatprep.subr.bf16.mxu0 0
      %9077 = vmatpush1.bf16.msra.mxu0 %v9008
      %9078 = vmatprep.subr.bf16.mxu0 0
      %9079 = vmatpush1.bf16.msra.mxu0 %v9009
      %9080 = vmatprep.subr.bf16.mxu0 0
      %9081 = vmatpush1.bf16.msra.mxu0 %v9010
      %9082 = vmatprep.subr.bf16.mxu0 0
      %9083 = vmatpush1.bf16.msra.mxu0 %v9011
      %9084 = vmatprep.subr.bf16.mxu0 0
      %9085 = vmatpush1.bf16.msra.mxu0 0
      %9086 = vmatprep.subr.bf16.mxu0 0
      %9087 = vmatpush1.bf16.msra.mxu0 0
      %9088 = vmatprep.subr.bf16.mxu0 0
      %9089 = vmatpush1.bf16.msra.mxu0 0
      %9090 = vmatprep.subr.bf16.mxu0 0
      %9091 = vmatpush1.bf16.msra.mxu0 0
      %9092 = vmatprep.subr.bf16.mxu0 0
      %9093 = vmatpush1.bf16.msra.mxu0 0
      %9094 = vmatprep.subr.bf16.mxu0 0
      %9095 = vmatpush1.bf16.msra.mxu0 0
      %9096 = vmatprep.subr.bf16.mxu0 0
      %9097 = vmatpush1.bf16.msra.mxu0 0
      %9098 = vmatprep.subr.bf16.mxu0 0
      %9099 = vmatpush1.bf16.msra.mxu0 0
      %9100 = vmatprep.subr.bf16.mxu0 0
      %9101 = vmatpush1.bf16.msra.mxu0 0
      %9102 = vmatprep.subr.bf16.mxu0 0
      %9103 = vmatpush1.bf16.msra.mxu0 0
      %9104 = vmatprep.mubr.bf16.mxu0 0
      %9105 = vmatmul.mubr.bf16.gmra.mrb[0].mxu0 %v9019
      %v9106 = vpop.f32.mrb[0].mxu0
      %v9107 = vadd.f32 0.0, %v9106
      %v9108 = vpop.f32.mrb[0].mxu0
      %v9109 = vpop.f32.mrb[0].mxu0
      %v9110 = vadd.f32 0.0, %v9109
      %v9111 = vpop.f32.mrb[0].mxu0
      %9112 = vmatprep.mubr.bf16.mxu0 0
      %9113 = vmatmul.mubr.bf16.gmra.mrb[0].mxu0 %v9022
      %v9114 = vpop.f32.mrb[0].mxu0
      %v9115 = vadd.f32 0.0, %v9114
      %v9116 = vpop.f32.mrb[0].mxu0
      %v9117 = vpop.f32.mrb[0].mxu0
      %v9118 = vadd.f32 0.0, %v9117
      %v9119 = vpop.f32.mrb[0].mxu0
      %9120 = vmatprep.mubr.bf16.mxu0 0
      %9121 = vmatmul.mubr.bf16.gmra.mrb[0].mxu0 %v9025
      %v9122 = vpop.f32.mrb[0].mxu0
      %v9123 = vadd.f32 0.0, %v9122
      %v9124 = vpop.f32.mrb[0].mxu0
      %v9125 = vpop.f32.mrb[0].mxu0
      %v9126 = vadd.f32 0.0, %v9125
      %v9127 = vpop.f32.mrb[0].mxu0
      %9128 = vmatprep.mubr.bf16.mxu0 0
      %9129 = vmatmul.mubr.bf16.gmra.mrb[0].mxu0 %v9028
      %v9130 = vpop.f32.mrb[0].mxu0
      %v9131 = vadd.f32 0.0, %v9130
      %v9132 = vpop.f32.mrb[0].mxu0
      %v9133 = vpop.f32.mrb[0].mxu0
      %v9134 = vadd.f32 0.0, %v9133
      %v9135 = vpop.f32.mrb[0].mxu0
      %9136 = vmatprep.mubr.bf16.mxu0 0
      %9137 = vmatmul.mubr.bf16.gmra.mrb[0].mxu0 %v9031
      %v9138 = vpop.f32.mrb[0].mxu0
      %v9139 = vadd.f32 0.0, %v9138
      %v9140 = vpop.f32.mrb[0].mxu0
      %v9141 = vpop.f32.mrb[0].mxu0
      %v9142 = vadd.f32 0.0, %v9141
      %v9143 = vpop.f32.mrb[0].mxu0
      %9144 = vmatprep.mubr.bf16.mxu0 0
      %9145 = vmatmul.mubr.bf16.gmra.mrb[0].mxu0 %v9034
      %v9146 = vpop.f32.mrb[0].mxu0
      %v9147 = vadd.f32 0.0, %v9146
      %v9148 = vpop.f32.mrb[0].mxu0
      %v9149 = vpop.f32.mrb[0].mxu0
      %v9150 = vadd.f32 0.0, %v9149
      %v9151 = vpop.f32.mrb[0].mxu0
      %9152 = vmatprep.mubr.bf16.mxu0 0
      %9153 = vmatmul.mubr.bf16.gmra.mrb[0].mxu0 %v9037
      %v9154 = vpop.f32.mrb[0].mxu0
      %v9155 = vadd.f32 0.0, %v9154
      %v9156 = vpop.f32.mrb[0].mxu0
      %v9157 = vpop.f32.mrb[0].mxu0
      %v9158 = vadd.f32 0.0, %v9157
      %v9159 = vpop.f32.mrb[0].mxu0
      %9160 = vmatprep.mubr.bf16.mxu0 0
      %9161 = vmatmul.mubr.bf16.gmra.mrb[0].mxu0 %v9040
      %v9162 = vpop.f32.mrb[0].mxu0
      %v9163 = vadd.f32 0.0, %v9162
      %v9164 = vpop.f32.mrb[0].mxu0
      %v9165 = vpop.f32.mrb[0].mxu0
      %v9166 = vadd.f32 0.0, %v9165
      %v9167 = vpop.f32.mrb[0].mxu0
      %9168 = vmatprep.mubr.bf16.mxu0 0
      %9169 = vmatmul.mubr.bf16.gmra.mrb[0].mxu0 %v9043
      %v9170 = vpop.f32.mrb[0].mxu0
      %v9171 = vadd.f32 0.0, %v9170
      %v9172 = vpop.f32.mrb[0].mxu0
      %v9173 = vpop.f32.mrb[0].mxu0
      %v9174 = vadd.f32 0.0, %v9173
      %v9175 = vpop.f32.mrb[0].mxu0
      %9176 = vmatprep.mubr.bf16.mxu0 0
      %9177 = vmatmul.mubr.bf16.gmra.mrb[0].mxu0 %v9046
      %v9178 = vpop.f32.mrb[0].mxu0
      %v9179 = vadd.f32 0.0, %v9178
      %v9180 = vpop.f32.mrb[0].mxu0
      %v9181 = vpop.f32.mrb[0].mxu0
      %v9182 = vadd.f32 0.0, %v9181
      %v9183 = vpop.f32.mrb[0].mxu0
      %9184 = vmatprep.mubr.bf16.mxu0 0
      %9185 = vmatmul.mubr.bf16.gmra.mrb[0].mxu0 %v9049
      %v9186 = vpop.f32.mrb[0].mxu0
      %v9187 = vadd.f32 0.0, %v9186
      %v9188 = vpop.f32.mrb[0].mxu0
      %v9189 = vpop.f32.mrb[0].mxu0
      %v9190 = vadd.f32 0.0, %v9189
      %v9191 = vpop.f32.mrb[0].mxu0
      %9192 = vmatprep.mubr.bf16.mxu0 0
      %9193 = vmatmul.mubr.bf16.gmra.mrb[0].mxu0 %v9052
      %v9194 = vpop.f32.mrb[0].mxu0
      %v9195 = vadd.f32 0.0, %v9194
      %v9196 = vpop.f32.mrb[0].mxu0
      %v9197 = vpop.f32.mrb[0].mxu0
      %v9198 = vadd.f32 0.0, %v9197
      %v9199 = vpop.f32.mrb[0].mxu0
      %9200 = vmatprep.mubr.bf16.mxu0 0
      %9201 = vmatmul.mubr.bf16.gmra.mrb[0].mxu0 %v9055
      %v9202 = vpop.f32.mrb[0].mxu0
      %v9203 = vadd.f32 0.0, %v9202
      %v9204 = vpop.f32.mrb[0].mxu0
      %v9205 = vpop.f32.mrb[0].mxu0
      %v9206 = vadd.f32 0.0, %v9205
      %v9207 = vpop.f32.mrb[0].mxu0
      %9208 = vmatprep.mubr.bf16.mxu0 0
      %9209 = vmatmul.mubr.bf16.gmra.mrb[0].mxu0 %v9058
      %v9210 = vpop.f32.mrb[0].mxu0
      %v9211 = vadd.f32 0.0, %v9210
      %v9212 = vpop.f32.mrb[0].mxu0
      %v9213 = vpop.f32.mrb[0].mxu0
      %v9214 = vadd.f32 0.0, %v9213
      %v9215 = vpop.f32.mrb[0].mxu0
      %9216 = vmatprep.mubr.bf16.mxu0 0
      %9217 = vmatmul.mubr.bf16.gmra.mrb[0].mxu0 %v9061
      %v9218 = vpop.f32.mrb[0].mxu0
      %v9219 = vadd.f32 0.0, %v9218
      %v9220 = vpop.f32.mrb[0].mxu0
      %v9221 = vpop.f32.mrb[0].mxu0
      %v9222 = vadd.f32 0.0, %v9221
      %v9223 = vpop.f32.mrb[0].mxu0
      %9224 = vmatprep.mubr.bf16.mxu0 0
      %9225 = vmatmul.mubr.bf16.gmra.mrb[0].mxu0 %v9064
      %v9226 = vpop.f32.mrb[0].mxu0
      %v9227 = vadd.f32 0.0, %v9226
      %v9228 = vpop.f32.mrb[0].mxu0
      %v9229 = vpop.f32.mrb[0].mxu0
      %v9230 = vadd.f32 0.0, %v9229
      %v9231 = vpop.f32.mrb[0].mxu0
      %9232 = vmatprep.mubr.bf16.mxu0 0
      %9233 = vmatmul.mubr.bf16.gmra.mrb[0].mxu0 %v9067
      %v9234 = vpop.f32.mrb[0].mxu0
      %v9235 = vadd.f32 0.0, %v9234
      %v9236 = vpop.f32.mrb[0].mxu0
      %v9237 = vpop.f32.mrb[0].mxu0
      %v9238 = vadd.f32 0.0, %v9237
      %v9239 = vpop.f32.mrb[0].mxu0
      %9240 = vmatprep.mubr.bf16.mxu0 0
      %9241 = vmatmul.mubr.bf16.gmra.mrb[0].mxu0 %v9070
      %v9242 = vpop.f32.mrb[0].mxu0
      %v9243 = vadd.f32 0.0, %v9242
      %v9244 = vpop.f32.mrb[0].mxu0
      %v9245 = vpop.f32.mrb[0].mxu0
      %v9246 = vadd.f32 0.0, %v9245
      %v9247 = vpop.f32.mrb[0].mxu0
      %9248 = vdwg.mxu0
      %v9249 = vadd.f32 %v8759, %v9107
      %v9250 = vadd.f32 %v8760, %v9110
      %v9251 = vadd.f32 %v8761, %v9115
      %v9252 = vadd.f32 %v8762, %v9118
      %v9253 = vadd.f32 %v8763, %v9123
      %v9254 = vadd.f32 %v8764, %v9126
      %v9255 = vadd.f32 %v8765, %v9131
      %v9256 = vadd.f32 %v8766, %v9134
      %v9257 = vadd.f32 %v8767, %v9139
      %v9258 = vadd.f32 %v8768, %v9142
      %v9259 = vadd.f32 %v8769, %v9147
      %v9260 = vadd.f32 %v8770, %v9150
      %v9261 = vadd.f32 %v8771, %v9155
      %v9262 = vadd.f32 %v8772, %v9158
      %v9263 = vadd.f32 %v8773, %v9163
      %v9264 = vadd.f32 %v8774, %v9166
      %v9265 = vadd.f32 %v8775, %v9171
      %v9266 = vadd.f32 %v8776, %v9174
      %v9267 = vadd.f32 %v8777, %v9179
      %v9268 = vadd.f32 %v8778, %v9182
      %v9269 = vadd.f32 %v8779, %v9187
      %v9270 = vadd.f32 %v8780, %v9190
      %v9271 = vadd.f32 %v8781, %v9195
      %v9272 = vadd.f32 %v8782, %v9198
      %v9273 = vadd.f32 %v8783, %v9203
      %v9274 = vadd.f32 %v8784, %v9206
      %v9275 = vadd.f32 %v8785, %v9211
      %v9276 = vadd.f32 %v8786, %v9214
      %v9277 = vadd.f32 %v8787, %v9219
      %v9278 = vadd.f32 %v8788, %v9222
      %v9279 = vadd.f32 %v8789, %v9227
      %v9280 = vadd.f32 %v8790, %v9230
      %v9281 = vadd.f32 %v8791, %v9235
      %v9282 = vadd.f32 %v8792, %v9238
      %v9283 = vadd.f32 %v8793, %v9243
      %v9284 = vadd.f32 %v8794, %v9246
      %v9285 = vld [vmem:[#allocation2 + $0x10] sm:$0x8]
      %s9286 = scalar_lea.vmem %s4, 384
      %v9287 = vld [vmem:[%s9286] sm:$0xf]
      %v9288 = vld [vmem:[%s9286 + $0x4] sm:$0xf]
      %v9289 = vld [vmem:[%s9286 + $0x8] sm:$0xf]
      %v9290 = vld [vmem:[%s9286 + $0xc] sm:$0xf]
      %v9291 = vld [vmem:[%s9286 + $0x10] sm:$0xf]
      %v9292 = vld [vmem:[%s9286 + $0x14] sm:$0xf]
      %v9293 = vld [vmem:[%s9286 + $0x18] sm:$0xf]
      %v9294 = vld [vmem:[%s9286 + $0x1c] sm:$0xf]
      %v9295 = vld [vmem:[%s9286 + $0x20] sm:$0xf]
      %v9296 = vld [vmem:[%s9286 + $0x24] sm:$0xf]
      %v9297 = vld [vmem:[%s9286 + $0x28] sm:$0xf]
      %v9298 = vld [vmem:[%s9286 + $0x2c] sm:$0xf]
      %v9300 = vunpack.c.l.b16 %v9285
      %v9301 = vpack.c.b16 %v8400, %v9300
      %v9302 = vrot.slane %v9301, 3
      %v9303 = vrot.slane %v8437, 3
      %v9304 = vsel %vm4769, %v9302, %v9303
      %v9305 = vrot.slane %v8438, 3
      %v9306 = vsel %vm4769, %v9303, %v9305
      %v9307 = vrot.slane %v8439, 3
      %v9308 = vsel %vm4769, %v9305, %v9307
      %v9309 = vrot.slane %v8440, 3
      %v9310 = vsel %vm4769, %v9307, %v9309
      %v9311 = vrot.slane %v8441, 3
      %v9312 = vsel %vm4769, %v9309, %v9311
      %v9313 = vrot.slane %v8442, 3
      %v9314 = vsel %vm4769, %v9311, %v9313
      %v9315 = vrot.slane %v8443, 3
      %v9316 = vsel %vm4769, %v9313, %v9315
      %v9317 = vrot.slane %v8444, 3
      %v9318 = vsel %vm4769, %v9315, %v9317
      %v9319 = vrot.slane %v8445, 3
      %v9320 = vsel %vm4769, %v9317, %v9319
      %v9321 = vrot.slane %v8446, 3
      %v9322 = vsel %vm4769, %v9319, %v9321
      %v9323 = vrot.slane %v8447, 3
      %v9324 = vsel %vm4769, %v9321, %v9323
      %v9325 = vrot.slane %v8448, 3
      %v9326 = vsel %vm4769, %v9323, %v9325
      %v9327 = vrot.slane %v8449, 3
      %v9328 = vsel %vm4769, %v9325, %v9327
      %v9329 = vrot.slane %v8450, 3
      %v9330 = vsel %vm4769, %v9327, %v9329
      %v9331 = vrot.slane %v8451, 3
      %v9332 = vsel %vm4769, %v9329, %v9331
      %v9333 = vrot.slane %v8452, 3
      %v9334 = vsel %vm4769, %v9331, %v9333
      %v9335 = vrot.slane %v8453, 3
      %v9336 = vsel %vm4769, %v9333, %v9335
      %v9337 = vrot.slane %v8811, 3
      %v9338 = vsel %vm4769, %v9335, %v9337
      %v9351 = vunpack.c.l.b16 %v9287
      %v9352 = vunpack.c.l.b16 %v9288
      %v9353 = vunpack.c.l.b16 %v9289
      %v9354 = vunpack.c.l.b16 %v9290
      %v9355 = vunpack.c.l.b16 %v9291
      %v9356 = vunpack.c.l.b16 %v9292
      %v9357 = vunpack.c.l.b16 %v9293
      %v9358 = vunpack.c.l.b16 %v9294
      %v9359 = vunpack.c.l.b16 %v9295
      %v9360 = vunpack.c.l.b16 %v9296
      %v9361 = vunpack.c.l.b16 %v9297
      %v9362 = vunpack.c.l.b16 %v9298
      %v9363 = vpack.c.b16 %v9352, %v9351
      %v9364 = vpack.c.b16 %v9354, %v9353
      %v9365 = vpack.c.b16 %v9356, %v9355
      %v9366 = vpack.c.b16 %v9358, %v9357
      %v9367 = vpack.c.b16 %v9360, %v9359
      %v9368 = vpack.c.b16 %v9362, %v9361
      %v9376 = vsel %vm394, %v9304, 0
      %v9379 = vsel %vm394, %v9306, 0
      %v9382 = vsel %vm394, %v9308, 0
      %v9385 = vsel %vm394, %v9310, 0
      %v9388 = vsel %vm394, %v9312, 0
      %v9391 = vsel %vm394, %v9314, 0
      %v9394 = vsel %vm394, %v9316, 0
      %v9397 = vsel %vm394, %v9318, 0
      %v9400 = vsel %vm394, %v9320, 0
      %v9403 = vsel %vm394, %v9322, 0
      %v9406 = vsel %vm394, %v9324, 0
      %v9409 = vsel %vm394, %v9326, 0
      %v9412 = vsel %vm394, %v9328, 0
      %v9415 = vsel %vm394, %v9330, 0
      %v9418 = vsel %vm394, %v9332, 0
      %v9421 = vsel %vm394, %v9334, 0
      %v9424 = vsel %vm394, %v9336, 0
      %v9427 = vsel %vm394, %v9338, 0
      %9429 = vmatprep.subr.bf16.mxu0 0
      %9430 = vmatpush1.bf16.msra.mxu0 %v9363
      %9431 = vmatprep.subr.bf16.mxu0 0
      %9432 = vmatpush1.bf16.msra.mxu0 %v9364
      %9433 = vmatprep.subr.bf16.mxu0 0
      %9434 = vmatpush1.bf16.msra.mxu0 %v9365
      %9435 = vmatprep.subr.bf16.mxu0 0
      %9436 = vmatpush1.bf16.msra.mxu0 %v9366
      %9437 = vmatprep.subr.bf16.mxu0 0
      %9438 = vmatpush1.bf16.msra.mxu0 %v9367
      %9439 = vmatprep.subr.bf16.mxu0 0
      %9440 = vmatpush1.bf16.msra.mxu0 %v9368
      %9441 = vmatprep.subr.bf16.mxu0 0
      %9442 = vmatpush1.bf16.msra.mxu0 0
      %9443 = vmatprep.subr.bf16.mxu0 0
      %9444 = vmatpush1.bf16.msra.mxu0 0
      %9445 = vmatprep.subr.bf16.mxu0 0
      %9446 = vmatpush1.bf16.msra.mxu0 0
      %9447 = vmatprep.subr.bf16.mxu0 0
      %9448 = vmatpush1.bf16.msra.mxu0 0
      %9449 = vmatprep.subr.bf16.mxu0 0
      %9450 = vmatpush1.bf16.msra.mxu0 0
      %9451 = vmatprep.subr.bf16.mxu0 0
      %9452 = vmatpush1.bf16.msra.mxu0 0
      %9453 = vmatprep.subr.bf16.mxu0 0
      %9454 = vmatpush1.bf16.msra.mxu0 0
      %9455 = vmatprep.subr.bf16.mxu0 0
      %9456 = vmatpush1.bf16.msra.mxu0 0
      %9457 = vmatprep.subr.bf16.mxu0 0
      %9458 = vmatpush1.bf16.msra.mxu0 0
      %9459 = vmatprep.subr.bf16.mxu0 0
      %9460 = vmatpush1.bf16.msra.mxu0 0
      %9461 = vmatprep.mubr.bf16.mxu0 0
      %9462 = vmatmul.mubr.bf16.gmra.mrb[0].mxu0 %v9376
      %v9463 = vpop.f32.mrb[0].mxu0
      %v9464 = vadd.f32 0.0, %v9463
      %v9465 = vpop.f32.mrb[0].mxu0
      %v9466 = vpop.f32.mrb[0].mxu0
      %v9467 = vadd.f32 0.0, %v9466
      %v9468 = vpop.f32.mrb[0].mxu0
      %9469 = vmatprep.mubr.bf16.mxu0 0
      %9470 = vmatmul.mubr.bf16.gmra.mrb[0].mxu0 %v9379
      %v9471 = vpop.f32.mrb[0].mxu0
      %v9472 = vadd.f32 0.0, %v9471
      %v9473 = vpop.f32.mrb[0].mxu0
      %v9474 = vpop.f32.mrb[0].mxu0
      %v9475 = vadd.f32 0.0, %v9474
      %v9476 = vpop.f32.mrb[0].mxu0
      %9477 = vmatprep.mubr.bf16.mxu0 0
      %9478 = vmatmul.mubr.bf16.gmra.mrb[0].mxu0 %v9382
      %v9479 = vpop.f32.mrb[0].mxu0
      %v9480 = vadd.f32 0.0, %v9479
      %v9481 = vpop.f32.mrb[0].mxu0
      %v9482 = vpop.f32.mrb[0].mxu0
      %v9483 = vadd.f32 0.0, %v9482
      %v9484 = vpop.f32.mrb[0].mxu0
      %9485 = vmatprep.mubr.bf16.mxu0 0
      %9486 = vmatmul.mubr.bf16.gmra.mrb[0].mxu0 %v9385
      %v9487 = vpop.f32.mrb[0].mxu0
      %v9488 = vadd.f32 0.0, %v9487
      %v9489 = vpop.f32.mrb[0].mxu0
      %v9490 = vpop.f32.mrb[0].mxu0
      %v9491 = vadd.f32 0.0, %v9490
      %v9492 = vpop.f32.mrb[0].mxu0
      %9493 = vmatprep.mubr.bf16.mxu0 0
      %9494 = vmatmul.mubr.bf16.gmra.mrb[0].mxu0 %v9388
      %v9495 = vpop.f32.mrb[0].mxu0
      %v9496 = vadd.f32 0.0, %v9495
      %v9497 = vpop.f32.mrb[0].mxu0
      %v9498 = vpop.f32.mrb[0].mxu0
      %v9499 = vadd.f32 0.0, %v9498
      %v9500 = vpop.f32.mrb[0].mxu0
      %9501 = vmatprep.mubr.bf16.mxu0 0
      %9502 = vmatmul.mubr.bf16.gmra.mrb[0].mxu0 %v9391
      %v9503 = vpop.f32.mrb[0].mxu0
      %v9504 = vadd.f32 0.0, %v9503
      %v9505 = vpop.f32.mrb[0].mxu0
      %v9506 = vpop.f32.mrb[0].mxu0
      %v9507 = vadd.f32 0.0, %v9506
      %v9508 = vpop.f32.mrb[0].mxu0
      %9509 = vmatprep.mubr.bf16.mxu0 0
      %9510 = vmatmul.mubr.bf16.gmra.mrb[0].mxu0 %v9394
      %v9511 = vpop.f32.mrb[0].mxu0
      %v9512 = vadd.f32 0.0, %v9511
      %v9513 = vpop.f32.mrb[0].mxu0
      %v9514 = vpop.f32.mrb[0].mxu0
      %v9515 = vadd.f32 0.0, %v9514
      %v9516 = vpop.f32.mrb[0].mxu0
      %9517 = vmatprep.mubr.bf16.mxu0 0
      %9518 = vmatmul.mubr.bf16.gmra.mrb[0].mxu0 %v9397
      %v9519 = vpop.f32.mrb[0].mxu0
      %v9520 = vadd.f32 0.0, %v9519
      %v9521 = vpop.f32.mrb[0].mxu0
      %v9522 = vpop.f32.mrb[0].mxu0
      %v9523 = vadd.f32 0.0, %v9522
      %v9524 = vpop.f32.mrb[0].mxu0
      %9525 = vmatprep.mubr.bf16.mxu0 0
      %9526 = vmatmul.mubr.bf16.gmra.mrb[0].mxu0 %v9400
      %v9527 = vpop.f32.mrb[0].mxu0
      %v9528 = vadd.f32 0.0, %v9527
      %v9529 = vpop.f32.mrb[0].mxu0
      %v9530 = vpop.f32.mrb[0].mxu0
      %v9531 = vadd.f32 0.0, %v9530
      %v9532 = vpop.f32.mrb[0].mxu0
      %9533 = vmatprep.mubr.bf16.mxu0 0
      %9534 = vmatmul.mubr.bf16.gmra.mrb[0].mxu0 %v9403
      %v9535 = vpop.f32.mrb[0].mxu0
      %v9536 = vadd.f32 0.0, %v9535
      %v9537 = vpop.f32.mrb[0].mxu0
      %v9538 = vpop.f32.mrb[0].mxu0
      %v9539 = vadd.f32 0.0, %v9538
      %v9540 = vpop.f32.mrb[0].mxu0
      %9541 = vmatprep.mubr.bf16.mxu0 0
      %9542 = vmatmul.mubr.bf16.gmra.mrb[0].mxu0 %v9406
      %v9543 = vpop.f32.mrb[0].mxu0
      %v9544 = vadd.f32 0.0, %v9543
      %v9545 = vpop.f32.mrb[0].mxu0
      %v9546 = vpop.f32.mrb[0].mxu0
      %v9547 = vadd.f32 0.0, %v9546
      %v9548 = vpop.f32.mrb[0].mxu0
      %9549 = vmatprep.mubr.bf16.mxu0 0
      %9550 = vmatmul.mubr.bf16.gmra.mrb[0].mxu0 %v9409
      %v9551 = vpop.f32.mrb[0].mxu0
      %v9552 = vadd.f32 0.0, %v9551
      %v9553 = vpop.f32.mrb[0].mxu0
      %v9554 = vpop.f32.mrb[0].mxu0
      %v9555 = vadd.f32 0.0, %v9554
      %v9556 = vpop.f32.mrb[0].mxu0
      %9557 = vmatprep.mubr.bf16.mxu0 0
      %9558 = vmatmul.mubr.bf16.gmra.mrb[0].mxu0 %v9412
      %v9559 = vpop.f32.mrb[0].mxu0
      %v9560 = vadd.f32 0.0, %v9559
      %v9561 = vpop.f32.mrb[0].mxu0
      %v9562 = vpop.f32.mrb[0].mxu0
      %v9563 = vadd.f32 0.0, %v9562
      %v9564 = vpop.f32.mrb[0].mxu0
      %9565 = vmatprep.mubr.bf16.mxu0 0
      %9566 = vmatmul.mubr.bf16.gmra.mrb[0].mxu0 %v9415
      %v9567 = vpop.f32.mrb[0].mxu0
      %v9568 = vadd.f32 0.0, %v9567
      %v9569 = vpop.f32.mrb[0].mxu0
      %v9570 = vpop.f32.mrb[0].mxu0
      %v9571 = vadd.f32 0.0, %v9570
      %v9572 = vpop.f32.mrb[0].mxu0
      %9573 = vmatprep.mubr.bf16.mxu0 0
      %9574 = vmatmul.mubr.bf16.gmra.mrb[0].mxu0 %v9418
      %v9575 = vpop.f32.mrb[0].mxu0
      %v9576 = vadd.f32 0.0, %v9575
      %v9577 = vpop.f32.mrb[0].mxu0
      %v9578 = vpop.f32.mrb[0].mxu0
      %v9579 = vadd.f32 0.0, %v9578
      %v9580 = vpop.f32.mrb[0].mxu0
      %9581 = vmatprep.mubr.bf16.mxu0 0
      %9582 = vmatmul.mubr.bf16.gmra.mrb[0].mxu0 %v9421
      %v9583 = vpop.f32.mrb[0].mxu0
      %v9584 = vadd.f32 0.0, %v9583
      %v9585 = vpop.f32.mrb[0].mxu0
      %v9586 = vpop.f32.mrb[0].mxu0
      %v9587 = vadd.f32 0.0, %v9586
      %v9588 = vpop.f32.mrb[0].mxu0
      %9589 = vmatprep.mubr.bf16.mxu0 0
      %9590 = vmatmul.mubr.bf16.gmra.mrb[0].mxu0 %v9424
      %v9591 = vpop.f32.mrb[0].mxu0
      %v9592 = vadd.f32 0.0, %v9591
      %v9593 = vpop.f32.mrb[0].mxu0
      %v9594 = vpop.f32.mrb[0].mxu0
      %v9595 = vadd.f32 0.0, %v9594
      %v9596 = vpop.f32.mrb[0].mxu0
      %9597 = vmatprep.mubr.bf16.mxu0 0
      %9598 = vmatmul.mubr.bf16.gmra.mrb[0].mxu0 %v9427
      %v9599 = vpop.f32.mrb[0].mxu0
      %v9600 = vadd.f32 0.0, %v9599
      %v9601 = vpop.f32.mrb[0].mxu0
      %v9602 = vpop.f32.mrb[0].mxu0
      %v9603 = vadd.f32 0.0, %v9602
      %v9604 = vpop.f32.mrb[0].mxu0
      %9605 = vdwg.mxu0
      %v9606 = vadd.f32 %v9249, %v9464
      %v9607 = vadd.f32 %v9250, %v9467
      %v9608 = vadd.f32 %v9251, %v9472
      %v9609 = vadd.f32 %v9252, %v9475
      %v9610 = vadd.f32 %v9253, %v9480
      %v9611 = vadd.f32 %v9254, %v9483
      %v9612 = vadd.f32 %v9255, %v9488
      %v9613 = vadd.f32 %v9256, %v9491
      %v9614 = vadd.f32 %v9257, %v9496
      %v9615 = vadd.f32 %v9258, %v9499
      %v9616 = vadd.f32 %v9259, %v9504
      %v9617 = vadd.f32 %v9260, %v9507
      %v9618 = vadd.f32 %v9261, %v9512
      %v9619 = vadd.f32 %v9262, %v9515
      %v9620 = vadd.f32 %v9263, %v9520
      %v9621 = vadd.f32 %v9264, %v9523
      %v9622 = vadd.f32 %v9265, %v9528
      %v9623 = vadd.f32 %v9266, %v9531
      %v9624 = vadd.f32 %v9267, %v9536
      %v9625 = vadd.f32 %v9268, %v9539
      %v9626 = vadd.f32 %v9269, %v9544
      %v9627 = vadd.f32 %v9270, %v9547
      %v9628 = vadd.f32 %v9271, %v9552
      %v9629 = vadd.f32 %v9272, %v9555
      %v9630 = vadd.f32 %v9273, %v9560
      %v9631 = vadd.f32 %v9274, %v9563
      %v9632 = vadd.f32 %v9275, %v9568
      %v9633 = vadd.f32 %v9276, %v9571
      %v9634 = vadd.f32 %v9277, %v9576
      %v9635 = vadd.f32 %v9278, %v9579
      %v9636 = vadd.f32 %v9279, %v9584
      %v9637 = vadd.f32 %v9280, %v9587
      %v9638 = vadd.f32 %v9281, %v9592
      %v9639 = vadd.f32 %v9282, %v9595
      %v9640 = vadd.f32 %v9283, %v9600
      %v9641 = vadd.f32 %v9284, %v9603
      %v9642 = vlaneseq
      %v9643 = vshrl.u32 %v9642, 7
      %v9644 = vsub.s32 0, %v9643
      %v9645 = vrot.slane %v229, %v9644
      %v9646 = vadd.f32 %v9606, %v9645
      %v9647 = vadd.f32 %v9607, %v9645
      %v9648 = vadd.f32 %v9608, %v9645
      %v9649 = vadd.f32 %v9609, %v9645
      %v9650 = vadd.f32 %v9610, %v9645
      %v9651 = vadd.f32 %v9611, %v9645
      %v9652 = vadd.f32 %v9612, %v9645
      %v9653 = vadd.f32 %v9613, %v9645
      %v9654 = vadd.f32 %v9614, %v9645
      %v9655 = vadd.f32 %v9615, %v9645
      %v9656 = vadd.f32 %v9616, %v9645
      %v9657 = vadd.f32 %v9617, %v9645
      %v9658 = vadd.f32 %v9618, %v9645
      %v9659 = vadd.f32 %v9619, %v9645
      %v9660 = vadd.f32 %v9620, %v9645
      %v9661 = vadd.f32 %v9621, %v9645
      %v9662 = vadd.f32 %v9622, %v9645
      %v9663 = vadd.f32 %v9623, %v9645
      %v9664 = vadd.f32 %v9624, %v9645
      %v9665 = vadd.f32 %v9625, %v9645
      %v9666 = vadd.f32 %v9626, %v9645
      %v9667 = vadd.f32 %v9627, %v9645
      %v9668 = vadd.f32 %v9628, %v9645
      %v9669 = vadd.f32 %v9629, %v9645
      %v9670 = vadd.f32 %v9630, %v9645
      %v9671 = vadd.f32 %v9631, %v9645
      %v9672 = vadd.f32 %v9632, %v9645
      %v9673 = vadd.f32 %v9633, %v9645
      %v9674 = vadd.f32 %v9634, %v9645
      %v9675 = vadd.f32 %v9635, %v9645
      %v9676 = vadd.f32 %v9636, %v9645
      %v9677 = vadd.f32 %v9637, %v9645
      %v9678 = vadd.f32 %v9638, %v9645
      %v9679 = vadd.f32 %v9639, %v9645
      %v9680 = vadd.f32 %v9640, %v9645
      %v9681 = vadd.f32 %v9641, %v9645
      %v9682 = vmax.f32 %v9646, 0.0
      %v9683 = vmax.f32 %v9647, 0.0
      %v9684 = vmax.f32 %v9648, 0.0
      %v9685 = vmax.f32 %v9649, 0.0
      %v9686 = vmax.f32 %v9650, 0.0
      %v9687 = vmax.f32 %v9651, 0.0
      %v9688 = vmax.f32 %v9652, 0.0
      %v9689 = vmax.f32 %v9653, 0.0
      %v9690 = vmax.f32 %v9654, 0.0
      %v9691 = vmax.f32 %v9655, 0.0
      %v9692 = vmax.f32 %v9656, 0.0
      %v9693 = vmax.f32 %v9657, 0.0
      %v9694 = vmax.f32 %v9658, 0.0
      %v9695 = vmax.f32 %v9659, 0.0
      %v9696 = vmax.f32 %v9660, 0.0
      %v9697 = vmax.f32 %v9661, 0.0
      %v9698 = vmax.f32 %v9662, 0.0
      %v9699 = vmax.f32 %v9663, 0.0
      %v9700 = vmax.f32 %v9664, 0.0
      %v9701 = vmax.f32 %v9665, 0.0
      %v9702 = vmax.f32 %v9666, 0.0
      %v9703 = vmax.f32 %v9667, 0.0
      %v9704 = vmax.f32 %v9668, 0.0
      %v9705 = vmax.f32 %v9669, 0.0
      %v9706 = vmax.f32 %v9670, 0.0
      %v9707 = vmax.f32 %v9671, 0.0
      %v9708 = vmax.f32 %v9672, 0.0
      %v9709 = vmax.f32 %v9673, 0.0
      %v9710 = vmax.f32 %v9674, 0.0
      %v9711 = vmax.f32 %v9675, 0.0
      %v9712 = vmax.f32 %v9676, 0.0
      %v9713 = vmax.f32 %v9677, 0.0
      %v9714 = vmax.f32 %v9678, 0.0
      %v9715 = vmax.f32 %v9679, 0.0
      %v9716 = vmax.f32 %v9680, 0.0
      %v9717 = vmax.f32 %v9681, 0.0
      %v9718 = vlaneseq
      %v9719 = vand.u32 %v9718, 127
      %vm9720 = vcmp.ge.s32.totalorder %v9719, 72
      %v9721 = vsel %vm9720, %v9682, %v5150
      %v9722 = vsel %vm9720, %v9683, %v5151
      %v9723 = vsel %vm9720, %v9684, %v5152
      %v9724 = vsel %vm9720, %v9685, %v5153
      %v9725 = vsel %vm9720, %v9686, %v5154
      %v9726 = vsel %vm9720, %v9687, %v5155
      %v9727 = vsel %vm9720, %v9688, %v5156
      %v9728 = vsel %vm9720, %v9689, %v5157
      %v9729 = vsel %vm9720, %v9690, %v5158
      %v9730 = vsel %vm9720, %v9691, %v5159
      %v9731 = vsel %vm9720, %v9692, %v5160
      %v9732 = vsel %vm9720, %v9693, %v5161
      %v9733 = vsel %vm9720, %v9694, %v5162
      %v9734 = vsel %vm9720, %v9695, %v5163
      %v9735 = vsel %vm9720, %v9696, %v5164
      %v9736 = vsel %vm9720, %v9697, %v5165
      %v9737 = vsel %vm9720, %v9698, %v5166
      %v9738 = vsel %vm9720, %v9699, %v5167
      %v9739 = vsel %vm9720, %v9700, %v5168
      %v9740 = vsel %vm9720, %v9701, %v5169
      %v9741 = vsel %vm9720, %v9702, %v5170
      %v9742 = vsel %vm9720, %v9703, %v5171
      %v9743 = vsel %vm9720, %v9704, %v5172
      %v9744 = vsel %vm9720, %v9705, %v5173
      %v9745 = vsel %vm9720, %v9706, %v5174
      %v9746 = vsel %vm9720, %v9707, %v5175
      %v9747 = vsel %vm9720, %v9708, %v5176
      %v9748 = vsel %vm9720, %v9709, %v5177
      %v9749 = vsel %vm9720, %v9710, %v5178
      %v9750 = vsel %vm9720, %v9711, %v5179
      %v9751 = vsel %vm9720, %v9712, %v5180
      %v9752 = vsel %vm9720, %v9713, %v5181
      %v9753 = vsel %vm9720, %v9714, %v5182
      %v9754 = vsel %vm9720, %v9715, %v5183
      %v9755 = vsel %vm9720, %v9716, %v5184
      %v9756 = vsel %vm9720, %v9717, %v5185
      %9757 = vst.msk [vmem:[%s224] sm:$0xff] %vm394, %v9721
      %9758 = vst.msk [vmem:[%s224 + $0x8] sm:$0xff] %vm394, %v9722
      %9759 = vst.msk [vmem:[%s224 + $0x10] sm:$0xff] %vm394, %v9723
      %9760 = vst.msk [vmem:[%s224 + $0x18] sm:$0xff] %vm394, %v9724
      %9761 = vst.msk [vmem:[%s224 + $0x20] sm:$0xff] %vm394, %v9725
      %9762 = vst.msk [vmem:[%s224 + $0x28] sm:$0xff] %vm394, %v9726
      %9763 = vst.msk [vmem:[%s224 + $0x30] sm:$0xff] %vm394, %v9727
      %9764 = vst.msk [vmem:[%s224 + $0x38] sm:$0xff] %vm394, %v9728
      %9765 = vst.msk [vmem:[%s224 + $0x40] sm:$0xff] %vm394, %v9729
      %9766 = vst.msk [vmem:[%s224 + $0x48] sm:$0xff] %vm394, %v9730
      %9767 = vst.msk [vmem:[%s224 + $0x50] sm:$0xff] %vm394, %v9731
      %9768 = vst.msk [vmem:[%s224 + $0x58] sm:$0xff] %vm394, %v9732
      %9769 = vst.msk [vmem:[%s224 + $0x60] sm:$0xff] %vm394, %v9733
      %9770 = vst.msk [vmem:[%s224 + $0x68] sm:$0xff] %vm394, %v9734
      %9771 = vst.msk [vmem:[%s224 + $0x70] sm:$0xff] %vm394, %v9735
      %9772 = vst.msk [vmem:[%s224 + $0x78] sm:$0xff] %vm394, %v9736
      %9773 = vst.msk [vmem:[%s224 + $0x80] sm:$0xff] %vm394, %v9737
      %9774 = vst.msk [vmem:[%s224 + $0x88] sm:$0xff] %vm394, %v9738
      %9775 = vst.msk [vmem:[%s224 + $0x90] sm:$0xff] %vm394, %v9739
      %9776 = vst.msk [vmem:[%s224 + $0x98] sm:$0xff] %vm394, %v9740
      %9777 = vst.msk [vmem:[%s224 + $0xa0] sm:$0xff] %vm394, %v9741
      %9778 = vst.msk [vmem:[%s224 + $0xa8] sm:$0xff] %vm394, %v9742
      %9779 = vst.msk [vmem:[%s224 + $0xb0] sm:$0xff] %vm394, %v9743
      %9780 = vst.msk [vmem:[%s224 + $0xb8] sm:$0xff] %vm394, %v9744
      %9781 = vst.msk [vmem:[%s224 + $0xc0] sm:$0xff] %vm394, %v9745
      %9782 = vst.msk [vmem:[%s224 + $0xc8] sm:$0xff] %vm394, %v9746
      %9783 = vst.msk [vmem:[%s224 + $0xd0] sm:$0xff] %vm394, %v9747
      %9784 = vst.msk [vmem:[%s224 + $0xd8] sm:$0xff] %vm394, %v9748
      %9785 = vst.msk [vmem:[%s224 + $0xe0] sm:$0xff] %vm394, %v9749
      %9786 = vst.msk [vmem:[%s224 + $0xe8] sm:$0xff] %vm394, %v9750
      %9787 = vst.msk [vmem:[%s224 + $0xf0] sm:$0xff] %vm394, %v9751
      %9788 = vst.msk [vmem:[%s224 + $0xf8] sm:$0xff] %vm394, %v9752
      %9789 = vst.msk [vmem:[%s224 + $0x100] sm:$0xff] %vm394, %v9753
      %9790 = vst.msk [vmem:[%s224 + $0x108] sm:$0xff] %vm394, %v9754
      %9791 = vst.msk [vmem:[%s224 + $0x110] sm:$0xff] %vm394, %v9755
      %9792 = vst.msk [vmem:[%s224 + $0x118] sm:$0xff] %vm394, %v9756
      %p9793 = scmp.lt.s32.totalorder %s16, 1
      %s9794 = scalar_select %p9793, %s16, 1
      %s9795 = smul.addr %s9794, 36
      %s9796 = smul.addr %s9795, 8
      %s9797 = scalar_lea.vmem %s5, %s9796
      // Predicated region
      $region41: #{inception_forward.1} parent=39 // pred_check
        %p9798 = pneg %p144
      $region42: #{inception_forward.1} parent=39 // pred_check_branch
        %9800 = sbr.rel (%p9798) target = $region44
      $region43: #{inception_forward.1} parent=39 // pred_region
        _
      $region44: #{inception_forward.1} parent=39 // pred_fallthru
        _
    $region40: #{inception_forward.1} parent=5 // pred_fallthru
      _
    %p9801 = scmp.le.s32.totalorder 2, %s11
    // Predicated region
    $region45: #{inception_forward.1} parent=5 // pred_check
      %p9802 = pneg %p9801
    $region46: #{inception_forward.1} parent=5 // pred_check_branch
      %9804 = sbr.rel (%p9802) target = $region48
    $region47: #{inception_forward.1} parent=5 // pred_region
      %s9805 = ssub.s32 %s11, 2
      // Predicated region
      $region49: #{inception_forward.1} parent=47 // pred_check
        %p9806 = pneg %p150
      $region50: #{inception_forward.1} parent=47 // pred_check_branch
        %9808 = sbr.rel (%p9806) target = $region52
      $region51: #{inception_forward.1} parent=47 // pred_region
        %p9809 = scmp.lt.s32.totalorder %s17, 1
        %s9810 = scalar_select %p9809, %s17, 1
        %s9811 = smul.addr %s9810, 36
        %s9812 = smul.addr %s9811, 8
        %s9813 = scalar_lea.vmem %s5, %s9812
      $region52: #{inception_forward.1} parent=47 // pred_fallthru
        _
    $region48: #{inception_forward.1} parent=5 // pred_fallthru
      _
  $region6: #{inception_forward.1} parent=0 // loop_footer
    %s15 = sadd.s32 1, %s11
  $region7: #{inception_forward.1} parent=0 // loop_footer_branch
    %10 = sbr.rel target = $region3
  $region8: #{inception_forward.1} parent=0 // loop_exit
    _

</llo_original>
